<compile_context>
chip_gen: v7x
topology: tpu7x:2x2x1
jax: 0.10.0
libtpu: 0.0.40
codegen_flags: <defaults>
</compile_context>

<pallas_src>
import jax
import jax.numpy as jnp
from jax.experimental import pallas as pl
from jax.experimental.pallas import tpu as pltpu


_VMEM = pl.BlockSpec(memory_space=pltpu.MemorySpace.VMEM)


# ------------------------------ fused kernel -------------------------------

def _lenet_kernel(p1_ref, w1_ref, b1_ref, w2_ref, b2_ref,
                  fc1w_ref, fc1b_ref, fc2w_ref, fc2b_ref, fc3w_ref, fc3b_ref,
                  out_ref, pool1_ref):
    n = out_ref.shape[0]                                   # batch (static)

    # ---- conv1: im2col GEMM + bias + sigmoid (rows = (corner, n, h, w)) ----
    h1 = jnp.dot(p1_ref[...], w1_ref[...], preferred_element_type=jnp.float32)
    h1 = jax.nn.sigmoid(h1 + b1_ref[...])                  # (4*n*144, 6)

    # ---- maxpool1: max over the 4 contiguous pool-corner row blocks --------
    r = n * 144
    pooled1 = jnp.maximum(jnp.maximum(h1[0 * r:1 * r], h1[1 * r:2 * r]),
                          jnp.maximum(h1[2 * r:3 * r], h1[3 * r:4 * r]))  # (n*144, 6)

    # Lay the pooled map out spatially in VMEM scratch so conv2's windows
    # below are plain rectangular slices (rows of pooled1 are (n, h, w)).
    for b in range(n):
        for hh in range(12):
            r0 = (b * 12 + hh) * 12
            pool1_ref[b, hh, :, :] = pooled1[r0:r0 + 12, :]

    # ---- conv2 (VMEM resident) + bias + sigmoid ----------------------------
    # Accumulate over the 25 kernel taps: each tap is a (n*64, 6) x (6, 16)
    # bf16 GEMM with f32 accumulation.
    acc2 = jnp.zeros((n * 64, 16), jnp.float32)
    tap = 0
    for kh in range(5):
        for kw in range(5):
            win = pool1_ref[:, kh:kh + 8, kw:kw + 8, :]        # (n, 8, 8, 6)
            lhs = win.reshape(n * 64, 6).astype(jnp.bfloat16)  # rows = (n, oh, ow)
            acc2 = acc2 + jnp.dot(lhs, w2_ref[tap],
                                  preferred_element_type=jnp.float32)
            tap += 1
    h2 = jax.nn.sigmoid(acc2 + b2_ref[...])                 # (n*64, 16)

    # ---- maxpool2 fused with flatten + fc1 ---------------------------------
    # fc1 weight is pre-permuted into 16 blocks of (16, 120), one per pooled
    # spatial position, so flatten+fc1 is an accumulation of block GEMMs.
    v2 = h2.reshape(n, 8, 8, 16)
    acc1 = jnp.zeros((n, 120), jnp.float32)
    blk_idx = 0
    for ph in range(4):
        for pw in range(4):
            blk = jnp.maximum(
                jnp.maximum(v2[:, 2 * ph,     2 * pw, :],
                            v2[:, 2 * ph,     2 * pw + 1, :]),
                jnp.maximum(v2[:, 2 * ph + 1, 2 * pw, :],
                            v2[:, 2 * ph + 1, 2 * pw + 1, :]))        # (n, 16)
            acc1 = acc1 + jnp.dot(blk.astype(jnp.bfloat16), fc1w_ref[blk_idx],
                                  preferred_element_type=jnp.float32)
            blk_idx += 1
    h3 = jax.nn.sigmoid(acc1 + fc1b_ref[...])               # (n, 120)

    # ---- fc2 + sigmoid, fc3 -------------------------------------------------
    h4 = jax.nn.sigmoid(
        jnp.dot(h3.astype(jnp.bfloat16), fc2w_ref[...],
                preferred_element_type=jnp.float32) + fc2b_ref[...])   # (n, 84)
    out = jnp.dot(h4.astype(jnp.bfloat16), fc3w_ref[...],
                  preferred_element_type=jnp.float32) + fc3b_ref[...]  # (n, 10)
    out_ref[...] = out.astype(out_ref.dtype)


# --------------------------- host-side wrappers -----------------------------

def _conv1_patches(x):
    """im2col for conv1 with rows ordered (pool_corner, n, h, w).

    Row ((dh*2+dw)*N + n)*144 + h*12 + w holds the 5x5 patch centred so the
    conv output pixel is (2h+dh, 2w+dw); maxpool1 then reduces over the 4
    contiguous corner blocks inside the kernel.
    """
    n = x.shape[0]
    xs = x[:, 0]                                            # (n, 28, 28), Cin=1
    cols = [xs[:, kh:kh + 24, kw:kw + 24]                   # (n, 24, 24) each
            for kh in range(5) for kw in range(5)]
    p = jnp.stack(cols, axis=-1)                            # (n, 24, 24, 25)
    p = p.reshape(n, 12, 2, 12, 2, 25)                      # (n, h, dh, w, dw, k)
    p = p.transpose(2, 4, 0, 1, 3, 5)                       # (dh, dw, n, h, w, k)
    return p.reshape(4 * n * 144, 25)


def lenet_forward(kparams, x):
    """Full LeNet forward: one fused Pallas kernel, weights already packed."""
    n = x.shape[0]
    patches1 = _conv1_patches(x).astype(jnp.bfloat16)       # (4*n*144, 25)
    # NOTE: at batch 2 everything (<1 MFLOP, a few hundred KB) fits in one
    # grid step; for large batches add a grid over the row axis with
    # dimension_semantics=("parallel",) so v7x's 2 TensorCores share the work
    # and VMEM stays bounded.
    return pl.pallas_call(
        _lenet_kernel,
        out_shape=jax.ShapeDtypeStruct((n, 10), jnp.float32),
        in_specs=[_VMEM] * (1 + len(kparams)),
        out_specs=_VMEM,
        scratch_shapes=[pltpu.VMEM((n, 12, 12, 6), jnp.float32)],
    )(patches1, *kparams)


# ----------------------------- parameter prep -------------------------------

def lenet_init(key):
    """PyTorch-style uniform(+-1/sqrt(fan_in)) init, torch weight layouts."""
    def uniform(key, shape, fan_in):
        bound = 1.0 / jnp.sqrt(jnp.float32(fan_in))
        return jax.random.uniform(key, shape, jnp.float32, -bound, bound)

    ks = jax.random.split(key, 10)
    return {
        "conv1_w": uniform(ks[0], (6, 1, 5, 5), 1 * 5 * 5),
        "conv1_b": uniform(ks[1], (6,), 1 * 5 * 5),
        "conv2_w": uniform(ks[2], (16, 6, 5, 5), 6 * 5 * 5),
        "conv2_b": uniform(ks[3], (16,), 6 * 5 * 5),
        "fc1_w": uniform(ks[4], (120, 256), 256),
        "fc1_b": uniform(ks[5], (120,), 256),
        "fc2_w": uniform(ks[6], (84, 120), 120),
        "fc2_b": uniform(ks[7], (84,), 120),
        "fc3_w": uniform(ks[8], (10, 84), 84),
        "fc3_b": uniform(ks[9], (10,), 84),
    }


def prepare_kernel_params(p):
    """One-time packing: transposes, block layouts and bf16 casts hoisted out
    of the forward pass (done once at init)."""
    f32, bf16 = jnp.float32, jnp.bfloat16
    w1 = p["conv1_w"].reshape(6, 25).T.astype(bf16)                    # (25, 6)
    b1 = p["conv1_b"].reshape(1, 6).astype(f32)
    # (kh, kw, cin, cout) -> 25 taps of (6, 16)
    w2 = p["conv2_w"].transpose(2, 3, 1, 0).reshape(25, 6, 16).astype(bf16)
    b2 = p["conv2_b"].reshape(1, 16).astype(f32)
    # fc1 acts on the torch flatten order c*16 + h*4 + w; re-block it per
    # spatial position (h*4+w) so pool2+flatten+fc1 fuse in the kernel.
    fc1w = (p["fc1_w"].reshape(120, 16, 4, 4)     # (o, c, h, w)
            .transpose(2, 3, 1, 0)                # (h, w, c, o)
            .reshape(16, 16, 120).astype(bf16))
    fc1b = p["fc1_b"].reshape(1, 120).astype(f32)
    fc2w = p["fc2_w"].T.astype(bf16)              # (120, 84)
    fc2b = p["fc2_b"].reshape(1, 84).astype(f32)
    fc3w = p["fc3_w"].T.astype(bf16)              # (84, 10)
    fc3b = p["fc3_b"].reshape(1, 10).astype(f32)
    return (w1, b1, w2, b2, fc1w, fc1b, fc2w, fc2b, fc3w, fc3b)


# --------------------------- pure-JAX reference -----------------------------

def lenet_reference(params, x):
    dn = jax.lax.conv_dimension_numbers(x.shape, params["conv1_w"].shape,
                                        ("NCHW", "OIHW", "NCHW"))

    def conv(x, w, b):
        y = jax.lax.conv_general_dilated(x, w, (1, 1), "VALID",
                                         dimension_numbers=dn)
        return jax.nn.sigmoid(y + b[None, :, None, None])

    def pool(x):
        return jax.lax.reduce_window(x, -jnp.inf, jax.lax.max,
                                     (1, 1, 2, 2), (1, 1, 2, 2), "VALID")

    h = pool(conv(x, params["conv1_w"], params["conv1_b"]))
    h = pool(conv(h, params["conv2_w"], params["conv2_b"]))
    h = h.reshape(h.shape[0], -1)
    h = jax.nn.sigmoid(h @ params["fc1_w"].T + params["fc1_b"])
    h = jax.nn.sigmoid(h @ params["fc2_w"].T + params["fc2_b"])
    return h @ params["fc3_w"].T + params["fc3_b"]


# ----------------------------------- main ------------------------------------

if __name__ == "__main__":
    key = jax.random.PRNGKey(0)
    pkey, xkey = jax.random.split(key)
    params = lenet_init(pkey)
    kparams = prepare_kernel_params(params)      # packed once, reused per step

    # LeNet's 4*4*16 flatten implies 28x28 inputs; batch kept small.
    x = jax.random.normal(xkey, (2, 1, 28, 28), jnp.float32)

    fwd = jax.jit(lenet_forward)
    out = jax.block_until_ready(fwd(kparams, x))
    ref = jax.block_until_ready(lenet_reference(params, x))

    assert out.shape == (2, 10), out.shape
    max_diff = float(jnp.max(jnp.abs(out - ref)))
    # bf16 MXU operands with f32 accumulation -> small deviation vs f32 ref.
    assert max_diff < 2e-2, f"max abs diff = {max_diff}"
    print("KERNEL_OK")
</pallas_src>

<mosaic_0001>
module attributes {stable_mosaic.version = 11 : i64} {
  func.func @_lenet_kernel(%arg0: memref<1152x25xbf16, #tpu.memory_space<vmem>>, %arg1: memref<25x6xbf16, #tpu.memory_space<vmem>>, %arg2: memref<1x6xf32, #tpu.memory_space<vmem>>, %arg3: memref<25x6x16xbf16, #tpu.memory_space<vmem>>, %arg4: memref<1x16xf32, #tpu.memory_space<vmem>>, %arg5: memref<16x16x120xbf16, #tpu.memory_space<vmem>>, %arg6: memref<1x120xf32, #tpu.memory_space<vmem>>, %arg7: memref<120x84xbf16, #tpu.memory_space<vmem>>, %arg8: memref<1x84xf32, #tpu.memory_space<vmem>>, %arg9: memref<84x10xbf16, #tpu.memory_space<vmem>>, %arg10: memref<1x10xf32, #tpu.memory_space<vmem>>, %arg11: memref<2x10xf32, #tpu.memory_space<vmem>>, %arg12: memref<2x12x12x6xf32, #tpu.memory_space<vmem>>) attributes {dimension_semantics = [], scalar_prefetch = 0 : i64, scratch_operands = 1 : i64, tpu.core_type = #tpu.core_type<tc>} {
    %c0 = arith.constant 0 : index
    %c0_0 = arith.constant 0 : index
    %0 = vector.load %arg0[%c0, %c0_0] : memref<1152x25xbf16, #tpu.memory_space<vmem>>, vector<1152x25xbf16>
    %c0_1 = arith.constant 0 : index
    %c0_2 = arith.constant 0 : index
    %1 = vector.load %arg1[%c0_1, %c0_2] : memref<25x6xbf16, #tpu.memory_space<vmem>>, vector<25x6xbf16>
    %cst = arith.constant dense<0.000000e+00> : vector<1152x6xf32>
    %2 = tpu.matmul %0, %1, %cst {dimension_numbers = #tpu.dot_dimension_numbers<[1], [0], [0], [1], [0, 0, 1, 1], [], []>} : vector<1152x25xbf16>, vector<25x6xbf16>, vector<1152x6xf32> -> vector<1152x6xf32>
    %c0_3 = arith.constant 0 : index
    %c0_4 = arith.constant 0 : index
    %3 = vector.load %arg2[%c0_3, %c0_4] : memref<1x6xf32, #tpu.memory_space<vmem>>, vector<1x6xf32>
    %4 = vector.broadcast %3 : vector<1x6xf32> to vector<1152x6xf32>
    %5 = arith.addf %2, %4 : vector<1152x6xf32>
    %6 = arith.negf %5 : vector<1152x6xf32>
    %7 = math.exp %6 : vector<1152x6xf32>
    %cst_5 = arith.constant 1.000000e+00 : f32
    %8 = vector.broadcast %cst_5 : f32 to vector<1152x6xf32>
    %9 = arith.addf %8, %7 : vector<1152x6xf32>
    %10 = arith.divf %8, %9 : vector<1152x6xf32>
    %11 = vector.extract_strided_slice %10 {offsets = [0, 0], sizes = [288, 6], strides = [1, 1]} : vector<1152x6xf32> to vector<288x6xf32>
    %12 = vector.extract_strided_slice %10 {offsets = [288, 0], sizes = [288, 6], strides = [1, 1]} : vector<1152x6xf32> to vector<288x6xf32>
    %13 = arith.maximumf %11, %12 : vector<288x6xf32>
    %14 = vector.extract_strided_slice %10 {offsets = [576, 0], sizes = [288, 6], strides = [1, 1]} : vector<1152x6xf32> to vector<288x6xf32>
    %15 = vector.extract_strided_slice %10 {offsets = [864, 0], sizes = [288, 6], strides = [1, 1]} : vector<1152x6xf32> to vector<288x6xf32>
    %16 = arith.maximumf %14, %15 : vector<288x6xf32>
    %17 = arith.maximumf %13, %16 : vector<288x6xf32>
    %18 = vector.extract_strided_slice %17 {offsets = [0, 0], sizes = [12, 6], strides = [1, 1]} : vector<288x6xf32> to vector<12x6xf32>
    %c0_6 = arith.constant 0 : index
    %c0_7 = arith.constant 0 : index
    %c0_8 = arith.constant 0 : index
    %c0_9 = arith.constant 0 : index
    %19 = vector.load %arg12[%c0_6, %c0_7, %c0_8, %c0_9] : memref<2x12x12x6xf32, #tpu.memory_space<vmem>>, vector<1x1x12x6xf32>
    %20 = vector.shape_cast %19 : vector<1x1x12x6xf32> to vector<12x6xf32>
    %21 = vector.shape_cast %18 : vector<12x6xf32> to vector<1x1x12x6xf32>
    tpu.vector_store %arg12[%c0_6, %c0_7, %c0_8, %c0_9], %21 {strides = array<i32>} : memref<2x12x12x6xf32, #tpu.memory_space<vmem>>, vector<1x1x12x6xf32>,
    %22 = vector.extract_strided_slice %17 {offsets = [12, 0], sizes = [12, 6], strides = [1, 1]} : vector<288x6xf32> to vector<12x6xf32>
    %c0_10 = arith.constant 0 : index
    %c1 = arith.constant 1 : index
    %c0_11 = arith.constant 0 : index
    %c0_12 = arith.constant 0 : index
    %23 = vector.load %arg12[%c0_10, %c1, %c0_11, %c0_12] : memref<2x12x12x6xf32, #tpu.memory_space<vmem>>, vector<1x1x12x6xf32>
    %24 = vector.shape_cast %23 : vector<1x1x12x6xf32> to vector<12x6xf32>
    %25 = vector.shape_cast %22 : vector<12x6xf32> to vector<1x1x12x6xf32>
    tpu.vector_store %arg12[%c0_10, %c1, %c0_11, %c0_12], %25 {strides = array<i32>} : memref<2x12x12x6xf32, #tpu.memory_space<vmem>>, vector<1x1x12x6xf32>,
    %26 = vector.extract_strided_slice %17 {offsets = [24, 0], sizes = [12, 6], strides = [1, 1]} : vector<288x6xf32> to vector<12x6xf32>
    %c0_13 = arith.constant 0 : index
    %c2 = arith.constant 2 : index
    %c0_14 = arith.constant 0 : index
    %c0_15 = arith.constant 0 : index
    %27 = vector.load %arg12[%c0_13, %c2, %c0_14, %c0_15] : memref<2x12x12x6xf32, #tpu.memory_space<vmem>>, vector<1x1x12x6xf32>
    %28 = vector.shape_cast %27 : vector<1x1x12x6xf32> to vector<12x6xf32>
    %29 = vector.shape_cast %26 : vector<12x6xf32> to vector<1x1x12x6xf32>
    tpu.vector_store %arg12[%c0_13, %c2, %c0_14, %c0_15], %29 {strides = array<i32>} : memref<2x12x12x6xf32, #tpu.memory_space<vmem>>, vector<1x1x12x6xf32>,
    %30 = vector.extract_strided_slice %17 {offsets = [36, 0], sizes = [12, 6], strides = [1, 1]} : vector<288x6xf32> to vector<12x6xf32>
    %c0_16 = arith.constant 0 : index
    %c3 = arith.constant 3 : index
    %c0_17 = arith.constant 0 : index
    %c0_18 = arith.constant 0 : index
    %31 = vector.load %arg12[%c0_16, %c3, %c0_17, %c0_18] : memref<2x12x12x6xf32, #tpu.memory_space<vmem>>, vector<1x1x12x6xf32>
    %32 = vector.shape_cast %31 : vector<1x1x12x6xf32> to vector<12x6xf32>
    %33 = vector.shape_cast %30 : vector<12x6xf32> to vector<1x1x12x6xf32>
    tpu.vector_store %arg12[%c0_16, %c3, %c0_17, %c0_18], %33 {strides = array<i32>} : memref<2x12x12x6xf32, #tpu.memory_space<vmem>>, vector<1x1x12x6xf32>,
    %34 = vector.extract_strided_slice %17 {offsets = [48, 0], sizes = [12, 6], strides = [1, 1]} : vector<288x6xf32> to vector<12x6xf32>
    %c0_19 = arith.constant 0 : index
    %c4 = arith.constant 4 : index
    %c0_20 = arith.constant 0 : index
    %c0_21 = arith.constant 0 : index
    %35 = vector.load %arg12[%c0_19, %c4, %c0_20, %c0_21] : memref<2x12x12x6xf32, #tpu.memory_space<vmem>>, vector<1x1x12x6xf32>
    %36 = vector.shape_cast %35 : vector<1x1x12x6xf32> to vector<12x6xf32>
    %37 = vector.shape_cast %34 : vector<12x6xf32> to vector<1x1x12x6xf32>
    tpu.vector_store %arg12[%c0_19, %c4, %c0_20, %c0_21], %37 {strides = array<i32>} : memref<2x12x12x6xf32, #tpu.memory_space<vmem>>, vector<1x1x12x6xf32>,
    %38 = vector.extract_strided_slice %17 {offsets = [60, 0], sizes = [12, 6], strides = [1, 1]} : vector<288x6xf32> to vector<12x6xf32>
    %c0_22 = arith.constant 0 : index
    %c5 = arith.constant 5 : index
    %c0_23 = arith.constant 0 : index
    %c0_24 = arith.constant 0 : index
    %39 = vector.load %arg12[%c0_22, %c5, %c0_23, %c0_24] : memref<2x12x12x6xf32, #tpu.memory_space<vmem>>, vector<1x1x12x6xf32>
    %40 = vector.shape_cast %39 : vector<1x1x12x6xf32> to vector<12x6xf32>
    %41 = vector.shape_cast %38 : vector<12x6xf32> to vector<1x1x12x6xf32>
    tpu.vector_store %arg12[%c0_22, %c5, %c0_23, %c0_24], %41 {strides = array<i32>} : memref<2x12x12x6xf32, #tpu.memory_space<vmem>>, vector<1x1x12x6xf32>,
    %42 = vector.extract_strided_slice %17 {offsets = [72, 0], sizes = [12, 6], strides = [1, 1]} : vector<288x6xf32> to vector<12x6xf32>
    %c0_25 = arith.constant 0 : index
    %c6 = arith.constant 6 : index
    %c0_26 = arith.constant 0 : index
    %c0_27 = arith.constant 0 : index
    %43 = vector.load %arg12[%c0_25, %c6, %c0_26, %c0_27] : memref<2x12x12x6xf32, #tpu.memory_space<vmem>>, vector<1x1x12x6xf32>
    %44 = vector.shape_cast %43 : vector<1x1x12x6xf32> to vector<12x6xf32>
    %45 = vector.shape_cast %42 : vector<12x6xf32> to vector<1x1x12x6xf32>
    tpu.vector_store %arg12[%c0_25, %c6, %c0_26, %c0_27], %45 {strides = array<i32>} : memref<2x12x12x6xf32, #tpu.memory_space<vmem>>, vector<1x1x12x6xf32>,
    %46 = vector.extract_strided_slice %17 {offsets = [84, 0], sizes = [12, 6], strides = [1, 1]} : vector<288x6xf32> to vector<12x6xf32>
    %c0_28 = arith.constant 0 : index
    %c7 = arith.constant 7 : index
    %c0_29 = arith.constant 0 : index
    %c0_30 = arith.constant 0 : index
    %47 = vector.load %arg12[%c0_28, %c7, %c0_29, %c0_30] : memref<2x12x12x6xf32, #tpu.memory_space<vmem>>, vector<1x1x12x6xf32>
    %48 = vector.shape_cast %47 : vector<1x1x12x6xf32> to vector<12x6xf32>
    %49 = vector.shape_cast %46 : vector<12x6xf32> to vector<1x1x12x6xf32>
    tpu.vector_store %arg12[%c0_28, %c7, %c0_29, %c0_30], %49 {strides = array<i32>} : memref<2x12x12x6xf32, #tpu.memory_space<vmem>>, vector<1x1x12x6xf32>,
    %50 = vector.extract_strided_slice %17 {offsets = [96, 0], sizes = [12, 6], strides = [1, 1]} : vector<288x6xf32> to vector<12x6xf32>
    %c0_31 = arith.constant 0 : index
    %c8 = arith.constant 8 : index
    %c0_32 = arith.constant 0 : index
    %c0_33 = arith.constant 0 : index
    %51 = vector.load %arg12[%c0_31, %c8, %c0_32, %c0_33] : memref<2x12x12x6xf32, #tpu.memory_space<vmem>>, vector<1x1x12x6xf32>
    %52 = vector.shape_cast %51 : vector<1x1x12x6xf32> to vector<12x6xf32>
    %53 = vector.shape_cast %50 : vector<12x6xf32> to vector<1x1x12x6xf32>
    tpu.vector_store %arg12[%c0_31, %c8, %c0_32, %c0_33], %53 {strides = array<i32>} : memref<2x12x12x6xf32, #tpu.memory_space<vmem>>, vector<1x1x12x6xf32>,
    %54 = vector.extract_strided_slice %17 {offsets = [108, 0], sizes = [12, 6], strides = [1, 1]} : vector<288x6xf32> to vector<12x6xf32>
    %c0_34 = arith.constant 0 : index
    %c9 = arith.constant 9 : index
    %c0_35 = arith.constant 0 : index
    %c0_36 = arith.constant 0 : index
    %55 = vector.load %arg12[%c0_34, %c9, %c0_35, %c0_36] : memref<2x12x12x6xf32, #tpu.memory_space<vmem>>, vector<1x1x12x6xf32>
    %56 = vector.shape_cast %55 : vector<1x1x12x6xf32> to vector<12x6xf32>
    %57 = vector.shape_cast %54 : vector<12x6xf32> to vector<1x1x12x6xf32>
    tpu.vector_store %arg12[%c0_34, %c9, %c0_35, %c0_36], %57 {strides = array<i32>} : memref<2x12x12x6xf32, #tpu.memory_space<vmem>>, vector<1x1x12x6xf32>,
    %58 = vector.extract_strided_slice %17 {offsets = [120, 0], sizes = [12, 6], strides = [1, 1]} : vector<288x6xf32> to vector<12x6xf32>
    %c0_37 = arith.constant 0 : index
    %c10 = arith.constant 10 : index
    %c0_38 = arith.constant 0 : index
    %c0_39 = arith.constant 0 : index
    %59 = vector.load %arg12[%c0_37, %c10, %c0_38, %c0_39] : memref<2x12x12x6xf32, #tpu.memory_space<vmem>>, vector<1x1x12x6xf32>
    %60 = vector.shape_cast %59 : vector<1x1x12x6xf32> to vector<12x6xf32>
    %61 = vector.shape_cast %58 : vector<12x6xf32> to vector<1x1x12x6xf32>
    tpu.vector_store %arg12[%c0_37, %c10, %c0_38, %c0_39], %61 {strides = array<i32>} : memref<2x12x12x6xf32, #tpu.memory_space<vmem>>, vector<1x1x12x6xf32>,
    %62 = vector.extract_strided_slice %17 {offsets = [132, 0], sizes = [12, 6], strides = [1, 1]} : vector<288x6xf32> to vector<12x6xf32>
    %c0_40 = arith.constant 0 : index
    %c11 = arith.constant 11 : index
    %c0_41 = arith.constant 0 : index
    %c0_42 = arith.constant 0 : index
    %63 = vector.load %arg12[%c0_40, %c11, %c0_41, %c0_42] : memref<2x12x12x6xf32, #tpu.memory_space<vmem>>, vector<1x1x12x6xf32>
    %64 = vector.shape_cast %63 : vector<1x1x12x6xf32> to vector<12x6xf32>
    %65 = vector.shape_cast %62 : vector<12x6xf32> to vector<1x1x12x6xf32>
    tpu.vector_store %arg12[%c0_40, %c11, %c0_41, %c0_42], %65 {strides = array<i32>} : memref<2x12x12x6xf32, #tpu.memory_space<vmem>>, vector<1x1x12x6xf32>,
    %66 = vector.extract_strided_slice %17 {offsets = [144, 0], sizes = [12, 6], strides = [1, 1]} : vector<288x6xf32> to vector<12x6xf32>
    %c1_43 = arith.constant 1 : index
    %c0_44 = arith.constant 0 : index
    %c0_45 = arith.constant 0 : index
    %c0_46 = arith.constant 0 : index
    %67 = vector.load %arg12[%c1_43, %c0_44, %c0_45, %c0_46] : memref<2x12x12x6xf32, #tpu.memory_space<vmem>>, vector<1x1x12x6xf32>
    %68 = vector.shape_cast %67 : vector<1x1x12x6xf32> to vector<12x6xf32>
    %69 = vector.shape_cast %66 : vector<12x6xf32> to vector<1x1x12x6xf32>
    tpu.vector_store %arg12[%c1_43, %c0_44, %c0_45, %c0_46], %69 {strides = array<i32>} : memref<2x12x12x6xf32, #tpu.memory_space<vmem>>, vector<1x1x12x6xf32>,
    %70 = vector.extract_strided_slice %17 {offsets = [156, 0], sizes = [12, 6], strides = [1, 1]} : vector<288x6xf32> to vector<12x6xf32>
    %c1_47 = arith.constant 1 : index
    %c1_48 = arith.constant 1 : index
    %c0_49 = arith.constant 0 : index
    %c0_50 = arith.constant 0 : index
    %71 = vector.load %arg12[%c1_47, %c1_48, %c0_49, %c0_50] : memref<2x12x12x6xf32, #tpu.memory_space<vmem>>, vector<1x1x12x6xf32>
    %72 = vector.shape_cast %71 : vector<1x1x12x6xf32> to vector<12x6xf32>
    %73 = vector.shape_cast %70 : vector<12x6xf32> to vector<1x1x12x6xf32>
    tpu.vector_store %arg12[%c1_47, %c1_48, %c0_49, %c0_50], %73 {strides = array<i32>} : memref<2x12x12x6xf32, #tpu.memory_space<vmem>>, vector<1x1x12x6xf32>,
    %74 = vector.extract_strided_slice %17 {offsets = [168, 0], sizes = [12, 6], strides = [1, 1]} : vector<288x6xf32> to vector<12x6xf32>
    %c1_51 = arith.constant 1 : index
    %c2_52 = arith.constant 2 : index
    %c0_53 = arith.constant 0 : index
    %c0_54 = arith.constant 0 : index
    %75 = vector.load %arg12[%c1_51, %c2_52, %c0_53, %c0_54] : memref<2x12x12x6xf32, #tpu.memory_space<vmem>>, vector<1x1x12x6xf32>
    %76 = vector.shape_cast %75 : vector<1x1x12x6xf32> to vector<12x6xf32>
    %77 = vector.shape_cast %74 : vector<12x6xf32> to vector<1x1x12x6xf32>
    tpu.vector_store %arg12[%c1_51, %c2_52, %c0_53, %c0_54], %77 {strides = array<i32>} : memref<2x12x12x6xf32, #tpu.memory_space<vmem>>, vector<1x1x12x6xf32>,
    %78 = vector.extract_strided_slice %17 {offsets = [180, 0], sizes = [12, 6], strides = [1, 1]} : vector<288x6xf32> to vector<12x6xf32>
    %c1_55 = arith.constant 1 : index
    %c3_56 = arith.constant 3 : index
    %c0_57 = arith.constant 0 : index
    %c0_58 = arith.constant 0 : index
    %79 = vector.load %arg12[%c1_55, %c3_56, %c0_57, %c0_58] : memref<2x12x12x6xf32, #tpu.memory_space<vmem>>, vector<1x1x12x6xf32>
    %80 = vector.shape_cast %79 : vector<1x1x12x6xf32> to vector<12x6xf32>
    %81 = vector.shape_cast %78 : vector<12x6xf32> to vector<1x1x12x6xf32>
    tpu.vector_store %arg12[%c1_55, %c3_56, %c0_57, %c0_58], %81 {strides = array<i32>} : memref<2x12x12x6xf32, #tpu.memory_space<vmem>>, vector<1x1x12x6xf32>,
    %82 = vector.extract_strided_slice %17 {offsets = [192, 0], sizes = [12, 6], strides = [1, 1]} : vector<288x6xf32> to vector<12x6xf32>
    %c1_59 = arith.constant 1 : index
    %c4_60 = arith.constant 4 : index
    %c0_61 = arith.constant 0 : index
    %c0_62 = arith.constant 0 : index
    %83 = vector.load %arg12[%c1_59, %c4_60, %c0_61, %c0_62] : memref<2x12x12x6xf32, #tpu.memory_space<vmem>>, vector<1x1x12x6xf32>
    %84 = vector.shape_cast %83 : vector<1x1x12x6xf32> to vector<12x6xf32>
    %85 = vector.shape_cast %82 : vector<12x6xf32> to vector<1x1x12x6xf32>
    tpu.vector_store %arg12[%c1_59, %c4_60, %c0_61, %c0_62], %85 {strides = array<i32>} : memref<2x12x12x6xf32, #tpu.memory_space<vmem>>, vector<1x1x12x6xf32>,
    %86 = vector.extract_strided_slice %17 {offsets = [204, 0], sizes = [12, 6], strides = [1, 1]} : vector<288x6xf32> to vector<12x6xf32>
    %c1_63 = arith.constant 1 : index
    %c5_64 = arith.constant 5 : index
    %c0_65 = arith.constant 0 : index
    %c0_66 = arith.constant 0 : index
    %87 = vector.load %arg12[%c1_63, %c5_64, %c0_65, %c0_66] : memref<2x12x12x6xf32, #tpu.memory_space<vmem>>, vector<1x1x12x6xf32>
    %88 = vector.shape_cast %87 : vector<1x1x12x6xf32> to vector<12x6xf32>
    %89 = vector.shape_cast %86 : vector<12x6xf32> to vector<1x1x12x6xf32>
    tpu.vector_store %arg12[%c1_63, %c5_64, %c0_65, %c0_66], %89 {strides = array<i32>} : memref<2x12x12x6xf32, #tpu.memory_space<vmem>>, vector<1x1x12x6xf32>,
    %90 = vector.extract_strided_slice %17 {offsets = [216, 0], sizes = [12, 6], strides = [1, 1]} : vector<288x6xf32> to vector<12x6xf32>
    %c1_67 = arith.constant 1 : index
    %c6_68 = arith.constant 6 : index
    %c0_69 = arith.constant 0 : index
    %c0_70 = arith.constant 0 : index
    %91 = vector.load %arg12[%c1_67, %c6_68, %c0_69, %c0_70] : memref<2x12x12x6xf32, #tpu.memory_space<vmem>>, vector<1x1x12x6xf32>
    %92 = vector.shape_cast %91 : vector<1x1x12x6xf32> to vector<12x6xf32>
    %93 = vector.shape_cast %90 : vector<12x6xf32> to vector<1x1x12x6xf32>
    tpu.vector_store %arg12[%c1_67, %c6_68, %c0_69, %c0_70], %93 {strides = array<i32>} : memref<2x12x12x6xf32, #tpu.memory_space<vmem>>, vector<1x1x12x6xf32>,
    %94 = vector.extract_strided_slice %17 {offsets = [228, 0], sizes = [12, 6], strides = [1, 1]} : vector<288x6xf32> to vector<12x6xf32>
    %c1_71 = arith.constant 1 : index
    %c7_72 = arith.constant 7 : index
    %c0_73 = arith.constant 0 : index
    %c0_74 = arith.constant 0 : index
    %95 = vector.load %arg12[%c1_71, %c7_72, %c0_73, %c0_74] : memref<2x12x12x6xf32, #tpu.memory_space<vmem>>, vector<1x1x12x6xf32>
    %96 = vector.shape_cast %95 : vector<1x1x12x6xf32> to vector<12x6xf32>
    %97 = vector.shape_cast %94 : vector<12x6xf32> to vector<1x1x12x6xf32>
    tpu.vector_store %arg12[%c1_71, %c7_72, %c0_73, %c0_74], %97 {strides = array<i32>} : memref<2x12x12x6xf32, #tpu.memory_space<vmem>>, vector<1x1x12x6xf32>,
    %98 = vector.extract_strided_slice %17 {offsets = [240, 0], sizes = [12, 6], strides = [1, 1]} : vector<288x6xf32> to vector<12x6xf32>
    %c1_75 = arith.constant 1 : index
    %c8_76 = arith.constant 8 : index
    %c0_77 = arith.constant 0 : index
    %c0_78 = arith.constant 0 : index
    %99 = vector.load %arg12[%c1_75, %c8_76, %c0_77, %c0_78] : memref<2x12x12x6xf32, #tpu.memory_space<vmem>>, vector<1x1x12x6xf32>
    %100 = vector.shape_cast %99 : vector<1x1x12x6xf32> to vector<12x6xf32>
    %101 = vector.shape_cast %98 : vector<12x6xf32> to vector<1x1x12x6xf32>
    tpu.vector_store %arg12[%c1_75, %c8_76, %c0_77, %c0_78], %101 {strides = array<i32>} : memref<2x12x12x6xf32, #tpu.memory_space<vmem>>, vector<1x1x12x6xf32>,
    %102 = vector.extract_strided_slice %17 {offsets = [252, 0], sizes = [12, 6], strides = [1, 1]} : vector<288x6xf32> to vector<12x6xf32>
    %c1_79 = arith.constant 1 : index
    %c9_80 = arith.constant 9 : index
    %c0_81 = arith.constant 0 : index
    %c0_82 = arith.constant 0 : index
    %103 = vector.load %arg12[%c1_79, %c9_80, %c0_81, %c0_82] : memref<2x12x12x6xf32, #tpu.memory_space<vmem>>, vector<1x1x12x6xf32>
    %104 = vector.shape_cast %103 : vector<1x1x12x6xf32> to vector<12x6xf32>
    %105 = vector.shape_cast %102 : vector<12x6xf32> to vector<1x1x12x6xf32>
    tpu.vector_store %arg12[%c1_79, %c9_80, %c0_81, %c0_82], %105 {strides = array<i32>} : memref<2x12x12x6xf32, #tpu.memory_space<vmem>>, vector<1x1x12x6xf32>,
    %106 = vector.extract_strided_slice %17 {offsets = [264, 0], sizes = [12, 6], strides = [1, 1]} : vector<288x6xf32> to vector<12x6xf32>
    %c1_83 = arith.constant 1 : index
    %c10_84 = arith.constant 10 : index
    %c0_85 = arith.constant 0 : index
    %c0_86 = arith.constant 0 : index
    %107 = vector.load %arg12[%c1_83, %c10_84, %c0_85, %c0_86] : memref<2x12x12x6xf32, #tpu.memory_space<vmem>>, vector<1x1x12x6xf32>
    %108 = vector.shape_cast %107 : vector<1x1x12x6xf32> to vector<12x6xf32>
    %109 = vector.shape_cast %106 : vector<12x6xf32> to vector<1x1x12x6xf32>
    tpu.vector_store %arg12[%c1_83, %c10_84, %c0_85, %c0_86], %109 {strides = array<i32>} : memref<2x12x12x6xf32, #tpu.memory_space<vmem>>, vector<1x1x12x6xf32>,
    %110 = vector.extract_strided_slice %17 {offsets = [276, 0], sizes = [12, 6], strides = [1, 1]} : vector<288x6xf32> to vector<12x6xf32>
    %c1_87 = arith.constant 1 : index
    %c11_88 = arith.constant 11 : index
    %c0_89 = arith.constant 0 : index
    %c0_90 = arith.constant 0 : index
    %111 = vector.load %arg12[%c1_87, %c11_88, %c0_89, %c0_90] : memref<2x12x12x6xf32, #tpu.memory_space<vmem>>, vector<1x1x12x6xf32>
    %112 = vector.shape_cast %111 : vector<1x1x12x6xf32> to vector<12x6xf32>
    %113 = vector.shape_cast %110 : vector<12x6xf32> to vector<1x1x12x6xf32>
    tpu.vector_store %arg12[%c1_87, %c11_88, %c0_89, %c0_90], %113 {strides = array<i32>} : memref<2x12x12x6xf32, #tpu.memory_space<vmem>>, vector<1x1x12x6xf32>,
    %cst_91 = arith.constant 0.000000e+00 : f32
    %114 = vector.broadcast %cst_91 : f32 to vector<128x16xf32>
    %c0_92 = arith.constant 0 : index
    %c0_93 = arith.constant 0 : index
    %c0_94 = arith.constant 0 : index
    %c0_95 = arith.constant 0 : index
    %115 = vector.load %arg12[%c0_92, %c0_93, %c0_94, %c0_95] : memref<2x12x12x6xf32, #tpu.memory_space<vmem>>, vector<2x8x8x6xf32>
    %116 = vector.shape_cast %115 : vector<2x8x8x6xf32> to vector<128x6xf32>
    %117 = arith.truncf %116 : vector<128x6xf32> to vector<128x6xbf16>
    %c0_96 = arith.constant 0 : index
    %c0_97 = arith.constant 0 : index
    %c0_98 = arith.constant 0 : index
    %118 = vector.load %arg3[%c0_96, %c0_97, %c0_98] : memref<25x6x16xbf16, #tpu.memory_space<vmem>>, vector<1x6x16xbf16>
    %119 = vector.shape_cast %118 : vector<1x6x16xbf16> to vector<6x16xbf16>
    %cst_99 = arith.constant dense<0.000000e+00> : vector<128x16xf32>
    %120 = tpu.matmul %117, %119, %cst_99 {dimension_numbers = #tpu.dot_dimension_numbers<[1], [0], [0], [1], [0, 0, 1, 1], [], []>} : vector<128x6xbf16>, vector<6x16xbf16>, vector<128x16xf32> -> vector<128x16xf32>
    %121 = arith.addf %114, %120 : vector<128x16xf32>
    %c0_100 = arith.constant 0 : index
    %c0_101 = arith.constant 0 : index
    %c1_102 = arith.constant 1 : index
    %c0_103 = arith.constant 0 : index
    %122 = vector.load %arg12[%c0_100, %c0_101, %c1_102, %c0_103] : memref<2x12x12x6xf32, #tpu.memory_space<vmem>>, vector<2x8x8x6xf32>
    %123 = vector.shape_cast %122 : vector<2x8x8x6xf32> to vector<128x6xf32>
    %124 = arith.truncf %123 : vector<128x6xf32> to vector<128x6xbf16>
    %c1_104 = arith.constant 1 : index
    %c0_105 = arith.constant 0 : index
    %c0_106 = arith.constant 0 : index
    %125 = vector.load %arg3[%c1_104, %c0_105, %c0_106] : memref<25x6x16xbf16, #tpu.memory_space<vmem>>, vector<1x6x16xbf16>
    %126 = vector.shape_cast %125 : vector<1x6x16xbf16> to vector<6x16xbf16>
    %cst_107 = arith.constant dense<0.000000e+00> : vector<128x16xf32>
    %127 = tpu.matmul %124, %126, %cst_107 {dimension_numbers = #tpu.dot_dimension_numbers<[1], [0], [0], [1], [0, 0, 1, 1], [], []>} : vector<128x6xbf16>, vector<6x16xbf16>, vector<128x16xf32> -> vector<128x16xf32>
    %128 = arith.addf %121, %127 : vector<128x16xf32>
    %c0_108 = arith.constant 0 : index
    %c0_109 = arith.constant 0 : index
    %c2_110 = arith.constant 2 : index
    %c0_111 = arith.constant 0 : index
    %129 = vector.load %arg12[%c0_108, %c0_109, %c2_110, %c0_111] : memref<2x12x12x6xf32, #tpu.memory_space<vmem>>, vector<2x8x8x6xf32>
    %130 = vector.shape_cast %129 : vector<2x8x8x6xf32> to vector<128x6xf32>
    %131 = arith.truncf %130 : vector<128x6xf32> to vector<128x6xbf16>
    %c2_112 = arith.constant 2 : index
    %c0_113 = arith.constant 0 : index
    %c0_114 = arith.constant 0 : index
    %132 = vector.load %arg3[%c2_112, %c0_113, %c0_114] : memref<25x6x16xbf16, #tpu.memory_space<vmem>>, vector<1x6x16xbf16>
    %133 = vector.shape_cast %132 : vector<1x6x16xbf16> to vector<6x16xbf16>
    %cst_115 = arith.constant dense<0.000000e+00> : vector<128x16xf32>
    %134 = tpu.matmul %131, %133, %cst_115 {dimension_numbers = #tpu.dot_dimension_numbers<[1], [0], [0], [1], [0, 0, 1, 1], [], []>} : vector<128x6xbf16>, vector<6x16xbf16>, vector<128x16xf32> -> vector<128x16xf32>
    %135 = arith.addf %128, %134 : vector<128x16xf32>
    %c0_116 = arith.constant 0 : index
    %c0_117 = arith.constant 0 : index
    %c3_118 = arith.constant 3 : index
    %c0_119 = arith.constant 0 : index
    %136 = vector.load %arg12[%c0_116, %c0_117, %c3_118, %c0_119] : memref<2x12x12x6xf32, #tpu.memory_space<vmem>>, vector<2x8x8x6xf32>
    %137 = vector.shape_cast %136 : vector<2x8x8x6xf32> to vector<128x6xf32>
    %138 = arith.truncf %137 : vector<128x6xf32> to vector<128x6xbf16>
    %c3_120 = arith.constant 3 : index
    %c0_121 = arith.constant 0 : index
    %c0_122 = arith.constant 0 : index
    %139 = vector.load %arg3[%c3_120, %c0_121, %c0_122] : memref<25x6x16xbf16, #tpu.memory_space<vmem>>, vector<1x6x16xbf16>
    %140 = vector.shape_cast %139 : vector<1x6x16xbf16> to vector<6x16xbf16>
    %cst_123 = arith.constant dense<0.000000e+00> : vector<128x16xf32>
    %141 = tpu.matmul %138, %140, %cst_123 {dimension_numbers = #tpu.dot_dimension_numbers<[1], [0], [0], [1], [0, 0, 1, 1], [], []>} : vector<128x6xbf16>, vector<6x16xbf16>, vector<128x16xf32> -> vector<128x16xf32>
    %142 = arith.addf %135, %141 : vector<128x16xf32>
    %c0_124 = arith.constant 0 : index
    %c0_125 = arith.constant 0 : index
    %c4_126 = arith.constant 4 : index
    %c0_127 = arith.constant 0 : index
    %143 = vector.load %arg12[%c0_124, %c0_125, %c4_126, %c0_127] : memref<2x12x12x6xf32, #tpu.memory_space<vmem>>, vector<2x8x8x6xf32>
    %144 = vector.shape_cast %143 : vector<2x8x8x6xf32> to vector<128x6xf32>
    %145 = arith.truncf %144 : vector<128x6xf32> to vector<128x6xbf16>
    %c4_128 = arith.constant 4 : index
    %c0_129 = arith.constant 0 : index
    %c0_130 = arith.constant 0 : index
    %146 = vector.load %arg3[%c4_128, %c0_129, %c0_130] : memref<25x6x16xbf16, #tpu.memory_space<vmem>>, vector<1x6x16xbf16>
    %147 = vector.shape_cast %146 : vector<1x6x16xbf16> to vector<6x16xbf16>
    %cst_131 = arith.constant dense<0.000000e+00> : vector<128x16xf32>
    %148 = tpu.matmul %145, %147, %cst_131 {dimension_numbers = #tpu.dot_dimension_numbers<[1], [0], [0], [1], [0, 0, 1, 1], [], []>} : vector<128x6xbf16>, vector<6x16xbf16>, vector<128x16xf32> -> vector<128x16xf32>
    %149 = arith.addf %142, %148 : vector<128x16xf32>
    %c0_132 = arith.constant 0 : index
    %c1_133 = arith.constant 1 : index
    %c0_134 = arith.constant 0 : index
    %c0_135 = arith.constant 0 : index
    %150 = vector.load %arg12[%c0_132, %c1_133, %c0_134, %c0_135] : memref<2x12x12x6xf32, #tpu.memory_space<vmem>>, vector<2x8x8x6xf32>
    %151 = vector.shape_cast %150 : vector<2x8x8x6xf32> to vector<128x6xf32>
    %152 = arith.truncf %151 : vector<128x6xf32> to vector<128x6xbf16>
    %c5_136 = arith.constant 5 : index
    %c0_137 = arith.constant 0 : index
    %c0_138 = arith.constant 0 : index
    %153 = vector.load %arg3[%c5_136, %c0_137, %c0_138] : memref<25x6x16xbf16, #tpu.memory_space<vmem>>, vector<1x6x16xbf16>
    %154 = vector.shape_cast %153 : vector<1x6x16xbf16> to vector<6x16xbf16>
    %cst_139 = arith.constant dense<0.000000e+00> : vector<128x16xf32>
    %155 = tpu.matmul %152, %154, %cst_139 {dimension_numbers = #tpu.dot_dimension_numbers<[1], [0], [0], [1], [0, 0, 1, 1], [], []>} : vector<128x6xbf16>, vector<6x16xbf16>, vector<128x16xf32> -> vector<128x16xf32>
    %156 = arith.addf %149, %155 : vector<128x16xf32>
    %c0_140 = arith.constant 0 : index
    %c1_141 = arith.constant 1 : index
    %c1_142 = arith.constant 1 : index
    %c0_143 = arith.constant 0 : index
    %157 = vector.load %arg12[%c0_140, %c1_141, %c1_142, %c0_143] : memref<2x12x12x6xf32, #tpu.memory_space<vmem>>, vector<2x8x8x6xf32>
    %158 = vector.shape_cast %157 : vector<2x8x8x6xf32> to vector<128x6xf32>
    %159 = arith.truncf %158 : vector<128x6xf32> to vector<128x6xbf16>
    %c6_144 = arith.constant 6 : index
    %c0_145 = arith.constant 0 : index
    %c0_146 = arith.constant 0 : index
    %160 = vector.load %arg3[%c6_144, %c0_145, %c0_146] : memref<25x6x16xbf16, #tpu.memory_space<vmem>>, vector<1x6x16xbf16>
    %161 = vector.shape_cast %160 : vector<1x6x16xbf16> to vector<6x16xbf16>
    %cst_147 = arith.constant dense<0.000000e+00> : vector<128x16xf32>
    %162 = tpu.matmul %159, %161, %cst_147 {dimension_numbers = #tpu.dot_dimension_numbers<[1], [0], [0], [1], [0, 0, 1, 1], [], []>} : vector<128x6xbf16>, vector<6x16xbf16>, vector<128x16xf32> -> vector<128x16xf32>
    %163 = arith.addf %156, %162 : vector<128x16xf32>
    %c0_148 = arith.constant 0 : index
    %c1_149 = arith.constant 1 : index
    %c2_150 = arith.constant 2 : index
    %c0_151 = arith.constant 0 : index
    %164 = vector.load %arg12[%c0_148, %c1_149, %c2_150, %c0_151] : memref<2x12x12x6xf32, #tpu.memory_space<vmem>>, vector<2x8x8x6xf32>
    %165 = vector.shape_cast %164 : vector<2x8x8x6xf32> to vector<128x6xf32>
    %166 = arith.truncf %165 : vector<128x6xf32> to vector<128x6xbf16>
    %c7_152 = arith.constant 7 : index
    %c0_153 = arith.constant 0 : index
    %c0_154 = arith.constant 0 : index
    %167 = vector.load %arg3[%c7_152, %c0_153, %c0_154] : memref<25x6x16xbf16, #tpu.memory_space<vmem>>, vector<1x6x16xbf16>
    %168 = vector.shape_cast %167 : vector<1x6x16xbf16> to vector<6x16xbf16>
    %cst_155 = arith.constant dense<0.000000e+00> : vector<128x16xf32>
    %169 = tpu.matmul %166, %168, %cst_155 {dimension_numbers = #tpu.dot_dimension_numbers<[1], [0], [0], [1], [0, 0, 1, 1], [], []>} : vector<128x6xbf16>, vector<6x16xbf16>, vector<128x16xf32> -> vector<128x16xf32>
    %170 = arith.addf %163, %169 : vector<128x16xf32>
    %c0_156 = arith.constant 0 : index
    %c1_157 = arith.constant 1 : index
    %c3_158 = arith.constant 3 : index
    %c0_159 = arith.constant 0 : index
    %171 = vector.load %arg12[%c0_156, %c1_157, %c3_158, %c0_159] : memref<2x12x12x6xf32, #tpu.memory_space<vmem>>, vector<2x8x8x6xf32>
    %172 = vector.shape_cast %171 : vector<2x8x8x6xf32> to vector<128x6xf32>
    %173 = arith.truncf %172 : vector<128x6xf32> to vector<128x6xbf16>
    %c8_160 = arith.constant 8 : index
    %c0_161 = arith.constant 0 : index
    %c0_162 = arith.constant 0 : index
    %174 = vector.load %arg3[%c8_160, %c0_161, %c0_162] : memref<25x6x16xbf16, #tpu.memory_space<vmem>>, vector<1x6x16xbf16>
    %175 = vector.shape_cast %174 : vector<1x6x16xbf16> to vector<6x16xbf16>
    %cst_163 = arith.constant dense<0.000000e+00> : vector<128x16xf32>
    %176 = tpu.matmul %173, %175, %cst_163 {dimension_numbers = #tpu.dot_dimension_numbers<[1], [0], [0], [1], [0, 0, 1, 1], [], []>} : vector<128x6xbf16>, vector<6x16xbf16>, vector<128x16xf32> -> vector<128x16xf32>
    %177 = arith.addf %170, %176 : vector<128x16xf32>
    %c0_164 = arith.constant 0 : index
    %c1_165 = arith.constant 1 : index
    %c4_166 = arith.constant 4 : index
    %c0_167 = arith.constant 0 : index
    %178 = vector.load %arg12[%c0_164, %c1_165, %c4_166, %c0_167] : memref<2x12x12x6xf32, #tpu.memory_space<vmem>>, vector<2x8x8x6xf32>
    %179 = vector.shape_cast %178 : vector<2x8x8x6xf32> to vector<128x6xf32>
    %180 = arith.truncf %179 : vector<128x6xf32> to vector<128x6xbf16>
    %c9_168 = arith.constant 9 : index
    %c0_169 = arith.constant 0 : index
    %c0_170 = arith.constant 0 : index
    %181 = vector.load %arg3[%c9_168, %c0_169, %c0_170] : memref<25x6x16xbf16, #tpu.memory_space<vmem>>, vector<1x6x16xbf16>
    %182 = vector.shape_cast %181 : vector<1x6x16xbf16> to vector<6x16xbf16>
    %cst_171 = arith.constant dense<0.000000e+00> : vector<128x16xf32>
    %183 = tpu.matmul %180, %182, %cst_171 {dimension_numbers = #tpu.dot_dimension_numbers<[1], [0], [0], [1], [0, 0, 1, 1], [], []>} : vector<128x6xbf16>, vector<6x16xbf16>, vector<128x16xf32> -> vector<128x16xf32>
    %184 = arith.addf %177, %183 : vector<128x16xf32>
    %c0_172 = arith.constant 0 : index
    %c2_173 = arith.constant 2 : index
    %c0_174 = arith.constant 0 : index
    %c0_175 = arith.constant 0 : index
    %185 = vector.load %arg12[%c0_172, %c2_173, %c0_174, %c0_175] : memref<2x12x12x6xf32, #tpu.memory_space<vmem>>, vector<2x8x8x6xf32>
    %186 = vector.shape_cast %185 : vector<2x8x8x6xf32> to vector<128x6xf32>
    %187 = arith.truncf %186 : vector<128x6xf32> to vector<128x6xbf16>
    %c10_176 = arith.constant 10 : index
    %c0_177 = arith.constant 0 : index
    %c0_178 = arith.constant 0 : index
    %188 = vector.load %arg3[%c10_176, %c0_177, %c0_178] : memref<25x6x16xbf16, #tpu.memory_space<vmem>>, vector<1x6x16xbf16>
    %189 = vector.shape_cast %188 : vector<1x6x16xbf16> to vector<6x16xbf16>
    %cst_179 = arith.constant dense<0.000000e+00> : vector<128x16xf32>
    %190 = tpu.matmul %187, %189, %cst_179 {dimension_numbers = #tpu.dot_dimension_numbers<[1], [0], [0], [1], [0, 0, 1, 1], [], []>} : vector<128x6xbf16>, vector<6x16xbf16>, vector<128x16xf32> -> vector<128x16xf32>
    %191 = arith.addf %184, %190 : vector<128x16xf32>
    %c0_180 = arith.constant 0 : index
    %c2_181 = arith.constant 2 : index
    %c1_182 = arith.constant 1 : index
    %c0_183 = arith.constant 0 : index
    %192 = vector.load %arg12[%c0_180, %c2_181, %c1_182, %c0_183] : memref<2x12x12x6xf32, #tpu.memory_space<vmem>>, vector<2x8x8x6xf32>
    %193 = vector.shape_cast %192 : vector<2x8x8x6xf32> to vector<128x6xf32>
    %194 = arith.truncf %193 : vector<128x6xf32> to vector<128x6xbf16>
    %c11_184 = arith.constant 11 : index
    %c0_185 = arith.constant 0 : index
    %c0_186 = arith.constant 0 : index
    %195 = vector.load %arg3[%c11_184, %c0_185, %c0_186] : memref<25x6x16xbf16, #tpu.memory_space<vmem>>, vector<1x6x16xbf16>
    %196 = vector.shape_cast %195 : vector<1x6x16xbf16> to vector<6x16xbf16>
    %cst_187 = arith.constant dense<0.000000e+00> : vector<128x16xf32>
    %197 = tpu.matmul %194, %196, %cst_187 {dimension_numbers = #tpu.dot_dimension_numbers<[1], [0], [0], [1], [0, 0, 1, 1], [], []>} : vector<128x6xbf16>, vector<6x16xbf16>, vector<128x16xf32> -> vector<128x16xf32>
    %198 = arith.addf %191, %197 : vector<128x16xf32>
    %c0_188 = arith.constant 0 : index
    %c2_189 = arith.constant 2 : index
    %c2_190 = arith.constant 2 : index
    %c0_191 = arith.constant 0 : index
    %199 = vector.load %arg12[%c0_188, %c2_189, %c2_190, %c0_191] : memref<2x12x12x6xf32, #tpu.memory_space<vmem>>, vector<2x8x8x6xf32>
    %200 = vector.shape_cast %199 : vector<2x8x8x6xf32> to vector<128x6xf32>
    %201 = arith.truncf %200 : vector<128x6xf32> to vector<128x6xbf16>
    %c12 = arith.constant 12 : index
    %c0_192 = arith.constant 0 : index
    %c0_193 = arith.constant 0 : index
    %202 = vector.load %arg3[%c12, %c0_192, %c0_193] : memref<25x6x16xbf16, #tpu.memory_space<vmem>>, vector<1x6x16xbf16>
    %203 = vector.shape_cast %202 : vector<1x6x16xbf16> to vector<6x16xbf16>
    %cst_194 = arith.constant dense<0.000000e+00> : vector<128x16xf32>
    %204 = tpu.matmul %201, %203, %cst_194 {dimension_numbers = #tpu.dot_dimension_numbers<[1], [0], [0], [1], [0, 0, 1, 1], [], []>} : vector<128x6xbf16>, vector<6x16xbf16>, vector<128x16xf32> -> vector<128x16xf32>
    %205 = arith.addf %198, %204 : vector<128x16xf32>
    %c0_195 = arith.constant 0 : index
    %c2_196 = arith.constant 2 : index
    %c3_197 = arith.constant 3 : index
    %c0_198 = arith.constant 0 : index
    %206 = vector.load %arg12[%c0_195, %c2_196, %c3_197, %c0_198] : memref<2x12x12x6xf32, #tpu.memory_space<vmem>>, vector<2x8x8x6xf32>
    %207 = vector.shape_cast %206 : vector<2x8x8x6xf32> to vector<128x6xf32>
    %208 = arith.truncf %207 : vector<128x6xf32> to vector<128x6xbf16>
    %c13 = arith.constant 13 : index
    %c0_199 = arith.constant 0 : index
    %c0_200 = arith.constant 0 : index
    %209 = vector.load %arg3[%c13, %c0_199, %c0_200] : memref<25x6x16xbf16, #tpu.memory_space<vmem>>, vector<1x6x16xbf16>
    %210 = vector.shape_cast %209 : vector<1x6x16xbf16> to vector<6x16xbf16>
    %cst_201 = arith.constant dense<0.000000e+00> : vector<128x16xf32>
    %211 = tpu.matmul %208, %210, %cst_201 {dimension_numbers = #tpu.dot_dimension_numbers<[1], [0], [0], [1], [0, 0, 1, 1], [], []>} : vector<128x6xbf16>, vector<6x16xbf16>, vector<128x16xf32> -> vector<128x16xf32>
    %212 = arith.addf %205, %211 : vector<128x16xf32>
    %c0_202 = arith.constant 0 : index
    %c2_203 = arith.constant 2 : index
    %c4_204 = arith.constant 4 : index
    %c0_205 = arith.constant 0 : index
    %213 = vector.load %arg12[%c0_202, %c2_203, %c4_204, %c0_205] : memref<2x12x12x6xf32, #tpu.memory_space<vmem>>, vector<2x8x8x6xf32>
    %214 = vector.shape_cast %213 : vector<2x8x8x6xf32> to vector<128x6xf32>
    %215 = arith.truncf %214 : vector<128x6xf32> to vector<128x6xbf16>
    %c14 = arith.constant 14 : index
    %c0_206 = arith.constant 0 : index
    %c0_207 = arith.constant 0 : index
    %216 = vector.load %arg3[%c14, %c0_206, %c0_207] : memref<25x6x16xbf16, #tpu.memory_space<vmem>>, vector<1x6x16xbf16>
    %217 = vector.shape_cast %216 : vector<1x6x16xbf16> to vector<6x16xbf16>
    %cst_208 = arith.constant dense<0.000000e+00> : vector<128x16xf32>
    %218 = tpu.matmul %215, %217, %cst_208 {dimension_numbers = #tpu.dot_dimension_numbers<[1], [0], [0], [1], [0, 0, 1, 1], [], []>} : vector<128x6xbf16>, vector<6x16xbf16>, vector<128x16xf32> -> vector<128x16xf32>
    %219 = arith.addf %212, %218 : vector<128x16xf32>
    %c0_209 = arith.constant 0 : index
    %c3_210 = arith.constant 3 : index
    %c0_211 = arith.constant 0 : index
    %c0_212 = arith.constant 0 : index
    %220 = vector.load %arg12[%c0_209, %c3_210, %c0_211, %c0_212] : memref<2x12x12x6xf32, #tpu.memory_space<vmem>>, vector<2x8x8x6xf32>
    %221 = vector.shape_cast %220 : vector<2x8x8x6xf32> to vector<128x6xf32>
    %222 = arith.truncf %221 : vector<128x6xf32> to vector<128x6xbf16>
    %c15 = arith.constant 15 : index
    %c0_213 = arith.constant 0 : index
    %c0_214 = arith.constant 0 : index
    %223 = vector.load %arg3[%c15, %c0_213, %c0_214] : memref<25x6x16xbf16, #tpu.memory_space<vmem>>, vector<1x6x16xbf16>
    %224 = vector.shape_cast %223 : vector<1x6x16xbf16> to vector<6x16xbf16>
    %cst_215 = arith.constant dense<0.000000e+00> : vector<128x16xf32>
    %225 = tpu.matmul %222, %224, %cst_215 {dimension_numbers = #tpu.dot_dimension_numbers<[1], [0], [0], [1], [0, 0, 1, 1], [], []>} : vector<128x6xbf16>, vector<6x16xbf16>, vector<128x16xf32> -> vector<128x16xf32>
    %226 = arith.addf %219, %225 : vector<128x16xf32>
    %c0_216 = arith.constant 0 : index
    %c3_217 = arith.constant 3 : index
    %c1_218 = arith.constant 1 : index
    %c0_219 = arith.constant 0 : index
    %227 = vector.load %arg12[%c0_216, %c3_217, %c1_218, %c0_219] : memref<2x12x12x6xf32, #tpu.memory_space<vmem>>, vector<2x8x8x6xf32>
    %228 = vector.shape_cast %227 : vector<2x8x8x6xf32> to vector<128x6xf32>
    %229 = arith.truncf %228 : vector<128x6xf32> to vector<128x6xbf16>
    %c16 = arith.constant 16 : index
    %c0_220 = arith.constant 0 : index
    %c0_221 = arith.constant 0 : index
    %230 = vector.load %arg3[%c16, %c0_220, %c0_221] : memref<25x6x16xbf16, #tpu.memory_space<vmem>>, vector<1x6x16xbf16>
    %231 = vector.shape_cast %230 : vector<1x6x16xbf16> to vector<6x16xbf16>
    %cst_222 = arith.constant dense<0.000000e+00> : vector<128x16xf32>
    %232 = tpu.matmul %229, %231, %cst_222 {dimension_numbers = #tpu.dot_dimension_numbers<[1], [0], [0], [1], [0, 0, 1, 1], [], []>} : vector<128x6xbf16>, vector<6x16xbf16>, vector<128x16xf32> -> vector<128x16xf32>
    %233 = arith.addf %226, %232 : vector<128x16xf32>
    %c0_223 = arith.constant 0 : index
    %c3_224 = arith.constant 3 : index
    %c2_225 = arith.constant 2 : index
    %c0_226 = arith.constant 0 : index
    %234 = vector.load %arg12[%c0_223, %c3_224, %c2_225, %c0_226] : memref<2x12x12x6xf32, #tpu.memory_space<vmem>>, vector<2x8x8x6xf32>
    %235 = vector.shape_cast %234 : vector<2x8x8x6xf32> to vector<128x6xf32>
    %236 = arith.truncf %235 : vector<128x6xf32> to vector<128x6xbf16>
    %c17 = arith.constant 17 : index
    %c0_227 = arith.constant 0 : index
    %c0_228 = arith.constant 0 : index
    %237 = vector.load %arg3[%c17, %c0_227, %c0_228] : memref<25x6x16xbf16, #tpu.memory_space<vmem>>, vector<1x6x16xbf16>
    %238 = vector.shape_cast %237 : vector<1x6x16xbf16> to vector<6x16xbf16>
    %cst_229 = arith.constant dense<0.000000e+00> : vector<128x16xf32>
    %239 = tpu.matmul %236, %238, %cst_229 {dimension_numbers = #tpu.dot_dimension_numbers<[1], [0], [0], [1], [0, 0, 1, 1], [], []>} : vector<128x6xbf16>, vector<6x16xbf16>, vector<128x16xf32> -> vector<128x16xf32>
    %240 = arith.addf %233, %239 : vector<128x16xf32>
    %c0_230 = arith.constant 0 : index
    %c3_231 = arith.constant 3 : index
    %c3_232 = arith.constant 3 : index
    %c0_233 = arith.constant 0 : index
    %241 = vector.load %arg12[%c0_230, %c3_231, %c3_232, %c0_233] : memref<2x12x12x6xf32, #tpu.memory_space<vmem>>, vector<2x8x8x6xf32>
    %242 = vector.shape_cast %241 : vector<2x8x8x6xf32> to vector<128x6xf32>
    %243 = arith.truncf %242 : vector<128x6xf32> to vector<128x6xbf16>
    %c18 = arith.constant 18 : index
    %c0_234 = arith.constant 0 : index
    %c0_235 = arith.constant 0 : index
    %244 = vector.load %arg3[%c18, %c0_234, %c0_235] : memref<25x6x16xbf16, #tpu.memory_space<vmem>>, vector<1x6x16xbf16>
    %245 = vector.shape_cast %244 : vector<1x6x16xbf16> to vector<6x16xbf16>
    %cst_236 = arith.constant dense<0.000000e+00> : vector<128x16xf32>
    %246 = tpu.matmul %243, %245, %cst_236 {dimension_numbers = #tpu.dot_dimension_numbers<[1], [0], [0], [1], [0, 0, 1, 1], [], []>} : vector<128x6xbf16>, vector<6x16xbf16>, vector<128x16xf32> -> vector<128x16xf32>
    %247 = arith.addf %240, %246 : vector<128x16xf32>
    %c0_237 = arith.constant 0 : index
    %c3_238 = arith.constant 3 : index
    %c4_239 = arith.constant 4 : index
    %c0_240 = arith.constant 0 : index
    %248 = vector.load %arg12[%c0_237, %c3_238, %c4_239, %c0_240] : memref<2x12x12x6xf32, #tpu.memory_space<vmem>>, vector<2x8x8x6xf32>
    %249 = vector.shape_cast %248 : vector<2x8x8x6xf32> to vector<128x6xf32>
    %250 = arith.truncf %249 : vector<128x6xf32> to vector<128x6xbf16>
    %c19 = arith.constant 19 : index
    %c0_241 = arith.constant 0 : index
    %c0_242 = arith.constant 0 : index
    %251 = vector.load %arg3[%c19, %c0_241, %c0_242] : memref<25x6x16xbf16, #tpu.memory_space<vmem>>, vector<1x6x16xbf16>
    %252 = vector.shape_cast %251 : vector<1x6x16xbf16> to vector<6x16xbf16>
    %cst_243 = arith.constant dense<0.000000e+00> : vector<128x16xf32>
    %253 = tpu.matmul %250, %252, %cst_243 {dimension_numbers = #tpu.dot_dimension_numbers<[1], [0], [0], [1], [0, 0, 1, 1], [], []>} : vector<128x6xbf16>, vector<6x16xbf16>, vector<128x16xf32> -> vector<128x16xf32>
    %254 = arith.addf %247, %253 : vector<128x16xf32>
    %c0_244 = arith.constant 0 : index
    %c4_245 = arith.constant 4 : index
    %c0_246 = arith.constant 0 : index
    %c0_247 = arith.constant 0 : index
    %255 = vector.load %arg12[%c0_244, %c4_245, %c0_246, %c0_247] : memref<2x12x12x6xf32, #tpu.memory_space<vmem>>, vector<2x8x8x6xf32>
    %256 = vector.shape_cast %255 : vector<2x8x8x6xf32> to vector<128x6xf32>
    %257 = arith.truncf %256 : vector<128x6xf32> to vector<128x6xbf16>
    %c20 = arith.constant 20 : index
    %c0_248 = arith.constant 0 : index
    %c0_249 = arith.constant 0 : index
    %258 = vector.load %arg3[%c20, %c0_248, %c0_249] : memref<25x6x16xbf16, #tpu.memory_space<vmem>>, vector<1x6x16xbf16>
    %259 = vector.shape_cast %258 : vector<1x6x16xbf16> to vector<6x16xbf16>
    %cst_250 = arith.constant dense<0.000000e+00> : vector<128x16xf32>
    %260 = tpu.matmul %257, %259, %cst_250 {dimension_numbers = #tpu.dot_dimension_numbers<[1], [0], [0], [1], [0, 0, 1, 1], [], []>} : vector<128x6xbf16>, vector<6x16xbf16>, vector<128x16xf32> -> vector<128x16xf32>
    %261 = arith.addf %254, %260 : vector<128x16xf32>
    %c0_251 = arith.constant 0 : index
    %c4_252 = arith.constant 4 : index
    %c1_253 = arith.constant 1 : index
    %c0_254 = arith.constant 0 : index
    %262 = vector.load %arg12[%c0_251, %c4_252, %c1_253, %c0_254] : memref<2x12x12x6xf32, #tpu.memory_space<vmem>>, vector<2x8x8x6xf32>
    %263 = vector.shape_cast %262 : vector<2x8x8x6xf32> to vector<128x6xf32>
    %264 = arith.truncf %263 : vector<128x6xf32> to vector<128x6xbf16>
    %c21 = arith.constant 21 : index
    %c0_255 = arith.constant 0 : index
    %c0_256 = arith.constant 0 : index
    %265 = vector.load %arg3[%c21, %c0_255, %c0_256] : memref<25x6x16xbf16, #tpu.memory_space<vmem>>, vector<1x6x16xbf16>
    %266 = vector.shape_cast %265 : vector<1x6x16xbf16> to vector<6x16xbf16>
    %cst_257 = arith.constant dense<0.000000e+00> : vector<128x16xf32>
    %267 = tpu.matmul %264, %266, %cst_257 {dimension_numbers = #tpu.dot_dimension_numbers<[1], [0], [0], [1], [0, 0, 1, 1], [], []>} : vector<128x6xbf16>, vector<6x16xbf16>, vector<128x16xf32> -> vector<128x16xf32>
    %268 = arith.addf %261, %267 : vector<128x16xf32>
    %c0_258 = arith.constant 0 : index
    %c4_259 = arith.constant 4 : index
    %c2_260 = arith.constant 2 : index
    %c0_261 = arith.constant 0 : index
    %269 = vector.load %arg12[%c0_258, %c4_259, %c2_260, %c0_261] : memref<2x12x12x6xf32, #tpu.memory_space<vmem>>, vector<2x8x8x6xf32>
    %270 = vector.shape_cast %269 : vector<2x8x8x6xf32> to vector<128x6xf32>
    %271 = arith.truncf %270 : vector<128x6xf32> to vector<128x6xbf16>
    %c22 = arith.constant 22 : index
    %c0_262 = arith.constant 0 : index
    %c0_263 = arith.constant 0 : index
    %272 = vector.load %arg3[%c22, %c0_262, %c0_263] : memref<25x6x16xbf16, #tpu.memory_space<vmem>>, vector<1x6x16xbf16>
    %273 = vector.shape_cast %272 : vector<1x6x16xbf16> to vector<6x16xbf16>
    %cst_264 = arith.constant dense<0.000000e+00> : vector<128x16xf32>
    %274 = tpu.matmul %271, %273, %cst_264 {dimension_numbers = #tpu.dot_dimension_numbers<[1], [0], [0], [1], [0, 0, 1, 1], [], []>} : vector<128x6xbf16>, vector<6x16xbf16>, vector<128x16xf32> -> vector<128x16xf32>
    %275 = arith.addf %268, %274 : vector<128x16xf32>
    %c0_265 = arith.constant 0 : index
    %c4_266 = arith.constant 4 : index
    %c3_267 = arith.constant 3 : index
    %c0_268 = arith.constant 0 : index
    %276 = vector.load %arg12[%c0_265, %c4_266, %c3_267, %c0_268] : memref<2x12x12x6xf32, #tpu.memory_space<vmem>>, vector<2x8x8x6xf32>
    %277 = vector.shape_cast %276 : vector<2x8x8x6xf32> to vector<128x6xf32>
    %278 = arith.truncf %277 : vector<128x6xf32> to vector<128x6xbf16>
    %c23 = arith.constant 23 : index
    %c0_269 = arith.constant 0 : index
    %c0_270 = arith.constant 0 : index
    %279 = vector.load %arg3[%c23, %c0_269, %c0_270] : memref<25x6x16xbf16, #tpu.memory_space<vmem>>, vector<1x6x16xbf16>
    %280 = vector.shape_cast %279 : vector<1x6x16xbf16> to vector<6x16xbf16>
    %cst_271 = arith.constant dense<0.000000e+00> : vector<128x16xf32>
    %281 = tpu.matmul %278, %280, %cst_271 {dimension_numbers = #tpu.dot_dimension_numbers<[1], [0], [0], [1], [0, 0, 1, 1], [], []>} : vector<128x6xbf16>, vector<6x16xbf16>, vector<128x16xf32> -> vector<128x16xf32>
    %282 = arith.addf %275, %281 : vector<128x16xf32>
    %c0_272 = arith.constant 0 : index
    %c4_273 = arith.constant 4 : index
    %c4_274 = arith.constant 4 : index
    %c0_275 = arith.constant 0 : index
    %283 = vector.load %arg12[%c0_272, %c4_273, %c4_274, %c0_275] : memref<2x12x12x6xf32, #tpu.memory_space<vmem>>, vector<2x8x8x6xf32>
    %284 = vector.shape_cast %283 : vector<2x8x8x6xf32> to vector<128x6xf32>
    %285 = arith.truncf %284 : vector<128x6xf32> to vector<128x6xbf16>
    %c24 = arith.constant 24 : index
    %c0_276 = arith.constant 0 : index
    %c0_277 = arith.constant 0 : index
    %286 = vector.load %arg3[%c24, %c0_276, %c0_277] : memref<25x6x16xbf16, #tpu.memory_space<vmem>>, vector<1x6x16xbf16>
    %287 = vector.shape_cast %286 : vector<1x6x16xbf16> to vector<6x16xbf16>
    %cst_278 = arith.constant dense<0.000000e+00> : vector<128x16xf32>
    %288 = tpu.matmul %285, %287, %cst_278 {dimension_numbers = #tpu.dot_dimension_numbers<[1], [0], [0], [1], [0, 0, 1, 1], [], []>} : vector<128x6xbf16>, vector<6x16xbf16>, vector<128x16xf32> -> vector<128x16xf32>
    %289 = arith.addf %282, %288 : vector<128x16xf32>
    %c0_279 = arith.constant 0 : index
    %c0_280 = arith.constant 0 : index
    %290 = vector.load %arg4[%c0_279, %c0_280] : memref<1x16xf32, #tpu.memory_space<vmem>>, vector<1x16xf32>
    %291 = vector.broadcast %290 : vector<1x16xf32> to vector<128x16xf32>
    %292 = arith.addf %289, %291 : vector<128x16xf32>
    %293 = arith.negf %292 : vector<128x16xf32>
    %294 = math.exp %293 : vector<128x16xf32>
    %cst_281 = arith.constant 1.000000e+00 : f32
    %295 = vector.broadcast %cst_281 : f32 to vector<128x16xf32>
    %296 = arith.addf %295, %294 : vector<128x16xf32>
    %297 = arith.divf %295, %296 : vector<128x16xf32>
    %298 = vector.shape_cast %297 : vector<128x16xf32> to vector<2x8x8x16xf32>
    %cst_282 = arith.constant 0.000000e+00 : f32
    %299 = vector.broadcast %cst_282 : f32 to vector<2x120xf32>
    %300 = vector.extract_strided_slice %298 {offsets = [0, 0, 0, 0], sizes = [2, 1, 1, 16], strides = [1, 1, 1, 1]} : vector<2x8x8x16xf32> to vector<2x1x1x16xf32>
    %301 = vector.shape_cast %300 : vector<2x1x1x16xf32> to vector<2x16xf32>
    %302 = vector.extract_strided_slice %298 {offsets = [0, 0, 1, 0], sizes = [2, 1, 1, 16], strides = [1, 1, 1, 1]} : vector<2x8x8x16xf32> to vector<2x1x1x16xf32>
    %303 = vector.shape_cast %302 : vector<2x1x1x16xf32> to vector<2x16xf32>
    %304 = arith.maximumf %301, %303 : vector<2x16xf32>
    %305 = vector.extract_strided_slice %298 {offsets = [0, 1, 0, 0], sizes = [2, 1, 1, 16], strides = [1, 1, 1, 1]} : vector<2x8x8x16xf32> to vector<2x1x1x16xf32>
    %306 = vector.shape_cast %305 : vector<2x1x1x16xf32> to vector<2x16xf32>
    %307 = vector.extract_strided_slice %298 {offsets = [0, 1, 1, 0], sizes = [2, 1, 1, 16], strides = [1, 1, 1, 1]} : vector<2x8x8x16xf32> to vector<2x1x1x16xf32>
    %308 = vector.shape_cast %307 : vector<2x1x1x16xf32> to vector<2x16xf32>
    %309 = arith.maximumf %306, %308 : vector<2x16xf32>
    %310 = arith.maximumf %304, %309 : vector<2x16xf32>
    %311 = arith.truncf %310 : vector<2x16xf32> to vector<2x16xbf16>
    %c0_283 = arith.constant 0 : index
    %c0_284 = arith.constant 0 : index
    %c0_285 = arith.constant 0 : index
    %312 = vector.load %arg5[%c0_283, %c0_284, %c0_285] : memref<16x16x120xbf16, #tpu.memory_space<vmem>>, vector<1x16x120xbf16>
    %313 = vector.shape_cast %312 : vector<1x16x120xbf16> to vector<16x120xbf16>
    %cst_286 = arith.constant dense<0.000000e+00> : vector<2x120xf32>
    %314 = tpu.matmul %311, %313, %cst_286 {dimension_numbers = #tpu.dot_dimension_numbers<[1], [0], [0], [1], [0, 0, 1, 1], [], []>} : vector<2x16xbf16>, vector<16x120xbf16>, vector<2x120xf32> -> vector<2x120xf32>
    %315 = arith.addf %299, %314 : vector<2x120xf32>
    %316 = vector.extract_strided_slice %298 {offsets = [0, 0, 2, 0], sizes = [2, 1, 1, 16], strides = [1, 1, 1, 1]} : vector<2x8x8x16xf32> to vector<2x1x1x16xf32>
    %317 = vector.shape_cast %316 : vector<2x1x1x16xf32> to vector<2x16xf32>
    %318 = vector.extract_strided_slice %298 {offsets = [0, 0, 3, 0], sizes = [2, 1, 1, 16], strides = [1, 1, 1, 1]} : vector<2x8x8x16xf32> to vector<2x1x1x16xf32>
    %319 = vector.shape_cast %318 : vector<2x1x1x16xf32> to vector<2x16xf32>
    %320 = arith.maximumf %317, %319 : vector<2x16xf32>
    %321 = vector.extract_strided_slice %298 {offsets = [0, 1, 2, 0], sizes = [2, 1, 1, 16], strides = [1, 1, 1, 1]} : vector<2x8x8x16xf32> to vector<2x1x1x16xf32>
    %322 = vector.shape_cast %321 : vector<2x1x1x16xf32> to vector<2x16xf32>
    %323 = vector.extract_strided_slice %298 {offsets = [0, 1, 3, 0], sizes = [2, 1, 1, 16], strides = [1, 1, 1, 1]} : vector<2x8x8x16xf32> to vector<2x1x1x16xf32>
    %324 = vector.shape_cast %323 : vector<2x1x1x16xf32> to vector<2x16xf32>
    %325 = arith.maximumf %322, %324 : vector<2x16xf32>
    %326 = arith.maximumf %320, %325 : vector<2x16xf32>
    %327 = arith.truncf %326 : vector<2x16xf32> to vector<2x16xbf16>
    %c1_287 = arith.constant 1 : index
    %c0_288 = arith.constant 0 : index
    %c0_289 = arith.constant 0 : index
    %328 = vector.load %arg5[%c1_287, %c0_288, %c0_289] : memref<16x16x120xbf16, #tpu.memory_space<vmem>>, vector<1x16x120xbf16>
    %329 = vector.shape_cast %328 : vector<1x16x120xbf16> to vector<16x120xbf16>
    %cst_290 = arith.constant dense<0.000000e+00> : vector<2x120xf32>
    %330 = tpu.matmul %327, %329, %cst_290 {dimension_numbers = #tpu.dot_dimension_numbers<[1], [0], [0], [1], [0, 0, 1, 1], [], []>} : vector<2x16xbf16>, vector<16x120xbf16>, vector<2x120xf32> -> vector<2x120xf32>
    %331 = arith.addf %315, %330 : vector<2x120xf32>
    %332 = vector.extract_strided_slice %298 {offsets = [0, 0, 4, 0], sizes = [2, 1, 1, 16], strides = [1, 1, 1, 1]} : vector<2x8x8x16xf32> to vector<2x1x1x16xf32>
    %333 = vector.shape_cast %332 : vector<2x1x1x16xf32> to vector<2x16xf32>
    %334 = vector.extract_strided_slice %298 {offsets = [0, 0, 5, 0], sizes = [2, 1, 1, 16], strides = [1, 1, 1, 1]} : vector<2x8x8x16xf32> to vector<2x1x1x16xf32>
    %335 = vector.shape_cast %334 : vector<2x1x1x16xf32> to vector<2x16xf32>
    %336 = arith.maximumf %333, %335 : vector<2x16xf32>
    %337 = vector.extract_strided_slice %298 {offsets = [0, 1, 4, 0], sizes = [2, 1, 1, 16], strides = [1, 1, 1, 1]} : vector<2x8x8x16xf32> to vector<2x1x1x16xf32>
    %338 = vector.shape_cast %337 : vector<2x1x1x16xf32> to vector<2x16xf32>
    %339 = vector.extract_strided_slice %298 {offsets = [0, 1, 5, 0], sizes = [2, 1, 1, 16], strides = [1, 1, 1, 1]} : vector<2x8x8x16xf32> to vector<2x1x1x16xf32>
    %340 = vector.shape_cast %339 : vector<2x1x1x16xf32> to vector<2x16xf32>
    %341 = arith.maximumf %338, %340 : vector<2x16xf32>
    %342 = arith.maximumf %336, %341 : vector<2x16xf32>
    %343 = arith.truncf %342 : vector<2x16xf32> to vector<2x16xbf16>
    %c2_291 = arith.constant 2 : index
    %c0_292 = arith.constant 0 : index
    %c0_293 = arith.constant 0 : index
    %344 = vector.load %arg5[%c2_291, %c0_292, %c0_293] : memref<16x16x120xbf16, #tpu.memory_space<vmem>>, vector<1x16x120xbf16>
    %345 = vector.shape_cast %344 : vector<1x16x120xbf16> to vector<16x120xbf16>
    %cst_294 = arith.constant dense<0.000000e+00> : vector<2x120xf32>
    %346 = tpu.matmul %343, %345, %cst_294 {dimension_numbers = #tpu.dot_dimension_numbers<[1], [0], [0], [1], [0, 0, 1, 1], [], []>} : vector<2x16xbf16>, vector<16x120xbf16>, vector<2x120xf32> -> vector<2x120xf32>
    %347 = arith.addf %331, %346 : vector<2x120xf32>
    %348 = vector.extract_strided_slice %298 {offsets = [0, 0, 6, 0], sizes = [2, 1, 1, 16], strides = [1, 1, 1, 1]} : vector<2x8x8x16xf32> to vector<2x1x1x16xf32>
    %349 = vector.shape_cast %348 : vector<2x1x1x16xf32> to vector<2x16xf32>
    %350 = vector.extract_strided_slice %298 {offsets = [0, 0, 7, 0], sizes = [2, 1, 1, 16], strides = [1, 1, 1, 1]} : vector<2x8x8x16xf32> to vector<2x1x1x16xf32>
    %351 = vector.shape_cast %350 : vector<2x1x1x16xf32> to vector<2x16xf32>
    %352 = arith.maximumf %349, %351 : vector<2x16xf32>
    %353 = vector.extract_strided_slice %298 {offsets = [0, 1, 6, 0], sizes = [2, 1, 1, 16], strides = [1, 1, 1, 1]} : vector<2x8x8x16xf32> to vector<2x1x1x16xf32>
    %354 = vector.shape_cast %353 : vector<2x1x1x16xf32> to vector<2x16xf32>
    %355 = vector.extract_strided_slice %298 {offsets = [0, 1, 7, 0], sizes = [2, 1, 1, 16], strides = [1, 1, 1, 1]} : vector<2x8x8x16xf32> to vector<2x1x1x16xf32>
    %356 = vector.shape_cast %355 : vector<2x1x1x16xf32> to vector<2x16xf32>
    %357 = arith.maximumf %354, %356 : vector<2x16xf32>
    %358 = arith.maximumf %352, %357 : vector<2x16xf32>
    %359 = arith.truncf %358 : vector<2x16xf32> to vector<2x16xbf16>
    %c3_295 = arith.constant 3 : index
    %c0_296 = arith.constant 0 : index
    %c0_297 = arith.constant 0 : index
    %360 = vector.load %arg5[%c3_295, %c0_296, %c0_297] : memref<16x16x120xbf16, #tpu.memory_space<vmem>>, vector<1x16x120xbf16>
    %361 = vector.shape_cast %360 : vector<1x16x120xbf16> to vector<16x120xbf16>
    %cst_298 = arith.constant dense<0.000000e+00> : vector<2x120xf32>
    %362 = tpu.matmul %359, %361, %cst_298 {dimension_numbers = #tpu.dot_dimension_numbers<[1], [0], [0], [1], [0, 0, 1, 1], [], []>} : vector<2x16xbf16>, vector<16x120xbf16>, vector<2x120xf32> -> vector<2x120xf32>
    %363 = arith.addf %347, %362 : vector<2x120xf32>
    %364 = vector.extract_strided_slice %298 {offsets = [0, 2, 0, 0], sizes = [2, 1, 1, 16], strides = [1, 1, 1, 1]} : vector<2x8x8x16xf32> to vector<2x1x1x16xf32>
    %365 = vector.shape_cast %364 : vector<2x1x1x16xf32> to vector<2x16xf32>
    %366 = vector.extract_strided_slice %298 {offsets = [0, 2, 1, 0], sizes = [2, 1, 1, 16], strides = [1, 1, 1, 1]} : vector<2x8x8x16xf32> to vector<2x1x1x16xf32>
    %367 = vector.shape_cast %366 : vector<2x1x1x16xf32> to vector<2x16xf32>
    %368 = arith.maximumf %365, %367 : vector<2x16xf32>
    %369 = vector.extract_strided_slice %298 {offsets = [0, 3, 0, 0], sizes = [2, 1, 1, 16], strides = [1, 1, 1, 1]} : vector<2x8x8x16xf32> to vector<2x1x1x16xf32>
    %370 = vector.shape_cast %369 : vector<2x1x1x16xf32> to vector<2x16xf32>
    %371 = vector.extract_strided_slice %298 {offsets = [0, 3, 1, 0], sizes = [2, 1, 1, 16], strides = [1, 1, 1, 1]} : vector<2x8x8x16xf32> to vector<2x1x1x16xf32>
    %372 = vector.shape_cast %371 : vector<2x1x1x16xf32> to vector<2x16xf32>
    %373 = arith.maximumf %370, %372 : vector<2x16xf32>
    %374 = arith.maximumf %368, %373 : vector<2x16xf32>
    %375 = arith.truncf %374 : vector<2x16xf32> to vector<2x16xbf16>
    %c4_299 = arith.constant 4 : index
    %c0_300 = arith.constant 0 : index
    %c0_301 = arith.constant 0 : index
    %376 = vector.load %arg5[%c4_299, %c0_300, %c0_301] : memref<16x16x120xbf16, #tpu.memory_space<vmem>>, vector<1x16x120xbf16>
    %377 = vector.shape_cast %376 : vector<1x16x120xbf16> to vector<16x120xbf16>
    %cst_302 = arith.constant dense<0.000000e+00> : vector<2x120xf32>
    %378 = tpu.matmul %375, %377, %cst_302 {dimension_numbers = #tpu.dot_dimension_numbers<[1], [0], [0], [1], [0, 0, 1, 1], [], []>} : vector<2x16xbf16>, vector<16x120xbf16>, vector<2x120xf32> -> vector<2x120xf32>
    %379 = arith.addf %363, %378 : vector<2x120xf32>
    %380 = vector.extract_strided_slice %298 {offsets = [0, 2, 2, 0], sizes = [2, 1, 1, 16], strides = [1, 1, 1, 1]} : vector<2x8x8x16xf32> to vector<2x1x1x16xf32>
    %381 = vector.shape_cast %380 : vector<2x1x1x16xf32> to vector<2x16xf32>
    %382 = vector.extract_strided_slice %298 {offsets = [0, 2, 3, 0], sizes = [2, 1, 1, 16], strides = [1, 1, 1, 1]} : vector<2x8x8x16xf32> to vector<2x1x1x16xf32>
    %383 = vector.shape_cast %382 : vector<2x1x1x16xf32> to vector<2x16xf32>
    %384 = arith.maximumf %381, %383 : vector<2x16xf32>
    %385 = vector.extract_strided_slice %298 {offsets = [0, 3, 2, 0], sizes = [2, 1, 1, 16], strides = [1, 1, 1, 1]} : vector<2x8x8x16xf32> to vector<2x1x1x16xf32>
    %386 = vector.shape_cast %385 : vector<2x1x1x16xf32> to vector<2x16xf32>
    %387 = vector.extract_strided_slice %298 {offsets = [0, 3, 3, 0], sizes = [2, 1, 1, 16], strides = [1, 1, 1, 1]} : vector<2x8x8x16xf32> to vector<2x1x1x16xf32>
    %388 = vector.shape_cast %387 : vector<2x1x1x16xf32> to vector<2x16xf32>
    %389 = arith.maximumf %386, %388 : vector<2x16xf32>
    %390 = arith.maximumf %384, %389 : vector<2x16xf32>
    %391 = arith.truncf %390 : vector<2x16xf32> to vector<2x16xbf16>
    %c5_303 = arith.constant 5 : index
    %c0_304 = arith.constant 0 : index
    %c0_305 = arith.constant 0 : index
    %392 = vector.load %arg5[%c5_303, %c0_304, %c0_305] : memref<16x16x120xbf16, #tpu.memory_space<vmem>>, vector<1x16x120xbf16>
    %393 = vector.shape_cast %392 : vector<1x16x120xbf16> to vector<16x120xbf16>
    %cst_306 = arith.constant dense<0.000000e+00> : vector<2x120xf32>
    %394 = tpu.matmul %391, %393, %cst_306 {dimension_numbers = #tpu.dot_dimension_numbers<[1], [0], [0], [1], [0, 0, 1, 1], [], []>} : vector<2x16xbf16>, vector<16x120xbf16>, vector<2x120xf32> -> vector<2x120xf32>
    %395 = arith.addf %379, %394 : vector<2x120xf32>
    %396 = vector.extract_strided_slice %298 {offsets = [0, 2, 4, 0], sizes = [2, 1, 1, 16], strides = [1, 1, 1, 1]} : vector<2x8x8x16xf32> to vector<2x1x1x16xf32>
    %397 = vector.shape_cast %396 : vector<2x1x1x16xf32> to vector<2x16xf32>
    %398 = vector.extract_strided_slice %298 {offsets = [0, 2, 5, 0], sizes = [2, 1, 1, 16], strides = [1, 1, 1, 1]} : vector<2x8x8x16xf32> to vector<2x1x1x16xf32>
    %399 = vector.shape_cast %398 : vector<2x1x1x16xf32> to vector<2x16xf32>
    %400 = arith.maximumf %397, %399 : vector<2x16xf32>
    %401 = vector.extract_strided_slice %298 {offsets = [0, 3, 4, 0], sizes = [2, 1, 1, 16], strides = [1, 1, 1, 1]} : vector<2x8x8x16xf32> to vector<2x1x1x16xf32>
    %402 = vector.shape_cast %401 : vector<2x1x1x16xf32> to vector<2x16xf32>
    %403 = vector.extract_strided_slice %298 {offsets = [0, 3, 5, 0], sizes = [2, 1, 1, 16], strides = [1, 1, 1, 1]} : vector<2x8x8x16xf32> to vector<2x1x1x16xf32>
    %404 = vector.shape_cast %403 : vector<2x1x1x16xf32> to vector<2x16xf32>
    %405 = arith.maximumf %402, %404 : vector<2x16xf32>
    %406 = arith.maximumf %400, %405 : vector<2x16xf32>
    %407 = arith.truncf %406 : vector<2x16xf32> to vector<2x16xbf16>
    %c6_307 = arith.constant 6 : index
    %c0_308 = arith.constant 0 : index
    %c0_309 = arith.constant 0 : index
    %408 = vector.load %arg5[%c6_307, %c0_308, %c0_309] : memref<16x16x120xbf16, #tpu.memory_space<vmem>>, vector<1x16x120xbf16>
    %409 = vector.shape_cast %408 : vector<1x16x120xbf16> to vector<16x120xbf16>
    %cst_310 = arith.constant dense<0.000000e+00> : vector<2x120xf32>
    %410 = tpu.matmul %407, %409, %cst_310 {dimension_numbers = #tpu.dot_dimension_numbers<[1], [0], [0], [1], [0, 0, 1, 1], [], []>} : vector<2x16xbf16>, vector<16x120xbf16>, vector<2x120xf32> -> vector<2x120xf32>
    %411 = arith.addf %395, %410 : vector<2x120xf32>
    %412 = vector.extract_strided_slice %298 {offsets = [0, 2, 6, 0], sizes = [2, 1, 1, 16], strides = [1, 1, 1, 1]} : vector<2x8x8x16xf32> to vector<2x1x1x16xf32>
    %413 = vector.shape_cast %412 : vector<2x1x1x16xf32> to vector<2x16xf32>
    %414 = vector.extract_strided_slice %298 {offsets = [0, 2, 7, 0], sizes = [2, 1, 1, 16], strides = [1, 1, 1, 1]} : vector<2x8x8x16xf32> to vector<2x1x1x16xf32>
    %415 = vector.shape_cast %414 : vector<2x1x1x16xf32> to vector<2x16xf32>
    %416 = arith.maximumf %413, %415 : vector<2x16xf32>
    %417 = vector.extract_strided_slice %298 {offsets = [0, 3, 6, 0], sizes = [2, 1, 1, 16], strides = [1, 1, 1, 1]} : vector<2x8x8x16xf32> to vector<2x1x1x16xf32>
    %418 = vector.shape_cast %417 : vector<2x1x1x16xf32> to vector<2x16xf32>
    %419 = vector.extract_strided_slice %298 {offsets = [0, 3, 7, 0], sizes = [2, 1, 1, 16], strides = [1, 1, 1, 1]} : vector<2x8x8x16xf32> to vector<2x1x1x16xf32>
    %420 = vector.shape_cast %419 : vector<2x1x1x16xf32> to vector<2x16xf32>
    %421 = arith.maximumf %418, %420 : vector<2x16xf32>
    %422 = arith.maximumf %416, %421 : vector<2x16xf32>
    %423 = arith.truncf %422 : vector<2x16xf32> to vector<2x16xbf16>
    %c7_311 = arith.constant 7 : index
    %c0_312 = arith.constant 0 : index
    %c0_313 = arith.constant 0 : index
    %424 = vector.load %arg5[%c7_311, %c0_312, %c0_313] : memref<16x16x120xbf16, #tpu.memory_space<vmem>>, vector<1x16x120xbf16>
    %425 = vector.shape_cast %424 : vector<1x16x120xbf16> to vector<16x120xbf16>
    %cst_314 = arith.constant dense<0.000000e+00> : vector<2x120xf32>
    %426 = tpu.matmul %423, %425, %cst_314 {dimension_numbers = #tpu.dot_dimension_numbers<[1], [0], [0], [1], [0, 0, 1, 1], [], []>} : vector<2x16xbf16>, vector<16x120xbf16>, vector<2x120xf32> -> vector<2x120xf32>
    %427 = arith.addf %411, %426 : vector<2x120xf32>
    %428 = vector.extract_strided_slice %298 {offsets = [0, 4, 0, 0], sizes = [2, 1, 1, 16], strides = [1, 1, 1, 1]} : vector<2x8x8x16xf32> to vector<2x1x1x16xf32>
    %429 = vector.shape_cast %428 : vector<2x1x1x16xf32> to vector<2x16xf32>
    %430 = vector.extract_strided_slice %298 {offsets = [0, 4, 1, 0], sizes = [2, 1, 1, 16], strides = [1, 1, 1, 1]} : vector<2x8x8x16xf32> to vector<2x1x1x16xf32>
    %431 = vector.shape_cast %430 : vector<2x1x1x16xf32> to vector<2x16xf32>
    %432 = arith.maximumf %429, %431 : vector<2x16xf32>
    %433 = vector.extract_strided_slice %298 {offsets = [0, 5, 0, 0], sizes = [2, 1, 1, 16], strides = [1, 1, 1, 1]} : vector<2x8x8x16xf32> to vector<2x1x1x16xf32>
    %434 = vector.shape_cast %433 : vector<2x1x1x16xf32> to vector<2x16xf32>
    %435 = vector.extract_strided_slice %298 {offsets = [0, 5, 1, 0], sizes = [2, 1, 1, 16], strides = [1, 1, 1, 1]} : vector<2x8x8x16xf32> to vector<2x1x1x16xf32>
    %436 = vector.shape_cast %435 : vector<2x1x1x16xf32> to vector<2x16xf32>
    %437 = arith.maximumf %434, %436 : vector<2x16xf32>
    %438 = arith.maximumf %432, %437 : vector<2x16xf32>
    %439 = arith.truncf %438 : vector<2x16xf32> to vector<2x16xbf16>
    %c8_315 = arith.constant 8 : index
    %c0_316 = arith.constant 0 : index
    %c0_317 = arith.constant 0 : index
    %440 = vector.load %arg5[%c8_315, %c0_316, %c0_317] : memref<16x16x120xbf16, #tpu.memory_space<vmem>>, vector<1x16x120xbf16>
    %441 = vector.shape_cast %440 : vector<1x16x120xbf16> to vector<16x120xbf16>
    %cst_318 = arith.constant dense<0.000000e+00> : vector<2x120xf32>
    %442 = tpu.matmul %439, %441, %cst_318 {dimension_numbers = #tpu.dot_dimension_numbers<[1], [0], [0], [1], [0, 0, 1, 1], [], []>} : vector<2x16xbf16>, vector<16x120xbf16>, vector<2x120xf32> -> vector<2x120xf32>
    %443 = arith.addf %427, %442 : vector<2x120xf32>
    %444 = vector.extract_strided_slice %298 {offsets = [0, 4, 2, 0], sizes = [2, 1, 1, 16], strides = [1, 1, 1, 1]} : vector<2x8x8x16xf32> to vector<2x1x1x16xf32>
    %445 = vector.shape_cast %444 : vector<2x1x1x16xf32> to vector<2x16xf32>
    %446 = vector.extract_strided_slice %298 {offsets = [0, 4, 3, 0], sizes = [2, 1, 1, 16], strides = [1, 1, 1, 1]} : vector<2x8x8x16xf32> to vector<2x1x1x16xf32>
    %447 = vector.shape_cast %446 : vector<2x1x1x16xf32> to vector<2x16xf32>
    %448 = arith.maximumf %445, %447 : vector<2x16xf32>
    %449 = vector.extract_strided_slice %298 {offsets = [0, 5, 2, 0], sizes = [2, 1, 1, 16], strides = [1, 1, 1, 1]} : vector<2x8x8x16xf32> to vector<2x1x1x16xf32>
    %450 = vector.shape_cast %449 : vector<2x1x1x16xf32> to vector<2x16xf32>
    %451 = vector.extract_strided_slice %298 {offsets = [0, 5, 3, 0], sizes = [2, 1, 1, 16], strides = [1, 1, 1, 1]} : vector<2x8x8x16xf32> to vector<2x1x1x16xf32>
    %452 = vector.shape_cast %451 : vector<2x1x1x16xf32> to vector<2x16xf32>
    %453 = arith.maximumf %450, %452 : vector<2x16xf32>
    %454 = arith.maximumf %448, %453 : vector<2x16xf32>
    %455 = arith.truncf %454 : vector<2x16xf32> to vector<2x16xbf16>
    %c9_319 = arith.constant 9 : index
    %c0_320 = arith.constant 0 : index
    %c0_321 = arith.constant 0 : index
    %456 = vector.load %arg5[%c9_319, %c0_320, %c0_321] : memref<16x16x120xbf16, #tpu.memory_space<vmem>>, vector<1x16x120xbf16>
    %457 = vector.shape_cast %456 : vector<1x16x120xbf16> to vector<16x120xbf16>
    %cst_322 = arith.constant dense<0.000000e+00> : vector<2x120xf32>
    %458 = tpu.matmul %455, %457, %cst_322 {dimension_numbers = #tpu.dot_dimension_numbers<[1], [0], [0], [1], [0, 0, 1, 1], [], []>} : vector<2x16xbf16>, vector<16x120xbf16>, vector<2x120xf32> -> vector<2x120xf32>
    %459 = arith.addf %443, %458 : vector<2x120xf32>
    %460 = vector.extract_strided_slice %298 {offsets = [0, 4, 4, 0], sizes = [2, 1, 1, 16], strides = [1, 1, 1, 1]} : vector<2x8x8x16xf32> to vector<2x1x1x16xf32>
    %461 = vector.shape_cast %460 : vector<2x1x1x16xf32> to vector<2x16xf32>
    %462 = vector.extract_strided_slice %298 {offsets = [0, 4, 5, 0], sizes = [2, 1, 1, 16], strides = [1, 1, 1, 1]} : vector<2x8x8x16xf32> to vector<2x1x1x16xf32>
    %463 = vector.shape_cast %462 : vector<2x1x1x16xf32> to vector<2x16xf32>
    %464 = arith.maximumf %461, %463 : vector<2x16xf32>
    %465 = vector.extract_strided_slice %298 {offsets = [0, 5, 4, 0], sizes = [2, 1, 1, 16], strides = [1, 1, 1, 1]} : vector<2x8x8x16xf32> to vector<2x1x1x16xf32>
    %466 = vector.shape_cast %465 : vector<2x1x1x16xf32> to vector<2x16xf32>
    %467 = vector.extract_strided_slice %298 {offsets = [0, 5, 5, 0], sizes = [2, 1, 1, 16], strides = [1, 1, 1, 1]} : vector<2x8x8x16xf32> to vector<2x1x1x16xf32>
    %468 = vector.shape_cast %467 : vector<2x1x1x16xf32> to vector<2x16xf32>
    %469 = arith.maximumf %466, %468 : vector<2x16xf32>
    %470 = arith.maximumf %464, %469 : vector<2x16xf32>
    %471 = arith.truncf %470 : vector<2x16xf32> to vector<2x16xbf16>
    %c10_323 = arith.constant 10 : index
    %c0_324 = arith.constant 0 : index
    %c0_325 = arith.constant 0 : index
    %472 = vector.load %arg5[%c10_323, %c0_324, %c0_325] : memref<16x16x120xbf16, #tpu.memory_space<vmem>>, vector<1x16x120xbf16>
    %473 = vector.shape_cast %472 : vector<1x16x120xbf16> to vector<16x120xbf16>
    %cst_326 = arith.constant dense<0.000000e+00> : vector<2x120xf32>
    %474 = tpu.matmul %471, %473, %cst_326 {dimension_numbers = #tpu.dot_dimension_numbers<[1], [0], [0], [1], [0, 0, 1, 1], [], []>} : vector<2x16xbf16>, vector<16x120xbf16>, vector<2x120xf32> -> vector<2x120xf32>
    %475 = arith.addf %459, %474 : vector<2x120xf32>
    %476 = vector.extract_strided_slice %298 {offsets = [0, 4, 6, 0], sizes = [2, 1, 1, 16], strides = [1, 1, 1, 1]} : vector<2x8x8x16xf32> to vector<2x1x1x16xf32>
    %477 = vector.shape_cast %476 : vector<2x1x1x16xf32> to vector<2x16xf32>
    %478 = vector.extract_strided_slice %298 {offsets = [0, 4, 7, 0], sizes = [2, 1, 1, 16], strides = [1, 1, 1, 1]} : vector<2x8x8x16xf32> to vector<2x1x1x16xf32>
    %479 = vector.shape_cast %478 : vector<2x1x1x16xf32> to vector<2x16xf32>
    %480 = arith.maximumf %477, %479 : vector<2x16xf32>
    %481 = vector.extract_strided_slice %298 {offsets = [0, 5, 6, 0], sizes = [2, 1, 1, 16], strides = [1, 1, 1, 1]} : vector<2x8x8x16xf32> to vector<2x1x1x16xf32>
    %482 = vector.shape_cast %481 : vector<2x1x1x16xf32> to vector<2x16xf32>
    %483 = vector.extract_strided_slice %298 {offsets = [0, 5, 7, 0], sizes = [2, 1, 1, 16], strides = [1, 1, 1, 1]} : vector<2x8x8x16xf32> to vector<2x1x1x16xf32>
    %484 = vector.shape_cast %483 : vector<2x1x1x16xf32> to vector<2x16xf32>
    %485 = arith.maximumf %482, %484 : vector<2x16xf32>
    %486 = arith.maximumf %480, %485 : vector<2x16xf32>
    %487 = arith.truncf %486 : vector<2x16xf32> to vector<2x16xbf16>
    %c11_327 = arith.constant 11 : index
    %c0_328 = arith.constant 0 : index
    %c0_329 = arith.constant 0 : index
    %488 = vector.load %arg5[%c11_327, %c0_328, %c0_329] : memref<16x16x120xbf16, #tpu.memory_space<vmem>>, vector<1x16x120xbf16>
    %489 = vector.shape_cast %488 : vector<1x16x120xbf16> to vector<16x120xbf16>
    %cst_330 = arith.constant dense<0.000000e+00> : vector<2x120xf32>
    %490 = tpu.matmul %487, %489, %cst_330 {dimension_numbers = #tpu.dot_dimension_numbers<[1], [0], [0], [1], [0, 0, 1, 1], [], []>} : vector<2x16xbf16>, vector<16x120xbf16>, vector<2x120xf32> -> vector<2x120xf32>
    %491 = arith.addf %475, %490 : vector<2x120xf32>
    %492 = vector.extract_strided_slice %298 {offsets = [0, 6, 0, 0], sizes = [2, 1, 1, 16], strides = [1, 1, 1, 1]} : vector<2x8x8x16xf32> to vector<2x1x1x16xf32>
    %493 = vector.shape_cast %492 : vector<2x1x1x16xf32> to vector<2x16xf32>
    %494 = vector.extract_strided_slice %298 {offsets = [0, 6, 1, 0], sizes = [2, 1, 1, 16], strides = [1, 1, 1, 1]} : vector<2x8x8x16xf32> to vector<2x1x1x16xf32>
    %495 = vector.shape_cast %494 : vector<2x1x1x16xf32> to vector<2x16xf32>
    %496 = arith.maximumf %493, %495 : vector<2x16xf32>
    %497 = vector.extract_strided_slice %298 {offsets = [0, 7, 0, 0], sizes = [2, 1, 1, 16], strides = [1, 1, 1, 1]} : vector<2x8x8x16xf32> to vector<2x1x1x16xf32>
    %498 = vector.shape_cast %497 : vector<2x1x1x16xf32> to vector<2x16xf32>
    %499 = vector.extract_strided_slice %298 {offsets = [0, 7, 1, 0], sizes = [2, 1, 1, 16], strides = [1, 1, 1, 1]} : vector<2x8x8x16xf32> to vector<2x1x1x16xf32>
    %500 = vector.shape_cast %499 : vector<2x1x1x16xf32> to vector<2x16xf32>
    %501 = arith.maximumf %498, %500 : vector<2x16xf32>
    %502 = arith.maximumf %496, %501 : vector<2x16xf32>
    %503 = arith.truncf %502 : vector<2x16xf32> to vector<2x16xbf16>
    %c12_331 = arith.constant 12 : index
    %c0_332 = arith.constant 0 : index
    %c0_333 = arith.constant 0 : index
    %504 = vector.load %arg5[%c12_331, %c0_332, %c0_333] : memref<16x16x120xbf16, #tpu.memory_space<vmem>>, vector<1x16x120xbf16>
    %505 = vector.shape_cast %504 : vector<1x16x120xbf16> to vector<16x120xbf16>
    %cst_334 = arith.constant dense<0.000000e+00> : vector<2x120xf32>
    %506 = tpu.matmul %503, %505, %cst_334 {dimension_numbers = #tpu.dot_dimension_numbers<[1], [0], [0], [1], [0, 0, 1, 1], [], []>} : vector<2x16xbf16>, vector<16x120xbf16>, vector<2x120xf32> -> vector<2x120xf32>
    %507 = arith.addf %491, %506 : vector<2x120xf32>
    %508 = vector.extract_strided_slice %298 {offsets = [0, 6, 2, 0], sizes = [2, 1, 1, 16], strides = [1, 1, 1, 1]} : vector<2x8x8x16xf32> to vector<2x1x1x16xf32>
    %509 = vector.shape_cast %508 : vector<2x1x1x16xf32> to vector<2x16xf32>
    %510 = vector.extract_strided_slice %298 {offsets = [0, 6, 3, 0], sizes = [2, 1, 1, 16], strides = [1, 1, 1, 1]} : vector<2x8x8x16xf32> to vector<2x1x1x16xf32>
    %511 = vector.shape_cast %510 : vector<2x1x1x16xf32> to vector<2x16xf32>
    %512 = arith.maximumf %509, %511 : vector<2x16xf32>
    %513 = vector.extract_strided_slice %298 {offsets = [0, 7, 2, 0], sizes = [2, 1, 1, 16], strides = [1, 1, 1, 1]} : vector<2x8x8x16xf32> to vector<2x1x1x16xf32>
    %514 = vector.shape_cast %513 : vector<2x1x1x16xf32> to vector<2x16xf32>
    %515 = vector.extract_strided_slice %298 {offsets = [0, 7, 3, 0], sizes = [2, 1, 1, 16], strides = [1, 1, 1, 1]} : vector<2x8x8x16xf32> to vector<2x1x1x16xf32>
    %516 = vector.shape_cast %515 : vector<2x1x1x16xf32> to vector<2x16xf32>
    %517 = arith.maximumf %514, %516 : vector<2x16xf32>
    %518 = arith.maximumf %512, %517 : vector<2x16xf32>
    %519 = arith.truncf %518 : vector<2x16xf32> to vector<2x16xbf16>
    %c13_335 = arith.constant 13 : index
    %c0_336 = arith.constant 0 : index
    %c0_337 = arith.constant 0 : index
    %520 = vector.load %arg5[%c13_335, %c0_336, %c0_337] : memref<16x16x120xbf16, #tpu.memory_space<vmem>>, vector<1x16x120xbf16>
    %521 = vector.shape_cast %520 : vector<1x16x120xbf16> to vector<16x120xbf16>
    %cst_338 = arith.constant dense<0.000000e+00> : vector<2x120xf32>
    %522 = tpu.matmul %519, %521, %cst_338 {dimension_numbers = #tpu.dot_dimension_numbers<[1], [0], [0], [1], [0, 0, 1, 1], [], []>} : vector<2x16xbf16>, vector<16x120xbf16>, vector<2x120xf32> -> vector<2x120xf32>
    %523 = arith.addf %507, %522 : vector<2x120xf32>
    %524 = vector.extract_strided_slice %298 {offsets = [0, 6, 4, 0], sizes = [2, 1, 1, 16], strides = [1, 1, 1, 1]} : vector<2x8x8x16xf32> to vector<2x1x1x16xf32>
    %525 = vector.shape_cast %524 : vector<2x1x1x16xf32> to vector<2x16xf32>
    %526 = vector.extract_strided_slice %298 {offsets = [0, 6, 5, 0], sizes = [2, 1, 1, 16], strides = [1, 1, 1, 1]} : vector<2x8x8x16xf32> to vector<2x1x1x16xf32>
    %527 = vector.shape_cast %526 : vector<2x1x1x16xf32> to vector<2x16xf32>
    %528 = arith.maximumf %525, %527 : vector<2x16xf32>
    %529 = vector.extract_strided_slice %298 {offsets = [0, 7, 4, 0], sizes = [2, 1, 1, 16], strides = [1, 1, 1, 1]} : vector<2x8x8x16xf32> to vector<2x1x1x16xf32>
    %530 = vector.shape_cast %529 : vector<2x1x1x16xf32> to vector<2x16xf32>
    %531 = vector.extract_strided_slice %298 {offsets = [0, 7, 5, 0], sizes = [2, 1, 1, 16], strides = [1, 1, 1, 1]} : vector<2x8x8x16xf32> to vector<2x1x1x16xf32>
    %532 = vector.shape_cast %531 : vector<2x1x1x16xf32> to vector<2x16xf32>
    %533 = arith.maximumf %530, %532 : vector<2x16xf32>
    %534 = arith.maximumf %528, %533 : vector<2x16xf32>
    %535 = arith.truncf %534 : vector<2x16xf32> to vector<2x16xbf16>
    %c14_339 = arith.constant 14 : index
    %c0_340 = arith.constant 0 : index
    %c0_341 = arith.constant 0 : index
    %536 = vector.load %arg5[%c14_339, %c0_340, %c0_341] : memref<16x16x120xbf16, #tpu.memory_space<vmem>>, vector<1x16x120xbf16>
    %537 = vector.shape_cast %536 : vector<1x16x120xbf16> to vector<16x120xbf16>
    %cst_342 = arith.constant dense<0.000000e+00> : vector<2x120xf32>
    %538 = tpu.matmul %535, %537, %cst_342 {dimension_numbers = #tpu.dot_dimension_numbers<[1], [0], [0], [1], [0, 0, 1, 1], [], []>} : vector<2x16xbf16>, vector<16x120xbf16>, vector<2x120xf32> -> vector<2x120xf32>
    %539 = arith.addf %523, %538 : vector<2x120xf32>
    %540 = vector.extract_strided_slice %298 {offsets = [0, 6, 6, 0], sizes = [2, 1, 1, 16], strides = [1, 1, 1, 1]} : vector<2x8x8x16xf32> to vector<2x1x1x16xf32>
    %541 = vector.shape_cast %540 : vector<2x1x1x16xf32> to vector<2x16xf32>
    %542 = vector.extract_strided_slice %298 {offsets = [0, 6, 7, 0], sizes = [2, 1, 1, 16], strides = [1, 1, 1, 1]} : vector<2x8x8x16xf32> to vector<2x1x1x16xf32>
    %543 = vector.shape_cast %542 : vector<2x1x1x16xf32> to vector<2x16xf32>
    %544 = arith.maximumf %541, %543 : vector<2x16xf32>
    %545 = vector.extract_strided_slice %298 {offsets = [0, 7, 6, 0], sizes = [2, 1, 1, 16], strides = [1, 1, 1, 1]} : vector<2x8x8x16xf32> to vector<2x1x1x16xf32>
    %546 = vector.shape_cast %545 : vector<2x1x1x16xf32> to vector<2x16xf32>
    %547 = vector.extract_strided_slice %298 {offsets = [0, 7, 7, 0], sizes = [2, 1, 1, 16], strides = [1, 1, 1, 1]} : vector<2x8x8x16xf32> to vector<2x1x1x16xf32>
    %548 = vector.shape_cast %547 : vector<2x1x1x16xf32> to vector<2x16xf32>
    %549 = arith.maximumf %546, %548 : vector<2x16xf32>
    %550 = arith.maximumf %544, %549 : vector<2x16xf32>
    %551 = arith.truncf %550 : vector<2x16xf32> to vector<2x16xbf16>
    %c15_343 = arith.constant 15 : index
    %c0_344 = arith.constant 0 : index
    %c0_345 = arith.constant 0 : index
    %552 = vector.load %arg5[%c15_343, %c0_344, %c0_345] : memref<16x16x120xbf16, #tpu.memory_space<vmem>>, vector<1x16x120xbf16>
    %553 = vector.shape_cast %552 : vector<1x16x120xbf16> to vector<16x120xbf16>
    %cst_346 = arith.constant dense<0.000000e+00> : vector<2x120xf32>
    %554 = tpu.matmul %551, %553, %cst_346 {dimension_numbers = #tpu.dot_dimension_numbers<[1], [0], [0], [1], [0, 0, 1, 1], [], []>} : vector<2x16xbf16>, vector<16x120xbf16>, vector<2x120xf32> -> vector<2x120xf32>
    %555 = arith.addf %539, %554 : vector<2x120xf32>
    %c0_347 = arith.constant 0 : index
    %c0_348 = arith.constant 0 : index
    %556 = vector.load %arg6[%c0_347, %c0_348] : memref<1x120xf32, #tpu.memory_space<vmem>>, vector<1x120xf32>
    %557 = vector.broadcast %556 : vector<1x120xf32> to vector<2x120xf32>
    %558 = arith.addf %555, %557 : vector<2x120xf32>
    %559 = arith.negf %558 : vector<2x120xf32>
    %560 = math.exp %559 : vector<2x120xf32>
    %cst_349 = arith.constant 1.000000e+00 : f32
    %561 = vector.broadcast %cst_349 : f32 to vector<2x120xf32>
    %562 = arith.addf %561, %560 : vector<2x120xf32>
    %563 = arith.divf %561, %562 : vector<2x120xf32>
    %564 = arith.truncf %563 : vector<2x120xf32> to vector<2x120xbf16>
    %c0_350 = arith.constant 0 : index
    %c0_351 = arith.constant 0 : index
    %565 = vector.load %arg7[%c0_350, %c0_351] : memref<120x84xbf16, #tpu.memory_space<vmem>>, vector<120x84xbf16>
    %cst_352 = arith.constant dense<0.000000e+00> : vector<2x84xf32>
    %566 = tpu.matmul %564, %565, %cst_352 {dimension_numbers = #tpu.dot_dimension_numbers<[1], [0], [0], [1], [0, 0, 1, 1], [], []>} : vector<2x120xbf16>, vector<120x84xbf16>, vector<2x84xf32> -> vector<2x84xf32>
    %c0_353 = arith.constant 0 : index
    %c0_354 = arith.constant 0 : index
    %567 = vector.load %arg8[%c0_353, %c0_354] : memref<1x84xf32, #tpu.memory_space<vmem>>, vector<1x84xf32>
    %568 = vector.broadcast %567 : vector<1x84xf32> to vector<2x84xf32>
    %569 = arith.addf %566, %568 : vector<2x84xf32>
    %570 = arith.negf %569 : vector<2x84xf32>
    %571 = math.exp %570 : vector<2x84xf32>
    %cst_355 = arith.constant 1.000000e+00 : f32
    %572 = vector.broadcast %cst_355 : f32 to vector<2x84xf32>
    %573 = arith.addf %572, %571 : vector<2x84xf32>
    %574 = arith.divf %572, %573 : vector<2x84xf32>
    %575 = arith.truncf %574 : vector<2x84xf32> to vector<2x84xbf16>
    %c0_356 = arith.constant 0 : index
    %c0_357 = arith.constant 0 : index
    %576 = vector.load %arg9[%c0_356, %c0_357] : memref<84x10xbf16, #tpu.memory_space<vmem>>, vector<84x10xbf16>
    %cst_358 = arith.constant dense<0.000000e+00> : vector<2x10xf32>
    %577 = tpu.matmul %575, %576, %cst_358 {dimension_numbers = #tpu.dot_dimension_numbers<[1], [0], [0], [1], [0, 0, 1, 1], [], []>} : vector<2x84xbf16>, vector<84x10xbf16>, vector<2x10xf32> -> vector<2x10xf32>
    %c0_359 = arith.constant 0 : index
    %c0_360 = arith.constant 0 : index
    %578 = vector.load %arg10[%c0_359, %c0_360] : memref<1x10xf32, #tpu.memory_space<vmem>>, vector<1x10xf32>
    %579 = vector.broadcast %578 : vector<1x10xf32> to vector<2x10xf32>
    %580 = arith.addf %577, %579 : vector<2x10xf32>
    %c0_361 = arith.constant 0 : index
    %c0_362 = arith.constant 0 : index
    %581 = vector.load %arg11[%c0_361, %c0_362] : memref<2x10xf32, #tpu.memory_space<vmem>>, vector<2x10xf32>
    tpu.vector_store %arg11[%c0_361, %c0_362], %580 {strides = array<i32>} : memref<2x10xf32, #tpu.memory_space<vmem>>, vector<2x10xf32>,
    return
  }
}

</mosaic_0001>

<llo_original>
// kernel: lenet_forward.1
$region0: #{lenet_forward.1}
  #allocation0 [shape = 'u32[]', space=smem, size = 0x4, offset = 0x4, fixed_abs, tag = 'smem constant byte address 0x4 - core index']
  #allocation1 [shape = 'u32[144,128]{1,0:T(1,128)}', space=vmem, size = 0x12000, scoped, tag = 'internal scratch']
  #allocation2 [shape = 'f32[2,12,12,6]{3,2,1,0:T(8,128)}', space=vmem, size = 0x30000, scoped, tag = 'scratch operand']
  %s0 = inlined_call_operand.vmem [shape: bf16[1152,25], index: 0, kind: input, shape index: {}]
  %s1 = inlined_call_operand.vmem [shape: bf16[25,6], index: 1, kind: input, shape index: {}]
  %s2 = inlined_call_operand.vmem [shape: f32[1,6], index: 2, kind: input, shape index: {}]
  %s3 = inlined_call_operand.vmem [shape: bf16[25,6,16], index: 3, kind: input, shape index: {}]
  %s4 = inlined_call_operand.vmem [shape: f32[1,16], index: 4, kind: input, shape index: {}]
  %s5 = inlined_call_operand.vmem [shape: bf16[16,16,120], index: 5, kind: input, shape index: {}]
  %s6 = inlined_call_operand.vmem [shape: f32[1,120], index: 6, kind: input, shape index: {}]
  %s7 = inlined_call_operand.vmem [shape: bf16[120,84], index: 7, kind: input, shape index: {}]
  %s8 = inlined_call_operand.vmem [shape: f32[1,84], index: 8, kind: input, shape index: {}]
  %s9 = inlined_call_operand.vmem [shape: bf16[84,10], index: 9, kind: input, shape index: {}]
  %s10 = inlined_call_operand.vmem [shape: f32[1,10], index: 10, kind: input, shape index: {}]
  %s11 = inlined_call_operand.hbm [shape: f32[2,10], index: 11, kind: output, shape index: {}]
  %s12 = sld [smem:[#allocation0]]
  $region54: #{lenet_forward.1} parent=0
    _
  %s14 = ssub.s32 1, %s12
  %s15 = scalar_select 0, %s14, %s12
  $region1: #{lenet_forward.1} parent=0
    #allocation3 [shape = 'u8[1024]{0}', space=vmem, size = 0x400, scoped, tag = 'output window, operand 0, single buffered']
    #allocation4 [shape = 's32[1]{0}', space=sflag, size = 0x4, scoped, tag = 'scoped memory for lenet_forward.1']
    %16 = vsyncpa [#allocation4], 0
    // Predicated region
    $region2: #{lenet_forward.1} parent=1 // pred_check
      _
    $region3: #{lenet_forward.1} parent=1 // pred_check_branch
      %18 = sbr.rel (0) target = $region5
    $region4: #{lenet_forward.1} parent=1 // pred_region
      _
    $region5: #{lenet_forward.1} parent=1 // pred_fallthru
      _
    // Predicated region
    $region6: #{lenet_forward.1} parent=1 // pred_check
      _
    $region7: #{lenet_forward.1} parent=1 // pred_check_branch
      %20 = sbr.rel (0) target = $region9
    $region8: #{lenet_forward.1} parent=1 // pred_region
      _
    $region9: #{lenet_forward.1} parent=1 // pred_fallthru
      _
    // Predicated region
    $region10: #{lenet_forward.1} parent=1 // pred_check
      _
    $region11: #{lenet_forward.1} parent=1 // pred_check_branch
      %22 = sbr.rel (0) target = $region13
    $region12: #{lenet_forward.1} parent=1 // pred_region
      _
    $region13: #{lenet_forward.1} parent=1 // pred_fallthru
      _
    // Predicated region
    $region14: #{lenet_forward.1} parent=1 // pred_check
      _
    $region15: #{lenet_forward.1} parent=1 // pred_check_branch
      %24 = sbr.rel (0) target = $region17
    $region16: #{lenet_forward.1} parent=1 // pred_region
      _
    $region17: #{lenet_forward.1} parent=1 // pred_fallthru
      _
    // Predicated region
    $region18: #{lenet_forward.1} parent=1 // pred_check
      _
    $region19: #{lenet_forward.1} parent=1 // pred_check_branch
      %26 = sbr.rel (0) target = $region21
    $region20: #{lenet_forward.1} parent=1 // pred_region
      _
    $region21: #{lenet_forward.1} parent=1 // pred_fallthru
      _
    // Predicated region
    $region22: #{lenet_forward.1} parent=1 // pred_check
      _
    $region23: #{lenet_forward.1} parent=1 // pred_check_branch
      %28 = sbr.rel (0) target = $region25
    $region24: #{lenet_forward.1} parent=1 // pred_region
      _
    $region25: #{lenet_forward.1} parent=1 // pred_fallthru
      _
    // Predicated region
    $region26: #{lenet_forward.1} parent=1 // pred_check
      _
    $region27: #{lenet_forward.1} parent=1 // pred_check_branch
      %30 = sbr.rel (0) target = $region29
    $region28: #{lenet_forward.1} parent=1 // pred_region
      _
    $region29: #{lenet_forward.1} parent=1 // pred_fallthru
      _
    // Predicated region
    $region30: #{lenet_forward.1} parent=1 // pred_check
      _
    $region31: #{lenet_forward.1} parent=1 // pred_check_branch
      %32 = sbr.rel (0) target = $region33
    $region32: #{lenet_forward.1} parent=1 // pred_region
      _
    $region33: #{lenet_forward.1} parent=1 // pred_fallthru
      _
    // Predicated region
    $region34: #{lenet_forward.1} parent=1 // pred_check
      _
    $region35: #{lenet_forward.1} parent=1 // pred_check_branch
      %34 = sbr.rel (0) target = $region37
    $region36: #{lenet_forward.1} parent=1 // pred_region
      _
    $region37: #{lenet_forward.1} parent=1 // pred_fallthru
      _
    // Predicated region
    $region38: #{lenet_forward.1} parent=1 // pred_check
      _
    $region39: #{lenet_forward.1} parent=1 // pred_check_branch
      %36 = sbr.rel (0) target = $region41
    $region40: #{lenet_forward.1} parent=1 // pred_region
      _
    $region41: #{lenet_forward.1} parent=1 // pred_fallthru
      _
    // Predicated region
    $region42: #{lenet_forward.1} parent=1 // pred_check
      _
    $region43: #{lenet_forward.1} parent=1 // pred_check_branch
      %38 = sbr.rel (0) target = $region45
    $region44: #{lenet_forward.1} parent=1 // pred_region
      _
    $region45: #{lenet_forward.1} parent=1 // pred_fallthru
      _
    %v40 = vld [vmem:[%s0] sm:$0xf]
    %v41 = vld [vmem:[%s0 + $0x4] sm:$0xf]
    %v42 = vld [vmem:[%s0 + $0x8] sm:$0xf]
    %v43 = vld [vmem:[%s0 + $0xc] sm:$0xf]
    %v44 = vld [vmem:[%s0 + $0x10] sm:$0xf]
    %v45 = vld [vmem:[%s0 + $0x14] sm:$0xf]
    %v46 = vld [vmem:[%s0 + $0x18] sm:$0xf]
    %v47 = vld [vmem:[%s0 + $0x1c] sm:$0xf]
    %v48 = vld [vmem:[%s0 + $0x20] sm:$0xf]
    %v49 = vld [vmem:[%s0 + $0x24] sm:$0xf]
    %v50 = vld [vmem:[%s0 + $0x28] sm:$0xf]
    %v51 = vld [vmem:[%s0 + $0x2c] sm:$0xf]
    %v52 = vld [vmem:[%s0 + $0x30] sm:$0xf]
    %v53 = vld [vmem:[%s0 + $0x34] sm:$0xf]
    %v54 = vld [vmem:[%s0 + $0x38] sm:$0xf]
    %v55 = vld [vmem:[%s0 + $0x3c] sm:$0xf]
    %v56 = vld [vmem:[%s0 + $0x40] sm:$0xf]
    %v57 = vld [vmem:[%s0 + $0x44] sm:$0xf]
    %v58 = vld [vmem:[%s0 + $0x48] sm:$0xf]
    %v59 = vld [vmem:[%s0 + $0x4c] sm:$0xf]
    %v60 = vld [vmem:[%s0 + $0x50] sm:$0xf]
    %v61 = vld [vmem:[%s0 + $0x54] sm:$0xf]
    %v62 = vld [vmem:[%s0 + $0x58] sm:$0xf]
    %v63 = vld [vmem:[%s0 + $0x5c] sm:$0xf]
    %v64 = vld [vmem:[%s0 + $0x60] sm:$0xf]
    %v65 = vld [vmem:[%s0 + $0x64] sm:$0xf]
    %v66 = vld [vmem:[%s0 + $0x68] sm:$0xf]
    %v67 = vld [vmem:[%s0 + $0x6c] sm:$0xf]
    %v68 = vld [vmem:[%s0 + $0x70] sm:$0xf]
    %v69 = vld [vmem:[%s0 + $0x74] sm:$0xf]
    %v70 = vld [vmem:[%s0 + $0x78] sm:$0xf]
    %v71 = vld [vmem:[%s0 + $0x7c] sm:$0xf]
    %v72 = vld [vmem:[%s0 + $0x80] sm:$0xf]
    %v73 = vld [vmem:[%s0 + $0x84] sm:$0xf]
    %v74 = vld [vmem:[%s0 + $0x88] sm:$0xf]
    %v75 = vld [vmem:[%s0 + $0x8c] sm:$0xf]
    %v76 = vld [vmem:[%s0 + $0x90] sm:$0xf]
    %v77 = vld [vmem:[%s0 + $0x94] sm:$0xf]
    %v78 = vld [vmem:[%s0 + $0x98] sm:$0xf]
    %v79 = vld [vmem:[%s0 + $0x9c] sm:$0xf]
    %v80 = vld [vmem:[%s0 + $0xa0] sm:$0xf]
    %v81 = vld [vmem:[%s0 + $0xa4] sm:$0xf]
    %v82 = vld [vmem:[%s0 + $0xa8] sm:$0xf]
    %v83 = vld [vmem:[%s0 + $0xac] sm:$0xf]
    %v84 = vld [vmem:[%s0 + $0xb0] sm:$0xf]
    %v85 = vld [vmem:[%s0 + $0xb4] sm:$0xf]
    %v86 = vld [vmem:[%s0 + $0xb8] sm:$0xf]
    %v87 = vld [vmem:[%s0 + $0xbc] sm:$0xf]
    %v88 = vld [vmem:[%s0 + $0xc0] sm:$0xf]
    %v89 = vld [vmem:[%s0 + $0xc4] sm:$0xf]
    %v90 = vld [vmem:[%s0 + $0xc8] sm:$0xf]
    %v91 = vld [vmem:[%s0 + $0xcc] sm:$0xf]
    %v92 = vld [vmem:[%s0 + $0xd0] sm:$0xf]
    %v93 = vld [vmem:[%s0 + $0xd4] sm:$0xf]
    %v94 = vld [vmem:[%s0 + $0xd8] sm:$0xf]
    %v95 = vld [vmem:[%s0 + $0xdc] sm:$0xf]
    %v96 = vld [vmem:[%s0 + $0xe0] sm:$0xf]
    %v97 = vld [vmem:[%s0 + $0xe4] sm:$0xf]
    %v98 = vld [vmem:[%s0 + $0xe8] sm:$0xf]
    %v99 = vld [vmem:[%s0 + $0xec] sm:$0xf]
    %v100 = vld [vmem:[%s0 + $0xf0] sm:$0xf]
    %v101 = vld [vmem:[%s0 + $0xf4] sm:$0xf]
    %v102 = vld [vmem:[%s0 + $0xf8] sm:$0xf]
    %v103 = vld [vmem:[%s0 + $0xfc] sm:$0xf]
    %v104 = vld [vmem:[%s0 + $0x100] sm:$0xf]
    %v105 = vld [vmem:[%s0 + $0x104] sm:$0xf]
    %v106 = vld [vmem:[%s0 + $0x108] sm:$0xf]
    %v107 = vld [vmem:[%s0 + $0x10c] sm:$0xf]
    %v108 = vld [vmem:[%s0 + $0x110] sm:$0xf]
    %v109 = vld [vmem:[%s0 + $0x114] sm:$0xf]
    %v110 = vld [vmem:[%s0 + $0x118] sm:$0xf]
    %v111 = vld [vmem:[%s0 + $0x11c] sm:$0xf]
    %v112 = vld [vmem:[%s0 + $0x120] sm:$0xf]
    %v113 = vld [vmem:[%s0 + $0x124] sm:$0xf]
    %v114 = vld [vmem:[%s0 + $0x128] sm:$0xf]
    %v115 = vld [vmem:[%s0 + $0x12c] sm:$0xf]
    %v116 = vld [vmem:[%s0 + $0x130] sm:$0xf]
    %v117 = vld [vmem:[%s0 + $0x134] sm:$0xf]
    %v118 = vld [vmem:[%s0 + $0x138] sm:$0xf]
    %v119 = vld [vmem:[%s0 + $0x13c] sm:$0xf]
    %v120 = vld [vmem:[%s0 + $0x140] sm:$0xf]
    %v121 = vld [vmem:[%s0 + $0x144] sm:$0xf]
    %v122 = vld [vmem:[%s0 + $0x148] sm:$0xf]
    %v123 = vld [vmem:[%s0 + $0x14c] sm:$0xf]
    %v124 = vld [vmem:[%s0 + $0x150] sm:$0xf]
    %v125 = vld [vmem:[%s0 + $0x154] sm:$0xf]
    %v126 = vld [vmem:[%s0 + $0x158] sm:$0xf]
    %v127 = vld [vmem:[%s0 + $0x15c] sm:$0xf]
    %v128 = vld [vmem:[%s0 + $0x160] sm:$0xf]
    %v129 = vld [vmem:[%s0 + $0x164] sm:$0xf]
    %v130 = vld [vmem:[%s0 + $0x168] sm:$0xf]
    %v131 = vld [vmem:[%s0 + $0x16c] sm:$0xf]
    %v132 = vld [vmem:[%s0 + $0x170] sm:$0xf]
    %v133 = vld [vmem:[%s0 + $0x174] sm:$0xf]
    %v134 = vld [vmem:[%s0 + $0x178] sm:$0xf]
    %v135 = vld [vmem:[%s0 + $0x17c] sm:$0xf]
    %v136 = vld [vmem:[%s0 + $0x180] sm:$0xf]
    %v137 = vld [vmem:[%s0 + $0x184] sm:$0xf]
    %v138 = vld [vmem:[%s0 + $0x188] sm:$0xf]
    %v139 = vld [vmem:[%s0 + $0x18c] sm:$0xf]
    %v140 = vld [vmem:[%s0 + $0x190] sm:$0xf]
    %v141 = vld [vmem:[%s0 + $0x194] sm:$0xf]
    %v142 = vld [vmem:[%s0 + $0x198] sm:$0xf]
    %v143 = vld [vmem:[%s0 + $0x19c] sm:$0xf]
    %v144 = vld [vmem:[%s0 + $0x1a0] sm:$0xf]
    %v145 = vld [vmem:[%s0 + $0x1a4] sm:$0xf]
    %v146 = vld [vmem:[%s0 + $0x1a8] sm:$0xf]
    %v147 = vld [vmem:[%s0 + $0x1ac] sm:$0xf]
    %v148 = vld [vmem:[%s0 + $0x1b0] sm:$0xf]
    %v149 = vld [vmem:[%s0 + $0x1b4] sm:$0xf]
    %v150 = vld [vmem:[%s0 + $0x1b8] sm:$0xf]
    %v151 = vld [vmem:[%s0 + $0x1bc] sm:$0xf]
    %v152 = vld [vmem:[%s0 + $0x1c0] sm:$0xf]
    %v153 = vld [vmem:[%s0 + $0x1c4] sm:$0xf]
    %v154 = vld [vmem:[%s0 + $0x1c8] sm:$0xf]
    %v155 = vld [vmem:[%s0 + $0x1cc] sm:$0xf]
    %v156 = vld [vmem:[%s0 + $0x1d0] sm:$0xf]
    %v157 = vld [vmem:[%s0 + $0x1d4] sm:$0xf]
    %v158 = vld [vmem:[%s0 + $0x1d8] sm:$0xf]
    %v159 = vld [vmem:[%s0 + $0x1dc] sm:$0xf]
    %v160 = vld [vmem:[%s0 + $0x1e0] sm:$0xf]
    %v161 = vld [vmem:[%s0 + $0x1e4] sm:$0xf]
    %v162 = vld [vmem:[%s0 + $0x1e8] sm:$0xf]
    %v163 = vld [vmem:[%s0 + $0x1ec] sm:$0xf]
    %v164 = vld [vmem:[%s0 + $0x1f0] sm:$0xf]
    %v165 = vld [vmem:[%s0 + $0x1f4] sm:$0xf]
    %v166 = vld [vmem:[%s0 + $0x1f8] sm:$0xf]
    %v167 = vld [vmem:[%s0 + $0x1fc] sm:$0xf]
    %v168 = vld [vmem:[%s0 + $0x200] sm:$0xf]
    %v169 = vld [vmem:[%s0 + $0x204] sm:$0xf]
    %v170 = vld [vmem:[%s0 + $0x208] sm:$0xf]
    %v171 = vld [vmem:[%s0 + $0x20c] sm:$0xf]
    %v172 = vld [vmem:[%s0 + $0x210] sm:$0xf]
    %v173 = vld [vmem:[%s0 + $0x214] sm:$0xf]
    %v174 = vld [vmem:[%s0 + $0x218] sm:$0xf]
    %v175 = vld [vmem:[%s0 + $0x21c] sm:$0xf]
    %v176 = vld [vmem:[%s0 + $0x220] sm:$0xf]
    %v177 = vld [vmem:[%s0 + $0x224] sm:$0xf]
    %v178 = vld [vmem:[%s0 + $0x228] sm:$0xf]
    %v179 = vld [vmem:[%s0 + $0x22c] sm:$0xf]
    %v180 = vld [vmem:[%s0 + $0x230] sm:$0xf]
    %v181 = vld [vmem:[%s0 + $0x234] sm:$0xf]
    %v182 = vld [vmem:[%s0 + $0x238] sm:$0xf]
    %v183 = vld [vmem:[%s0 + $0x23c] sm:$0xf]
    %v184 = vld [vmem:[%s1] sm:$0xf]
    %v185 = vld [vmem:[%s1 + $0x4] sm:$0xf]
    %v186 = vld [vmem:[%s1 + $0x8] sm:$0xf]
    %v187 = vld [vmem:[%s1 + $0xc] sm:$0x1]
    %v188 = vld [vmem:[%s2] sm:$0x1]
    %v190 = vlaneseq
    %v191 = vshrl.u32 %v190, 7
    %v192 = vsub.s32 0, %v191
    %v193 = vrot.slane %v188, %v192
    %v339 = vunpack.c.l.b16 %v40
    %v340 = vunpack.c.l.b16 %v41
    %v341 = vunpack.c.l.b16 %v42
    %v342 = vunpack.c.l.b16 %v43
    %v343 = vunpack.c.l.b16 %v44
    %v344 = vunpack.c.l.b16 %v45
    %v345 = vunpack.c.l.b16 %v46
    %v346 = vunpack.c.l.b16 %v47
    %v347 = vunpack.c.l.b16 %v48
    %v348 = vunpack.c.l.b16 %v49
    %v349 = vunpack.c.l.b16 %v50
    %v350 = vunpack.c.l.b16 %v51
    %v351 = vunpack.c.l.b16 %v52
    %v352 = vunpack.c.l.b16 %v53
    %v353 = vunpack.c.l.b16 %v54
    %v354 = vunpack.c.l.b16 %v55
    %v355 = vunpack.c.l.b16 %v56
    %v356 = vunpack.c.l.b16 %v57
    %v357 = vunpack.c.l.b16 %v58
    %v358 = vunpack.c.l.b16 %v59
    %v359 = vunpack.c.l.b16 %v60
    %v360 = vunpack.c.l.b16 %v61
    %v361 = vunpack.c.l.b16 %v62
    %v362 = vunpack.c.l.b16 %v63
    %v363 = vunpack.c.l.b16 %v64
    %v364 = vunpack.c.l.b16 %v65
    %v365 = vunpack.c.l.b16 %v66
    %v366 = vunpack.c.l.b16 %v67
    %v367 = vunpack.c.l.b16 %v68
    %v368 = vunpack.c.l.b16 %v69
    %v369 = vunpack.c.l.b16 %v70
    %v370 = vunpack.c.l.b16 %v71
    %v371 = vunpack.c.l.b16 %v72
    %v372 = vunpack.c.l.b16 %v73
    %v373 = vunpack.c.l.b16 %v74
    %v374 = vunpack.c.l.b16 %v75
    %v375 = vunpack.c.l.b16 %v76
    %v376 = vunpack.c.l.b16 %v77
    %v377 = vunpack.c.l.b16 %v78
    %v378 = vunpack.c.l.b16 %v79
    %v379 = vunpack.c.l.b16 %v80
    %v380 = vunpack.c.l.b16 %v81
    %v381 = vunpack.c.l.b16 %v82
    %v382 = vunpack.c.l.b16 %v83
    %v383 = vunpack.c.l.b16 %v84
    %v384 = vunpack.c.l.b16 %v85
    %v385 = vunpack.c.l.b16 %v86
    %v386 = vunpack.c.l.b16 %v87
    %v387 = vunpack.c.l.b16 %v88
    %v388 = vunpack.c.l.b16 %v89
    %v389 = vunpack.c.l.b16 %v90
    %v390 = vunpack.c.l.b16 %v91
    %v391 = vunpack.c.l.b16 %v92
    %v392 = vunpack.c.l.b16 %v93
    %v393 = vunpack.c.l.b16 %v94
    %v394 = vunpack.c.l.b16 %v95
    %v395 = vunpack.c.l.b16 %v96
    %v396 = vunpack.c.l.b16 %v97
    %v397 = vunpack.c.l.b16 %v98
    %v398 = vunpack.c.l.b16 %v99
    %v399 = vunpack.c.l.b16 %v100
    %v400 = vunpack.c.l.b16 %v101
    %v401 = vunpack.c.l.b16 %v102
    %v402 = vunpack.c.l.b16 %v103
    %v403 = vunpack.c.l.b16 %v104
    %v404 = vunpack.c.l.b16 %v105
    %v405 = vunpack.c.l.b16 %v106
    %v406 = vunpack.c.l.b16 %v107
    %v407 = vunpack.c.l.b16 %v108
    %v408 = vunpack.c.l.b16 %v109
    %v409 = vunpack.c.l.b16 %v110
    %v410 = vunpack.c.l.b16 %v111
    %v411 = vunpack.c.l.b16 %v112
    %v412 = vunpack.c.l.b16 %v113
    %v413 = vunpack.c.l.b16 %v114
    %v414 = vunpack.c.l.b16 %v115
    %v415 = vunpack.c.l.b16 %v116
    %v416 = vunpack.c.l.b16 %v117
    %v417 = vunpack.c.l.b16 %v118
    %v418 = vunpack.c.l.b16 %v119
    %v419 = vunpack.c.l.b16 %v120
    %v420 = vunpack.c.l.b16 %v121
    %v421 = vunpack.c.l.b16 %v122
    %v422 = vunpack.c.l.b16 %v123
    %v423 = vunpack.c.l.b16 %v124
    %v424 = vunpack.c.l.b16 %v125
    %v425 = vunpack.c.l.b16 %v126
    %v426 = vunpack.c.l.b16 %v127
    %v427 = vunpack.c.l.b16 %v128
    %v428 = vunpack.c.l.b16 %v129
    %v429 = vunpack.c.l.b16 %v130
    %v430 = vunpack.c.l.b16 %v131
    %v431 = vunpack.c.l.b16 %v132
    %v432 = vunpack.c.l.b16 %v133
    %v433 = vunpack.c.l.b16 %v134
    %v434 = vunpack.c.l.b16 %v135
    %v435 = vunpack.c.l.b16 %v136
    %v436 = vunpack.c.l.b16 %v137
    %v437 = vunpack.c.l.b16 %v138
    %v438 = vunpack.c.l.b16 %v139
    %v439 = vunpack.c.l.b16 %v140
    %v440 = vunpack.c.l.b16 %v141
    %v441 = vunpack.c.l.b16 %v142
    %v442 = vunpack.c.l.b16 %v143
    %v443 = vunpack.c.l.b16 %v144
    %v444 = vunpack.c.l.b16 %v145
    %v445 = vunpack.c.l.b16 %v146
    %v446 = vunpack.c.l.b16 %v147
    %v447 = vunpack.c.l.b16 %v148
    %v448 = vunpack.c.l.b16 %v149
    %v449 = vunpack.c.l.b16 %v150
    %v450 = vunpack.c.l.b16 %v151
    %v451 = vunpack.c.l.b16 %v152
    %v452 = vunpack.c.l.b16 %v153
    %v453 = vunpack.c.l.b16 %v154
    %v454 = vunpack.c.l.b16 %v155
    %v455 = vunpack.c.l.b16 %v156
    %v456 = vunpack.c.l.b16 %v157
    %v457 = vunpack.c.l.b16 %v158
    %v458 = vunpack.c.l.b16 %v159
    %v459 = vunpack.c.l.b16 %v160
    %v460 = vunpack.c.l.b16 %v161
    %v461 = vunpack.c.l.b16 %v162
    %v462 = vunpack.c.l.b16 %v163
    %v463 = vunpack.c.l.b16 %v164
    %v464 = vunpack.c.l.b16 %v165
    %v465 = vunpack.c.l.b16 %v166
    %v466 = vunpack.c.l.b16 %v167
    %v467 = vunpack.c.l.b16 %v168
    %v468 = vunpack.c.l.b16 %v169
    %v469 = vunpack.c.l.b16 %v170
    %v470 = vunpack.c.l.b16 %v171
    %v471 = vunpack.c.l.b16 %v172
    %v472 = vunpack.c.l.b16 %v173
    %v473 = vunpack.c.l.b16 %v174
    %v474 = vunpack.c.l.b16 %v175
    %v475 = vunpack.c.l.b16 %v176
    %v476 = vunpack.c.l.b16 %v177
    %v477 = vunpack.c.l.b16 %v178
    %v478 = vunpack.c.l.b16 %v179
    %v479 = vunpack.c.l.b16 %v180
    %v480 = vunpack.c.l.b16 %v181
    %v481 = vunpack.c.l.b16 %v182
    %v482 = vunpack.c.l.b16 %v183
    %v483 = vpack.c.b16 %v340, %v339
    %v484 = vpack.c.b16 %v342, %v341
    %v485 = vpack.c.b16 %v344, %v343
    %v486 = vpack.c.b16 %v346, %v345
    %v487 = vpack.c.b16 %v348, %v347
    %v488 = vpack.c.b16 %v350, %v349
    %v489 = vpack.c.b16 %v352, %v351
    %v490 = vpack.c.b16 %v354, %v353
    %v491 = vpack.c.b16 %v356, %v355
    %v492 = vpack.c.b16 %v358, %v357
    %v493 = vpack.c.b16 %v360, %v359
    %v494 = vpack.c.b16 %v362, %v361
    %v495 = vpack.c.b16 %v364, %v363
    %v496 = vpack.c.b16 %v366, %v365
    %v497 = vpack.c.b16 %v368, %v367
    %v498 = vpack.c.b16 %v370, %v369
    %v499 = vpack.c.b16 %v372, %v371
    %v500 = vpack.c.b16 %v374, %v373
    %v501 = vpack.c.b16 %v376, %v375
    %v502 = vpack.c.b16 %v378, %v377
    %v503 = vpack.c.b16 %v380, %v379
    %v504 = vpack.c.b16 %v382, %v381
    %v505 = vpack.c.b16 %v384, %v383
    %v506 = vpack.c.b16 %v386, %v385
    %v507 = vpack.c.b16 %v388, %v387
    %v508 = vpack.c.b16 %v390, %v389
    %v509 = vpack.c.b16 %v392, %v391
    %v510 = vpack.c.b16 %v394, %v393
    %v511 = vpack.c.b16 %v396, %v395
    %v512 = vpack.c.b16 %v398, %v397
    %v513 = vpack.c.b16 %v400, %v399
    %v514 = vpack.c.b16 %v402, %v401
    %v515 = vpack.c.b16 %v404, %v403
    %v516 = vpack.c.b16 %v406, %v405
    %v517 = vpack.c.b16 %v408, %v407
    %v518 = vpack.c.b16 %v410, %v409
    %v519 = vpack.c.b16 %v412, %v411
    %v520 = vpack.c.b16 %v414, %v413
    %v521 = vpack.c.b16 %v416, %v415
    %v522 = vpack.c.b16 %v418, %v417
    %v523 = vpack.c.b16 %v420, %v419
    %v524 = vpack.c.b16 %v422, %v421
    %v525 = vpack.c.b16 %v424, %v423
    %v526 = vpack.c.b16 %v426, %v425
    %v527 = vpack.c.b16 %v428, %v427
    %v528 = vpack.c.b16 %v430, %v429
    %v529 = vpack.c.b16 %v432, %v431
    %v530 = vpack.c.b16 %v434, %v433
    %v531 = vpack.c.b16 %v436, %v435
    %v532 = vpack.c.b16 %v438, %v437
    %v533 = vpack.c.b16 %v440, %v439
    %v534 = vpack.c.b16 %v442, %v441
    %v535 = vpack.c.b16 %v444, %v443
    %v536 = vpack.c.b16 %v446, %v445
    %v537 = vpack.c.b16 %v448, %v447
    %v538 = vpack.c.b16 %v450, %v449
    %v539 = vpack.c.b16 %v452, %v451
    %v540 = vpack.c.b16 %v454, %v453
    %v541 = vpack.c.b16 %v456, %v455
    %v542 = vpack.c.b16 %v458, %v457
    %v543 = vpack.c.b16 %v460, %v459
    %v544 = vpack.c.b16 %v462, %v461
    %v545 = vpack.c.b16 %v464, %v463
    %v546 = vpack.c.b16 %v466, %v465
    %v547 = vpack.c.b16 %v468, %v467
    %v548 = vpack.c.b16 %v470, %v469
    %v549 = vpack.c.b16 %v472, %v471
    %v550 = vpack.c.b16 %v474, %v473
    %v551 = vpack.c.b16 %v476, %v475
    %v552 = vpack.c.b16 %v478, %v477
    %v553 = vpack.c.b16 %v480, %v479
    %v554 = vpack.c.b16 %v482, %v481
    %v559 = vunpack.c.l.b16 %v184
    %v560 = vunpack.c.l.b16 %v185
    %v561 = vunpack.c.l.b16 %v186
    %v562 = vunpack.c.l.b16 %v187
    %v563 = vpack.c.b16 %v560, %v559
    %v564 = vpack.c.b16 %v562, %v561
    %vm566 = vcmask 203776
    %v568 = vsel %vm566, %v483, 0
    %v571 = vsel %vm566, %v484, 0
    %v574 = vsel %vm566, %v485, 0
    %v577 = vsel %vm566, %v486, 0
    %v580 = vsel %vm566, %v487, 0
    %v583 = vsel %vm566, %v488, 0
    %v586 = vsel %vm566, %v489, 0
    %v589 = vsel %vm566, %v490, 0
    %v592 = vsel %vm566, %v491, 0
    %v595 = vsel %vm566, %v492, 0
    %v598 = vsel %vm566, %v493, 0
    %v601 = vsel %vm566, %v494, 0
    %v604 = vsel %vm566, %v495, 0
    %v607 = vsel %vm566, %v496, 0
    %v610 = vsel %vm566, %v497, 0
    %v613 = vsel %vm566, %v498, 0
    %v616 = vsel %vm566, %v499, 0
    %v619 = vsel %vm566, %v500, 0
    %v622 = vsel %vm566, %v501, 0
    %v625 = vsel %vm566, %v502, 0
    %v628 = vsel %vm566, %v503, 0
    %v631 = vsel %vm566, %v504, 0
    %v634 = vsel %vm566, %v505, 0
    %v637 = vsel %vm566, %v506, 0
    %v640 = vsel %vm566, %v507, 0
    %v643 = vsel %vm566, %v508, 0
    %v646 = vsel %vm566, %v509, 0
    %v649 = vsel %vm566, %v510, 0
    %v652 = vsel %vm566, %v511, 0
    %v655 = vsel %vm566, %v512, 0
    %v658 = vsel %vm566, %v513, 0
    %v661 = vsel %vm566, %v514, 0
    %v664 = vsel %vm566, %v515, 0
    %v667 = vsel %vm566, %v516, 0
    %v670 = vsel %vm566, %v517, 0
    %v673 = vsel %vm566, %v518, 0
    %v676 = vsel %vm566, %v519, 0
    %v679 = vsel %vm566, %v520, 0
    %v682 = vsel %vm566, %v521, 0
    %v685 = vsel %vm566, %v522, 0
    %v688 = vsel %vm566, %v523, 0
    %v691 = vsel %vm566, %v524, 0
    %v694 = vsel %vm566, %v525, 0
    %v697 = vsel %vm566, %v526, 0
    %v700 = vsel %vm566, %v527, 0
    %v703 = vsel %vm566, %v528, 0
    %v706 = vsel %vm566, %v529, 0
    %v709 = vsel %vm566, %v530, 0
    %v712 = vsel %vm566, %v531, 0
    %v715 = vsel %vm566, %v532, 0
    %v718 = vsel %vm566, %v533, 0
    %v721 = vsel %vm566, %v534, 0
    %v724 = vsel %vm566, %v535, 0
    %v727 = vsel %vm566, %v536, 0
    %v730 = vsel %vm566, %v537, 0
    %v733 = vsel %vm566, %v538, 0
    %v736 = vsel %vm566, %v539, 0
    %v739 = vsel %vm566, %v540, 0
    %v742 = vsel %vm566, %v541, 0
    %v745 = vsel %vm566, %v542, 0
    %v748 = vsel %vm566, %v543, 0
    %v751 = vsel %vm566, %v544, 0
    %v754 = vsel %vm566, %v545, 0
    %v757 = vsel %vm566, %v546, 0
    %v760 = vsel %vm566, %v547, 0
    %v763 = vsel %vm566, %v548, 0
    %v766 = vsel %vm566, %v549, 0
    %v769 = vsel %vm566, %v550, 0
    %v772 = vsel %vm566, %v551, 0
    %v775 = vsel %vm566, %v552, 0
    %v778 = vsel %vm566, %v553, 0
    %v781 = vsel %vm566, %v554, 0
    %vm783 = vcmask 1043456
    %vm784 = vcmask 1044480
    %v785 = vsel %vm783, 4294967295, 65535
    %v786 = vsel %vm784, %v785, 0
    %v788 = vand.u32 %v564, %v786
    %790 = vmatprep.subr.bf16.mxu0 0
    %791 = vmatpush1.bf16.msra.mxu0 %v563
    %792 = vmatprep.subr.bf16.mxu0 0
    %793 = vmatpush1.bf16.msra.mxu0 %v788
    %794 = vmatprep.subr.bf16.mxu0 0
    %795 = vmatpush1.bf16.msra.mxu0 0
    %796 = vmatprep.subr.bf16.mxu0 0
    %797 = vmatpush1.bf16.msra.mxu0 0
    %798 = vmatprep.subr.bf16.mxu0 0
    %799 = vmatpush1.bf16.msra.mxu0 0
    %800 = vmatprep.subr.bf16.mxu0 0
    %801 = vmatpush1.bf16.msra.mxu0 0
    %802 = vmatprep.subr.bf16.mxu0 0
    %803 = vmatpush1.bf16.msra.mxu0 0
    %804 = vmatprep.subr.bf16.mxu0 0
    %805 = vmatpush1.bf16.msra.mxu0 0
    %806 = vmatprep.subr.bf16.mxu0 0
    %807 = vmatpush1.bf16.msra.mxu0 0
    %808 = vmatprep.subr.bf16.mxu0 0
    %809 = vmatpush1.bf16.msra.mxu0 0
    %810 = vmatprep.subr.bf16.mxu0 0
    %811 = vmatpush1.bf16.msra.mxu0 0
    %812 = vmatprep.subr.bf16.mxu0 0
    %813 = vmatpush1.bf16.msra.mxu0 0
    %814 = vmatprep.subr.bf16.mxu0 0
    %815 = vmatpush1.bf16.msra.mxu0 0
    %816 = vmatprep.subr.bf16.mxu0 0
    %817 = vmatpush1.bf16.msra.mxu0 0
    %818 = vmatprep.subr.bf16.mxu0 0
    %819 = vmatpush1.bf16.msra.mxu0 0
    %820 = vmatprep.subr.bf16.mxu0 0
    %821 = vmatpush1.bf16.msra.mxu0 0
    %822 = vmatprep.mubr.bf16.mxu0 0
    %823 = vmatmul.mubr.bf16.gmra.mrb[0].mxu0 %v568
    %v824 = vpop.f32.mrb[0].mxu0
    %v825 = vadd.f32 %v193, %v824
    %v826 = vpop.f32.mrb[0].mxu0
    %v827 = vpop.f32.mrb[0].mxu0
    %v828 = vadd.f32 %v193, %v827
    %v829 = vpop.f32.mrb[0].mxu0
    %830 = vmatprep.mubr.bf16.mxu0 0
    %831 = vmatmul.mubr.bf16.gmra.mrb[0].mxu0 %v571
    %v832 = vpop.f32.mrb[0].mxu0
    %v833 = vadd.f32 %v193, %v832
    %v834 = vpop.f32.mrb[0].mxu0
    %v835 = vpop.f32.mrb[0].mxu0
    %v836 = vadd.f32 %v193, %v835
    %v837 = vpop.f32.mrb[0].mxu0
    %838 = vmatprep.mubr.bf16.mxu0 0
    %839 = vmatmul.mubr.bf16.gmra.mrb[0].mxu0 %v574
    %v840 = vpop.f32.mrb[0].mxu0
    %v841 = vadd.f32 %v193, %v840
    %v842 = vpop.f32.mrb[0].mxu0
    %v843 = vpop.f32.mrb[0].mxu0
    %v844 = vadd.f32 %v193, %v843
    %v845 = vpop.f32.mrb[0].mxu0
    %846 = vmatprep.mubr.bf16.mxu0 0
    %847 = vmatmul.mubr.bf16.gmra.mrb[0].mxu0 %v577
    %v848 = vpop.f32.mrb[0].mxu0
    %v849 = vadd.f32 %v193, %v848
    %v850 = vpop.f32.mrb[0].mxu0
    %v851 = vpop.f32.mrb[0].mxu0
    %v852 = vadd.f32 %v193, %v851
    %v853 = vpop.f32.mrb[0].mxu0
    %854 = vmatprep.mubr.bf16.mxu0 0
    %855 = vmatmul.mubr.bf16.gmra.mrb[0].mxu0 %v580
    %v856 = vpop.f32.mrb[0].mxu0
    %v857 = vadd.f32 %v193, %v856
    %v858 = vpop.f32.mrb[0].mxu0
    %v859 = vpop.f32.mrb[0].mxu0
    %v860 = vadd.f32 %v193, %v859
    %v861 = vpop.f32.mrb[0].mxu0
    %862 = vmatprep.mubr.bf16.mxu0 0
    %863 = vmatmul.mubr.bf16.gmra.mrb[0].mxu0 %v583
    %v864 = vpop.f32.mrb[0].mxu0
    %v865 = vadd.f32 %v193, %v864
    %v866 = vpop.f32.mrb[0].mxu0
    %v867 = vpop.f32.mrb[0].mxu0
    %v868 = vadd.f32 %v193, %v867
    %v869 = vpop.f32.mrb[0].mxu0
    %870 = vmatprep.mubr.bf16.mxu0 0
    %871 = vmatmul.mubr.bf16.gmra.mrb[0].mxu0 %v586
    %v872 = vpop.f32.mrb[0].mxu0
    %v873 = vadd.f32 %v193, %v872
    %v874 = vpop.f32.mrb[0].mxu0
    %v875 = vpop.f32.mrb[0].mxu0
    %v876 = vadd.f32 %v193, %v875
    %v877 = vpop.f32.mrb[0].mxu0
    %878 = vmatprep.mubr.bf16.mxu0 0
    %879 = vmatmul.mubr.bf16.gmra.mrb[0].mxu0 %v589
    %v880 = vpop.f32.mrb[0].mxu0
    %v881 = vadd.f32 %v193, %v880
    %v882 = vpop.f32.mrb[0].mxu0
    %v883 = vpop.f32.mrb[0].mxu0
    %v884 = vadd.f32 %v193, %v883
    %v885 = vpop.f32.mrb[0].mxu0
    %886 = vmatprep.mubr.bf16.mxu0 0
    %887 = vmatmul.mubr.bf16.gmra.mrb[0].mxu0 %v592
    %v888 = vpop.f32.mrb[0].mxu0
    %v889 = vadd.f32 %v193, %v888
    %v890 = vpop.f32.mrb[0].mxu0
    %v891 = vpop.f32.mrb[0].mxu0
    %v892 = vadd.f32 %v193, %v891
    %v893 = vpop.f32.mrb[0].mxu0
    %894 = vmatprep.mubr.bf16.mxu0 0
    %895 = vmatmul.mubr.bf16.gmra.mrb[0].mxu0 %v595
    %v896 = vpop.f32.mrb[0].mxu0
    %v897 = vadd.f32 %v193, %v896
    %v898 = vpop.f32.mrb[0].mxu0
    %v899 = vpop.f32.mrb[0].mxu0
    %v900 = vadd.f32 %v193, %v899
    %v901 = vpop.f32.mrb[0].mxu0
    %902 = vmatprep.mubr.bf16.mxu0 0
    %903 = vmatmul.mubr.bf16.gmra.mrb[0].mxu0 %v598
    %v904 = vpop.f32.mrb[0].mxu0
    %v905 = vadd.f32 %v193, %v904
    %v906 = vpop.f32.mrb[0].mxu0
    %v907 = vpop.f32.mrb[0].mxu0
    %v908 = vadd.f32 %v193, %v907
    %v909 = vpop.f32.mrb[0].mxu0
    %910 = vmatprep.mubr.bf16.mxu0 0
    %911 = vmatmul.mubr.bf16.gmra.mrb[0].mxu0 %v601
    %v912 = vpop.f32.mrb[0].mxu0
    %v913 = vadd.f32 %v193, %v912
    %v914 = vpop.f32.mrb[0].mxu0
    %v915 = vpop.f32.mrb[0].mxu0
    %v916 = vadd.f32 %v193, %v915
    %v917 = vpop.f32.mrb[0].mxu0
    %918 = vmatprep.mubr.bf16.mxu0 0
    %919 = vmatmul.mubr.bf16.gmra.mrb[0].mxu0 %v604
    %v920 = vpop.f32.mrb[0].mxu0
    %v921 = vadd.f32 %v193, %v920
    %v922 = vpop.f32.mrb[0].mxu0
    %v923 = vpop.f32.mrb[0].mxu0
    %v924 = vadd.f32 %v193, %v923
    %v925 = vpop.f32.mrb[0].mxu0
    %926 = vmatprep.mubr.bf16.mxu0 0
    %927 = vmatmul.mubr.bf16.gmra.mrb[0].mxu0 %v607
    %v928 = vpop.f32.mrb[0].mxu0
    %v929 = vadd.f32 %v193, %v928
    %v930 = vpop.f32.mrb[0].mxu0
    %v931 = vpop.f32.mrb[0].mxu0
    %v932 = vadd.f32 %v193, %v931
    %v933 = vpop.f32.mrb[0].mxu0
    %934 = vmatprep.mubr.bf16.mxu0 0
    %935 = vmatmul.mubr.bf16.gmra.mrb[0].mxu0 %v610
    %v936 = vpop.f32.mrb[0].mxu0
    %v937 = vadd.f32 %v193, %v936
    %v938 = vpop.f32.mrb[0].mxu0
    %v939 = vpop.f32.mrb[0].mxu0
    %v940 = vadd.f32 %v193, %v939
    %v941 = vpop.f32.mrb[0].mxu0
    %942 = vmatprep.mubr.bf16.mxu0 0
    %943 = vmatmul.mubr.bf16.gmra.mrb[0].mxu0 %v613
    %v944 = vpop.f32.mrb[0].mxu0
    %v945 = vadd.f32 %v193, %v944
    %v946 = vpop.f32.mrb[0].mxu0
    %v947 = vpop.f32.mrb[0].mxu0
    %v948 = vadd.f32 %v193, %v947
    %v949 = vpop.f32.mrb[0].mxu0
    %950 = vmatprep.mubr.bf16.mxu0 0
    %951 = vmatmul.mubr.bf16.gmra.mrb[0].mxu0 %v616
    %v952 = vpop.f32.mrb[0].mxu0
    %v953 = vadd.f32 %v193, %v952
    %v954 = vpop.f32.mrb[0].mxu0
    %v955 = vpop.f32.mrb[0].mxu0
    %v956 = vadd.f32 %v193, %v955
    %v957 = vpop.f32.mrb[0].mxu0
    %958 = vmatprep.mubr.bf16.mxu0 0
    %959 = vmatmul.mubr.bf16.gmra.mrb[0].mxu0 %v619
    %v960 = vpop.f32.mrb[0].mxu0
    %v961 = vadd.f32 %v193, %v960
    %v962 = vpop.f32.mrb[0].mxu0
    %v963 = vpop.f32.mrb[0].mxu0
    %v964 = vadd.f32 %v193, %v963
    %v965 = vpop.f32.mrb[0].mxu0
    %966 = vmatprep.mubr.bf16.mxu0 0
    %967 = vmatmul.mubr.bf16.gmra.mrb[0].mxu0 %v622
    %v968 = vpop.f32.mrb[0].mxu0
    %v969 = vadd.f32 %v193, %v968
    %v970 = vpop.f32.mrb[0].mxu0
    %v971 = vpop.f32.mrb[0].mxu0
    %v972 = vadd.f32 %v193, %v971
    %v973 = vpop.f32.mrb[0].mxu0
    %974 = vmatprep.mubr.bf16.mxu0 0
    %975 = vmatmul.mubr.bf16.gmra.mrb[0].mxu0 %v625
    %v976 = vpop.f32.mrb[0].mxu0
    %v977 = vadd.f32 %v193, %v976
    %v978 = vpop.f32.mrb[0].mxu0
    %v979 = vpop.f32.mrb[0].mxu0
    %v980 = vadd.f32 %v193, %v979
    %v981 = vpop.f32.mrb[0].mxu0
    %982 = vmatprep.mubr.bf16.mxu0 0
    %983 = vmatmul.mubr.bf16.gmra.mrb[0].mxu0 %v628
    %v984 = vpop.f32.mrb[0].mxu0
    %v985 = vadd.f32 %v193, %v984
    %v986 = vpop.f32.mrb[0].mxu0
    %v987 = vpop.f32.mrb[0].mxu0
    %v988 = vadd.f32 %v193, %v987
    %v989 = vpop.f32.mrb[0].mxu0
    %990 = vmatprep.mubr.bf16.mxu0 0
    %991 = vmatmul.mubr.bf16.gmra.mrb[0].mxu0 %v631
    %v992 = vpop.f32.mrb[0].mxu0
    %v993 = vadd.f32 %v193, %v992
    %v994 = vpop.f32.mrb[0].mxu0
    %v995 = vpop.f32.mrb[0].mxu0
    %v996 = vadd.f32 %v193, %v995
    %v997 = vpop.f32.mrb[0].mxu0
    %998 = vmatprep.mubr.bf16.mxu0 0
    %999 = vmatmul.mubr.bf16.gmra.mrb[0].mxu0 %v634
    %v1000 = vpop.f32.mrb[0].mxu0
    %v1001 = vadd.f32 %v193, %v1000
    %v1002 = vpop.f32.mrb[0].mxu0
    %v1003 = vpop.f32.mrb[0].mxu0
    %v1004 = vadd.f32 %v193, %v1003
    %v1005 = vpop.f32.mrb[0].mxu0
    %1006 = vmatprep.mubr.bf16.mxu0 0
    %1007 = vmatmul.mubr.bf16.gmra.mrb[0].mxu0 %v637
    %v1008 = vpop.f32.mrb[0].mxu0
    %v1009 = vadd.f32 %v193, %v1008
    %v1010 = vpop.f32.mrb[0].mxu0
    %v1011 = vpop.f32.mrb[0].mxu0
    %v1012 = vadd.f32 %v193, %v1011
    %v1013 = vpop.f32.mrb[0].mxu0
    %1014 = vmatprep.mubr.bf16.mxu0 0
    %1015 = vmatmul.mubr.bf16.gmra.mrb[0].mxu0 %v640
    %v1016 = vpop.f32.mrb[0].mxu0
    %v1017 = vadd.f32 %v193, %v1016
    %v1018 = vpop.f32.mrb[0].mxu0
    %v1019 = vpop.f32.mrb[0].mxu0
    %v1020 = vadd.f32 %v193, %v1019
    %v1021 = vpop.f32.mrb[0].mxu0
    %1022 = vmatprep.mubr.bf16.mxu0 0
    %1023 = vmatmul.mubr.bf16.gmra.mrb[0].mxu0 %v643
    %v1024 = vpop.f32.mrb[0].mxu0
    %v1025 = vadd.f32 %v193, %v1024
    %v1026 = vpop.f32.mrb[0].mxu0
    %v1027 = vpop.f32.mrb[0].mxu0
    %v1028 = vadd.f32 %v193, %v1027
    %v1029 = vpop.f32.mrb[0].mxu0
    %1030 = vmatprep.mubr.bf16.mxu0 0
    %1031 = vmatmul.mubr.bf16.gmra.mrb[0].mxu0 %v646
    %v1032 = vpop.f32.mrb[0].mxu0
    %v1033 = vadd.f32 %v193, %v1032
    %v1034 = vpop.f32.mrb[0].mxu0
    %v1035 = vpop.f32.mrb[0].mxu0
    %v1036 = vadd.f32 %v193, %v1035
    %v1037 = vpop.f32.mrb[0].mxu0
    %1038 = vmatprep.mubr.bf16.mxu0 0
    %1039 = vmatmul.mubr.bf16.gmra.mrb[0].mxu0 %v649
    %v1040 = vpop.f32.mrb[0].mxu0
    %v1041 = vadd.f32 %v193, %v1040
    %v1042 = vpop.f32.mrb[0].mxu0
    %v1043 = vpop.f32.mrb[0].mxu0
    %v1044 = vadd.f32 %v193, %v1043
    %v1045 = vpop.f32.mrb[0].mxu0
    %1046 = vmatprep.mubr.bf16.mxu0 0
    %1047 = vmatmul.mubr.bf16.gmra.mrb[0].mxu0 %v652
    %v1048 = vpop.f32.mrb[0].mxu0
    %v1049 = vadd.f32 %v193, %v1048
    %v1050 = vpop.f32.mrb[0].mxu0
    %v1051 = vpop.f32.mrb[0].mxu0
    %v1052 = vadd.f32 %v193, %v1051
    %v1053 = vpop.f32.mrb[0].mxu0
    %1054 = vmatprep.mubr.bf16.mxu0 0
    %1055 = vmatmul.mubr.bf16.gmra.mrb[0].mxu0 %v655
    %v1056 = vpop.f32.mrb[0].mxu0
    %v1057 = vadd.f32 %v193, %v1056
    %v1058 = vpop.f32.mrb[0].mxu0
    %v1059 = vpop.f32.mrb[0].mxu0
    %v1060 = vadd.f32 %v193, %v1059
    %v1061 = vpop.f32.mrb[0].mxu0
    %1062 = vmatprep.mubr.bf16.mxu0 0
    %1063 = vmatmul.mubr.bf16.gmra.mrb[0].mxu0 %v658
    %v1064 = vpop.f32.mrb[0].mxu0
    %v1065 = vadd.f32 %v193, %v1064
    %v1066 = vpop.f32.mrb[0].mxu0
    %v1067 = vpop.f32.mrb[0].mxu0
    %v1068 = vadd.f32 %v193, %v1067
    %v1069 = vpop.f32.mrb[0].mxu0
    %1070 = vmatprep.mubr.bf16.mxu0 0
    %1071 = vmatmul.mubr.bf16.gmra.mrb[0].mxu0 %v661
    %v1072 = vpop.f32.mrb[0].mxu0
    %v1073 = vadd.f32 %v193, %v1072
    %v1074 = vpop.f32.mrb[0].mxu0
    %v1075 = vpop.f32.mrb[0].mxu0
    %v1076 = vadd.f32 %v193, %v1075
    %v1077 = vpop.f32.mrb[0].mxu0
    %1078 = vmatprep.mubr.bf16.mxu0 0
    %1079 = vmatmul.mubr.bf16.gmra.mrb[0].mxu0 %v664
    %v1080 = vpop.f32.mrb[0].mxu0
    %v1081 = vadd.f32 %v193, %v1080
    %v1082 = vpop.f32.mrb[0].mxu0
    %v1083 = vpop.f32.mrb[0].mxu0
    %v1084 = vadd.f32 %v193, %v1083
    %v1085 = vpop.f32.mrb[0].mxu0
    %1086 = vmatprep.mubr.bf16.mxu0 0
    %1087 = vmatmul.mubr.bf16.gmra.mrb[0].mxu0 %v667
    %v1088 = vpop.f32.mrb[0].mxu0
    %v1089 = vadd.f32 %v193, %v1088
    %v1090 = vpop.f32.mrb[0].mxu0
    %v1091 = vpop.f32.mrb[0].mxu0
    %v1092 = vadd.f32 %v193, %v1091
    %v1093 = vpop.f32.mrb[0].mxu0
    %1094 = vmatprep.mubr.bf16.mxu0 0
    %1095 = vmatmul.mubr.bf16.gmra.mrb[0].mxu0 %v670
    %v1096 = vpop.f32.mrb[0].mxu0
    %v1097 = vadd.f32 %v193, %v1096
    %v1098 = vpop.f32.mrb[0].mxu0
    %v1099 = vpop.f32.mrb[0].mxu0
    %v1100 = vadd.f32 %v193, %v1099
    %v1101 = vpop.f32.mrb[0].mxu0
    %1102 = vmatprep.mubr.bf16.mxu0 0
    %1103 = vmatmul.mubr.bf16.gmra.mrb[0].mxu0 %v673
    %v1104 = vpop.f32.mrb[0].mxu0
    %v1105 = vadd.f32 %v193, %v1104
    %v1106 = vpop.f32.mrb[0].mxu0
    %v1107 = vpop.f32.mrb[0].mxu0
    %v1108 = vadd.f32 %v193, %v1107
    %v1109 = vpop.f32.mrb[0].mxu0
    %1110 = vmatprep.mubr.bf16.mxu0 0
    %1111 = vmatmul.mubr.bf16.gmra.mrb[0].mxu0 %v676
    %v1112 = vpop.f32.mrb[0].mxu0
    %v1113 = vadd.f32 %v193, %v1112
    %v1114 = vpop.f32.mrb[0].mxu0
    %v1115 = vpop.f32.mrb[0].mxu0
    %v1116 = vadd.f32 %v193, %v1115
    %v1117 = vpop.f32.mrb[0].mxu0
    %1118 = vmatprep.mubr.bf16.mxu0 0
    %1119 = vmatmul.mubr.bf16.gmra.mrb[0].mxu0 %v679
    %v1120 = vpop.f32.mrb[0].mxu0
    %v1121 = vadd.f32 %v193, %v1120
    %v1122 = vpop.f32.mrb[0].mxu0
    %v1123 = vpop.f32.mrb[0].mxu0
    %v1124 = vadd.f32 %v193, %v1123
    %v1125 = vpop.f32.mrb[0].mxu0
    %1126 = vmatprep.mubr.bf16.mxu0 0
    %1127 = vmatmul.mubr.bf16.gmra.mrb[0].mxu0 %v682
    %v1128 = vpop.f32.mrb[0].mxu0
    %v1129 = vadd.f32 %v193, %v1128
    %v1130 = vpop.f32.mrb[0].mxu0
    %v1131 = vpop.f32.mrb[0].mxu0
    %v1132 = vadd.f32 %v193, %v1131
    %v1133 = vpop.f32.mrb[0].mxu0
    %1134 = vmatprep.mubr.bf16.mxu0 0
    %1135 = vmatmul.mubr.bf16.gmra.mrb[0].mxu0 %v685
    %v1136 = vpop.f32.mrb[0].mxu0
    %v1137 = vadd.f32 %v193, %v1136
    %v1138 = vpop.f32.mrb[0].mxu0
    %v1139 = vpop.f32.mrb[0].mxu0
    %v1140 = vadd.f32 %v193, %v1139
    %v1141 = vpop.f32.mrb[0].mxu0
    %1142 = vmatprep.mubr.bf16.mxu0 0
    %1143 = vmatmul.mubr.bf16.gmra.mrb[0].mxu0 %v688
    %v1144 = vpop.f32.mrb[0].mxu0
    %v1145 = vadd.f32 %v193, %v1144
    %v1146 = vpop.f32.mrb[0].mxu0
    %v1147 = vpop.f32.mrb[0].mxu0
    %v1148 = vadd.f32 %v193, %v1147
    %v1149 = vpop.f32.mrb[0].mxu0
    %1150 = vmatprep.mubr.bf16.mxu0 0
    %1151 = vmatmul.mubr.bf16.gmra.mrb[0].mxu0 %v691
    %v1152 = vpop.f32.mrb[0].mxu0
    %v1153 = vadd.f32 %v193, %v1152
    %v1154 = vpop.f32.mrb[0].mxu0
    %v1155 = vpop.f32.mrb[0].mxu0
    %v1156 = vadd.f32 %v193, %v1155
    %v1157 = vpop.f32.mrb[0].mxu0
    %1158 = vmatprep.mubr.bf16.mxu0 0
    %1159 = vmatmul.mubr.bf16.gmra.mrb[0].mxu0 %v694
    %v1160 = vpop.f32.mrb[0].mxu0
    %v1161 = vadd.f32 %v193, %v1160
    %v1162 = vpop.f32.mrb[0].mxu0
    %v1163 = vpop.f32.mrb[0].mxu0
    %v1164 = vadd.f32 %v193, %v1163
    %v1165 = vpop.f32.mrb[0].mxu0
    %1166 = vmatprep.mubr.bf16.mxu0 0
    %1167 = vmatmul.mubr.bf16.gmra.mrb[0].mxu0 %v697
    %v1168 = vpop.f32.mrb[0].mxu0
    %v1169 = vadd.f32 %v193, %v1168
    %v1170 = vpop.f32.mrb[0].mxu0
    %v1171 = vpop.f32.mrb[0].mxu0
    %v1172 = vadd.f32 %v193, %v1171
    %v1173 = vpop.f32.mrb[0].mxu0
    %1174 = vmatprep.mubr.bf16.mxu0 0
    %1175 = vmatmul.mubr.bf16.gmra.mrb[0].mxu0 %v700
    %v1176 = vpop.f32.mrb[0].mxu0
    %v1177 = vadd.f32 %v193, %v1176
    %v1178 = vpop.f32.mrb[0].mxu0
    %v1179 = vpop.f32.mrb[0].mxu0
    %v1180 = vadd.f32 %v193, %v1179
    %v1181 = vpop.f32.mrb[0].mxu0
    %1182 = vmatprep.mubr.bf16.mxu0 0
    %1183 = vmatmul.mubr.bf16.gmra.mrb[0].mxu0 %v703
    %v1184 = vpop.f32.mrb[0].mxu0
    %v1185 = vadd.f32 %v193, %v1184
    %v1186 = vpop.f32.mrb[0].mxu0
    %v1187 = vpop.f32.mrb[0].mxu0
    %v1188 = vadd.f32 %v193, %v1187
    %v1189 = vpop.f32.mrb[0].mxu0
    %1190 = vmatprep.mubr.bf16.mxu0 0
    %1191 = vmatmul.mubr.bf16.gmra.mrb[0].mxu0 %v706
    %v1192 = vpop.f32.mrb[0].mxu0
    %v1193 = vadd.f32 %v193, %v1192
    %v1194 = vpop.f32.mrb[0].mxu0
    %v1195 = vpop.f32.mrb[0].mxu0
    %v1196 = vadd.f32 %v193, %v1195
    %v1197 = vpop.f32.mrb[0].mxu0
    %1198 = vmatprep.mubr.bf16.mxu0 0
    %1199 = vmatmul.mubr.bf16.gmra.mrb[0].mxu0 %v709
    %v1200 = vpop.f32.mrb[0].mxu0
    %v1201 = vadd.f32 %v193, %v1200
    %v1202 = vpop.f32.mrb[0].mxu0
    %v1203 = vpop.f32.mrb[0].mxu0
    %v1204 = vadd.f32 %v193, %v1203
    %v1205 = vpop.f32.mrb[0].mxu0
    %1206 = vmatprep.mubr.bf16.mxu0 0
    %1207 = vmatmul.mubr.bf16.gmra.mrb[0].mxu0 %v712
    %v1208 = vpop.f32.mrb[0].mxu0
    %v1209 = vadd.f32 %v193, %v1208
    %v1210 = vpop.f32.mrb[0].mxu0
    %v1211 = vpop.f32.mrb[0].mxu0
    %v1212 = vadd.f32 %v193, %v1211
    %v1213 = vpop.f32.mrb[0].mxu0
    %1214 = vmatprep.mubr.bf16.mxu0 0
    %1215 = vmatmul.mubr.bf16.gmra.mrb[0].mxu0 %v715
    %v1216 = vpop.f32.mrb[0].mxu0
    %v1217 = vadd.f32 %v193, %v1216
    %v1218 = vpop.f32.mrb[0].mxu0
    %v1219 = vpop.f32.mrb[0].mxu0
    %v1220 = vadd.f32 %v193, %v1219
    %v1221 = vpop.f32.mrb[0].mxu0
    %1222 = vmatprep.mubr.bf16.mxu0 0
    %1223 = vmatmul.mubr.bf16.gmra.mrb[0].mxu0 %v718
    %v1224 = vpop.f32.mrb[0].mxu0
    %v1225 = vadd.f32 %v193, %v1224
    %v1226 = vpop.f32.mrb[0].mxu0
    %v1227 = vpop.f32.mrb[0].mxu0
    %v1228 = vadd.f32 %v193, %v1227
    %v1229 = vpop.f32.mrb[0].mxu0
    %1230 = vmatprep.mubr.bf16.mxu0 0
    %1231 = vmatmul.mubr.bf16.gmra.mrb[0].mxu0 %v721
    %v1232 = vpop.f32.mrb[0].mxu0
    %v1233 = vadd.f32 %v193, %v1232
    %v1234 = vpop.f32.mrb[0].mxu0
    %v1235 = vpop.f32.mrb[0].mxu0
    %v1236 = vadd.f32 %v193, %v1235
    %v1237 = vpop.f32.mrb[0].mxu0
    %1238 = vmatprep.mubr.bf16.mxu0 0
    %1239 = vmatmul.mubr.bf16.gmra.mrb[0].mxu0 %v724
    %v1240 = vpop.f32.mrb[0].mxu0
    %v1241 = vadd.f32 %v193, %v1240
    %v1242 = vpop.f32.mrb[0].mxu0
    %v1243 = vpop.f32.mrb[0].mxu0
    %v1244 = vadd.f32 %v193, %v1243
    %v1245 = vpop.f32.mrb[0].mxu0
    %1246 = vmatprep.mubr.bf16.mxu0 0
    %1247 = vmatmul.mubr.bf16.gmra.mrb[0].mxu0 %v727
    %v1248 = vpop.f32.mrb[0].mxu0
    %v1249 = vadd.f32 %v193, %v1248
    %v1250 = vpop.f32.mrb[0].mxu0
    %v1251 = vpop.f32.mrb[0].mxu0
    %v1252 = vadd.f32 %v193, %v1251
    %v1253 = vpop.f32.mrb[0].mxu0
    %1254 = vmatprep.mubr.bf16.mxu0 0
    %1255 = vmatmul.mubr.bf16.gmra.mrb[0].mxu0 %v730
    %v1256 = vpop.f32.mrb[0].mxu0
    %v1257 = vadd.f32 %v193, %v1256
    %v1258 = vpop.f32.mrb[0].mxu0
    %v1259 = vpop.f32.mrb[0].mxu0
    %v1260 = vadd.f32 %v193, %v1259
    %v1261 = vpop.f32.mrb[0].mxu0
    %1262 = vmatprep.mubr.bf16.mxu0 0
    %1263 = vmatmul.mubr.bf16.gmra.mrb[0].mxu0 %v733
    %v1264 = vpop.f32.mrb[0].mxu0
    %v1265 = vadd.f32 %v193, %v1264
    %v1266 = vpop.f32.mrb[0].mxu0
    %v1267 = vpop.f32.mrb[0].mxu0
    %v1268 = vadd.f32 %v193, %v1267
    %v1269 = vpop.f32.mrb[0].mxu0
    %1270 = vmatprep.mubr.bf16.mxu0 0
    %1271 = vmatmul.mubr.bf16.gmra.mrb[0].mxu0 %v736
    %v1272 = vpop.f32.mrb[0].mxu0
    %v1273 = vadd.f32 %v193, %v1272
    %v1274 = vpop.f32.mrb[0].mxu0
    %v1275 = vpop.f32.mrb[0].mxu0
    %v1276 = vadd.f32 %v193, %v1275
    %v1277 = vpop.f32.mrb[0].mxu0
    %1278 = vmatprep.mubr.bf16.mxu0 0
    %1279 = vmatmul.mubr.bf16.gmra.mrb[0].mxu0 %v739
    %v1280 = vpop.f32.mrb[0].mxu0
    %v1281 = vadd.f32 %v193, %v1280
    %v1282 = vpop.f32.mrb[0].mxu0
    %v1283 = vpop.f32.mrb[0].mxu0
    %v1284 = vadd.f32 %v193, %v1283
    %v1285 = vpop.f32.mrb[0].mxu0
    %1286 = vmatprep.mubr.bf16.mxu0 0
    %1287 = vmatmul.mubr.bf16.gmra.mrb[0].mxu0 %v742
    %v1288 = vpop.f32.mrb[0].mxu0
    %v1289 = vadd.f32 %v193, %v1288
    %v1290 = vpop.f32.mrb[0].mxu0
    %v1291 = vpop.f32.mrb[0].mxu0
    %v1292 = vadd.f32 %v193, %v1291
    %v1293 = vpop.f32.mrb[0].mxu0
    %1294 = vmatprep.mubr.bf16.mxu0 0
    %1295 = vmatmul.mubr.bf16.gmra.mrb[0].mxu0 %v745
    %v1296 = vpop.f32.mrb[0].mxu0
    %v1297 = vadd.f32 %v193, %v1296
    %v1298 = vpop.f32.mrb[0].mxu0
    %v1299 = vpop.f32.mrb[0].mxu0
    %v1300 = vadd.f32 %v193, %v1299
    %v1301 = vpop.f32.mrb[0].mxu0
    %1302 = vmatprep.mubr.bf16.mxu0 0
    %1303 = vmatmul.mubr.bf16.gmra.mrb[0].mxu0 %v748
    %v1304 = vpop.f32.mrb[0].mxu0
    %v1305 = vadd.f32 %v193, %v1304
    %v1306 = vpop.f32.mrb[0].mxu0
    %v1307 = vpop.f32.mrb[0].mxu0
    %v1308 = vadd.f32 %v193, %v1307
    %v1309 = vpop.f32.mrb[0].mxu0
    %1310 = vmatprep.mubr.bf16.mxu0 0
    %1311 = vmatmul.mubr.bf16.gmra.mrb[0].mxu0 %v751
    %v1312 = vpop.f32.mrb[0].mxu0
    %v1313 = vadd.f32 %v193, %v1312
    %v1314 = vpop.f32.mrb[0].mxu0
    %v1315 = vpop.f32.mrb[0].mxu0
    %v1316 = vadd.f32 %v193, %v1315
    %v1317 = vpop.f32.mrb[0].mxu0
    %1318 = vmatprep.mubr.bf16.mxu0 0
    %1319 = vmatmul.mubr.bf16.gmra.mrb[0].mxu0 %v754
    %v1320 = vpop.f32.mrb[0].mxu0
    %v1321 = vadd.f32 %v193, %v1320
    %v1322 = vpop.f32.mrb[0].mxu0
    %v1323 = vpop.f32.mrb[0].mxu0
    %v1324 = vadd.f32 %v193, %v1323
    %v1325 = vpop.f32.mrb[0].mxu0
    %1326 = vmatprep.mubr.bf16.mxu0 0
    %1327 = vmatmul.mubr.bf16.gmra.mrb[0].mxu0 %v757
    %v1328 = vpop.f32.mrb[0].mxu0
    %v1329 = vadd.f32 %v193, %v1328
    %v1330 = vpop.f32.mrb[0].mxu0
    %v1331 = vpop.f32.mrb[0].mxu0
    %v1332 = vadd.f32 %v193, %v1331
    %v1333 = vpop.f32.mrb[0].mxu0
    %1334 = vmatprep.mubr.bf16.mxu0 0
    %1335 = vmatmul.mubr.bf16.gmra.mrb[0].mxu0 %v760
    %v1336 = vpop.f32.mrb[0].mxu0
    %v1337 = vadd.f32 %v193, %v1336
    %v1338 = vpop.f32.mrb[0].mxu0
    %v1339 = vpop.f32.mrb[0].mxu0
    %v1340 = vadd.f32 %v193, %v1339
    %v1341 = vpop.f32.mrb[0].mxu0
    %1342 = vmatprep.mubr.bf16.mxu0 0
    %1343 = vmatmul.mubr.bf16.gmra.mrb[0].mxu0 %v763
    %v1344 = vpop.f32.mrb[0].mxu0
    %v1345 = vadd.f32 %v193, %v1344
    %v1346 = vpop.f32.mrb[0].mxu0
    %v1347 = vpop.f32.mrb[0].mxu0
    %v1348 = vadd.f32 %v193, %v1347
    %v1349 = vpop.f32.mrb[0].mxu0
    %1350 = vmatprep.mubr.bf16.mxu0 0
    %1351 = vmatmul.mubr.bf16.gmra.mrb[0].mxu0 %v766
    %v1352 = vpop.f32.mrb[0].mxu0
    %v1353 = vadd.f32 %v193, %v1352
    %v1354 = vpop.f32.mrb[0].mxu0
    %v1355 = vpop.f32.mrb[0].mxu0
    %v1356 = vadd.f32 %v193, %v1355
    %v1357 = vpop.f32.mrb[0].mxu0
    %1358 = vmatprep.mubr.bf16.mxu0 0
    %1359 = vmatmul.mubr.bf16.gmra.mrb[0].mxu0 %v769
    %v1360 = vpop.f32.mrb[0].mxu0
    %v1361 = vadd.f32 %v193, %v1360
    %v1362 = vpop.f32.mrb[0].mxu0
    %v1363 = vpop.f32.mrb[0].mxu0
    %v1364 = vadd.f32 %v193, %v1363
    %v1365 = vpop.f32.mrb[0].mxu0
    %1366 = vmatprep.mubr.bf16.mxu0 0
    %1367 = vmatmul.mubr.bf16.gmra.mrb[0].mxu0 %v772
    %v1368 = vpop.f32.mrb[0].mxu0
    %v1369 = vadd.f32 %v193, %v1368
    %v1370 = vpop.f32.mrb[0].mxu0
    %v1371 = vpop.f32.mrb[0].mxu0
    %v1372 = vadd.f32 %v193, %v1371
    %v1373 = vpop.f32.mrb[0].mxu0
    %1374 = vmatprep.mubr.bf16.mxu0 0
    %1375 = vmatmul.mubr.bf16.gmra.mrb[0].mxu0 %v775
    %v1376 = vpop.f32.mrb[0].mxu0
    %v1377 = vadd.f32 %v193, %v1376
    %v1378 = vpop.f32.mrb[0].mxu0
    %v1379 = vpop.f32.mrb[0].mxu0
    %v1380 = vadd.f32 %v193, %v1379
    %v1381 = vpop.f32.mrb[0].mxu0
    %1382 = vmatprep.mubr.bf16.mxu0 0
    %1383 = vmatmul.mubr.bf16.gmra.mrb[0].mxu0 %v778
    %v1384 = vpop.f32.mrb[0].mxu0
    %v1385 = vadd.f32 %v193, %v1384
    %v1386 = vpop.f32.mrb[0].mxu0
    %v1387 = vpop.f32.mrb[0].mxu0
    %v1388 = vadd.f32 %v193, %v1387
    %v1389 = vpop.f32.mrb[0].mxu0
    %1390 = vmatprep.mubr.bf16.mxu0 0
    %1391 = vmatmul.mubr.bf16.gmra.mrb[0].mxu0 %v781
    %v1392 = vpop.f32.mrb[0].mxu0
    %v1393 = vadd.f32 %v193, %v1392
    %v1394 = vpop.f32.mrb[0].mxu0
    %v1395 = vpop.f32.mrb[0].mxu0
    %v1396 = vadd.f32 %v193, %v1395
    %v1397 = vpop.f32.mrb[0].mxu0
    %1398 = vdwg.mxu0
    %v1399 = vxor.u32 %v825, 2147483648
    %v1400 = vxor.u32 %v828, 2147483648
    %v1401 = vxor.u32 %v833, 2147483648
    %v1402 = vxor.u32 %v836, 2147483648
    %v1403 = vxor.u32 %v841, 2147483648
    %v1404 = vxor.u32 %v844, 2147483648
    %v1405 = vxor.u32 %v849, 2147483648
    %v1406 = vxor.u32 %v852, 2147483648
    %v1407 = vxor.u32 %v857, 2147483648
    %v1408 = vxor.u32 %v860, 2147483648
    %v1409 = vxor.u32 %v865, 2147483648
    %v1410 = vxor.u32 %v868, 2147483648
    %v1411 = vxor.u32 %v873, 2147483648
    %v1412 = vxor.u32 %v876, 2147483648
    %v1413 = vxor.u32 %v881, 2147483648
    %v1414 = vxor.u32 %v884, 2147483648
    %v1415 = vxor.u32 %v889, 2147483648
    %v1416 = vxor.u32 %v892, 2147483648
    %v1417 = vxor.u32 %v897, 2147483648
    %v1418 = vxor.u32 %v900, 2147483648
    %v1419 = vxor.u32 %v905, 2147483648
    %v1420 = vxor.u32 %v908, 2147483648
    %v1421 = vxor.u32 %v913, 2147483648
    %v1422 = vxor.u32 %v916, 2147483648
    %v1423 = vxor.u32 %v921, 2147483648
    %v1424 = vxor.u32 %v924, 2147483648
    %v1425 = vxor.u32 %v929, 2147483648
    %v1426 = vxor.u32 %v932, 2147483648
    %v1427 = vxor.u32 %v937, 2147483648
    %v1428 = vxor.u32 %v940, 2147483648
    %v1429 = vxor.u32 %v945, 2147483648
    %v1430 = vxor.u32 %v948, 2147483648
    %v1431 = vxor.u32 %v953, 2147483648
    %v1432 = vxor.u32 %v956, 2147483648
    %v1433 = vxor.u32 %v961, 2147483648
    %v1434 = vxor.u32 %v964, 2147483648
    %v1435 = vxor.u32 %v969, 2147483648
    %v1436 = vxor.u32 %v972, 2147483648
    %v1437 = vxor.u32 %v977, 2147483648
    %v1438 = vxor.u32 %v980, 2147483648
    %v1439 = vxor.u32 %v985, 2147483648
    %v1440 = vxor.u32 %v988, 2147483648
    %v1441 = vxor.u32 %v993, 2147483648
    %v1442 = vxor.u32 %v996, 2147483648
    %v1443 = vxor.u32 %v1001, 2147483648
    %v1444 = vxor.u32 %v1004, 2147483648
    %v1445 = vxor.u32 %v1009, 2147483648
    %v1446 = vxor.u32 %v1012, 2147483648
    %v1447 = vxor.u32 %v1017, 2147483648
    %v1448 = vxor.u32 %v1020, 2147483648
    %v1449 = vxor.u32 %v1025, 2147483648
    %v1450 = vxor.u32 %v1028, 2147483648
    %v1451 = vxor.u32 %v1033, 2147483648
    %v1452 = vxor.u32 %v1036, 2147483648
    %v1453 = vxor.u32 %v1041, 2147483648
    %v1454 = vxor.u32 %v1044, 2147483648
    %v1455 = vxor.u32 %v1049, 2147483648
    %v1456 = vxor.u32 %v1052, 2147483648
    %v1457 = vxor.u32 %v1057, 2147483648
    %v1458 = vxor.u32 %v1060, 2147483648
    %v1459 = vxor.u32 %v1065, 2147483648
    %v1460 = vxor.u32 %v1068, 2147483648
    %v1461 = vxor.u32 %v1073, 2147483648
    %v1462 = vxor.u32 %v1076, 2147483648
    %v1463 = vxor.u32 %v1081, 2147483648
    %v1464 = vxor.u32 %v1084, 2147483648
    %v1465 = vxor.u32 %v1089, 2147483648
    %v1466 = vxor.u32 %v1092, 2147483648
    %v1467 = vxor.u32 %v1097, 2147483648
    %v1468 = vxor.u32 %v1100, 2147483648
    %v1469 = vxor.u32 %v1105, 2147483648
    %v1470 = vxor.u32 %v1108, 2147483648
    %v1471 = vxor.u32 %v1113, 2147483648
    %v1472 = vxor.u32 %v1116, 2147483648
    %v1473 = vxor.u32 %v1121, 2147483648
    %v1474 = vxor.u32 %v1124, 2147483648
    %v1475 = vxor.u32 %v1129, 2147483648
    %v1476 = vxor.u32 %v1132, 2147483648
    %v1477 = vxor.u32 %v1137, 2147483648
    %v1478 = vxor.u32 %v1140, 2147483648
    %v1479 = vxor.u32 %v1145, 2147483648
    %v1480 = vxor.u32 %v1148, 2147483648
    %v1481 = vxor.u32 %v1153, 2147483648
    %v1482 = vxor.u32 %v1156, 2147483648
    %v1483 = vxor.u32 %v1161, 2147483648
    %v1484 = vxor.u32 %v1164, 2147483648
    %v1485 = vxor.u32 %v1169, 2147483648
    %v1486 = vxor.u32 %v1172, 2147483648
    %v1487 = vxor.u32 %v1177, 2147483648
    %v1488 = vxor.u32 %v1180, 2147483648
    %v1489 = vxor.u32 %v1185, 2147483648
    %v1490 = vxor.u32 %v1188, 2147483648
    %v1491 = vxor.u32 %v1193, 2147483648
    %v1492 = vxor.u32 %v1196, 2147483648
    %v1493 = vxor.u32 %v1201, 2147483648
    %v1494 = vxor.u32 %v1204, 2147483648
    %v1495 = vxor.u32 %v1209, 2147483648
    %v1496 = vxor.u32 %v1212, 2147483648
    %v1497 = vxor.u32 %v1217, 2147483648
    %v1498 = vxor.u32 %v1220, 2147483648
    %v1499 = vxor.u32 %v1225, 2147483648
    %v1500 = vxor.u32 %v1228, 2147483648
    %v1501 = vxor.u32 %v1233, 2147483648
    %v1502 = vxor.u32 %v1236, 2147483648
    %v1503 = vxor.u32 %v1241, 2147483648
    %v1504 = vxor.u32 %v1244, 2147483648
    %v1505 = vxor.u32 %v1249, 2147483648
    %v1506 = vxor.u32 %v1252, 2147483648
    %v1507 = vxor.u32 %v1257, 2147483648
    %v1508 = vxor.u32 %v1260, 2147483648
    %v1509 = vxor.u32 %v1265, 2147483648
    %v1510 = vxor.u32 %v1268, 2147483648
    %v1511 = vxor.u32 %v1273, 2147483648
    %v1512 = vxor.u32 %v1276, 2147483648
    %v1513 = vxor.u32 %v1281, 2147483648
    %v1514 = vxor.u32 %v1284, 2147483648
    %v1515 = vxor.u32 %v1289, 2147483648
    %v1516 = vxor.u32 %v1292, 2147483648
    %v1517 = vxor.u32 %v1297, 2147483648
    %v1518 = vxor.u32 %v1300, 2147483648
    %v1519 = vxor.u32 %v1305, 2147483648
    %v1520 = vxor.u32 %v1308, 2147483648
    %v1521 = vxor.u32 %v1313, 2147483648
    %v1522 = vxor.u32 %v1316, 2147483648
    %v1523 = vxor.u32 %v1321, 2147483648
    %v1524 = vxor.u32 %v1324, 2147483648
    %v1525 = vxor.u32 %v1329, 2147483648
    %v1526 = vxor.u32 %v1332, 2147483648
    %v1527 = vxor.u32 %v1337, 2147483648
    %v1528 = vxor.u32 %v1340, 2147483648
    %v1529 = vxor.u32 %v1345, 2147483648
    %v1530 = vxor.u32 %v1348, 2147483648
    %v1531 = vxor.u32 %v1353, 2147483648
    %v1532 = vxor.u32 %v1356, 2147483648
    %v1533 = vxor.u32 %v1361, 2147483648
    %v1534 = vxor.u32 %v1364, 2147483648
    %v1535 = vxor.u32 %v1369, 2147483648
    %v1536 = vxor.u32 %v1372, 2147483648
    %v1537 = vxor.u32 %v1377, 2147483648
    %v1538 = vxor.u32 %v1380, 2147483648
    %v1539 = vxor.u32 %v1385, 2147483648
    %v1540 = vxor.u32 %v1388, 2147483648
    %v1541 = vxor.u32 %v1393, 2147483648
    %v1542 = vxor.u32 %v1396, 2147483648
    %v1543 = vmul.f32 %v1399, 1.442695
    %v1544 = vpow.pop %v1543
    %v1545 = vmul.f32 %v1400, 1.442695
    %v1546 = vpow.pop %v1545
    %v1547 = vmul.f32 %v1401, 1.442695
    %v1548 = vpow.pop %v1547
    %v1549 = vmul.f32 %v1402, 1.442695
    %v1550 = vpow.pop %v1549
    %v1551 = vmul.f32 %v1403, 1.442695
    %v1552 = vpow.pop %v1551
    %v1553 = vmul.f32 %v1404, 1.442695
    %v1554 = vpow.pop %v1553
    %v1555 = vmul.f32 %v1405, 1.442695
    %v1556 = vpow.pop %v1555
    %v1557 = vmul.f32 %v1406, 1.442695
    %v1558 = vpow.pop %v1557
    %v1559 = vmul.f32 %v1407, 1.442695
    %v1560 = vpow.pop %v1559
    %v1561 = vmul.f32 %v1408, 1.442695
    %v1562 = vpow.pop %v1561
    %v1563 = vmul.f32 %v1409, 1.442695
    %v1564 = vpow.pop %v1563
    %v1565 = vmul.f32 %v1410, 1.442695
    %v1566 = vpow.pop %v1565
    %v1567 = vmul.f32 %v1411, 1.442695
    %v1568 = vpow.pop %v1567
    %v1569 = vmul.f32 %v1412, 1.442695
    %v1570 = vpow.pop %v1569
    %v1571 = vmul.f32 %v1413, 1.442695
    %v1572 = vpow.pop %v1571
    %v1573 = vmul.f32 %v1414, 1.442695
    %v1574 = vpow.pop %v1573
    %v1575 = vmul.f32 %v1415, 1.442695
    %v1576 = vpow.pop %v1575
    %v1577 = vmul.f32 %v1416, 1.442695
    %v1578 = vpow.pop %v1577
    %v1579 = vmul.f32 %v1417, 1.442695
    %v1580 = vpow.pop %v1579
    %v1581 = vmul.f32 %v1418, 1.442695
    %v1582 = vpow.pop %v1581
    %v1583 = vmul.f32 %v1419, 1.442695
    %v1584 = vpow.pop %v1583
    %v1585 = vmul.f32 %v1420, 1.442695
    %v1586 = vpow.pop %v1585
    %v1587 = vmul.f32 %v1421, 1.442695
    %v1588 = vpow.pop %v1587
    %v1589 = vmul.f32 %v1422, 1.442695
    %v1590 = vpow.pop %v1589
    %v1591 = vmul.f32 %v1423, 1.442695
    %v1592 = vpow.pop %v1591
    %v1593 = vmul.f32 %v1424, 1.442695
    %v1594 = vpow.pop %v1593
    %v1595 = vmul.f32 %v1425, 1.442695
    %v1596 = vpow.pop %v1595
    %v1597 = vmul.f32 %v1426, 1.442695
    %v1598 = vpow.pop %v1597
    %v1599 = vmul.f32 %v1427, 1.442695
    %v1600 = vpow.pop %v1599
    %v1601 = vmul.f32 %v1428, 1.442695
    %v1602 = vpow.pop %v1601
    %v1603 = vmul.f32 %v1429, 1.442695
    %v1604 = vpow.pop %v1603
    %v1605 = vmul.f32 %v1430, 1.442695
    %v1606 = vpow.pop %v1605
    %v1607 = vmul.f32 %v1431, 1.442695
    %v1608 = vpow.pop %v1607
    %v1609 = vmul.f32 %v1432, 1.442695
    %v1610 = vpow.pop %v1609
    %v1611 = vmul.f32 %v1433, 1.442695
    %v1612 = vpow.pop %v1611
    %v1613 = vmul.f32 %v1434, 1.442695
    %v1614 = vpow.pop %v1613
    %v1615 = vmul.f32 %v1435, 1.442695
    %v1616 = vpow.pop %v1615
    %v1617 = vmul.f32 %v1436, 1.442695
    %v1618 = vpow.pop %v1617
    %v1619 = vmul.f32 %v1437, 1.442695
    %v1620 = vpow.pop %v1619
    %v1621 = vmul.f32 %v1438, 1.442695
    %v1622 = vpow.pop %v1621
    %v1623 = vmul.f32 %v1439, 1.442695
    %v1624 = vpow.pop %v1623
    %v1625 = vmul.f32 %v1440, 1.442695
    %v1626 = vpow.pop %v1625
    %v1627 = vmul.f32 %v1441, 1.442695
    %v1628 = vpow.pop %v1627
    %v1629 = vmul.f32 %v1442, 1.442695
    %v1630 = vpow.pop %v1629
    %v1631 = vmul.f32 %v1443, 1.442695
    %v1632 = vpow.pop %v1631
    %v1633 = vmul.f32 %v1444, 1.442695
    %v1634 = vpow.pop %v1633
    %v1635 = vmul.f32 %v1445, 1.442695
    %v1636 = vpow.pop %v1635
    %v1637 = vmul.f32 %v1446, 1.442695
    %v1638 = vpow.pop %v1637
    %v1639 = vmul.f32 %v1447, 1.442695
    %v1640 = vpow.pop %v1639
    %v1641 = vmul.f32 %v1448, 1.442695
    %v1642 = vpow.pop %v1641
    %v1643 = vmul.f32 %v1449, 1.442695
    %v1644 = vpow.pop %v1643
    %v1645 = vmul.f32 %v1450, 1.442695
    %v1646 = vpow.pop %v1645
    %v1647 = vmul.f32 %v1451, 1.442695
    %v1648 = vpow.pop %v1647
    %v1649 = vmul.f32 %v1452, 1.442695
    %v1650 = vpow.pop %v1649
    %v1651 = vmul.f32 %v1453, 1.442695
    %v1652 = vpow.pop %v1651
    %v1653 = vmul.f32 %v1454, 1.442695
    %v1654 = vpow.pop %v1653
    %v1655 = vmul.f32 %v1455, 1.442695
    %v1656 = vpow.pop %v1655
    %v1657 = vmul.f32 %v1456, 1.442695
    %v1658 = vpow.pop %v1657
    %v1659 = vmul.f32 %v1457, 1.442695
    %v1660 = vpow.pop %v1659
    %v1661 = vmul.f32 %v1458, 1.442695
    %v1662 = vpow.pop %v1661
    %v1663 = vmul.f32 %v1459, 1.442695
    %v1664 = vpow.pop %v1663
    %v1665 = vmul.f32 %v1460, 1.442695
    %v1666 = vpow.pop %v1665
    %v1667 = vmul.f32 %v1461, 1.442695
    %v1668 = vpow.pop %v1667
    %v1669 = vmul.f32 %v1462, 1.442695
    %v1670 = vpow.pop %v1669
    %v1671 = vmul.f32 %v1463, 1.442695
    %v1672 = vpow.pop %v1671
    %v1673 = vmul.f32 %v1464, 1.442695
    %v1674 = vpow.pop %v1673
    %v1675 = vmul.f32 %v1465, 1.442695
    %v1676 = vpow.pop %v1675
    %v1677 = vmul.f32 %v1466, 1.442695
    %v1678 = vpow.pop %v1677
    %v1679 = vmul.f32 %v1467, 1.442695
    %v1680 = vpow.pop %v1679
    %v1681 = vmul.f32 %v1468, 1.442695
    %v1682 = vpow.pop %v1681
    %v1683 = vmul.f32 %v1469, 1.442695
    %v1684 = vpow.pop %v1683
    %v1685 = vmul.f32 %v1470, 1.442695
    %v1686 = vpow.pop %v1685
    %v1687 = vmul.f32 %v1471, 1.442695
    %v1688 = vpow.pop %v1687
    %v1689 = vmul.f32 %v1472, 1.442695
    %v1690 = vpow.pop %v1689
    %v1691 = vmul.f32 %v1473, 1.442695
    %v1692 = vpow.pop %v1691
    %v1693 = vmul.f32 %v1474, 1.442695
    %v1694 = vpow.pop %v1693
    %v1695 = vmul.f32 %v1475, 1.442695
    %v1696 = vpow.pop %v1695
    %v1697 = vmul.f32 %v1476, 1.442695
    %v1698 = vpow.pop %v1697
    %v1699 = vmul.f32 %v1477, 1.442695
    %v1700 = vpow.pop %v1699
    %v1701 = vmul.f32 %v1478, 1.442695
    %v1702 = vpow.pop %v1701
    %v1703 = vmul.f32 %v1479, 1.442695
    %v1704 = vpow.pop %v1703
    %v1705 = vmul.f32 %v1480, 1.442695
    %v1706 = vpow.pop %v1705
    %v1707 = vmul.f32 %v1481, 1.442695
    %v1708 = vpow.pop %v1707
    %v1709 = vmul.f32 %v1482, 1.442695
    %v1710 = vpow.pop %v1709
    %v1711 = vmul.f32 %v1483, 1.442695
    %v1712 = vpow.pop %v1711
    %v1713 = vmul.f32 %v1484, 1.442695
    %v1714 = vpow.pop %v1713
    %v1715 = vmul.f32 %v1485, 1.442695
    %v1716 = vpow.pop %v1715
    %v1717 = vmul.f32 %v1486, 1.442695
    %v1718 = vpow.pop %v1717
    %v1719 = vmul.f32 %v1487, 1.442695
    %v1720 = vpow.pop %v1719
    %v1721 = vmul.f32 %v1488, 1.442695
    %v1722 = vpow.pop %v1721
    %v1723 = vmul.f32 %v1489, 1.442695
    %v1724 = vpow.pop %v1723
    %v1725 = vmul.f32 %v1490, 1.442695
    %v1726 = vpow.pop %v1725
    %v1727 = vmul.f32 %v1491, 1.442695
    %v1728 = vpow.pop %v1727
    %v1729 = vmul.f32 %v1492, 1.442695
    %v1730 = vpow.pop %v1729
    %v1731 = vmul.f32 %v1493, 1.442695
    %v1732 = vpow.pop %v1731
    %v1733 = vmul.f32 %v1494, 1.442695
    %v1734 = vpow.pop %v1733
    %v1735 = vmul.f32 %v1495, 1.442695
    %v1736 = vpow.pop %v1735
    %v1737 = vmul.f32 %v1496, 1.442695
    %v1738 = vpow.pop %v1737
    %v1739 = vmul.f32 %v1497, 1.442695
    %v1740 = vpow.pop %v1739
    %v1741 = vmul.f32 %v1498, 1.442695
    %v1742 = vpow.pop %v1741
    %v1743 = vmul.f32 %v1499, 1.442695
    %v1744 = vpow.pop %v1743
    %v1745 = vmul.f32 %v1500, 1.442695
    %v1746 = vpow.pop %v1745
    %v1747 = vmul.f32 %v1501, 1.442695
    %v1748 = vpow.pop %v1747
    %v1749 = vmul.f32 %v1502, 1.442695
    %v1750 = vpow.pop %v1749
    %v1751 = vmul.f32 %v1503, 1.442695
    %v1752 = vpow.pop %v1751
    %v1753 = vmul.f32 %v1504, 1.442695
    %v1754 = vpow.pop %v1753
    %v1755 = vmul.f32 %v1505, 1.442695
    %v1756 = vpow.pop %v1755
    %v1757 = vmul.f32 %v1506, 1.442695
    %v1758 = vpow.pop %v1757
    %v1759 = vmul.f32 %v1507, 1.442695
    %v1760 = vpow.pop %v1759
    %v1761 = vmul.f32 %v1508, 1.442695
    %v1762 = vpow.pop %v1761
    %v1763 = vmul.f32 %v1509, 1.442695
    %v1764 = vpow.pop %v1763
    %v1765 = vmul.f32 %v1510, 1.442695
    %v1766 = vpow.pop %v1765
    %v1767 = vmul.f32 %v1511, 1.442695
    %v1768 = vpow.pop %v1767
    %v1769 = vmul.f32 %v1512, 1.442695
    %v1770 = vpow.pop %v1769
    %v1771 = vmul.f32 %v1513, 1.442695
    %v1772 = vpow.pop %v1771
    %v1773 = vmul.f32 %v1514, 1.442695
    %v1774 = vpow.pop %v1773
    %v1775 = vmul.f32 %v1515, 1.442695
    %v1776 = vpow.pop %v1775
    %v1777 = vmul.f32 %v1516, 1.442695
    %v1778 = vpow.pop %v1777
    %v1779 = vmul.f32 %v1517, 1.442695
    %v1780 = vpow.pop %v1779
    %v1781 = vmul.f32 %v1518, 1.442695
    %v1782 = vpow.pop %v1781
    %v1783 = vmul.f32 %v1519, 1.442695
    %v1784 = vpow.pop %v1783
    %v1785 = vmul.f32 %v1520, 1.442695
    %v1786 = vpow.pop %v1785
    %v1787 = vmul.f32 %v1521, 1.442695
    %v1788 = vpow.pop %v1787
    %v1789 = vmul.f32 %v1522, 1.442695
    %v1790 = vpow.pop %v1789
    %v1791 = vmul.f32 %v1523, 1.442695
    %v1792 = vpow.pop %v1791
    %v1793 = vmul.f32 %v1524, 1.442695
    %v1794 = vpow.pop %v1793
    %v1795 = vmul.f32 %v1525, 1.442695
    %v1796 = vpow.pop %v1795
    %v1797 = vmul.f32 %v1526, 1.442695
    %v1798 = vpow.pop %v1797
    %v1799 = vmul.f32 %v1527, 1.442695
    %v1800 = vpow.pop %v1799
    %v1801 = vmul.f32 %v1528, 1.442695
    %v1802 = vpow.pop %v1801
    %v1803 = vmul.f32 %v1529, 1.442695
    %v1804 = vpow.pop %v1803
    %v1805 = vmul.f32 %v1530, 1.442695
    %v1806 = vpow.pop %v1805
    %v1807 = vmul.f32 %v1531, 1.442695
    %v1808 = vpow.pop %v1807
    %v1809 = vmul.f32 %v1532, 1.442695
    %v1810 = vpow.pop %v1809
    %v1811 = vmul.f32 %v1533, 1.442695
    %v1812 = vpow.pop %v1811
    %v1813 = vmul.f32 %v1534, 1.442695
    %v1814 = vpow.pop %v1813
    %v1815 = vmul.f32 %v1535, 1.442695
    %v1816 = vpow.pop %v1815
    %v1817 = vmul.f32 %v1536, 1.442695
    %v1818 = vpow.pop %v1817
    %v1819 = vmul.f32 %v1537, 1.442695
    %v1820 = vpow.pop %v1819
    %v1821 = vmul.f32 %v1538, 1.442695
    %v1822 = vpow.pop %v1821
    %v1823 = vmul.f32 %v1539, 1.442695
    %v1824 = vpow.pop %v1823
    %v1825 = vmul.f32 %v1540, 1.442695
    %v1826 = vpow.pop %v1825
    %v1827 = vmul.f32 %v1541, 1.442695
    %v1828 = vpow.pop %v1827
    %v1829 = vmul.f32 %v1542, 1.442695
    %v1830 = vpow.pop %v1829
    %v1831 = vadd.f32 %v1544, 1.0
    %v1832 = vadd.f32 %v1546, 1.0
    %v1833 = vadd.f32 %v1548, 1.0
    %v1834 = vadd.f32 %v1550, 1.0
    %v1835 = vadd.f32 %v1552, 1.0
    %v1836 = vadd.f32 %v1554, 1.0
    %v1837 = vadd.f32 %v1556, 1.0
    %v1838 = vadd.f32 %v1558, 1.0
    %v1839 = vadd.f32 %v1560, 1.0
    %v1840 = vadd.f32 %v1562, 1.0
    %v1841 = vadd.f32 %v1564, 1.0
    %v1842 = vadd.f32 %v1566, 1.0
    %v1843 = vadd.f32 %v1568, 1.0
    %v1844 = vadd.f32 %v1570, 1.0
    %v1845 = vadd.f32 %v1572, 1.0
    %v1846 = vadd.f32 %v1574, 1.0
    %v1847 = vadd.f32 %v1576, 1.0
    %v1848 = vadd.f32 %v1578, 1.0
    %v1849 = vadd.f32 %v1580, 1.0
    %v1850 = vadd.f32 %v1582, 1.0
    %v1851 = vadd.f32 %v1584, 1.0
    %v1852 = vadd.f32 %v1586, 1.0
    %v1853 = vadd.f32 %v1588, 1.0
    %v1854 = vadd.f32 %v1590, 1.0
    %v1855 = vadd.f32 %v1592, 1.0
    %v1856 = vadd.f32 %v1594, 1.0
    %v1857 = vadd.f32 %v1596, 1.0
    %v1858 = vadd.f32 %v1598, 1.0
    %v1859 = vadd.f32 %v1600, 1.0
    %v1860 = vadd.f32 %v1602, 1.0
    %v1861 = vadd.f32 %v1604, 1.0
    %v1862 = vadd.f32 %v1606, 1.0
    %v1863 = vadd.f32 %v1608, 1.0
    %v1864 = vadd.f32 %v1610, 1.0
    %v1865 = vadd.f32 %v1612, 1.0
    %v1866 = vadd.f32 %v1614, 1.0
    %v1867 = vadd.f32 %v1616, 1.0
    %v1868 = vadd.f32 %v1618, 1.0
    %v1869 = vadd.f32 %v1620, 1.0
    %v1870 = vadd.f32 %v1622, 1.0
    %v1871 = vadd.f32 %v1624, 1.0
    %v1872 = vadd.f32 %v1626, 1.0
    %v1873 = vadd.f32 %v1628, 1.0
    %v1874 = vadd.f32 %v1630, 1.0
    %v1875 = vadd.f32 %v1632, 1.0
    %v1876 = vadd.f32 %v1634, 1.0
    %v1877 = vadd.f32 %v1636, 1.0
    %v1878 = vadd.f32 %v1638, 1.0
    %v1879 = vadd.f32 %v1640, 1.0
    %v1880 = vadd.f32 %v1642, 1.0
    %v1881 = vadd.f32 %v1644, 1.0
    %v1882 = vadd.f32 %v1646, 1.0
    %v1883 = vadd.f32 %v1648, 1.0
    %v1884 = vadd.f32 %v1650, 1.0
    %v1885 = vadd.f32 %v1652, 1.0
    %v1886 = vadd.f32 %v1654, 1.0
    %v1887 = vadd.f32 %v1656, 1.0
    %v1888 = vadd.f32 %v1658, 1.0
    %v1889 = vadd.f32 %v1660, 1.0
    %v1890 = vadd.f32 %v1662, 1.0
    %v1891 = vadd.f32 %v1664, 1.0
    %v1892 = vadd.f32 %v1666, 1.0
    %v1893 = vadd.f32 %v1668, 1.0
    %v1894 = vadd.f32 %v1670, 1.0
    %v1895 = vadd.f32 %v1672, 1.0
    %v1896 = vadd.f32 %v1674, 1.0
    %v1897 = vadd.f32 %v1676, 1.0
    %v1898 = vadd.f32 %v1678, 1.0
    %v1899 = vadd.f32 %v1680, 1.0
    %v1900 = vadd.f32 %v1682, 1.0
    %v1901 = vadd.f32 %v1684, 1.0
    %v1902 = vadd.f32 %v1686, 1.0
    %v1903 = vadd.f32 %v1688, 1.0
    %v1904 = vadd.f32 %v1690, 1.0
    %v1905 = vadd.f32 %v1692, 1.0
    %v1906 = vadd.f32 %v1694, 1.0
    %v1907 = vadd.f32 %v1696, 1.0
    %v1908 = vadd.f32 %v1698, 1.0
    %v1909 = vadd.f32 %v1700, 1.0
    %v1910 = vadd.f32 %v1702, 1.0
    %v1911 = vadd.f32 %v1704, 1.0
    %v1912 = vadd.f32 %v1706, 1.0
    %v1913 = vadd.f32 %v1708, 1.0
    %v1914 = vadd.f32 %v1710, 1.0
    %v1915 = vadd.f32 %v1712, 1.0
    %v1916 = vadd.f32 %v1714, 1.0
    %v1917 = vadd.f32 %v1716, 1.0
    %v1918 = vadd.f32 %v1718, 1.0
    %v1919 = vadd.f32 %v1720, 1.0
    %v1920 = vadd.f32 %v1722, 1.0
    %v1921 = vadd.f32 %v1724, 1.0
    %v1922 = vadd.f32 %v1726, 1.0
    %v1923 = vadd.f32 %v1728, 1.0
    %v1924 = vadd.f32 %v1730, 1.0
    %v1925 = vadd.f32 %v1732, 1.0
    %v1926 = vadd.f32 %v1734, 1.0
    %v1927 = vadd.f32 %v1736, 1.0
    %v1928 = vadd.f32 %v1738, 1.0
    %v1929 = vadd.f32 %v1740, 1.0
    %v1930 = vadd.f32 %v1742, 1.0
    %v1931 = vadd.f32 %v1744, 1.0
    %v1932 = vadd.f32 %v1746, 1.0
    %v1933 = vadd.f32 %v1748, 1.0
    %v1934 = vadd.f32 %v1750, 1.0
    %v1935 = vadd.f32 %v1752, 1.0
    %v1936 = vadd.f32 %v1754, 1.0
    %v1937 = vadd.f32 %v1756, 1.0
    %v1938 = vadd.f32 %v1758, 1.0
    %v1939 = vadd.f32 %v1760, 1.0
    %v1940 = vadd.f32 %v1762, 1.0
    %v1941 = vadd.f32 %v1764, 1.0
    %v1942 = vadd.f32 %v1766, 1.0
    %v1943 = vadd.f32 %v1768, 1.0
    %v1944 = vadd.f32 %v1770, 1.0
    %v1945 = vadd.f32 %v1772, 1.0
    %v1946 = vadd.f32 %v1774, 1.0
    %v1947 = vadd.f32 %v1776, 1.0
    %v1948 = vadd.f32 %v1778, 1.0
    %v1949 = vadd.f32 %v1780, 1.0
    %v1950 = vadd.f32 %v1782, 1.0
    %v1951 = vadd.f32 %v1784, 1.0
    %v1952 = vadd.f32 %v1786, 1.0
    %v1953 = vadd.f32 %v1788, 1.0
    %v1954 = vadd.f32 %v1790, 1.0
    %v1955 = vadd.f32 %v1792, 1.0
    %v1956 = vadd.f32 %v1794, 1.0
    %v1957 = vadd.f32 %v1796, 1.0
    %v1958 = vadd.f32 %v1798, 1.0
    %v1959 = vadd.f32 %v1800, 1.0
    %v1960 = vadd.f32 %v1802, 1.0
    %v1961 = vadd.f32 %v1804, 1.0
    %v1962 = vadd.f32 %v1806, 1.0
    %v1963 = vadd.f32 %v1808, 1.0
    %v1964 = vadd.f32 %v1810, 1.0
    %v1965 = vadd.f32 %v1812, 1.0
    %v1966 = vadd.f32 %v1814, 1.0
    %v1967 = vadd.f32 %v1816, 1.0
    %v1968 = vadd.f32 %v1818, 1.0
    %v1969 = vadd.f32 %v1820, 1.0
    %v1970 = vadd.f32 %v1822, 1.0
    %v1971 = vadd.f32 %v1824, 1.0
    %v1972 = vadd.f32 %v1826, 1.0
    %v1973 = vadd.f32 %v1828, 1.0
    %v1974 = vadd.f32 %v1830, 1.0
    %v1975 = vrcp.pop %v1831
    %v1976 = vmul.f32 1.0, %v1975
    %v1977 = vrcp.pop %v1832
    %v1978 = vmul.f32 1.0, %v1977
    %v1979 = vrcp.pop %v1833
    %v1980 = vmul.f32 1.0, %v1979
    %v1981 = vrcp.pop %v1834
    %v1982 = vmul.f32 1.0, %v1981
    %v1983 = vrcp.pop %v1835
    %v1984 = vmul.f32 1.0, %v1983
    %v1985 = vrcp.pop %v1836
    %v1986 = vmul.f32 1.0, %v1985
    %v1987 = vrcp.pop %v1837
    %v1988 = vmul.f32 1.0, %v1987
    %v1989 = vrcp.pop %v1838
    %v1990 = vmul.f32 1.0, %v1989
    %v1991 = vrcp.pop %v1839
    %v1992 = vmul.f32 1.0, %v1991
    %v1993 = vrcp.pop %v1840
    %v1994 = vmul.f32 1.0, %v1993
    %v1995 = vrcp.pop %v1841
    %v1996 = vmul.f32 1.0, %v1995
    %v1997 = vrcp.pop %v1842
    %v1998 = vmul.f32 1.0, %v1997
    %v1999 = vrcp.pop %v1843
    %v2000 = vmul.f32 1.0, %v1999
    %v2001 = vrcp.pop %v1844
    %v2002 = vmul.f32 1.0, %v2001
    %v2003 = vrcp.pop %v1845
    %v2004 = vmul.f32 1.0, %v2003
    %v2005 = vrcp.pop %v1846
    %v2006 = vmul.f32 1.0, %v2005
    %v2007 = vrcp.pop %v1847
    %v2008 = vmul.f32 1.0, %v2007
    %v2009 = vrcp.pop %v1848
    %v2010 = vmul.f32 1.0, %v2009
    %v2011 = vrcp.pop %v1849
    %v2012 = vmul.f32 1.0, %v2011
    %v2013 = vrcp.pop %v1850
    %v2014 = vmul.f32 1.0, %v2013
    %v2015 = vrcp.pop %v1851
    %v2016 = vmul.f32 1.0, %v2015
    %v2017 = vrcp.pop %v1852
    %v2018 = vmul.f32 1.0, %v2017
    %v2019 = vrcp.pop %v1853
    %v2020 = vmul.f32 1.0, %v2019
    %v2021 = vrcp.pop %v1854
    %v2022 = vmul.f32 1.0, %v2021
    %v2023 = vrcp.pop %v1855
    %v2024 = vmul.f32 1.0, %v2023
    %v2025 = vrcp.pop %v1856
    %v2026 = vmul.f32 1.0, %v2025
    %v2027 = vrcp.pop %v1857
    %v2028 = vmul.f32 1.0, %v2027
    %v2029 = vrcp.pop %v1858
    %v2030 = vmul.f32 1.0, %v2029
    %v2031 = vrcp.pop %v1859
    %v2032 = vmul.f32 1.0, %v2031
    %v2033 = vrcp.pop %v1860
    %v2034 = vmul.f32 1.0, %v2033
    %v2035 = vrcp.pop %v1861
    %v2036 = vmul.f32 1.0, %v2035
    %v2037 = vrcp.pop %v1862
    %v2038 = vmul.f32 1.0, %v2037
    %v2039 = vrcp.pop %v1863
    %v2040 = vmul.f32 1.0, %v2039
    %v2041 = vrcp.pop %v1864
    %v2042 = vmul.f32 1.0, %v2041
    %v2043 = vrcp.pop %v1865
    %v2044 = vmul.f32 1.0, %v2043
    %v2045 = vrcp.pop %v1866
    %v2046 = vmul.f32 1.0, %v2045
    %v2047 = vrcp.pop %v1867
    %v2048 = vmul.f32 1.0, %v2047
    %v2049 = vrcp.pop %v1868
    %v2050 = vmul.f32 1.0, %v2049
    %v2051 = vrcp.pop %v1869
    %v2052 = vmul.f32 1.0, %v2051
    %v2053 = vrcp.pop %v1870
    %v2054 = vmul.f32 1.0, %v2053
    %v2055 = vrcp.pop %v1871
    %v2056 = vmul.f32 1.0, %v2055
    %v2057 = vrcp.pop %v1872
    %v2058 = vmul.f32 1.0, %v2057
    %v2059 = vrcp.pop %v1873
    %v2060 = vmul.f32 1.0, %v2059
    %v2061 = vrcp.pop %v1874
    %v2062 = vmul.f32 1.0, %v2061
    %v2063 = vrcp.pop %v1875
    %v2064 = vmul.f32 1.0, %v2063
    %v2065 = vrcp.pop %v1876
    %v2066 = vmul.f32 1.0, %v2065
    %v2067 = vrcp.pop %v1877
    %v2068 = vmul.f32 1.0, %v2067
    %v2069 = vrcp.pop %v1878
    %v2070 = vmul.f32 1.0, %v2069
    %v2071 = vrcp.pop %v1879
    %v2072 = vmul.f32 1.0, %v2071
    %v2073 = vrcp.pop %v1880
    %v2074 = vmul.f32 1.0, %v2073
    %v2075 = vrcp.pop %v1881
    %v2076 = vmul.f32 1.0, %v2075
    %v2077 = vrcp.pop %v1882
    %v2078 = vmul.f32 1.0, %v2077
    %v2079 = vrcp.pop %v1883
    %v2080 = vmul.f32 1.0, %v2079
    %v2081 = vrcp.pop %v1884
    %v2082 = vmul.f32 1.0, %v2081
    %v2083 = vrcp.pop %v1885
    %v2084 = vmul.f32 1.0, %v2083
    %v2085 = vrcp.pop %v1886
    %v2086 = vmul.f32 1.0, %v2085
    %v2087 = vrcp.pop %v1887
    %v2088 = vmul.f32 1.0, %v2087
    %v2089 = vrcp.pop %v1888
    %v2090 = vmul.f32 1.0, %v2089
    %v2091 = vrcp.pop %v1889
    %v2092 = vmul.f32 1.0, %v2091
    %v2093 = vrcp.pop %v1890
    %v2094 = vmul.f32 1.0, %v2093
    %v2095 = vrcp.pop %v1891
    %v2096 = vmul.f32 1.0, %v2095
    %v2097 = vrcp.pop %v1892
    %v2098 = vmul.f32 1.0, %v2097
    %v2099 = vrcp.pop %v1893
    %v2100 = vmul.f32 1.0, %v2099
    %v2101 = vrcp.pop %v1894
    %v2102 = vmul.f32 1.0, %v2101
    %v2103 = vrcp.pop %v1895
    %v2104 = vmul.f32 1.0, %v2103
    %v2105 = vrcp.pop %v1896
    %v2106 = vmul.f32 1.0, %v2105
    %v2107 = vrcp.pop %v1897
    %v2108 = vmul.f32 1.0, %v2107
    %v2109 = vrcp.pop %v1898
    %v2110 = vmul.f32 1.0, %v2109
    %v2111 = vrcp.pop %v1899
    %v2112 = vmul.f32 1.0, %v2111
    %v2113 = vrcp.pop %v1900
    %v2114 = vmul.f32 1.0, %v2113
    %v2115 = vrcp.pop %v1901
    %v2116 = vmul.f32 1.0, %v2115
    %v2117 = vrcp.pop %v1902
    %v2118 = vmul.f32 1.0, %v2117
    %v2119 = vrcp.pop %v1903
    %v2120 = vmul.f32 1.0, %v2119
    %v2121 = vrcp.pop %v1904
    %v2122 = vmul.f32 1.0, %v2121
    %v2123 = vrcp.pop %v1905
    %v2124 = vmul.f32 1.0, %v2123
    %v2125 = vrcp.pop %v1906
    %v2126 = vmul.f32 1.0, %v2125
    %v2127 = vrcp.pop %v1907
    %v2128 = vmul.f32 1.0, %v2127
    %v2129 = vrcp.pop %v1908
    %v2130 = vmul.f32 1.0, %v2129
    %v2131 = vrcp.pop %v1909
    %v2132 = vmul.f32 1.0, %v2131
    %v2133 = vrcp.pop %v1910
    %v2134 = vmul.f32 1.0, %v2133
    %v2135 = vrcp.pop %v1911
    %v2136 = vmul.f32 1.0, %v2135
    %v2137 = vrcp.pop %v1912
    %v2138 = vmul.f32 1.0, %v2137
    %v2139 = vrcp.pop %v1913
    %v2140 = vmul.f32 1.0, %v2139
    %v2141 = vrcp.pop %v1914
    %v2142 = vmul.f32 1.0, %v2141
    %v2143 = vrcp.pop %v1915
    %v2144 = vmul.f32 1.0, %v2143
    %v2145 = vrcp.pop %v1916
    %v2146 = vmul.f32 1.0, %v2145
    %v2147 = vrcp.pop %v1917
    %v2148 = vmul.f32 1.0, %v2147
    %v2149 = vrcp.pop %v1918
    %v2150 = vmul.f32 1.0, %v2149
    %v2151 = vrcp.pop %v1919
    %v2152 = vmul.f32 1.0, %v2151
    %v2153 = vrcp.pop %v1920
    %v2154 = vmul.f32 1.0, %v2153
    %v2155 = vrcp.pop %v1921
    %v2156 = vmul.f32 1.0, %v2155
    %v2157 = vrcp.pop %v1922
    %v2158 = vmul.f32 1.0, %v2157
    %v2159 = vrcp.pop %v1923
    %v2160 = vmul.f32 1.0, %v2159
    %v2161 = vrcp.pop %v1924
    %v2162 = vmul.f32 1.0, %v2161
    %v2163 = vrcp.pop %v1925
    %v2164 = vmul.f32 1.0, %v2163
    %v2165 = vrcp.pop %v1926
    %v2166 = vmul.f32 1.0, %v2165
    %v2167 = vrcp.pop %v1927
    %v2168 = vmul.f32 1.0, %v2167
    %v2169 = vrcp.pop %v1928
    %v2170 = vmul.f32 1.0, %v2169
    %v2171 = vrcp.pop %v1929
    %v2172 = vmul.f32 1.0, %v2171
    %v2173 = vrcp.pop %v1930
    %v2174 = vmul.f32 1.0, %v2173
    %v2175 = vrcp.pop %v1931
    %v2176 = vmul.f32 1.0, %v2175
    %v2177 = vrcp.pop %v1932
    %v2178 = vmul.f32 1.0, %v2177
    %v2179 = vrcp.pop %v1933
    %v2180 = vmul.f32 1.0, %v2179
    %v2181 = vrcp.pop %v1934
    %v2182 = vmul.f32 1.0, %v2181
    %v2183 = vrcp.pop %v1935
    %v2184 = vmul.f32 1.0, %v2183
    %v2185 = vrcp.pop %v1936
    %v2186 = vmul.f32 1.0, %v2185
    %v2187 = vrcp.pop %v1937
    %v2188 = vmul.f32 1.0, %v2187
    %v2189 = vrcp.pop %v1938
    %v2190 = vmul.f32 1.0, %v2189
    %v2191 = vrcp.pop %v1939
    %v2192 = vmul.f32 1.0, %v2191
    %v2193 = vrcp.pop %v1940
    %v2194 = vmul.f32 1.0, %v2193
    %v2195 = vrcp.pop %v1941
    %v2196 = vmul.f32 1.0, %v2195
    %v2197 = vrcp.pop %v1942
    %v2198 = vmul.f32 1.0, %v2197
    %v2199 = vrcp.pop %v1943
    %v2200 = vmul.f32 1.0, %v2199
    %v2201 = vrcp.pop %v1944
    %v2202 = vmul.f32 1.0, %v2201
    %v2203 = vrcp.pop %v1945
    %v2204 = vmul.f32 1.0, %v2203
    %v2205 = vrcp.pop %v1946
    %v2206 = vmul.f32 1.0, %v2205
    %v2207 = vrcp.pop %v1947
    %v2208 = vmul.f32 1.0, %v2207
    %v2209 = vrcp.pop %v1948
    %v2210 = vmul.f32 1.0, %v2209
    %v2211 = vrcp.pop %v1949
    %v2212 = vmul.f32 1.0, %v2211
    %v2213 = vrcp.pop %v1950
    %v2214 = vmul.f32 1.0, %v2213
    %v2215 = vrcp.pop %v1951
    %v2216 = vmul.f32 1.0, %v2215
    %v2217 = vrcp.pop %v1952
    %v2218 = vmul.f32 1.0, %v2217
    %v2219 = vrcp.pop %v1953
    %v2220 = vmul.f32 1.0, %v2219
    %v2221 = vrcp.pop %v1954
    %v2222 = vmul.f32 1.0, %v2221
    %v2223 = vrcp.pop %v1955
    %v2224 = vmul.f32 1.0, %v2223
    %v2225 = vrcp.pop %v1956
    %v2226 = vmul.f32 1.0, %v2225
    %v2227 = vrcp.pop %v1957
    %v2228 = vmul.f32 1.0, %v2227
    %v2229 = vrcp.pop %v1958
    %v2230 = vmul.f32 1.0, %v2229
    %v2231 = vrcp.pop %v1959
    %v2232 = vmul.f32 1.0, %v2231
    %v2233 = vrcp.pop %v1960
    %v2234 = vmul.f32 1.0, %v2233
    %v2235 = vrcp.pop %v1961
    %v2236 = vmul.f32 1.0, %v2235
    %v2237 = vrcp.pop %v1962
    %v2238 = vmul.f32 1.0, %v2237
    %v2239 = vrcp.pop %v1963
    %v2240 = vmul.f32 1.0, %v2239
    %v2241 = vrcp.pop %v1964
    %v2242 = vmul.f32 1.0, %v2241
    %v2243 = vrcp.pop %v1965
    %v2244 = vmul.f32 1.0, %v2243
    %v2245 = vrcp.pop %v1966
    %v2246 = vmul.f32 1.0, %v2245
    %v2247 = vrcp.pop %v1967
    %v2248 = vmul.f32 1.0, %v2247
    %v2249 = vrcp.pop %v1968
    %v2250 = vmul.f32 1.0, %v2249
    %v2251 = vrcp.pop %v1969
    %v2252 = vmul.f32 1.0, %v2251
    %v2253 = vrcp.pop %v1970
    %v2254 = vmul.f32 1.0, %v2253
    %v2255 = vrcp.pop %v1971
    %v2256 = vmul.f32 1.0, %v2255
    %v2257 = vrcp.pop %v1972
    %v2258 = vmul.f32 1.0, %v2257
    %v2259 = vrcp.pop %v1973
    %v2260 = vmul.f32 1.0, %v2259
    %v2261 = vrcp.pop %v1974
    %v2262 = vmul.f32 1.0, %v2261
    %v2263 = vmax.f32 %v1976, %v2048
    %v2264 = vmax.f32 %v1978, %v2050
    %v2265 = vmax.f32 %v1980, %v2052
    %v2266 = vmax.f32 %v1982, %v2054
    %v2267 = vmax.f32 %v1984, %v2056
    %v2268 = vmax.f32 %v1986, %v2058
    %v2269 = vmax.f32 %v1988, %v2060
    %v2270 = vmax.f32 %v1990, %v2062
    %v2271 = vmax.f32 %v1992, %v2064
    %v2272 = vmax.f32 %v1994, %v2066
    %v2273 = vmax.f32 %v1996, %v2068
    %v2274 = vmax.f32 %v1998, %v2070
    %v2275 = vmax.f32 %v2000, %v2072
    %v2276 = vmax.f32 %v2002, %v2074
    %v2277 = vmax.f32 %v2004, %v2076
    %v2278 = vmax.f32 %v2006, %v2078
    %v2279 = vmax.f32 %v2008, %v2080
    %v2280 = vmax.f32 %v2010, %v2082
    %v2281 = vmax.f32 %v2012, %v2084
    %v2282 = vmax.f32 %v2014, %v2086
    %v2283 = vmax.f32 %v2016, %v2088
    %v2284 = vmax.f32 %v2018, %v2090
    %v2285 = vmax.f32 %v2020, %v2092
    %v2286 = vmax.f32 %v2022, %v2094
    %v2287 = vmax.f32 %v2024, %v2096
    %v2288 = vmax.f32 %v2026, %v2098
    %v2289 = vmax.f32 %v2028, %v2100
    %v2290 = vmax.f32 %v2030, %v2102
    %v2291 = vmax.f32 %v2032, %v2104
    %v2292 = vmax.f32 %v2034, %v2106
    %v2293 = vmax.f32 %v2036, %v2108
    %v2294 = vmax.f32 %v2038, %v2110
    %v2295 = vmax.f32 %v2040, %v2112
    %v2296 = vmax.f32 %v2042, %v2114
    %v2297 = vmax.f32 %v2044, %v2116
    %v2298 = vmax.f32 %v2046, %v2118
    %v2299 = vmax.f32 %v2120, %v2192
    %v2300 = vmax.f32 %v2122, %v2194
    %v2301 = vmax.f32 %v2124, %v2196
    %v2302 = vmax.f32 %v2126, %v2198
    %v2303 = vmax.f32 %v2128, %v2200
    %v2304 = vmax.f32 %v2130, %v2202
    %v2305 = vmax.f32 %v2132, %v2204
    %v2306 = vmax.f32 %v2134, %v2206
    %v2307 = vmax.f32 %v2136, %v2208
    %v2308 = vmax.f32 %v2138, %v2210
    %v2309 = vmax.f32 %v2140, %v2212
    %v2310 = vmax.f32 %v2142, %v2214
    %v2311 = vmax.f32 %v2144, %v2216
    %v2312 = vmax.f32 %v2146, %v2218
    %v2313 = vmax.f32 %v2148, %v2220
    %v2314 = vmax.f32 %v2150, %v2222
    %v2315 = vmax.f32 %v2152, %v2224
    %v2316 = vmax.f32 %v2154, %v2226
    %v2317 = vmax.f32 %v2156, %v2228
    %v2318 = vmax.f32 %v2158, %v2230
    %v2319 = vmax.f32 %v2160, %v2232
    %v2320 = vmax.f32 %v2162, %v2234
    %v2321 = vmax.f32 %v2164, %v2236
    %v2322 = vmax.f32 %v2166, %v2238
    %v2323 = vmax.f32 %v2168, %v2240
    %v2324 = vmax.f32 %v2170, %v2242
    %v2325 = vmax.f32 %v2172, %v2244
    %v2326 = vmax.f32 %v2174, %v2246
    %v2327 = vmax.f32 %v2176, %v2248
    %v2328 = vmax.f32 %v2178, %v2250
    %v2329 = vmax.f32 %v2180, %v2252
    %v2330 = vmax.f32 %v2182, %v2254
    %v2331 = vmax.f32 %v2184, %v2256
    %v2332 = vmax.f32 %v2186, %v2258
    %v2333 = vmax.f32 %v2188, %v2260
    %v2334 = vmax.f32 %v2190, %v2262
    %v2335 = vmax.f32 %v2263, %v2299
    %v2336 = vmax.f32 %v2264, %v2300
    %v2337 = vmax.f32 %v2265, %v2301
    %v2338 = vmax.f32 %v2266, %v2302
    %v2339 = vmax.f32 %v2267, %v2303
    %v2340 = vmax.f32 %v2268, %v2304
    %v2341 = vmax.f32 %v2269, %v2305
    %v2342 = vmax.f32 %v2270, %v2306
    %v2343 = vmax.f32 %v2271, %v2307
    %v2344 = vmax.f32 %v2272, %v2308
    %v2345 = vmax.f32 %v2273, %v2309
    %v2346 = vmax.f32 %v2274, %v2310
    %v2347 = vmax.f32 %v2275, %v2311
    %v2348 = vmax.f32 %v2276, %v2312
    %v2349 = vmax.f32 %v2277, %v2313
    %v2350 = vmax.f32 %v2278, %v2314
    %v2351 = vmax.f32 %v2279, %v2315
    %v2352 = vmax.f32 %v2280, %v2316
    %v2353 = vmax.f32 %v2281, %v2317
    %v2354 = vmax.f32 %v2282, %v2318
    %v2355 = vmax.f32 %v2283, %v2319
    %v2356 = vmax.f32 %v2284, %v2320
    %v2357 = vmax.f32 %v2285, %v2321
    %v2358 = vmax.f32 %v2286, %v2322
    %v2359 = vmax.f32 %v2287, %v2323
    %v2360 = vmax.f32 %v2288, %v2324
    %v2361 = vmax.f32 %v2289, %v2325
    %v2362 = vmax.f32 %v2290, %v2326
    %v2363 = vmax.f32 %v2291, %v2327
    %v2364 = vmax.f32 %v2292, %v2328
    %v2365 = vmax.f32 %v2293, %v2329
    %v2366 = vmax.f32 %v2294, %v2330
    %v2367 = vmax.f32 %v2295, %v2331
    %v2368 = vmax.f32 %v2296, %v2332
    %v2369 = vmax.f32 %v2297, %v2333
    %v2370 = vmax.f32 %v2298, %v2334
    %vm2371 = vcmask 48128
    %2372 = vst.msk [vmem:[#allocation2] sm:$0xff] %vm2371, %v2335
    %vm2373 = vcmask 44032
    %2374 = vst.msk [vmem:[#allocation2 + $0x8] sm:$0xf] %vm2373, %v2336
    %s2375 = scalar_lea.vmem [#allocation2], 16
    %vm2376 = vcmask 48132
    %2377 = vst.msk [vmem:[%s2375 - $0x4] sm:$0xf0] %vm2376, %v2336
    %2378 = vst.msk [vmem:[%s2375 + $0x4] sm:$0xff] %vm2371, %v2337
    %s2379 = scalar_lea.vmem [#allocation2], 32
    %2380 = vst.msk [vmem:[%s2379] sm:$0xff] %vm2371, %v2338
    %2381 = vst.msk [vmem:[%s2379 + $0x8] sm:$0xf] %vm2373, %v2339
    %s2382 = scalar_lea.vmem [#allocation2], 48
    %2383 = vst.msk [vmem:[%s2382 - $0x4] sm:$0xf0] %vm2376, %v2339
    %2384 = vst.msk [vmem:[%s2382 + $0x4] sm:$0xff] %vm2371, %v2340
    %s2385 = scalar_lea.vmem [#allocation2], 64
    %2386 = vst.msk [vmem:[%s2385] sm:$0xff] %vm2371, %v2341
    %2387 = vst.msk [vmem:[%s2385 + $0x8] sm:$0xf] %vm2373, %v2342
    %s2388 = scalar_lea.vmem [#allocation2], 80
    %2389 = vst.msk [vmem:[%s2388 - $0x4] sm:$0xf0] %vm2376, %v2342
    %2390 = vst.msk [vmem:[%s2388 + $0x4] sm:$0xff] %vm2371, %v2343
    %s2391 = scalar_lea.vmem [#allocation2], 96
    %2392 = vst.msk [vmem:[%s2391] sm:$0xff] %vm2371, %v2344
    %2393 = vst.msk [vmem:[%s2391 + $0x8] sm:$0xf] %vm2373, %v2345
    %s2394 = scalar_lea.vmem [#allocation2], 112
    %2395 = vst.msk [vmem:[%s2394 - $0x4] sm:$0xf0] %vm2376, %v2345
    %2396 = vst.msk [vmem:[%s2394 + $0x4] sm:$0xff] %vm2371, %v2346
    %s2397 = scalar_lea.vmem [#allocation2], 128
    %2398 = vst.msk [vmem:[%s2397] sm:$0xff] %vm2371, %v2347
    %2399 = vst.msk [vmem:[%s2397 + $0x8] sm:$0xf] %vm2373, %v2348
    %s2400 = scalar_lea.vmem [#allocation2], 144
    %2401 = vst.msk [vmem:[%s2400 - $0x4] sm:$0xf0] %vm2376, %v2348
    %2402 = vst.msk [vmem:[%s2400 + $0x4] sm:$0xff] %vm2371, %v2349
    %s2403 = scalar_lea.vmem [#allocation2], 160
    %2404 = vst.msk [vmem:[%s2403] sm:$0xff] %vm2371, %v2350
    %2405 = vst.msk [vmem:[%s2403 + $0x8] sm:$0xf] %vm2373, %v2351
    %s2406 = scalar_lea.vmem [#allocation2], 176
    %2407 = vst.msk [vmem:[%s2406 - $0x4] sm:$0xf0] %vm2376, %v2351
    %2408 = vst.msk [vmem:[%s2406 + $0x4] sm:$0xff] %vm2371, %v2352
    %s2409 = scalar_lea.vmem [#allocation2], 192
    %2410 = vst.msk [vmem:[%s2409] sm:$0xff] %vm2371, %v2353
    %2411 = vst.msk [vmem:[%s2409 + $0x8] sm:$0xf] %vm2373, %v2354
    %s2412 = scalar_lea.vmem [#allocation2], 208
    %2413 = vst.msk [vmem:[%s2412 - $0x4] sm:$0xf0] %vm2376, %v2354
    %2414 = vst.msk [vmem:[%s2412 + $0x4] sm:$0xff] %vm2371, %v2355
    %s2415 = scalar_lea.vmem [#allocation2], 224
    %2416 = vst.msk [vmem:[%s2415] sm:$0xff] %vm2371, %v2356
    %2417 = vst.msk [vmem:[%s2415 + $0x8] sm:$0xf] %vm2373, %v2357
    %s2418 = scalar_lea.vmem [#allocation2], 240
    %2419 = vst.msk [vmem:[%s2418 - $0x4] sm:$0xf0] %vm2376, %v2357
    %2420 = vst.msk [vmem:[%s2418 + $0x4] sm:$0xff] %vm2371, %v2358
    %s2421 = scalar_lea.vmem [#allocation2], 256
    %2422 = vst.msk [vmem:[%s2421] sm:$0xff] %vm2371, %v2359
    %2423 = vst.msk [vmem:[%s2421 + $0x8] sm:$0xf] %vm2373, %v2360
    %s2424 = scalar_lea.vmem [#allocation2], 272
    %2425 = vst.msk [vmem:[%s2424 - $0x4] sm:$0xf0] %vm2376, %v2360
    %2426 = vst.msk [vmem:[%s2424 + $0x4] sm:$0xff] %vm2371, %v2361
    %s2427 = scalar_lea.vmem [#allocation2], 288
    %2428 = vst.msk [vmem:[%s2427] sm:$0xff] %vm2371, %v2362
    %2429 = vst.msk [vmem:[%s2427 + $0x8] sm:$0xf] %vm2373, %v2363
    %s2430 = scalar_lea.vmem [#allocation2], 304
    %2431 = vst.msk [vmem:[%s2430 - $0x4] sm:$0xf0] %vm2376, %v2363
    %2432 = vst.msk [vmem:[%s2430 + $0x4] sm:$0xff] %vm2371, %v2364
    %s2433 = scalar_lea.vmem [#allocation2], 320
    %2434 = vst.msk [vmem:[%s2433] sm:$0xff] %vm2371, %v2365
    %2435 = vst.msk [vmem:[%s2433 + $0x8] sm:$0xf] %vm2373, %v2366
    %s2436 = scalar_lea.vmem [#allocation2], 336
    %2437 = vst.msk [vmem:[%s2436 - $0x4] sm:$0xf0] %vm2376, %v2366
    %2438 = vst.msk [vmem:[%s2436 + $0x4] sm:$0xff] %vm2371, %v2367
    %s2439 = scalar_lea.vmem [#allocation2], 352
    %2440 = vst.msk [vmem:[%s2439] sm:$0xff] %vm2371, %v2368
    %2441 = vst.msk [vmem:[%s2439 + $0x8] sm:$0xf] %vm2373, %v2369
    %s2442 = scalar_lea.vmem [#allocation2], 368
    %2443 = vst.msk [vmem:[%s2442 - $0x4] sm:$0xf0] %vm2376, %v2369
    %2444 = vst.msk [vmem:[%s2442 + $0x4] sm:$0xff] %vm2371, %v2370
    %v2445 = vld [vmem:[#allocation2] sm:$0xff]
    %v2446 = vld [vmem:[#allocation2 + $0x10] sm:$0xff]
    %v2447 = vld [vmem:[#allocation2 + $0x20] sm:$0xff]
    %v2448 = vld [vmem:[#allocation2 + $0x30] sm:$0xff]
    %v2449 = vld [vmem:[#allocation2 + $0x40] sm:$0xff]
    %v2450 = vld [vmem:[#allocation2 + $0x50] sm:$0xff]
    %v2451 = vld [vmem:[#allocation2 + $0x60] sm:$0xff]
    %v2452 = vld [vmem:[#allocation2 + $0x70] sm:$0xff]
    %v2453 = vld [vmem:[#allocation2 + $0xc0] sm:$0xff]
    %v2454 = vld [vmem:[#allocation2 + $0xd0] sm:$0xff]
    %v2455 = vld [vmem:[#allocation2 + $0xe0] sm:$0xff]
    %v2456 = vld [vmem:[#allocation2 + $0xf0] sm:$0xff]
    %v2457 = vld [vmem:[#allocation2 + $0x100] sm:$0xff]
    %v2458 = vld [vmem:[#allocation2 + $0x110] sm:$0xff]
    %v2459 = vld [vmem:[#allocation2 + $0x120] sm:$0xff]
    %v2460 = vld [vmem:[#allocation2 + $0x130] sm:$0xff]
    %v2461 = vpack.c.bf16 %v2446, %v2445
    %v2462 = vpack.c.bf16 %v2448, %v2447
    %v2463 = vpack.c.bf16 %v2450, %v2449
    %v2464 = vpack.c.bf16 %v2452, %v2451
    %v2465 = vpack.c.bf16 %v2454, %v2453
    %v2466 = vpack.c.bf16 %v2456, %v2455
    %v2467 = vpack.c.bf16 %v2458, %v2457
    %v2468 = vpack.c.bf16 %v2460, %v2459
    %v2469 = vld [vmem:[%s3] sm:$0x7]
    %v2470 = vld [vmem:[#allocation2 + $0x1] sm:$0xff]
    %v2471 = vld [vmem:[#allocation2 + $0x11] sm:$0xff]
    %v2472 = vld [vmem:[#allocation2 + $0x21] sm:$0xff]
    %v2473 = vld [vmem:[#allocation2 + $0x31] sm:$0xff]
    %v2474 = vld [vmem:[#allocation2 + $0x41] sm:$0xff]
    %v2475 = vld [vmem:[#allocation2 + $0x51] sm:$0xff]
    %v2476 = vld [vmem:[#allocation2 + $0x61] sm:$0xff]
    %v2477 = vld [vmem:[#allocation2 + $0x71] sm:$0xff]
    %v2478 = vld [vmem:[#allocation2 + $0xc1] sm:$0xff]
    %v2479 = vld [vmem:[#allocation2 + $0xd1] sm:$0xff]
    %v2480 = vld [vmem:[#allocation2 + $0xe1] sm:$0xff]
    %v2481 = vld [vmem:[#allocation2 + $0xf1] sm:$0xff]
    %v2482 = vld [vmem:[#allocation2 + $0x101] sm:$0xff]
    %v2483 = vld [vmem:[#allocation2 + $0x111] sm:$0xff]
    %v2484 = vld [vmem:[#allocation2 + $0x121] sm:$0xff]
    %v2485 = vld [vmem:[#allocation2 + $0x131] sm:$0xff]
    %v2486 = vpack.c.bf16 %v2471, %v2470
    %v2487 = vpack.c.bf16 %v2473, %v2472
    %v2488 = vpack.c.bf16 %v2475, %v2474
    %v2489 = vpack.c.bf16 %v2477, %v2476
    %v2490 = vpack.c.bf16 %v2479, %v2478
    %v2491 = vpack.c.bf16 %v2481, %v2480
    %v2492 = vpack.c.bf16 %v2483, %v2482
    %v2493 = vpack.c.bf16 %v2485, %v2484
    %s2494 = scalar_lea.vmem %s3, 4
    %v2495 = vld [vmem:[%s2494] sm:$0x7]
    %v2497 = vsel %vm2371, %v2486, 0
    %v2500 = vsel %vm2371, %v2487, 0
    %v2503 = vsel %vm2371, %v2488, 0
    %v2506 = vsel %vm2371, %v2489, 0
    %v2509 = vsel %vm2371, %v2490, 0
    %v2512 = vsel %vm2371, %v2491, 0
    %v2515 = vsel %vm2371, %v2492, 0
    %v2518 = vsel %vm2371, %v2493, 0
    %vm2520 = vcmask 1042432
    %v2522 = vsel %vm2520, %v2495, 0
    %2524 = vmatprep.subr.bf16.mxu0 0
    %2525 = vmatpush1.bf16.msra.mxu0 %v2522
    %2526 = vmatprep.subr.bf16.mxu0 0
    %2527 = vmatpush1.bf16.msra.mxu0 0
    %2528 = vmatprep.subr.bf16.mxu0 0
    %2529 = vmatpush1.bf16.msra.mxu0 0
    %2530 = vmatprep.subr.bf16.mxu0 0
    %2531 = vmatpush1.bf16.msra.mxu0 0
    %2532 = vmatprep.subr.bf16.mxu0 0
    %2533 = vmatpush1.bf16.msra.mxu0 0
    %2534 = vmatprep.subr.bf16.mxu0 0
    %2535 = vmatpush1.bf16.msra.mxu0 0
    %2536 = vmatprep.subr.bf16.mxu0 0
    %2537 = vmatpush1.bf16.msra.mxu0 0
    %2538 = vmatprep.subr.bf16.mxu0 0
    %2539 = vmatpush1.bf16.msra.mxu0 0
    %2540 = vmatprep.subr.bf16.mxu0 0
    %2541 = vmatpush1.bf16.msra.mxu0 0
    %2542 = vmatprep.subr.bf16.mxu0 0
    %2543 = vmatpush1.bf16.msra.mxu0 0
    %2544 = vmatprep.subr.bf16.mxu0 0
    %2545 = vmatpush1.bf16.msra.mxu0 0
    %2546 = vmatprep.subr.bf16.mxu0 0
    %2547 = vmatpush1.bf16.msra.mxu0 0
    %2548 = vmatprep.subr.bf16.mxu0 0
    %2549 = vmatpush1.bf16.msra.mxu0 0
    %2550 = vmatprep.subr.bf16.mxu0 0
    %2551 = vmatpush1.bf16.msra.mxu0 0
    %2552 = vmatprep.subr.bf16.mxu0 0
    %2553 = vmatpush1.bf16.msra.mxu0 0
    %2554 = vmatprep.subr.bf16.mxu0 0
    %2555 = vmatpush1.bf16.msra.mxu0 0
    %2556 = vmatprep.mubr.bf16.mxu0 0
    %2557 = vmatmul.mubr.bf16.gmra.mrb[0].mxu0 %v2497
    %v2558 = vpop.f32.mrb[0].mxu0
    %v2559 = vadd.f32 0.0, %v2558
    %v2560 = vpop.f32.mrb[0].mxu0
    %v2561 = vpop.f32.mrb[0].mxu0
    %v2562 = vadd.f32 0.0, %v2561
    %v2563 = vpop.f32.mrb[0].mxu0
    %2564 = vmatprep.mubr.bf16.mxu0 0
    %2565 = vmatmul.mubr.bf16.gmra.mrb[0].mxu0 %v2500
    %v2566 = vpop.f32.mrb[0].mxu0
    %v2567 = vadd.f32 0.0, %v2566
    %v2568 = vpop.f32.mrb[0].mxu0
    %v2569 = vpop.f32.mrb[0].mxu0
    %v2570 = vadd.f32 0.0, %v2569
    %v2571 = vpop.f32.mrb[0].mxu0
    %2572 = vmatprep.mubr.bf16.mxu0 0
    %2573 = vmatmul.mubr.bf16.gmra.mrb[0].mxu0 %v2503
    %v2574 = vpop.f32.mrb[0].mxu0
    %v2575 = vadd.f32 0.0, %v2574
    %v2576 = vpop.f32.mrb[0].mxu0
    %v2577 = vpop.f32.mrb[0].mxu0
    %v2578 = vadd.f32 0.0, %v2577
    %v2579 = vpop.f32.mrb[0].mxu0
    %2580 = vmatprep.mubr.bf16.mxu0 0
    %2581 = vmatmul.mubr.bf16.gmra.mrb[0].mxu0 %v2506
    %v2582 = vpop.f32.mrb[0].mxu0
    %v2583 = vadd.f32 0.0, %v2582
    %v2584 = vpop.f32.mrb[0].mxu0
    %v2585 = vpop.f32.mrb[0].mxu0
    %v2586 = vadd.f32 0.0, %v2585
    %v2587 = vpop.f32.mrb[0].mxu0
    %2588 = vmatprep.mubr.bf16.mxu0 0
    %2589 = vmatmul.mubr.bf16.gmra.mrb[0].mxu0 %v2509
    %v2590 = vpop.f32.mrb[0].mxu0
    %v2591 = vadd.f32 0.0, %v2590
    %v2592 = vpop.f32.mrb[0].mxu0
    %v2593 = vpop.f32.mrb[0].mxu0
    %v2594 = vadd.f32 0.0, %v2593
    %v2595 = vpop.f32.mrb[0].mxu0
    %2596 = vmatprep.mubr.bf16.mxu0 0
    %2597 = vmatmul.mubr.bf16.gmra.mrb[0].mxu0 %v2512
    %v2598 = vpop.f32.mrb[0].mxu0
    %v2599 = vadd.f32 0.0, %v2598
    %v2600 = vpop.f32.mrb[0].mxu0
    %v2601 = vpop.f32.mrb[0].mxu0
    %v2602 = vadd.f32 0.0, %v2601
    %v2603 = vpop.f32.mrb[0].mxu0
    %2604 = vmatprep.mubr.bf16.mxu0 0
    %2605 = vmatmul.mubr.bf16.gmra.mrb[0].mxu0 %v2515
    %v2606 = vpop.f32.mrb[0].mxu0
    %v2607 = vadd.f32 0.0, %v2606
    %v2608 = vpop.f32.mrb[0].mxu0
    %v2609 = vpop.f32.mrb[0].mxu0
    %v2610 = vadd.f32 0.0, %v2609
    %v2611 = vpop.f32.mrb[0].mxu0
    %2612 = vmatprep.mubr.bf16.mxu0 0
    %2613 = vmatmul.mubr.bf16.gmra.mrb[0].mxu0 %v2518
    %v2614 = vpop.f32.mrb[0].mxu0
    %v2615 = vadd.f32 0.0, %v2614
    %v2616 = vpop.f32.mrb[0].mxu0
    %v2617 = vpop.f32.mrb[0].mxu0
    %v2618 = vadd.f32 0.0, %v2617
    %v2619 = vpop.f32.mrb[0].mxu0
    %2620 = vdwg.mxu0
    %v2622 = vsel %vm2371, %v2461, 0
    %v2625 = vsel %vm2371, %v2462, 0
    %v2628 = vsel %vm2371, %v2463, 0
    %v2631 = vsel %vm2371, %v2464, 0
    %v2634 = vsel %vm2371, %v2465, 0
    %v2637 = vsel %vm2371, %v2466, 0
    %v2640 = vsel %vm2371, %v2467, 0
    %v2643 = vsel %vm2371, %v2468, 0
    %v2646 = vsel %vm2520, %v2469, 0
    %2648 = vmatprep.subr.bf16.mxu0 0
    %2649 = vmatpush1.bf16.msra.mxu0 %v2646
    %2650 = vmatprep.subr.bf16.mxu0 0
    %2651 = vmatpush1.bf16.msra.mxu0 0
    %2652 = vmatprep.subr.bf16.mxu0 0
    %2653 = vmatpush1.bf16.msra.mxu0 0
    %2654 = vmatprep.subr.bf16.mxu0 0
    %2655 = vmatpush1.bf16.msra.mxu0 0
    %2656 = vmatprep.subr.bf16.mxu0 0
    %2657 = vmatpush1.bf16.msra.mxu0 0
    %2658 = vmatprep.subr.bf16.mxu0 0
    %2659 = vmatpush1.bf16.msra.mxu0 0
    %2660 = vmatprep.subr.bf16.mxu0 0
    %2661 = vmatpush1.bf16.msra.mxu0 0
    %2662 = vmatprep.subr.bf16.mxu0 0
    %2663 = vmatpush1.bf16.msra.mxu0 0
    %2664 = vmatprep.subr.bf16.mxu0 0
    %2665 = vmatpush1.bf16.msra.mxu0 0
    %2666 = vmatprep.subr.bf16.mxu0 0
    %2667 = vmatpush1.bf16.msra.mxu0 0
    %2668 = vmatprep.subr.bf16.mxu0 0
    %2669 = vmatpush1.bf16.msra.mxu0 0
    %2670 = vmatprep.subr.bf16.mxu0 0
    %2671 = vmatpush1.bf16.msra.mxu0 0
    %2672 = vmatprep.subr.bf16.mxu0 0
    %2673 = vmatpush1.bf16.msra.mxu0 0
    %2674 = vmatprep.subr.bf16.mxu0 0
    %2675 = vmatpush1.bf16.msra.mxu0 0
    %2676 = vmatprep.subr.bf16.mxu0 0
    %2677 = vmatpush1.bf16.msra.mxu0 0
    %2678 = vmatprep.subr.bf16.mxu0 0
    %2679 = vmatpush1.bf16.msra.mxu0 0
    %2680 = vmatprep.mubr.bf16.mxu0 0
    %2681 = vmatmul.mubr.bf16.gmra.mrb[0].mxu0 %v2622
    %v2682 = vpop.f32.mrb[0].mxu0
    %v2683 = vadd.f32 %v2559, %v2682
    %v2684 = vpop.f32.mrb[0].mxu0
    %v2685 = vpop.f32.mrb[0].mxu0
    %v2686 = vadd.f32 %v2562, %v2685
    %v2687 = vpop.f32.mrb[0].mxu0
    %2688 = vmatprep.mubr.bf16.mxu0 0
    %2689 = vmatmul.mubr.bf16.gmra.mrb[0].mxu0 %v2625
    %v2690 = vpop.f32.mrb[0].mxu0
    %v2691 = vadd.f32 %v2567, %v2690
    %v2692 = vpop.f32.mrb[0].mxu0
    %v2693 = vpop.f32.mrb[0].mxu0
    %v2694 = vadd.f32 %v2570, %v2693
    %v2695 = vpop.f32.mrb[0].mxu0
    %2696 = vmatprep.mubr.bf16.mxu0 0
    %2697 = vmatmul.mubr.bf16.gmra.mrb[0].mxu0 %v2628
    %v2698 = vpop.f32.mrb[0].mxu0
    %v2699 = vadd.f32 %v2575, %v2698
    %v2700 = vpop.f32.mrb[0].mxu0
    %v2701 = vpop.f32.mrb[0].mxu0
    %v2702 = vadd.f32 %v2578, %v2701
    %v2703 = vpop.f32.mrb[0].mxu0
    %2704 = vmatprep.mubr.bf16.mxu0 0
    %2705 = vmatmul.mubr.bf16.gmra.mrb[0].mxu0 %v2631
    %v2706 = vpop.f32.mrb[0].mxu0
    %v2707 = vadd.f32 %v2583, %v2706
    %v2708 = vpop.f32.mrb[0].mxu0
    %v2709 = vpop.f32.mrb[0].mxu0
    %v2710 = vadd.f32 %v2586, %v2709
    %v2711 = vpop.f32.mrb[0].mxu0
    %2712 = vmatprep.mubr.bf16.mxu0 0
    %2713 = vmatmul.mubr.bf16.gmra.mrb[0].mxu0 %v2634
    %v2714 = vpop.f32.mrb[0].mxu0
    %v2715 = vadd.f32 %v2591, %v2714
    %v2716 = vpop.f32.mrb[0].mxu0
    %v2717 = vpop.f32.mrb[0].mxu0
    %v2718 = vadd.f32 %v2594, %v2717
    %v2719 = vpop.f32.mrb[0].mxu0
    %2720 = vmatprep.mubr.bf16.mxu0 0
    %2721 = vmatmul.mubr.bf16.gmra.mrb[0].mxu0 %v2637
    %v2722 = vpop.f32.mrb[0].mxu0
    %v2723 = vadd.f32 %v2599, %v2722
    %v2724 = vpop.f32.mrb[0].mxu0
    %v2725 = vpop.f32.mrb[0].mxu0
    %v2726 = vadd.f32 %v2602, %v2725
    %v2727 = vpop.f32.mrb[0].mxu0
    %2728 = vmatprep.mubr.bf16.mxu0 0
    %2729 = vmatmul.mubr.bf16.gmra.mrb[0].mxu0 %v2640
    %v2730 = vpop.f32.mrb[0].mxu0
    %v2731 = vadd.f32 %v2607, %v2730
    %v2732 = vpop.f32.mrb[0].mxu0
    %v2733 = vpop.f32.mrb[0].mxu0
    %v2734 = vadd.f32 %v2610, %v2733
    %v2735 = vpop.f32.mrb[0].mxu0
    %2736 = vmatprep.mubr.bf16.mxu0 0
    %2737 = vmatmul.mubr.bf16.gmra.mrb[0].mxu0 %v2643
    %v2738 = vpop.f32.mrb[0].mxu0
    %v2739 = vadd.f32 %v2615, %v2738
    %v2740 = vpop.f32.mrb[0].mxu0
    %v2741 = vpop.f32.mrb[0].mxu0
    %v2742 = vadd.f32 %v2618, %v2741
    %v2743 = vpop.f32.mrb[0].mxu0
    %2744 = vdwg.mxu0
    %v2745 = vld [vmem:[#allocation2 + $0x2] sm:$0xff]
    %v2746 = vld [vmem:[#allocation2 + $0x12] sm:$0xff]
    %v2747 = vld [vmem:[#allocation2 + $0x22] sm:$0xff]
    %v2748 = vld [vmem:[#allocation2 + $0x32] sm:$0xff]
    %v2749 = vld [vmem:[#allocation2 + $0x42] sm:$0xff]
    %v2750 = vld [vmem:[#allocation2 + $0x52] sm:$0xff]
    %v2751 = vld [vmem:[#allocation2 + $0x62] sm:$0xff]
    %v2752 = vld [vmem:[#allocation2 + $0x72] sm:$0xff]
    %v2753 = vld [vmem:[#allocation2 + $0xc2] sm:$0xff]
    %v2754 = vld [vmem:[#allocation2 + $0xd2] sm:$0xff]
    %v2755 = vld [vmem:[#allocation2 + $0xe2] sm:$0xff]
    %v2756 = vld [vmem:[#allocation2 + $0xf2] sm:$0xff]
    %v2757 = vld [vmem:[#allocation2 + $0x102] sm:$0xff]
    %v2758 = vld [vmem:[#allocation2 + $0x112] sm:$0xff]
    %v2759 = vld [vmem:[#allocation2 + $0x122] sm:$0xff]
    %v2760 = vld [vmem:[#allocation2 + $0x132] sm:$0xff]
    %v2761 = vpack.c.bf16 %v2746, %v2745
    %v2762 = vpack.c.bf16 %v2748, %v2747
    %v2763 = vpack.c.bf16 %v2750, %v2749
    %v2764 = vpack.c.bf16 %v2752, %v2751
    %v2765 = vpack.c.bf16 %v2754, %v2753
    %v2766 = vpack.c.bf16 %v2756, %v2755
    %v2767 = vpack.c.bf16 %v2758, %v2757
    %v2768 = vpack.c.bf16 %v2760, %v2759
    %s2769 = scalar_lea.vmem %s3, 8
    %v2770 = vld [vmem:[%s2769] sm:$0x7]
    %v2772 = vsel %vm2371, %v2761, 0
    %v2775 = vsel %vm2371, %v2762, 0
    %v2778 = vsel %vm2371, %v2763, 0
    %v2781 = vsel %vm2371, %v2764, 0
    %v2784 = vsel %vm2371, %v2765, 0
    %v2787 = vsel %vm2371, %v2766, 0
    %v2790 = vsel %vm2371, %v2767, 0
    %v2793 = vsel %vm2371, %v2768, 0
    %v2796 = vsel %vm2520, %v2770, 0
    %2798 = vmatprep.subr.bf16.mxu0 0
    %2799 = vmatpush1.bf16.msra.mxu0 %v2796
    %2800 = vmatprep.subr.bf16.mxu0 0
    %2801 = vmatpush1.bf16.msra.mxu0 0
    %2802 = vmatprep.subr.bf16.mxu0 0
    %2803 = vmatpush1.bf16.msra.mxu0 0
    %2804 = vmatprep.subr.bf16.mxu0 0
    %2805 = vmatpush1.bf16.msra.mxu0 0
    %2806 = vmatprep.subr.bf16.mxu0 0
    %2807 = vmatpush1.bf16.msra.mxu0 0
    %2808 = vmatprep.subr.bf16.mxu0 0
    %2809 = vmatpush1.bf16.msra.mxu0 0
    %2810 = vmatprep.subr.bf16.mxu0 0
    %2811 = vmatpush1.bf16.msra.mxu0 0
    %2812 = vmatprep.subr.bf16.mxu0 0
    %2813 = vmatpush1.bf16.msra.mxu0 0
    %2814 = vmatprep.subr.bf16.mxu0 0
    %2815 = vmatpush1.bf16.msra.mxu0 0
    %2816 = vmatprep.subr.bf16.mxu0 0
    %2817 = vmatpush1.bf16.msra.mxu0 0
    %2818 = vmatprep.subr.bf16.mxu0 0
    %2819 = vmatpush1.bf16.msra.mxu0 0
    %2820 = vmatprep.subr.bf16.mxu0 0
    %2821 = vmatpush1.bf16.msra.mxu0 0
    %2822 = vmatprep.subr.bf16.mxu0 0
    %2823 = vmatpush1.bf16.msra.mxu0 0
    %2824 = vmatprep.subr.bf16.mxu0 0
    %2825 = vmatpush1.bf16.msra.mxu0 0
    %2826 = vmatprep.subr.bf16.mxu0 0
    %2827 = vmatpush1.bf16.msra.mxu0 0
    %2828 = vmatprep.subr.bf16.mxu0 0
    %2829 = vmatpush1.bf16.msra.mxu0 0
    %2830 = vmatprep.mubr.bf16.mxu0 0
    %2831 = vmatmul.mubr.bf16.gmra.mrb[0].mxu0 %v2772
    %v2832 = vpop.f32.mrb[0].mxu0
    %v2833 = vadd.f32 0.0, %v2832
    %v2834 = vpop.f32.mrb[0].mxu0
    %v2835 = vpop.f32.mrb[0].mxu0
    %v2836 = vadd.f32 0.0, %v2835
    %v2837 = vpop.f32.mrb[0].mxu0
    %2838 = vmatprep.mubr.bf16.mxu0 0
    %2839 = vmatmul.mubr.bf16.gmra.mrb[0].mxu0 %v2775
    %v2840 = vpop.f32.mrb[0].mxu0
    %v2841 = vadd.f32 0.0, %v2840
    %v2842 = vpop.f32.mrb[0].mxu0
    %v2843 = vpop.f32.mrb[0].mxu0
    %v2844 = vadd.f32 0.0, %v2843
    %v2845 = vpop.f32.mrb[0].mxu0
    %2846 = vmatprep.mubr.bf16.mxu0 0
    %2847 = vmatmul.mubr.bf16.gmra.mrb[0].mxu0 %v2778
    %v2848 = vpop.f32.mrb[0].mxu0
    %v2849 = vadd.f32 0.0, %v2848
    %v2850 = vpop.f32.mrb[0].mxu0
    %v2851 = vpop.f32.mrb[0].mxu0
    %v2852 = vadd.f32 0.0, %v2851
    %v2853 = vpop.f32.mrb[0].mxu0
    %2854 = vmatprep.mubr.bf16.mxu0 0
    %2855 = vmatmul.mubr.bf16.gmra.mrb[0].mxu0 %v2781
    %v2856 = vpop.f32.mrb[0].mxu0
    %v2857 = vadd.f32 0.0, %v2856
    %v2858 = vpop.f32.mrb[0].mxu0
    %v2859 = vpop.f32.mrb[0].mxu0
    %v2860 = vadd.f32 0.0, %v2859
    %v2861 = vpop.f32.mrb[0].mxu0
    %2862 = vmatprep.mubr.bf16.mxu0 0
    %2863 = vmatmul.mubr.bf16.gmra.mrb[0].mxu0 %v2784
    %v2864 = vpop.f32.mrb[0].mxu0
    %v2865 = vadd.f32 0.0, %v2864
    %v2866 = vpop.f32.mrb[0].mxu0
    %v2867 = vpop.f32.mrb[0].mxu0
    %v2868 = vadd.f32 0.0, %v2867
    %v2869 = vpop.f32.mrb[0].mxu0
    %2870 = vmatprep.mubr.bf16.mxu0 0
    %2871 = vmatmul.mubr.bf16.gmra.mrb[0].mxu0 %v2787
    %v2872 = vpop.f32.mrb[0].mxu0
    %v2873 = vadd.f32 0.0, %v2872
    %v2874 = vpop.f32.mrb[0].mxu0
    %v2875 = vpop.f32.mrb[0].mxu0
    %v2876 = vadd.f32 0.0, %v2875
    %v2877 = vpop.f32.mrb[0].mxu0
    %2878 = vmatprep.mubr.bf16.mxu0 0
    %2879 = vmatmul.mubr.bf16.gmra.mrb[0].mxu0 %v2790
    %v2880 = vpop.f32.mrb[0].mxu0
    %v2881 = vadd.f32 0.0, %v2880
    %v2882 = vpop.f32.mrb[0].mxu0
    %v2883 = vpop.f32.mrb[0].mxu0
    %v2884 = vadd.f32 0.0, %v2883
    %v2885 = vpop.f32.mrb[0].mxu0
    %2886 = vmatprep.mubr.bf16.mxu0 0
    %2887 = vmatmul.mubr.bf16.gmra.mrb[0].mxu0 %v2793
    %v2888 = vpop.f32.mrb[0].mxu0
    %v2889 = vadd.f32 0.0, %v2888
    %v2890 = vpop.f32.mrb[0].mxu0
    %v2891 = vpop.f32.mrb[0].mxu0
    %v2892 = vadd.f32 0.0, %v2891
    %v2893 = vpop.f32.mrb[0].mxu0
    %2894 = vdwg.mxu0
    %v2895 = vadd.f32 %v2683, %v2833
    %v2896 = vadd.f32 %v2686, %v2836
    %v2897 = vadd.f32 %v2691, %v2841
    %v2898 = vadd.f32 %v2694, %v2844
    %v2899 = vadd.f32 %v2699, %v2849
    %v2900 = vadd.f32 %v2702, %v2852
    %v2901 = vadd.f32 %v2707, %v2857
    %v2902 = vadd.f32 %v2710, %v2860
    %v2903 = vadd.f32 %v2715, %v2865
    %v2904 = vadd.f32 %v2718, %v2868
    %v2905 = vadd.f32 %v2723, %v2873
    %v2906 = vadd.f32 %v2726, %v2876
    %v2907 = vadd.f32 %v2731, %v2881
    %v2908 = vadd.f32 %v2734, %v2884
    %v2909 = vadd.f32 %v2739, %v2889
    %v2910 = vadd.f32 %v2742, %v2892
    %v2911 = vld [vmem:[#allocation2 + $0x3] sm:$0xff]
    %v2912 = vld [vmem:[#allocation2 + $0x13] sm:$0xff]
    %v2913 = vld [vmem:[#allocation2 + $0x23] sm:$0xff]
    %v2914 = vld [vmem:[#allocation2 + $0x33] sm:$0xff]
    %v2915 = vld [vmem:[#allocation2 + $0x43] sm:$0xff]
    %v2916 = vld [vmem:[#allocation2 + $0x53] sm:$0xff]
    %v2917 = vld [vmem:[#allocation2 + $0x63] sm:$0xff]
    %v2918 = vld [vmem:[#allocation2 + $0x73] sm:$0xff]
    %v2919 = vld [vmem:[#allocation2 + $0xc3] sm:$0xff]
    %v2920 = vld [vmem:[#allocation2 + $0xd3] sm:$0xff]
    %v2921 = vld [vmem:[#allocation2 + $0xe3] sm:$0xff]
    %v2922 = vld [vmem:[#allocation2 + $0xf3] sm:$0xff]
    %v2923 = vld [vmem:[#allocation2 + $0x103] sm:$0xff]
    %v2924 = vld [vmem:[#allocation2 + $0x113] sm:$0xff]
    %v2925 = vld [vmem:[#allocation2 + $0x123] sm:$0xff]
    %v2926 = vld [vmem:[#allocation2 + $0x133] sm:$0xff]
    %v2927 = vpack.c.bf16 %v2912, %v2911
    %v2928 = vpack.c.bf16 %v2914, %v2913
    %v2929 = vpack.c.bf16 %v2916, %v2915
    %v2930 = vpack.c.bf16 %v2918, %v2917
    %v2931 = vpack.c.bf16 %v2920, %v2919
    %v2932 = vpack.c.bf16 %v2922, %v2921
    %v2933 = vpack.c.bf16 %v2924, %v2923
    %v2934 = vpack.c.bf16 %v2926, %v2925
    %s2935 = scalar_lea.vmem %s3, 12
    %v2936 = vld [vmem:[%s2935] sm:$0x7]
    %v2938 = vsel %vm2371, %v2927, 0
    %v2941 = vsel %vm2371, %v2928, 0
    %v2944 = vsel %vm2371, %v2929, 0
    %v2947 = vsel %vm2371, %v2930, 0
    %v2950 = vsel %vm2371, %v2931, 0
    %v2953 = vsel %vm2371, %v2932, 0
    %v2956 = vsel %vm2371, %v2933, 0
    %v2959 = vsel %vm2371, %v2934, 0
    %v2962 = vsel %vm2520, %v2936, 0
    %2964 = vmatprep.subr.bf16.mxu0 0
    %2965 = vmatpush1.bf16.msra.mxu0 %v2962
    %2966 = vmatprep.subr.bf16.mxu0 0
    %2967 = vmatpush1.bf16.msra.mxu0 0
    %2968 = vmatprep.subr.bf16.mxu0 0
    %2969 = vmatpush1.bf16.msra.mxu0 0
    %2970 = vmatprep.subr.bf16.mxu0 0
    %2971 = vmatpush1.bf16.msra.mxu0 0
    %2972 = vmatprep.subr.bf16.mxu0 0
    %2973 = vmatpush1.bf16.msra.mxu0 0
    %2974 = vmatprep.subr.bf16.mxu0 0
    %2975 = vmatpush1.bf16.msra.mxu0 0
    %2976 = vmatprep.subr.bf16.mxu0 0
    %2977 = vmatpush1.bf16.msra.mxu0 0
    %2978 = vmatprep.subr.bf16.mxu0 0
    %2979 = vmatpush1.bf16.msra.mxu0 0
    %2980 = vmatprep.subr.bf16.mxu0 0
    %2981 = vmatpush1.bf16.msra.mxu0 0
    %2982 = vmatprep.subr.bf16.mxu0 0
    %2983 = vmatpush1.bf16.msra.mxu0 0
    %2984 = vmatprep.subr.bf16.mxu0 0
    %2985 = vmatpush1.bf16.msra.mxu0 0
    %2986 = vmatprep.subr.bf16.mxu0 0
    %2987 = vmatpush1.bf16.msra.mxu0 0
    %2988 = vmatprep.subr.bf16.mxu0 0
    %2989 = vmatpush1.bf16.msra.mxu0 0
    %2990 = vmatprep.subr.bf16.mxu0 0
    %2991 = vmatpush1.bf16.msra.mxu0 0
    %2992 = vmatprep.subr.bf16.mxu0 0
    %2993 = vmatpush1.bf16.msra.mxu0 0
    %2994 = vmatprep.subr.bf16.mxu0 0
    %2995 = vmatpush1.bf16.msra.mxu0 0
    %2996 = vmatprep.mubr.bf16.mxu0 0
    %2997 = vmatmul.mubr.bf16.gmra.mrb[0].mxu0 %v2938
    %v2998 = vpop.f32.mrb[0].mxu0
    %v2999 = vadd.f32 0.0, %v2998
    %v3000 = vpop.f32.mrb[0].mxu0
    %v3001 = vpop.f32.mrb[0].mxu0
    %v3002 = vadd.f32 0.0, %v3001
    %v3003 = vpop.f32.mrb[0].mxu0
    %3004 = vmatprep.mubr.bf16.mxu0 0
    %3005 = vmatmul.mubr.bf16.gmra.mrb[0].mxu0 %v2941
    %v3006 = vpop.f32.mrb[0].mxu0
    %v3007 = vadd.f32 0.0, %v3006
    %v3008 = vpop.f32.mrb[0].mxu0
    %v3009 = vpop.f32.mrb[0].mxu0
    %v3010 = vadd.f32 0.0, %v3009
    %v3011 = vpop.f32.mrb[0].mxu0
    %3012 = vmatprep.mubr.bf16.mxu0 0
    %3013 = vmatmul.mubr.bf16.gmra.mrb[0].mxu0 %v2944
    %v3014 = vpop.f32.mrb[0].mxu0
    %v3015 = vadd.f32 0.0, %v3014
    %v3016 = vpop.f32.mrb[0].mxu0
    %v3017 = vpop.f32.mrb[0].mxu0
    %v3018 = vadd.f32 0.0, %v3017
    %v3019 = vpop.f32.mrb[0].mxu0
    %3020 = vmatprep.mubr.bf16.mxu0 0
    %3021 = vmatmul.mubr.bf16.gmra.mrb[0].mxu0 %v2947
    %v3022 = vpop.f32.mrb[0].mxu0
    %v3023 = vadd.f32 0.0, %v3022
    %v3024 = vpop.f32.mrb[0].mxu0
    %v3025 = vpop.f32.mrb[0].mxu0
    %v3026 = vadd.f32 0.0, %v3025
    %v3027 = vpop.f32.mrb[0].mxu0
    %3028 = vmatprep.mubr.bf16.mxu0 0
    %3029 = vmatmul.mubr.bf16.gmra.mrb[0].mxu0 %v2950
    %v3030 = vpop.f32.mrb[0].mxu0
    %v3031 = vadd.f32 0.0, %v3030
    %v3032 = vpop.f32.mrb[0].mxu0
    %v3033 = vpop.f32.mrb[0].mxu0
    %v3034 = vadd.f32 0.0, %v3033
    %v3035 = vpop.f32.mrb[0].mxu0
    %3036 = vmatprep.mubr.bf16.mxu0 0
    %3037 = vmatmul.mubr.bf16.gmra.mrb[0].mxu0 %v2953
    %v3038 = vpop.f32.mrb[0].mxu0
    %v3039 = vadd.f32 0.0, %v3038
    %v3040 = vpop.f32.mrb[0].mxu0
    %v3041 = vpop.f32.mrb[0].mxu0
    %v3042 = vadd.f32 0.0, %v3041
    %v3043 = vpop.f32.mrb[0].mxu0
    %3044 = vmatprep.mubr.bf16.mxu0 0
    %3045 = vmatmul.mubr.bf16.gmra.mrb[0].mxu0 %v2956
    %v3046 = vpop.f32.mrb[0].mxu0
    %v3047 = vadd.f32 0.0, %v3046
    %v3048 = vpop.f32.mrb[0].mxu0
    %v3049 = vpop.f32.mrb[0].mxu0
    %v3050 = vadd.f32 0.0, %v3049
    %v3051 = vpop.f32.mrb[0].mxu0
    %3052 = vmatprep.mubr.bf16.mxu0 0
    %3053 = vmatmul.mubr.bf16.gmra.mrb[0].mxu0 %v2959
    %v3054 = vpop.f32.mrb[0].mxu0
    %v3055 = vadd.f32 0.0, %v3054
    %v3056 = vpop.f32.mrb[0].mxu0
    %v3057 = vpop.f32.mrb[0].mxu0
    %v3058 = vadd.f32 0.0, %v3057
    %v3059 = vpop.f32.mrb[0].mxu0
    %3060 = vdwg.mxu0
    %v3061 = vadd.f32 %v2895, %v2999
    %v3062 = vadd.f32 %v2896, %v3002
    %v3063 = vadd.f32 %v2897, %v3007
    %v3064 = vadd.f32 %v2898, %v3010
    %v3065 = vadd.f32 %v2899, %v3015
    %v3066 = vadd.f32 %v2900, %v3018
    %v3067 = vadd.f32 %v2901, %v3023
    %v3068 = vadd.f32 %v2902, %v3026
    %v3069 = vadd.f32 %v2903, %v3031
    %v3070 = vadd.f32 %v2904, %v3034
    %v3071 = vadd.f32 %v2905, %v3039
    %v3072 = vadd.f32 %v2906, %v3042
    %v3073 = vadd.f32 %v2907, %v3047
    %v3074 = vadd.f32 %v2908, %v3050
    %v3075 = vadd.f32 %v2909, %v3055
    %v3076 = vadd.f32 %v2910, %v3058
    %v3077 = vld [vmem:[#allocation2 + $0x4] sm:$0xff]
    %v3078 = vld [vmem:[#allocation2 + $0x14] sm:$0xff]
    %v3079 = vld [vmem:[#allocation2 + $0x24] sm:$0xff]
    %v3080 = vld [vmem:[#allocation2 + $0x34] sm:$0xff]
    %v3081 = vld [vmem:[#allocation2 + $0x44] sm:$0xff]
    %v3082 = vld [vmem:[#allocation2 + $0x54] sm:$0xff]
    %v3083 = vld [vmem:[#allocation2 + $0x64] sm:$0xff]
    %v3084 = vld [vmem:[#allocation2 + $0x74] sm:$0xff]
    %v3085 = vld [vmem:[#allocation2 + $0xc4] sm:$0xff]
    %v3086 = vld [vmem:[#allocation2 + $0xd4] sm:$0xff]
    %v3087 = vld [vmem:[#allocation2 + $0xe4] sm:$0xff]
    %v3088 = vld [vmem:[#allocation2 + $0xf4] sm:$0xff]
    %v3089 = vld [vmem:[#allocation2 + $0x104] sm:$0xff]
    %v3090 = vld [vmem:[#allocation2 + $0x114] sm:$0xff]
    %v3091 = vld [vmem:[#allocation2 + $0x124] sm:$0xff]
    %v3092 = vld [vmem:[#allocation2 + $0x134] sm:$0xff]
    %v3093 = vpack.c.bf16 %v3078, %v3077
    %v3094 = vpack.c.bf16 %v3080, %v3079
    %v3095 = vpack.c.bf16 %v3082, %v3081
    %v3096 = vpack.c.bf16 %v3084, %v3083
    %v3097 = vpack.c.bf16 %v3086, %v3085
    %v3098 = vpack.c.bf16 %v3088, %v3087
    %v3099 = vpack.c.bf16 %v3090, %v3089
    %v3100 = vpack.c.bf16 %v3092, %v3091
    %s3101 = scalar_lea.vmem %s3, 16
    %v3102 = vld [vmem:[%s3101] sm:$0x7]
    %v3104 = vsel %vm2371, %v3093, 0
    %v3107 = vsel %vm2371, %v3094, 0
    %v3110 = vsel %vm2371, %v3095, 0
    %v3113 = vsel %vm2371, %v3096, 0
    %v3116 = vsel %vm2371, %v3097, 0
    %v3119 = vsel %vm2371, %v3098, 0
    %v3122 = vsel %vm2371, %v3099, 0
    %v3125 = vsel %vm2371, %v3100, 0
    %v3128 = vsel %vm2520, %v3102, 0
    %3130 = vmatprep.subr.bf16.mxu0 0
    %3131 = vmatpush1.bf16.msra.mxu0 %v3128
    %3132 = vmatprep.subr.bf16.mxu0 0
    %3133 = vmatpush1.bf16.msra.mxu0 0
    %3134 = vmatprep.subr.bf16.mxu0 0
    %3135 = vmatpush1.bf16.msra.mxu0 0
    %3136 = vmatprep.subr.bf16.mxu0 0
    %3137 = vmatpush1.bf16.msra.mxu0 0
    %3138 = vmatprep.subr.bf16.mxu0 0
    %3139 = vmatpush1.bf16.msra.mxu0 0
    %3140 = vmatprep.subr.bf16.mxu0 0
    %3141 = vmatpush1.bf16.msra.mxu0 0
    %3142 = vmatprep.subr.bf16.mxu0 0
    %3143 = vmatpush1.bf16.msra.mxu0 0
    %3144 = vmatprep.subr.bf16.mxu0 0
    %3145 = vmatpush1.bf16.msra.mxu0 0
    %3146 = vmatprep.subr.bf16.mxu0 0
    %3147 = vmatpush1.bf16.msra.mxu0 0
    %3148 = vmatprep.subr.bf16.mxu0 0
    %3149 = vmatpush1.bf16.msra.mxu0 0
    %3150 = vmatprep.subr.bf16.mxu0 0
    %3151 = vmatpush1.bf16.msra.mxu0 0
    %3152 = vmatprep.subr.bf16.mxu0 0
    %3153 = vmatpush1.bf16.msra.mxu0 0
    %3154 = vmatprep.subr.bf16.mxu0 0
    %3155 = vmatpush1.bf16.msra.mxu0 0
    %3156 = vmatprep.subr.bf16.mxu0 0
    %3157 = vmatpush1.bf16.msra.mxu0 0
    %3158 = vmatprep.subr.bf16.mxu0 0
    %3159 = vmatpush1.bf16.msra.mxu0 0
    %3160 = vmatprep.subr.bf16.mxu0 0
    %3161 = vmatpush1.bf16.msra.mxu0 0
    %3162 = vmatprep.mubr.bf16.mxu0 0
    %3163 = vmatmul.mubr.bf16.gmra.mrb[0].mxu0 %v3104
    %v3164 = vpop.f32.mrb[0].mxu0
    %v3165 = vadd.f32 0.0, %v3164
    %v3166 = vpop.f32.mrb[0].mxu0
    %v3167 = vpop.f32.mrb[0].mxu0
    %v3168 = vadd.f32 0.0, %v3167
    %v3169 = vpop.f32.mrb[0].mxu0
    %3170 = vmatprep.mubr.bf16.mxu0 0
    %3171 = vmatmul.mubr.bf16.gmra.mrb[0].mxu0 %v3107
    %v3172 = vpop.f32.mrb[0].mxu0
    %v3173 = vadd.f32 0.0, %v3172
    %v3174 = vpop.f32.mrb[0].mxu0
    %v3175 = vpop.f32.mrb[0].mxu0
    %v3176 = vadd.f32 0.0, %v3175
    %v3177 = vpop.f32.mrb[0].mxu0
    %3178 = vmatprep.mubr.bf16.mxu0 0
    %3179 = vmatmul.mubr.bf16.gmra.mrb[0].mxu0 %v3110
    %v3180 = vpop.f32.mrb[0].mxu0
    %v3181 = vadd.f32 0.0, %v3180
    %v3182 = vpop.f32.mrb[0].mxu0
    %v3183 = vpop.f32.mrb[0].mxu0
    %v3184 = vadd.f32 0.0, %v3183
    %v3185 = vpop.f32.mrb[0].mxu0
    %3186 = vmatprep.mubr.bf16.mxu0 0
    %3187 = vmatmul.mubr.bf16.gmra.mrb[0].mxu0 %v3113
    %v3188 = vpop.f32.mrb[0].mxu0
    %v3189 = vadd.f32 0.0, %v3188
    %v3190 = vpop.f32.mrb[0].mxu0
    %v3191 = vpop.f32.mrb[0].mxu0
    %v3192 = vadd.f32 0.0, %v3191
    %v3193 = vpop.f32.mrb[0].mxu0
    %3194 = vmatprep.mubr.bf16.mxu0 0
    %3195 = vmatmul.mubr.bf16.gmra.mrb[0].mxu0 %v3116
    %v3196 = vpop.f32.mrb[0].mxu0
    %v3197 = vadd.f32 0.0, %v3196
    %v3198 = vpop.f32.mrb[0].mxu0
    %v3199 = vpop.f32.mrb[0].mxu0
    %v3200 = vadd.f32 0.0, %v3199
    %v3201 = vpop.f32.mrb[0].mxu0
    %3202 = vmatprep.mubr.bf16.mxu0 0
    %3203 = vmatmul.mubr.bf16.gmra.mrb[0].mxu0 %v3119
    %v3204 = vpop.f32.mrb[0].mxu0
    %v3205 = vadd.f32 0.0, %v3204
    %v3206 = vpop.f32.mrb[0].mxu0
    %v3207 = vpop.f32.mrb[0].mxu0
    %v3208 = vadd.f32 0.0, %v3207
    %v3209 = vpop.f32.mrb[0].mxu0
    %3210 = vmatprep.mubr.bf16.mxu0 0
    %3211 = vmatmul.mubr.bf16.gmra.mrb[0].mxu0 %v3122
    %v3212 = vpop.f32.mrb[0].mxu0
    %v3213 = vadd.f32 0.0, %v3212
    %v3214 = vpop.f32.mrb[0].mxu0
    %v3215 = vpop.f32.mrb[0].mxu0
    %v3216 = vadd.f32 0.0, %v3215
    %v3217 = vpop.f32.mrb[0].mxu0
    %3218 = vmatprep.mubr.bf16.mxu0 0
    %3219 = vmatmul.mubr.bf16.gmra.mrb[0].mxu0 %v3125
    %v3220 = vpop.f32.mrb[0].mxu0
    %v3221 = vadd.f32 0.0, %v3220
    %v3222 = vpop.f32.mrb[0].mxu0
    %v3223 = vpop.f32.mrb[0].mxu0
    %v3224 = vadd.f32 0.0, %v3223
    %v3225 = vpop.f32.mrb[0].mxu0
    %3226 = vdwg.mxu0
    %v3227 = vadd.f32 %v3061, %v3165
    %v3228 = vadd.f32 %v3062, %v3168
    %v3229 = vadd.f32 %v3063, %v3173
    %v3230 = vadd.f32 %v3064, %v3176
    %v3231 = vadd.f32 %v3065, %v3181
    %v3232 = vadd.f32 %v3066, %v3184
    %v3233 = vadd.f32 %v3067, %v3189
    %v3234 = vadd.f32 %v3068, %v3192
    %v3235 = vadd.f32 %v3069, %v3197
    %v3236 = vadd.f32 %v3070, %v3200
    %v3237 = vadd.f32 %v3071, %v3205
    %v3238 = vadd.f32 %v3072, %v3208
    %v3239 = vadd.f32 %v3073, %v3213
    %v3240 = vadd.f32 %v3074, %v3216
    %v3241 = vadd.f32 %v3075, %v3221
    %v3242 = vadd.f32 %v3076, %v3224
    %v3243 = vld [vmem:[%s2375] sm:$0xff]
    %v3244 = vld [vmem:[%s2375 + $0x10] sm:$0xff]
    %v3245 = vld [vmem:[%s2375 + $0x20] sm:$0xff]
    %v3246 = vld [vmem:[%s2375 + $0x30] sm:$0xff]
    %v3247 = vld [vmem:[%s2375 + $0x40] sm:$0xff]
    %v3248 = vld [vmem:[%s2375 + $0x50] sm:$0xff]
    %v3249 = vld [vmem:[%s2375 + $0x60] sm:$0xff]
    %v3250 = vld [vmem:[%s2375 + $0x70] sm:$0xff]
    %v3251 = vld [vmem:[%s2375 + $0xc0] sm:$0xff]
    %v3252 = vld [vmem:[%s2375 + $0xd0] sm:$0xff]
    %v3253 = vld [vmem:[%s2375 + $0xe0] sm:$0xff]
    %v3254 = vld [vmem:[%s2375 + $0xf0] sm:$0xff]
    %v3255 = vld [vmem:[%s2375 + $0x100] sm:$0xff]
    %v3256 = vld [vmem:[%s2375 + $0x110] sm:$0xff]
    %v3257 = vld [vmem:[%s2375 + $0x120] sm:$0xff]
    %v3258 = vld [vmem:[%s2375 + $0x130] sm:$0xff]
    %v3259 = vpack.c.bf16 %v3244, %v3243
    %v3260 = vpack.c.bf16 %v3246, %v3245
    %v3261 = vpack.c.bf16 %v3248, %v3247
    %v3262 = vpack.c.bf16 %v3250, %v3249
    %v3263 = vpack.c.bf16 %v3252, %v3251
    %v3264 = vpack.c.bf16 %v3254, %v3253
    %v3265 = vpack.c.bf16 %v3256, %v3255
    %v3266 = vpack.c.bf16 %v3258, %v3257
    %s3267 = scalar_lea.vmem %s3, 20
    %v3268 = vld [vmem:[%s3267] sm:$0x7]
    %v3270 = vsel %vm2371, %v3259, 0
    %v3273 = vsel %vm2371, %v3260, 0
    %v3276 = vsel %vm2371, %v3261, 0
    %v3279 = vsel %vm2371, %v3262, 0
    %v3282 = vsel %vm2371, %v3263, 0
    %v3285 = vsel %vm2371, %v3264, 0
    %v3288 = vsel %vm2371, %v3265, 0
    %v3291 = vsel %vm2371, %v3266, 0
    %v3294 = vsel %vm2520, %v3268, 0
    %3296 = vmatprep.subr.bf16.mxu0 0
    %3297 = vmatpush1.bf16.msra.mxu0 %v3294
    %3298 = vmatprep.subr.bf16.mxu0 0
    %3299 = vmatpush1.bf16.msra.mxu0 0
    %3300 = vmatprep.subr.bf16.mxu0 0
    %3301 = vmatpush1.bf16.msra.mxu0 0
    %3302 = vmatprep.subr.bf16.mxu0 0
    %3303 = vmatpush1.bf16.msra.mxu0 0
    %3304 = vmatprep.subr.bf16.mxu0 0
    %3305 = vmatpush1.bf16.msra.mxu0 0
    %3306 = vmatprep.subr.bf16.mxu0 0
    %3307 = vmatpush1.bf16.msra.mxu0 0
    %3308 = vmatprep.subr.bf16.mxu0 0
    %3309 = vmatpush1.bf16.msra.mxu0 0
    %3310 = vmatprep.subr.bf16.mxu0 0
    %3311 = vmatpush1.bf16.msra.mxu0 0
    %3312 = vmatprep.subr.bf16.mxu0 0
    %3313 = vmatpush1.bf16.msra.mxu0 0
    %3314 = vmatprep.subr.bf16.mxu0 0
    %3315 = vmatpush1.bf16.msra.mxu0 0
    %3316 = vmatprep.subr.bf16.mxu0 0
    %3317 = vmatpush1.bf16.msra.mxu0 0
    %3318 = vmatprep.subr.bf16.mxu0 0
    %3319 = vmatpush1.bf16.msra.mxu0 0
    %3320 = vmatprep.subr.bf16.mxu0 0
    %3321 = vmatpush1.bf16.msra.mxu0 0
    %3322 = vmatprep.subr.bf16.mxu0 0
    %3323 = vmatpush1.bf16.msra.mxu0 0
    %3324 = vmatprep.subr.bf16.mxu0 0
    %3325 = vmatpush1.bf16.msra.mxu0 0
    %3326 = vmatprep.subr.bf16.mxu0 0
    %3327 = vmatpush1.bf16.msra.mxu0 0
    %3328 = vmatprep.mubr.bf16.mxu0 0
    %3329 = vmatmul.mubr.bf16.gmra.mrb[0].mxu0 %v3270
    %v3330 = vpop.f32.mrb[0].mxu0
    %v3331 = vadd.f32 0.0, %v3330
    %v3332 = vpop.f32.mrb[0].mxu0
    %v3333 = vpop.f32.mrb[0].mxu0
    %v3334 = vadd.f32 0.0, %v3333
    %v3335 = vpop.f32.mrb[0].mxu0
    %3336 = vmatprep.mubr.bf16.mxu0 0
    %3337 = vmatmul.mubr.bf16.gmra.mrb[0].mxu0 %v3273
    %v3338 = vpop.f32.mrb[0].mxu0
    %v3339 = vadd.f32 0.0, %v3338
    %v3340 = vpop.f32.mrb[0].mxu0
    %v3341 = vpop.f32.mrb[0].mxu0
    %v3342 = vadd.f32 0.0, %v3341
    %v3343 = vpop.f32.mrb[0].mxu0
    %3344 = vmatprep.mubr.bf16.mxu0 0
    %3345 = vmatmul.mubr.bf16.gmra.mrb[0].mxu0 %v3276
    %v3346 = vpop.f32.mrb[0].mxu0
    %v3347 = vadd.f32 0.0, %v3346
    %v3348 = vpop.f32.mrb[0].mxu0
    %v3349 = vpop.f32.mrb[0].mxu0
    %v3350 = vadd.f32 0.0, %v3349
    %v3351 = vpop.f32.mrb[0].mxu0
    %3352 = vmatprep.mubr.bf16.mxu0 0
    %3353 = vmatmul.mubr.bf16.gmra.mrb[0].mxu0 %v3279
    %v3354 = vpop.f32.mrb[0].mxu0
    %v3355 = vadd.f32 0.0, %v3354
    %v3356 = vpop.f32.mrb[0].mxu0
    %v3357 = vpop.f32.mrb[0].mxu0
    %v3358 = vadd.f32 0.0, %v3357
    %v3359 = vpop.f32.mrb[0].mxu0
    %3360 = vmatprep.mubr.bf16.mxu0 0
    %3361 = vmatmul.mubr.bf16.gmra.mrb[0].mxu0 %v3282
    %v3362 = vpop.f32.mrb[0].mxu0
    %v3363 = vadd.f32 0.0, %v3362
    %v3364 = vpop.f32.mrb[0].mxu0
    %v3365 = vpop.f32.mrb[0].mxu0
    %v3366 = vadd.f32 0.0, %v3365
    %v3367 = vpop.f32.mrb[0].mxu0
    %3368 = vmatprep.mubr.bf16.mxu0 0
    %3369 = vmatmul.mubr.bf16.gmra.mrb[0].mxu0 %v3285
    %v3370 = vpop.f32.mrb[0].mxu0
    %v3371 = vadd.f32 0.0, %v3370
    %v3372 = vpop.f32.mrb[0].mxu0
    %v3373 = vpop.f32.mrb[0].mxu0
    %v3374 = vadd.f32 0.0, %v3373
    %v3375 = vpop.f32.mrb[0].mxu0
    %3376 = vmatprep.mubr.bf16.mxu0 0
    %3377 = vmatmul.mubr.bf16.gmra.mrb[0].mxu0 %v3288
    %v3378 = vpop.f32.mrb[0].mxu0
    %v3379 = vadd.f32 0.0, %v3378
    %v3380 = vpop.f32.mrb[0].mxu0
    %v3381 = vpop.f32.mrb[0].mxu0
    %v3382 = vadd.f32 0.0, %v3381
    %v3383 = vpop.f32.mrb[0].mxu0
    %3384 = vmatprep.mubr.bf16.mxu0 0
    %3385 = vmatmul.mubr.bf16.gmra.mrb[0].mxu0 %v3291
    %v3386 = vpop.f32.mrb[0].mxu0
    %v3387 = vadd.f32 0.0, %v3386
    %v3388 = vpop.f32.mrb[0].mxu0
    %v3389 = vpop.f32.mrb[0].mxu0
    %v3390 = vadd.f32 0.0, %v3389
    %v3391 = vpop.f32.mrb[0].mxu0
    %3392 = vdwg.mxu0
    %v3393 = vadd.f32 %v3227, %v3331
    %v3394 = vadd.f32 %v3228, %v3334
    %v3395 = vadd.f32 %v3229, %v3339
    %v3396 = vadd.f32 %v3230, %v3342
    %v3397 = vadd.f32 %v3231, %v3347
    %v3398 = vadd.f32 %v3232, %v3350
    %v3399 = vadd.f32 %v3233, %v3355
    %v3400 = vadd.f32 %v3234, %v3358
    %v3401 = vadd.f32 %v3235, %v3363
    %v3402 = vadd.f32 %v3236, %v3366
    %v3403 = vadd.f32 %v3237, %v3371
    %v3404 = vadd.f32 %v3238, %v3374
    %v3405 = vadd.f32 %v3239, %v3379
    %v3406 = vadd.f32 %v3240, %v3382
    %v3407 = vadd.f32 %v3241, %v3387
    %v3408 = vadd.f32 %v3242, %v3390
    %v3409 = vld [vmem:[%s2375 + $0x1] sm:$0xff]
    %v3410 = vld [vmem:[%s2375 + $0x11] sm:$0xff]
    %v3411 = vld [vmem:[%s2375 + $0x21] sm:$0xff]
    %v3412 = vld [vmem:[%s2375 + $0x31] sm:$0xff]
    %v3413 = vld [vmem:[%s2375 + $0x41] sm:$0xff]
    %v3414 = vld [vmem:[%s2375 + $0x51] sm:$0xff]
    %v3415 = vld [vmem:[%s2375 + $0x61] sm:$0xff]
    %v3416 = vld [vmem:[%s2375 + $0x71] sm:$0xff]
    %v3417 = vld [vmem:[%s2375 + $0xc1] sm:$0xff]
    %v3418 = vld [vmem:[%s2375 + $0xd1] sm:$0xff]
    %v3419 = vld [vmem:[%s2375 + $0xe1] sm:$0xff]
    %v3420 = vld [vmem:[%s2375 + $0xf1] sm:$0xff]
    %v3421 = vld [vmem:[%s2375 + $0x101] sm:$0xff]
    %v3422 = vld [vmem:[%s2375 + $0x111] sm:$0xff]
    %v3423 = vld [vmem:[%s2375 + $0x121] sm:$0xff]
    %v3424 = vld [vmem:[%s2375 + $0x131] sm:$0xff]
    %v3425 = vpack.c.bf16 %v3410, %v3409
    %v3426 = vpack.c.bf16 %v3412, %v3411
    %v3427 = vpack.c.bf16 %v3414, %v3413
    %v3428 = vpack.c.bf16 %v3416, %v3415
    %v3429 = vpack.c.bf16 %v3418, %v3417
    %v3430 = vpack.c.bf16 %v3420, %v3419
    %v3431 = vpack.c.bf16 %v3422, %v3421
    %v3432 = vpack.c.bf16 %v3424, %v3423
    %s3433 = scalar_lea.vmem %s3, 24
    %v3434 = vld [vmem:[%s3433] sm:$0x7]
    %v3436 = vsel %vm2371, %v3425, 0
    %v3439 = vsel %vm2371, %v3426, 0
    %v3442 = vsel %vm2371, %v3427, 0
    %v3445 = vsel %vm2371, %v3428, 0
    %v3448 = vsel %vm2371, %v3429, 0
    %v3451 = vsel %vm2371, %v3430, 0
    %v3454 = vsel %vm2371, %v3431, 0
    %v3457 = vsel %vm2371, %v3432, 0
    %v3460 = vsel %vm2520, %v3434, 0
    %3462 = vmatprep.subr.bf16.mxu0 0
    %3463 = vmatpush1.bf16.msra.mxu0 %v3460
    %3464 = vmatprep.subr.bf16.mxu0 0
    %3465 = vmatpush1.bf16.msra.mxu0 0
    %3466 = vmatprep.subr.bf16.mxu0 0
    %3467 = vmatpush1.bf16.msra.mxu0 0
    %3468 = vmatprep.subr.bf16.mxu0 0
    %3469 = vmatpush1.bf16.msra.mxu0 0
    %3470 = vmatprep.subr.bf16.mxu0 0
    %3471 = vmatpush1.bf16.msra.mxu0 0
    %3472 = vmatprep.subr.bf16.mxu0 0
    %3473 = vmatpush1.bf16.msra.mxu0 0
    %3474 = vmatprep.subr.bf16.mxu0 0
    %3475 = vmatpush1.bf16.msra.mxu0 0
    %3476 = vmatprep.subr.bf16.mxu0 0
    %3477 = vmatpush1.bf16.msra.mxu0 0
    %3478 = vmatprep.subr.bf16.mxu0 0
    %3479 = vmatpush1.bf16.msra.mxu0 0
    %3480 = vmatprep.subr.bf16.mxu0 0
    %3481 = vmatpush1.bf16.msra.mxu0 0
    %3482 = vmatprep.subr.bf16.mxu0 0
    %3483 = vmatpush1.bf16.msra.mxu0 0
    %3484 = vmatprep.subr.bf16.mxu0 0
    %3485 = vmatpush1.bf16.msra.mxu0 0
    %3486 = vmatprep.subr.bf16.mxu0 0
    %3487 = vmatpush1.bf16.msra.mxu0 0
    %3488 = vmatprep.subr.bf16.mxu0 0
    %3489 = vmatpush1.bf16.msra.mxu0 0
    %3490 = vmatprep.subr.bf16.mxu0 0
    %3491 = vmatpush1.bf16.msra.mxu0 0
    %3492 = vmatprep.subr.bf16.mxu0 0
    %3493 = vmatpush1.bf16.msra.mxu0 0
    %3494 = vmatprep.mubr.bf16.mxu0 0
    %3495 = vmatmul.mubr.bf16.gmra.mrb[0].mxu0 %v3436
    %v3496 = vpop.f32.mrb[0].mxu0
    %v3497 = vadd.f32 0.0, %v3496
    %v3498 = vpop.f32.mrb[0].mxu0
    %v3499 = vpop.f32.mrb[0].mxu0
    %v3500 = vadd.f32 0.0, %v3499
    %v3501 = vpop.f32.mrb[0].mxu0
    %3502 = vmatprep.mubr.bf16.mxu0 0
    %3503 = vmatmul.mubr.bf16.gmra.mrb[0].mxu0 %v3439
    %v3504 = vpop.f32.mrb[0].mxu0
    %v3505 = vadd.f32 0.0, %v3504
    %v3506 = vpop.f32.mrb[0].mxu0
    %v3507 = vpop.f32.mrb[0].mxu0
    %v3508 = vadd.f32 0.0, %v3507
    %v3509 = vpop.f32.mrb[0].mxu0
    %3510 = vmatprep.mubr.bf16.mxu0 0
    %3511 = vmatmul.mubr.bf16.gmra.mrb[0].mxu0 %v3442
    %v3512 = vpop.f32.mrb[0].mxu0
    %v3513 = vadd.f32 0.0, %v3512
    %v3514 = vpop.f32.mrb[0].mxu0
    %v3515 = vpop.f32.mrb[0].mxu0
    %v3516 = vadd.f32 0.0, %v3515
    %v3517 = vpop.f32.mrb[0].mxu0
    %3518 = vmatprep.mubr.bf16.mxu0 0
    %3519 = vmatmul.mubr.bf16.gmra.mrb[0].mxu0 %v3445
    %v3520 = vpop.f32.mrb[0].mxu0
    %v3521 = vadd.f32 0.0, %v3520
    %v3522 = vpop.f32.mrb[0].mxu0
    %v3523 = vpop.f32.mrb[0].mxu0
    %v3524 = vadd.f32 0.0, %v3523
    %v3525 = vpop.f32.mrb[0].mxu0
    %3526 = vmatprep.mubr.bf16.mxu0 0
    %3527 = vmatmul.mubr.bf16.gmra.mrb[0].mxu0 %v3448
    %v3528 = vpop.f32.mrb[0].mxu0
    %v3529 = vadd.f32 0.0, %v3528
    %v3530 = vpop.f32.mrb[0].mxu0
    %v3531 = vpop.f32.mrb[0].mxu0
    %v3532 = vadd.f32 0.0, %v3531
    %v3533 = vpop.f32.mrb[0].mxu0
    %3534 = vmatprep.mubr.bf16.mxu0 0
    %3535 = vmatmul.mubr.bf16.gmra.mrb[0].mxu0 %v3451
    %v3536 = vpop.f32.mrb[0].mxu0
    %v3537 = vadd.f32 0.0, %v3536
    %v3538 = vpop.f32.mrb[0].mxu0
    %v3539 = vpop.f32.mrb[0].mxu0
    %v3540 = vadd.f32 0.0, %v3539
    %v3541 = vpop.f32.mrb[0].mxu0
    %3542 = vmatprep.mubr.bf16.mxu0 0
    %3543 = vmatmul.mubr.bf16.gmra.mrb[0].mxu0 %v3454
    %v3544 = vpop.f32.mrb[0].mxu0
    %v3545 = vadd.f32 0.0, %v3544
    %v3546 = vpop.f32.mrb[0].mxu0
    %v3547 = vpop.f32.mrb[0].mxu0
    %v3548 = vadd.f32 0.0, %v3547
    %v3549 = vpop.f32.mrb[0].mxu0
    %3550 = vmatprep.mubr.bf16.mxu0 0
    %3551 = vmatmul.mubr.bf16.gmra.mrb[0].mxu0 %v3457
    %v3552 = vpop.f32.mrb[0].mxu0
    %v3553 = vadd.f32 0.0, %v3552
    %v3554 = vpop.f32.mrb[0].mxu0
    %v3555 = vpop.f32.mrb[0].mxu0
    %v3556 = vadd.f32 0.0, %v3555
    %v3557 = vpop.f32.mrb[0].mxu0
    %3558 = vdwg.mxu0
    %v3559 = vadd.f32 %v3393, %v3497
    %v3560 = vadd.f32 %v3394, %v3500
    %v3561 = vadd.f32 %v3395, %v3505
    %v3562 = vadd.f32 %v3396, %v3508
    %v3563 = vadd.f32 %v3397, %v3513
    %v3564 = vadd.f32 %v3398, %v3516
    %v3565 = vadd.f32 %v3399, %v3521
    %v3566 = vadd.f32 %v3400, %v3524
    %v3567 = vadd.f32 %v3401, %v3529
    %v3568 = vadd.f32 %v3402, %v3532
    %v3569 = vadd.f32 %v3403, %v3537
    %v3570 = vadd.f32 %v3404, %v3540
    %v3571 = vadd.f32 %v3405, %v3545
    %v3572 = vadd.f32 %v3406, %v3548
    %v3573 = vadd.f32 %v3407, %v3553
    %v3574 = vadd.f32 %v3408, %v3556
    %v3575 = vld [vmem:[%s2375 + $0x2] sm:$0xff]
    %v3576 = vld [vmem:[%s2375 + $0x12] sm:$0xff]
    %v3577 = vld [vmem:[%s2375 + $0x22] sm:$0xff]
    %v3578 = vld [vmem:[%s2375 + $0x32] sm:$0xff]
    %v3579 = vld [vmem:[%s2375 + $0x42] sm:$0xff]
    %v3580 = vld [vmem:[%s2375 + $0x52] sm:$0xff]
    %v3581 = vld [vmem:[%s2375 + $0x62] sm:$0xff]
    %v3582 = vld [vmem:[%s2375 + $0x72] sm:$0xff]
    %v3583 = vld [vmem:[%s2375 + $0xc2] sm:$0xff]
    %v3584 = vld [vmem:[%s2375 + $0xd2] sm:$0xff]
    %v3585 = vld [vmem:[%s2375 + $0xe2] sm:$0xff]
    %v3586 = vld [vmem:[%s2375 + $0xf2] sm:$0xff]
    %v3587 = vld [vmem:[%s2375 + $0x102] sm:$0xff]
    %v3588 = vld [vmem:[%s2375 + $0x112] sm:$0xff]
    %v3589 = vld [vmem:[%s2375 + $0x122] sm:$0xff]
    %v3590 = vld [vmem:[%s2375 + $0x132] sm:$0xff]
    %v3591 = vpack.c.bf16 %v3576, %v3575
    %v3592 = vpack.c.bf16 %v3578, %v3577
    %v3593 = vpack.c.bf16 %v3580, %v3579
    %v3594 = vpack.c.bf16 %v3582, %v3581
    %v3595 = vpack.c.bf16 %v3584, %v3583
    %v3596 = vpack.c.bf16 %v3586, %v3585
    %v3597 = vpack.c.bf16 %v3588, %v3587
    %v3598 = vpack.c.bf16 %v3590, %v3589
    %s3599 = scalar_lea.vmem %s3, 28
    %v3600 = vld [vmem:[%s3599] sm:$0x7]
    %v3602 = vsel %vm2371, %v3591, 0
    %v3605 = vsel %vm2371, %v3592, 0
    %v3608 = vsel %vm2371, %v3593, 0
    %v3611 = vsel %vm2371, %v3594, 0
    %v3614 = vsel %vm2371, %v3595, 0
    %v3617 = vsel %vm2371, %v3596, 0
    %v3620 = vsel %vm2371, %v3597, 0
    %v3623 = vsel %vm2371, %v3598, 0
    %v3626 = vsel %vm2520, %v3600, 0
    %3628 = vmatprep.subr.bf16.mxu0 0
    %3629 = vmatpush1.bf16.msra.mxu0 %v3626
    %3630 = vmatprep.subr.bf16.mxu0 0
    %3631 = vmatpush1.bf16.msra.mxu0 0
    %3632 = vmatprep.subr.bf16.mxu0 0
    %3633 = vmatpush1.bf16.msra.mxu0 0
    %3634 = vmatprep.subr.bf16.mxu0 0
    %3635 = vmatpush1.bf16.msra.mxu0 0
    %3636 = vmatprep.subr.bf16.mxu0 0
    %3637 = vmatpush1.bf16.msra.mxu0 0
    %3638 = vmatprep.subr.bf16.mxu0 0
    %3639 = vmatpush1.bf16.msra.mxu0 0
    %3640 = vmatprep.subr.bf16.mxu0 0
    %3641 = vmatpush1.bf16.msra.mxu0 0
    %3642 = vmatprep.subr.bf16.mxu0 0
    %3643 = vmatpush1.bf16.msra.mxu0 0
    %3644 = vmatprep.subr.bf16.mxu0 0
    %3645 = vmatpush1.bf16.msra.mxu0 0
    %3646 = vmatprep.subr.bf16.mxu0 0
    %3647 = vmatpush1.bf16.msra.mxu0 0
    %3648 = vmatprep.subr.bf16.mxu0 0
    %3649 = vmatpush1.bf16.msra.mxu0 0
    %3650 = vmatprep.subr.bf16.mxu0 0
    %3651 = vmatpush1.bf16.msra.mxu0 0
    %3652 = vmatprep.subr.bf16.mxu0 0
    %3653 = vmatpush1.bf16.msra.mxu0 0
    %3654 = vmatprep.subr.bf16.mxu0 0
    %3655 = vmatpush1.bf16.msra.mxu0 0
    %3656 = vmatprep.subr.bf16.mxu0 0
    %3657 = vmatpush1.bf16.msra.mxu0 0
    %3658 = vmatprep.subr.bf16.mxu0 0
    %3659 = vmatpush1.bf16.msra.mxu0 0
    %3660 = vmatprep.mubr.bf16.mxu0 0
    %3661 = vmatmul.mubr.bf16.gmra.mrb[0].mxu0 %v3602
    %v3662 = vpop.f32.mrb[0].mxu0
    %v3663 = vadd.f32 0.0, %v3662
    %v3664 = vpop.f32.mrb[0].mxu0
    %v3665 = vpop.f32.mrb[0].mxu0
    %v3666 = vadd.f32 0.0, %v3665
    %v3667 = vpop.f32.mrb[0].mxu0
    %3668 = vmatprep.mubr.bf16.mxu0 0
    %3669 = vmatmul.mubr.bf16.gmra.mrb[0].mxu0 %v3605
    %v3670 = vpop.f32.mrb[0].mxu0
    %v3671 = vadd.f32 0.0, %v3670
    %v3672 = vpop.f32.mrb[0].mxu0
    %v3673 = vpop.f32.mrb[0].mxu0
    %v3674 = vadd.f32 0.0, %v3673
    %v3675 = vpop.f32.mrb[0].mxu0
    %3676 = vmatprep.mubr.bf16.mxu0 0
    %3677 = vmatmul.mubr.bf16.gmra.mrb[0].mxu0 %v3608
    %v3678 = vpop.f32.mrb[0].mxu0
    %v3679 = vadd.f32 0.0, %v3678
    %v3680 = vpop.f32.mrb[0].mxu0
    %v3681 = vpop.f32.mrb[0].mxu0
    %v3682 = vadd.f32 0.0, %v3681
    %v3683 = vpop.f32.mrb[0].mxu0
    %3684 = vmatprep.mubr.bf16.mxu0 0
    %3685 = vmatmul.mubr.bf16.gmra.mrb[0].mxu0 %v3611
    %v3686 = vpop.f32.mrb[0].mxu0
    %v3687 = vadd.f32 0.0, %v3686
    %v3688 = vpop.f32.mrb[0].mxu0
    %v3689 = vpop.f32.mrb[0].mxu0
    %v3690 = vadd.f32 0.0, %v3689
    %v3691 = vpop.f32.mrb[0].mxu0
    %3692 = vmatprep.mubr.bf16.mxu0 0
    %3693 = vmatmul.mubr.bf16.gmra.mrb[0].mxu0 %v3614
    %v3694 = vpop.f32.mrb[0].mxu0
    %v3695 = vadd.f32 0.0, %v3694
    %v3696 = vpop.f32.mrb[0].mxu0
    %v3697 = vpop.f32.mrb[0].mxu0
    %v3698 = vadd.f32 0.0, %v3697
    %v3699 = vpop.f32.mrb[0].mxu0
    %3700 = vmatprep.mubr.bf16.mxu0 0
    %3701 = vmatmul.mubr.bf16.gmra.mrb[0].mxu0 %v3617
    %v3702 = vpop.f32.mrb[0].mxu0
    %v3703 = vadd.f32 0.0, %v3702
    %v3704 = vpop.f32.mrb[0].mxu0
    %v3705 = vpop.f32.mrb[0].mxu0
    %v3706 = vadd.f32 0.0, %v3705
    %v3707 = vpop.f32.mrb[0].mxu0
    %3708 = vmatprep.mubr.bf16.mxu0 0
    %3709 = vmatmul.mubr.bf16.gmra.mrb[0].mxu0 %v3620
    %v3710 = vpop.f32.mrb[0].mxu0
    %v3711 = vadd.f32 0.0, %v3710
    %v3712 = vpop.f32.mrb[0].mxu0
    %v3713 = vpop.f32.mrb[0].mxu0
    %v3714 = vadd.f32 0.0, %v3713
    %v3715 = vpop.f32.mrb[0].mxu0
    %3716 = vmatprep.mubr.bf16.mxu0 0
    %3717 = vmatmul.mubr.bf16.gmra.mrb[0].mxu0 %v3623
    %v3718 = vpop.f32.mrb[0].mxu0
    %v3719 = vadd.f32 0.0, %v3718
    %v3720 = vpop.f32.mrb[0].mxu0
    %v3721 = vpop.f32.mrb[0].mxu0
    %v3722 = vadd.f32 0.0, %v3721
    %v3723 = vpop.f32.mrb[0].mxu0
    %3724 = vdwg.mxu0
    %v3725 = vadd.f32 %v3559, %v3663
    %v3726 = vadd.f32 %v3560, %v3666
    %v3727 = vadd.f32 %v3561, %v3671
    %v3728 = vadd.f32 %v3562, %v3674
    %v3729 = vadd.f32 %v3563, %v3679
    %v3730 = vadd.f32 %v3564, %v3682
    %v3731 = vadd.f32 %v3565, %v3687
    %v3732 = vadd.f32 %v3566, %v3690
    %v3733 = vadd.f32 %v3567, %v3695
    %v3734 = vadd.f32 %v3568, %v3698
    %v3735 = vadd.f32 %v3569, %v3703
    %v3736 = vadd.f32 %v3570, %v3706
    %v3737 = vadd.f32 %v3571, %v3711
    %v3738 = vadd.f32 %v3572, %v3714
    %v3739 = vadd.f32 %v3573, %v3719
    %v3740 = vadd.f32 %v3574, %v3722
    %v3741 = vld [vmem:[%s2375 + $0x3] sm:$0xff]
    %v3742 = vld [vmem:[%s2375 + $0x13] sm:$0xff]
    %v3743 = vld [vmem:[%s2375 + $0x23] sm:$0xff]
    %v3744 = vld [vmem:[%s2375 + $0x33] sm:$0xff]
    %v3745 = vld [vmem:[%s2375 + $0x43] sm:$0xff]
    %v3746 = vld [vmem:[%s2375 + $0x53] sm:$0xff]
    %v3747 = vld [vmem:[%s2375 + $0x63] sm:$0xff]
    %v3748 = vld [vmem:[%s2375 + $0x73] sm:$0xff]
    %v3749 = vld [vmem:[%s2375 + $0xc3] sm:$0xff]
    %v3750 = vld [vmem:[%s2375 + $0xd3] sm:$0xff]
    %v3751 = vld [vmem:[%s2375 + $0xe3] sm:$0xff]
    %v3752 = vld [vmem:[%s2375 + $0xf3] sm:$0xff]
    %v3753 = vld [vmem:[%s2375 + $0x103] sm:$0xff]
    %v3754 = vld [vmem:[%s2375 + $0x113] sm:$0xff]
    %v3755 = vld [vmem:[%s2375 + $0x123] sm:$0xff]
    %v3756 = vld [vmem:[%s2375 + $0x133] sm:$0xff]
    %v3757 = vpack.c.bf16 %v3742, %v3741
    %v3758 = vpack.c.bf16 %v3744, %v3743
    %v3759 = vpack.c.bf16 %v3746, %v3745
    %v3760 = vpack.c.bf16 %v3748, %v3747
    %v3761 = vpack.c.bf16 %v3750, %v3749
    %v3762 = vpack.c.bf16 %v3752, %v3751
    %v3763 = vpack.c.bf16 %v3754, %v3753
    %v3764 = vpack.c.bf16 %v3756, %v3755
    %s3765 = scalar_lea.vmem %s3, 32
    %v3766 = vld [vmem:[%s3765] sm:$0x7]
    %v3768 = vsel %vm2371, %v3757, 0
    %v3771 = vsel %vm2371, %v3758, 0
    %v3774 = vsel %vm2371, %v3759, 0
    %v3777 = vsel %vm2371, %v3760, 0
    %v3780 = vsel %vm2371, %v3761, 0
    %v3783 = vsel %vm2371, %v3762, 0
    %v3786 = vsel %vm2371, %v3763, 0
    %v3789 = vsel %vm2371, %v3764, 0
    %v3792 = vsel %vm2520, %v3766, 0
    %3794 = vmatprep.subr.bf16.mxu0 0
    %3795 = vmatpush1.bf16.msra.mxu0 %v3792
    %3796 = vmatprep.subr.bf16.mxu0 0
    %3797 = vmatpush1.bf16.msra.mxu0 0
    %3798 = vmatprep.subr.bf16.mxu0 0
    %3799 = vmatpush1.bf16.msra.mxu0 0
    %3800 = vmatprep.subr.bf16.mxu0 0
    %3801 = vmatpush1.bf16.msra.mxu0 0
    %3802 = vmatprep.subr.bf16.mxu0 0
    %3803 = vmatpush1.bf16.msra.mxu0 0
    %3804 = vmatprep.subr.bf16.mxu0 0
    %3805 = vmatpush1.bf16.msra.mxu0 0
    %3806 = vmatprep.subr.bf16.mxu0 0
    %3807 = vmatpush1.bf16.msra.mxu0 0
    %3808 = vmatprep.subr.bf16.mxu0 0
    %3809 = vmatpush1.bf16.msra.mxu0 0
    %3810 = vmatprep.subr.bf16.mxu0 0
    %3811 = vmatpush1.bf16.msra.mxu0 0
    %3812 = vmatprep.subr.bf16.mxu0 0
    %3813 = vmatpush1.bf16.msra.mxu0 0
    %3814 = vmatprep.subr.bf16.mxu0 0
    %3815 = vmatpush1.bf16.msra.mxu0 0
    %3816 = vmatprep.subr.bf16.mxu0 0
    %3817 = vmatpush1.bf16.msra.mxu0 0
    %3818 = vmatprep.subr.bf16.mxu0 0
    %3819 = vmatpush1.bf16.msra.mxu0 0
    %3820 = vmatprep.subr.bf16.mxu0 0
    %3821 = vmatpush1.bf16.msra.mxu0 0
    %3822 = vmatprep.subr.bf16.mxu0 0
    %3823 = vmatpush1.bf16.msra.mxu0 0
    %3824 = vmatprep.subr.bf16.mxu0 0
    %3825 = vmatpush1.bf16.msra.mxu0 0
    %3826 = vmatprep.mubr.bf16.mxu0 0
    %3827 = vmatmul.mubr.bf16.gmra.mrb[0].mxu0 %v3768
    %v3828 = vpop.f32.mrb[0].mxu0
    %v3829 = vadd.f32 0.0, %v3828
    %v3830 = vpop.f32.mrb[0].mxu0
    %v3831 = vpop.f32.mrb[0].mxu0
    %v3832 = vadd.f32 0.0, %v3831
    %v3833 = vpop.f32.mrb[0].mxu0
    %3834 = vmatprep.mubr.bf16.mxu0 0
    %3835 = vmatmul.mubr.bf16.gmra.mrb[0].mxu0 %v3771
    %v3836 = vpop.f32.mrb[0].mxu0
    %v3837 = vadd.f32 0.0, %v3836
    %v3838 = vpop.f32.mrb[0].mxu0
    %v3839 = vpop.f32.mrb[0].mxu0
    %v3840 = vadd.f32 0.0, %v3839
    %v3841 = vpop.f32.mrb[0].mxu0
    %3842 = vmatprep.mubr.bf16.mxu0 0
    %3843 = vmatmul.mubr.bf16.gmra.mrb[0].mxu0 %v3774
    %v3844 = vpop.f32.mrb[0].mxu0
    %v3845 = vadd.f32 0.0, %v3844
    %v3846 = vpop.f32.mrb[0].mxu0
    %v3847 = vpop.f32.mrb[0].mxu0
    %v3848 = vadd.f32 0.0, %v3847
    %v3849 = vpop.f32.mrb[0].mxu0
    %3850 = vmatprep.mubr.bf16.mxu0 0
    %3851 = vmatmul.mubr.bf16.gmra.mrb[0].mxu0 %v3777
    %v3852 = vpop.f32.mrb[0].mxu0
    %v3853 = vadd.f32 0.0, %v3852
    %v3854 = vpop.f32.mrb[0].mxu0
    %v3855 = vpop.f32.mrb[0].mxu0
    %v3856 = vadd.f32 0.0, %v3855
    %v3857 = vpop.f32.mrb[0].mxu0
    %3858 = vmatprep.mubr.bf16.mxu0 0
    %3859 = vmatmul.mubr.bf16.gmra.mrb[0].mxu0 %v3780
    %v3860 = vpop.f32.mrb[0].mxu0
    %v3861 = vadd.f32 0.0, %v3860
    %v3862 = vpop.f32.mrb[0].mxu0
    %v3863 = vpop.f32.mrb[0].mxu0
    %v3864 = vadd.f32 0.0, %v3863
    %v3865 = vpop.f32.mrb[0].mxu0
    %3866 = vmatprep.mubr.bf16.mxu0 0
    %3867 = vmatmul.mubr.bf16.gmra.mrb[0].mxu0 %v3783
    %v3868 = vpop.f32.mrb[0].mxu0
    %v3869 = vadd.f32 0.0, %v3868
    %v3870 = vpop.f32.mrb[0].mxu0
    %v3871 = vpop.f32.mrb[0].mxu0
    %v3872 = vadd.f32 0.0, %v3871
    %v3873 = vpop.f32.mrb[0].mxu0
    %3874 = vmatprep.mubr.bf16.mxu0 0
    %3875 = vmatmul.mubr.bf16.gmra.mrb[0].mxu0 %v3786
    %v3876 = vpop.f32.mrb[0].mxu0
    %v3877 = vadd.f32 0.0, %v3876
    %v3878 = vpop.f32.mrb[0].mxu0
    %v3879 = vpop.f32.mrb[0].mxu0
    %v3880 = vadd.f32 0.0, %v3879
    %v3881 = vpop.f32.mrb[0].mxu0
    %3882 = vmatprep.mubr.bf16.mxu0 0
    %3883 = vmatmul.mubr.bf16.gmra.mrb[0].mxu0 %v3789
    %v3884 = vpop.f32.mrb[0].mxu0
    %v3885 = vadd.f32 0.0, %v3884
    %v3886 = vpop.f32.mrb[0].mxu0
    %v3887 = vpop.f32.mrb[0].mxu0
    %v3888 = vadd.f32 0.0, %v3887
    %v3889 = vpop.f32.mrb[0].mxu0
    %3890 = vdwg.mxu0
    %v3891 = vadd.f32 %v3725, %v3829
    %v3892 = vadd.f32 %v3726, %v3832
    %v3893 = vadd.f32 %v3727, %v3837
    %v3894 = vadd.f32 %v3728, %v3840
    %v3895 = vadd.f32 %v3729, %v3845
    %v3896 = vadd.f32 %v3730, %v3848
    %v3897 = vadd.f32 %v3731, %v3853
    %v3898 = vadd.f32 %v3732, %v3856
    %v3899 = vadd.f32 %v3733, %v3861
    %v3900 = vadd.f32 %v3734, %v3864
    %v3901 = vadd.f32 %v3735, %v3869
    %v3902 = vadd.f32 %v3736, %v3872
    %v3903 = vadd.f32 %v3737, %v3877
    %v3904 = vadd.f32 %v3738, %v3880
    %v3905 = vadd.f32 %v3739, %v3885
    %v3906 = vadd.f32 %v3740, %v3888
    %v3907 = vld [vmem:[%s2375 + $0x4] sm:$0xff]
    %v3908 = vld [vmem:[%s2375 + $0x14] sm:$0xff]
    %v3909 = vld [vmem:[%s2375 + $0x24] sm:$0xff]
    %v3910 = vld [vmem:[%s2375 + $0x34] sm:$0xff]
    %v3911 = vld [vmem:[%s2375 + $0x44] sm:$0xff]
    %v3912 = vld [vmem:[%s2375 + $0x54] sm:$0xff]
    %v3913 = vld [vmem:[%s2375 + $0x64] sm:$0xff]
    %v3914 = vld [vmem:[%s2375 + $0x74] sm:$0xff]
    %v3915 = vld [vmem:[%s2375 + $0xc4] sm:$0xff]
    %v3916 = vld [vmem:[%s2375 + $0xd4] sm:$0xff]
    %v3917 = vld [vmem:[%s2375 + $0xe4] sm:$0xff]
    %v3918 = vld [vmem:[%s2375 + $0xf4] sm:$0xff]
    %v3919 = vld [vmem:[%s2375 + $0x104] sm:$0xff]
    %v3920 = vld [vmem:[%s2375 + $0x114] sm:$0xff]
    %v3921 = vld [vmem:[%s2375 + $0x124] sm:$0xff]
    %v3922 = vld [vmem:[%s2375 + $0x134] sm:$0xff]
    %v3923 = vpack.c.bf16 %v3908, %v3907
    %v3924 = vpack.c.bf16 %v3910, %v3909
    %v3925 = vpack.c.bf16 %v3912, %v3911
    %v3926 = vpack.c.bf16 %v3914, %v3913
    %v3927 = vpack.c.bf16 %v3916, %v3915
    %v3928 = vpack.c.bf16 %v3918, %v3917
    %v3929 = vpack.c.bf16 %v3920, %v3919
    %v3930 = vpack.c.bf16 %v3922, %v3921
    %s3931 = scalar_lea.vmem %s3, 36
    %v3932 = vld [vmem:[%s3931] sm:$0x7]
    %v3934 = vsel %vm2371, %v3923, 0
    %v3937 = vsel %vm2371, %v3924, 0
    %v3940 = vsel %vm2371, %v3925, 0
    %v3943 = vsel %vm2371, %v3926, 0
    %v3946 = vsel %vm2371, %v3927, 0
    %v3949 = vsel %vm2371, %v3928, 0
    %v3952 = vsel %vm2371, %v3929, 0
    %v3955 = vsel %vm2371, %v3930, 0
    %v3958 = vsel %vm2520, %v3932, 0
    %3960 = vmatprep.subr.bf16.mxu0 0
    %3961 = vmatpush1.bf16.msra.mxu0 %v3958
    %3962 = vmatprep.subr.bf16.mxu0 0
    %3963 = vmatpush1.bf16.msra.mxu0 0
    %3964 = vmatprep.subr.bf16.mxu0 0
    %3965 = vmatpush1.bf16.msra.mxu0 0
    %3966 = vmatprep.subr.bf16.mxu0 0
    %3967 = vmatpush1.bf16.msra.mxu0 0
    %3968 = vmatprep.subr.bf16.mxu0 0
    %3969 = vmatpush1.bf16.msra.mxu0 0
    %3970 = vmatprep.subr.bf16.mxu0 0
    %3971 = vmatpush1.bf16.msra.mxu0 0
    %3972 = vmatprep.subr.bf16.mxu0 0
    %3973 = vmatpush1.bf16.msra.mxu0 0
    %3974 = vmatprep.subr.bf16.mxu0 0
    %3975 = vmatpush1.bf16.msra.mxu0 0
    %3976 = vmatprep.subr.bf16.mxu0 0
    %3977 = vmatpush1.bf16.msra.mxu0 0
    %3978 = vmatprep.subr.bf16.mxu0 0
    %3979 = vmatpush1.bf16.msra.mxu0 0
    %3980 = vmatprep.subr.bf16.mxu0 0
    %3981 = vmatpush1.bf16.msra.mxu0 0
    %3982 = vmatprep.subr.bf16.mxu0 0
    %3983 = vmatpush1.bf16.msra.mxu0 0
    %3984 = vmatprep.subr.bf16.mxu0 0
    %3985 = vmatpush1.bf16.msra.mxu0 0
    %3986 = vmatprep.subr.bf16.mxu0 0
    %3987 = vmatpush1.bf16.msra.mxu0 0
    %3988 = vmatprep.subr.bf16.mxu0 0
    %3989 = vmatpush1.bf16.msra.mxu0 0
    %3990 = vmatprep.subr.bf16.mxu0 0
    %3991 = vmatpush1.bf16.msra.mxu0 0
    %3992 = vmatprep.mubr.bf16.mxu0 0
    %3993 = vmatmul.mubr.bf16.gmra.mrb[0].mxu0 %v3934
    %v3994 = vpop.f32.mrb[0].mxu0
    %v3995 = vadd.f32 0.0, %v3994
    %v3996 = vpop.f32.mrb[0].mxu0
    %v3997 = vpop.f32.mrb[0].mxu0
    %v3998 = vadd.f32 0.0, %v3997
    %v3999 = vpop.f32.mrb[0].mxu0
    %4000 = vmatprep.mubr.bf16.mxu0 0
    %4001 = vmatmul.mubr.bf16.gmra.mrb[0].mxu0 %v3937
    %v4002 = vpop.f32.mrb[0].mxu0
    %v4003 = vadd.f32 0.0, %v4002
    %v4004 = vpop.f32.mrb[0].mxu0
    %v4005 = vpop.f32.mrb[0].mxu0
    %v4006 = vadd.f32 0.0, %v4005
    %v4007 = vpop.f32.mrb[0].mxu0
    %4008 = vmatprep.mubr.bf16.mxu0 0
    %4009 = vmatmul.mubr.bf16.gmra.mrb[0].mxu0 %v3940
    %v4010 = vpop.f32.mrb[0].mxu0
    %v4011 = vadd.f32 0.0, %v4010
    %v4012 = vpop.f32.mrb[0].mxu0
    %v4013 = vpop.f32.mrb[0].mxu0
    %v4014 = vadd.f32 0.0, %v4013
    %v4015 = vpop.f32.mrb[0].mxu0
    %4016 = vmatprep.mubr.bf16.mxu0 0
    %4017 = vmatmul.mubr.bf16.gmra.mrb[0].mxu0 %v3943
    %v4018 = vpop.f32.mrb[0].mxu0
    %v4019 = vadd.f32 0.0, %v4018
    %v4020 = vpop.f32.mrb[0].mxu0
    %v4021 = vpop.f32.mrb[0].mxu0
    %v4022 = vadd.f32 0.0, %v4021
    %v4023 = vpop.f32.mrb[0].mxu0
    %4024 = vmatprep.mubr.bf16.mxu0 0
    %4025 = vmatmul.mubr.bf16.gmra.mrb[0].mxu0 %v3946
    %v4026 = vpop.f32.mrb[0].mxu0
    %v4027 = vadd.f32 0.0, %v4026
    %v4028 = vpop.f32.mrb[0].mxu0
    %v4029 = vpop.f32.mrb[0].mxu0
    %v4030 = vadd.f32 0.0, %v4029
    %v4031 = vpop.f32.mrb[0].mxu0
    %4032 = vmatprep.mubr.bf16.mxu0 0
    %4033 = vmatmul.mubr.bf16.gmra.mrb[0].mxu0 %v3949
    %v4034 = vpop.f32.mrb[0].mxu0
    %v4035 = vadd.f32 0.0, %v4034
    %v4036 = vpop.f32.mrb[0].mxu0
    %v4037 = vpop.f32.mrb[0].mxu0
    %v4038 = vadd.f32 0.0, %v4037
    %v4039 = vpop.f32.mrb[0].mxu0
    %4040 = vmatprep.mubr.bf16.mxu0 0
    %4041 = vmatmul.mubr.bf16.gmra.mrb[0].mxu0 %v3952
    %v4042 = vpop.f32.mrb[0].mxu0
    %v4043 = vadd.f32 0.0, %v4042
    %v4044 = vpop.f32.mrb[0].mxu0
    %v4045 = vpop.f32.mrb[0].mxu0
    %v4046 = vadd.f32 0.0, %v4045
    %v4047 = vpop.f32.mrb[0].mxu0
    %4048 = vmatprep.mubr.bf16.mxu0 0
    %4049 = vmatmul.mubr.bf16.gmra.mrb[0].mxu0 %v3955
    %v4050 = vpop.f32.mrb[0].mxu0
    %v4051 = vadd.f32 0.0, %v4050
    %v4052 = vpop.f32.mrb[0].mxu0
    %v4053 = vpop.f32.mrb[0].mxu0
    %v4054 = vadd.f32 0.0, %v4053
    %v4055 = vpop.f32.mrb[0].mxu0
    %4056 = vdwg.mxu0
    %v4057 = vadd.f32 %v3891, %v3995
    %v4058 = vadd.f32 %v3892, %v3998
    %v4059 = vadd.f32 %v3893, %v4003
    %v4060 = vadd.f32 %v3894, %v4006
    %v4061 = vadd.f32 %v3895, %v4011
    %v4062 = vadd.f32 %v3896, %v4014
    %v4063 = vadd.f32 %v3897, %v4019
    %v4064 = vadd.f32 %v3898, %v4022
    %v4065 = vadd.f32 %v3899, %v4027
    %v4066 = vadd.f32 %v3900, %v4030
    %v4067 = vadd.f32 %v3901, %v4035
    %v4068 = vadd.f32 %v3902, %v4038
    %v4069 = vadd.f32 %v3903, %v4043
    %v4070 = vadd.f32 %v3904, %v4046
    %v4071 = vadd.f32 %v3905, %v4051
    %v4072 = vadd.f32 %v3906, %v4054
    %v4073 = vld [vmem:[%s2379] sm:$0xff]
    %v4074 = vld [vmem:[%s2379 + $0x10] sm:$0xff]
    %v4075 = vld [vmem:[%s2379 + $0x20] sm:$0xff]
    %v4076 = vld [vmem:[%s2379 + $0x30] sm:$0xff]
    %v4077 = vld [vmem:[%s2379 + $0x40] sm:$0xff]
    %v4078 = vld [vmem:[%s2379 + $0x50] sm:$0xff]
    %v4079 = vld [vmem:[%s2379 + $0x60] sm:$0xff]
    %v4080 = vld [vmem:[%s2379 + $0x70] sm:$0xff]
    %v4081 = vld [vmem:[%s2379 + $0xc0] sm:$0xff]
    %v4082 = vld [vmem:[%s2379 + $0xd0] sm:$0xff]
    %v4083 = vld [vmem:[%s2379 + $0xe0] sm:$0xff]
    %v4084 = vld [vmem:[%s2379 + $0xf0] sm:$0xff]
    %v4085 = vld [vmem:[%s2379 + $0x100] sm:$0xff]
    %v4086 = vld [vmem:[%s2379 + $0x110] sm:$0xff]
    %v4087 = vld [vmem:[%s2379 + $0x120] sm:$0xff]
    %v4088 = vld [vmem:[%s2379 + $0x130] sm:$0xff]
    %v4089 = vpack.c.bf16 %v4074, %v4073
    %v4090 = vpack.c.bf16 %v4076, %v4075
    %v4091 = vpack.c.bf16 %v4078, %v4077
    %v4092 = vpack.c.bf16 %v4080, %v4079
    %v4093 = vpack.c.bf16 %v4082, %v4081
    %v4094 = vpack.c.bf16 %v4084, %v4083
    %v4095 = vpack.c.bf16 %v4086, %v4085
    %v4096 = vpack.c.bf16 %v4088, %v4087
    %s4097 = scalar_lea.vmem %s3, 40
    %v4098 = vld [vmem:[%s4097] sm:$0x7]
    %v4100 = vsel %vm2371, %v4089, 0
    %v4103 = vsel %vm2371, %v4090, 0
    %v4106 = vsel %vm2371, %v4091, 0
    %v4109 = vsel %vm2371, %v4092, 0
    %v4112 = vsel %vm2371, %v4093, 0
    %v4115 = vsel %vm2371, %v4094, 0
    %v4118 = vsel %vm2371, %v4095, 0
    %v4121 = vsel %vm2371, %v4096, 0
    %v4124 = vsel %vm2520, %v4098, 0
    %4126 = vmatprep.subr.bf16.mxu0 0
    %4127 = vmatpush1.bf16.msra.mxu0 %v4124
    %4128 = vmatprep.subr.bf16.mxu0 0
    %4129 = vmatpush1.bf16.msra.mxu0 0
    %4130 = vmatprep.subr.bf16.mxu0 0
    %4131 = vmatpush1.bf16.msra.mxu0 0
    %4132 = vmatprep.subr.bf16.mxu0 0
    %4133 = vmatpush1.bf16.msra.mxu0 0
    %4134 = vmatprep.subr.bf16.mxu0 0
    %4135 = vmatpush1.bf16.msra.mxu0 0
    %4136 = vmatprep.subr.bf16.mxu0 0
    %4137 = vmatpush1.bf16.msra.mxu0 0
    %4138 = vmatprep.subr.bf16.mxu0 0
    %4139 = vmatpush1.bf16.msra.mxu0 0
    %4140 = vmatprep.subr.bf16.mxu0 0
    %4141 = vmatpush1.bf16.msra.mxu0 0
    %4142 = vmatprep.subr.bf16.mxu0 0
    %4143 = vmatpush1.bf16.msra.mxu0 0
    %4144 = vmatprep.subr.bf16.mxu0 0
    %4145 = vmatpush1.bf16.msra.mxu0 0
    %4146 = vmatprep.subr.bf16.mxu0 0
    %4147 = vmatpush1.bf16.msra.mxu0 0
    %4148 = vmatprep.subr.bf16.mxu0 0
    %4149 = vmatpush1.bf16.msra.mxu0 0
    %4150 = vmatprep.subr.bf16.mxu0 0
    %4151 = vmatpush1.bf16.msra.mxu0 0
    %4152 = vmatprep.subr.bf16.mxu0 0
    %4153 = vmatpush1.bf16.msra.mxu0 0
    %4154 = vmatprep.subr.bf16.mxu0 0
    %4155 = vmatpush1.bf16.msra.mxu0 0
    %4156 = vmatprep.subr.bf16.mxu0 0
    %4157 = vmatpush1.bf16.msra.mxu0 0
    %4158 = vmatprep.mubr.bf16.mxu0 0
    %4159 = vmatmul.mubr.bf16.gmra.mrb[0].mxu0 %v4100
    %v4160 = vpop.f32.mrb[0].mxu0
    %v4161 = vadd.f32 0.0, %v4160
    %v4162 = vpop.f32.mrb[0].mxu0
    %v4163 = vpop.f32.mrb[0].mxu0
    %v4164 = vadd.f32 0.0, %v4163
    %v4165 = vpop.f32.mrb[0].mxu0
    %4166 = vmatprep.mubr.bf16.mxu0 0
    %4167 = vmatmul.mubr.bf16.gmra.mrb[0].mxu0 %v4103
    %v4168 = vpop.f32.mrb[0].mxu0
    %v4169 = vadd.f32 0.0, %v4168
    %v4170 = vpop.f32.mrb[0].mxu0
    %v4171 = vpop.f32.mrb[0].mxu0
    %v4172 = vadd.f32 0.0, %v4171
    %v4173 = vpop.f32.mrb[0].mxu0
    %4174 = vmatprep.mubr.bf16.mxu0 0
    %4175 = vmatmul.mubr.bf16.gmra.mrb[0].mxu0 %v4106
    %v4176 = vpop.f32.mrb[0].mxu0
    %v4177 = vadd.f32 0.0, %v4176
    %v4178 = vpop.f32.mrb[0].mxu0
    %v4179 = vpop.f32.mrb[0].mxu0
    %v4180 = vadd.f32 0.0, %v4179
    %v4181 = vpop.f32.mrb[0].mxu0
    %4182 = vmatprep.mubr.bf16.mxu0 0
    %4183 = vmatmul.mubr.bf16.gmra.mrb[0].mxu0 %v4109
    %v4184 = vpop.f32.mrb[0].mxu0
    %v4185 = vadd.f32 0.0, %v4184
    %v4186 = vpop.f32.mrb[0].mxu0
    %v4187 = vpop.f32.mrb[0].mxu0
    %v4188 = vadd.f32 0.0, %v4187
    %v4189 = vpop.f32.mrb[0].mxu0
    %4190 = vmatprep.mubr.bf16.mxu0 0
    %4191 = vmatmul.mubr.bf16.gmra.mrb[0].mxu0 %v4112
    %v4192 = vpop.f32.mrb[0].mxu0
    %v4193 = vadd.f32 0.0, %v4192
    %v4194 = vpop.f32.mrb[0].mxu0
    %v4195 = vpop.f32.mrb[0].mxu0
    %v4196 = vadd.f32 0.0, %v4195
    %v4197 = vpop.f32.mrb[0].mxu0
    %4198 = vmatprep.mubr.bf16.mxu0 0
    %4199 = vmatmul.mubr.bf16.gmra.mrb[0].mxu0 %v4115
    %v4200 = vpop.f32.mrb[0].mxu0
    %v4201 = vadd.f32 0.0, %v4200
    %v4202 = vpop.f32.mrb[0].mxu0
    %v4203 = vpop.f32.mrb[0].mxu0
    %v4204 = vadd.f32 0.0, %v4203
    %v4205 = vpop.f32.mrb[0].mxu0
    %4206 = vmatprep.mubr.bf16.mxu0 0
    %4207 = vmatmul.mubr.bf16.gmra.mrb[0].mxu0 %v4118
    %v4208 = vpop.f32.mrb[0].mxu0
    %v4209 = vadd.f32 0.0, %v4208
    %v4210 = vpop.f32.mrb[0].mxu0
    %v4211 = vpop.f32.mrb[0].mxu0
    %v4212 = vadd.f32 0.0, %v4211
    %v4213 = vpop.f32.mrb[0].mxu0
    %4214 = vmatprep.mubr.bf16.mxu0 0
    %4215 = vmatmul.mubr.bf16.gmra.mrb[0].mxu0 %v4121
    %v4216 = vpop.f32.mrb[0].mxu0
    %v4217 = vadd.f32 0.0, %v4216
    %v4218 = vpop.f32.mrb[0].mxu0
    %v4219 = vpop.f32.mrb[0].mxu0
    %v4220 = vadd.f32 0.0, %v4219
    %v4221 = vpop.f32.mrb[0].mxu0
    %4222 = vdwg.mxu0
    %v4223 = vadd.f32 %v4057, %v4161
    %v4224 = vadd.f32 %v4058, %v4164
    %v4225 = vadd.f32 %v4059, %v4169
    %v4226 = vadd.f32 %v4060, %v4172
    %v4227 = vadd.f32 %v4061, %v4177
    %v4228 = vadd.f32 %v4062, %v4180
    %v4229 = vadd.f32 %v4063, %v4185
    %v4230 = vadd.f32 %v4064, %v4188
    %v4231 = vadd.f32 %v4065, %v4193
    %v4232 = vadd.f32 %v4066, %v4196
    %v4233 = vadd.f32 %v4067, %v4201
    %v4234 = vadd.f32 %v4068, %v4204
    %v4235 = vadd.f32 %v4069, %v4209
    %v4236 = vadd.f32 %v4070, %v4212
    %v4237 = vadd.f32 %v4071, %v4217
    %v4238 = vadd.f32 %v4072, %v4220
    %v4239 = vld [vmem:[%s2379 + $0x1] sm:$0xff]
    %v4240 = vld [vmem:[%s2379 + $0x11] sm:$0xff]
    %v4241 = vld [vmem:[%s2379 + $0x21] sm:$0xff]
    %v4242 = vld [vmem:[%s2379 + $0x31] sm:$0xff]
    %v4243 = vld [vmem:[%s2379 + $0x41] sm:$0xff]
    %v4244 = vld [vmem:[%s2379 + $0x51] sm:$0xff]
    %v4245 = vld [vmem:[%s2379 + $0x61] sm:$0xff]
    %v4246 = vld [vmem:[%s2379 + $0x71] sm:$0xff]
    %v4247 = vld [vmem:[%s2379 + $0xc1] sm:$0xff]
    %v4248 = vld [vmem:[%s2379 + $0xd1] sm:$0xff]
    %v4249 = vld [vmem:[%s2379 + $0xe1] sm:$0xff]
    %v4250 = vld [vmem:[%s2379 + $0xf1] sm:$0xff]
    %v4251 = vld [vmem:[%s2379 + $0x101] sm:$0xff]
    %v4252 = vld [vmem:[%s2379 + $0x111] sm:$0xff]
    %v4253 = vld [vmem:[%s2379 + $0x121] sm:$0xff]
    %v4254 = vld [vmem:[%s2379 + $0x131] sm:$0xff]
    %v4255 = vpack.c.bf16 %v4240, %v4239
    %v4256 = vpack.c.bf16 %v4242, %v4241
    %v4257 = vpack.c.bf16 %v4244, %v4243
    %v4258 = vpack.c.bf16 %v4246, %v4245
    %v4259 = vpack.c.bf16 %v4248, %v4247
    %v4260 = vpack.c.bf16 %v4250, %v4249
    %v4261 = vpack.c.bf16 %v4252, %v4251
    %v4262 = vpack.c.bf16 %v4254, %v4253
    %s4263 = scalar_lea.vmem %s3, 44
    %v4264 = vld [vmem:[%s4263] sm:$0x7]
    %v4266 = vsel %vm2371, %v4255, 0
    %v4269 = vsel %vm2371, %v4256, 0
    %v4272 = vsel %vm2371, %v4257, 0
    %v4275 = vsel %vm2371, %v4258, 0
    %v4278 = vsel %vm2371, %v4259, 0
    %v4281 = vsel %vm2371, %v4260, 0
    %v4284 = vsel %vm2371, %v4261, 0
    %v4287 = vsel %vm2371, %v4262, 0
    %v4290 = vsel %vm2520, %v4264, 0
    %4292 = vmatprep.subr.bf16.mxu0 0
    %4293 = vmatpush1.bf16.msra.mxu0 %v4290
    %4294 = vmatprep.subr.bf16.mxu0 0
    %4295 = vmatpush1.bf16.msra.mxu0 0
    %4296 = vmatprep.subr.bf16.mxu0 0
    %4297 = vmatpush1.bf16.msra.mxu0 0
    %4298 = vmatprep.subr.bf16.mxu0 0
    %4299 = vmatpush1.bf16.msra.mxu0 0
    %4300 = vmatprep.subr.bf16.mxu0 0
    %4301 = vmatpush1.bf16.msra.mxu0 0
    %4302 = vmatprep.subr.bf16.mxu0 0
    %4303 = vmatpush1.bf16.msra.mxu0 0
    %4304 = vmatprep.subr.bf16.mxu0 0
    %4305 = vmatpush1.bf16.msra.mxu0 0
    %4306 = vmatprep.subr.bf16.mxu0 0
    %4307 = vmatpush1.bf16.msra.mxu0 0
    %4308 = vmatprep.subr.bf16.mxu0 0
    %4309 = vmatpush1.bf16.msra.mxu0 0
    %4310 = vmatprep.subr.bf16.mxu0 0
    %4311 = vmatpush1.bf16.msra.mxu0 0
    %4312 = vmatprep.subr.bf16.mxu0 0
    %4313 = vmatpush1.bf16.msra.mxu0 0
    %4314 = vmatprep.subr.bf16.mxu0 0
    %4315 = vmatpush1.bf16.msra.mxu0 0
    %4316 = vmatprep.subr.bf16.mxu0 0
    %4317 = vmatpush1.bf16.msra.mxu0 0
    %4318 = vmatprep.subr.bf16.mxu0 0
    %4319 = vmatpush1.bf16.msra.mxu0 0
    %4320 = vmatprep.subr.bf16.mxu0 0
    %4321 = vmatpush1.bf16.msra.mxu0 0
    %4322 = vmatprep.subr.bf16.mxu0 0
    %4323 = vmatpush1.bf16.msra.mxu0 0
    %4324 = vmatprep.mubr.bf16.mxu0 0
    %4325 = vmatmul.mubr.bf16.gmra.mrb[0].mxu0 %v4266
    %v4326 = vpop.f32.mrb[0].mxu0
    %v4327 = vadd.f32 0.0, %v4326
    %v4328 = vpop.f32.mrb[0].mxu0
    %v4329 = vpop.f32.mrb[0].mxu0
    %v4330 = vadd.f32 0.0, %v4329
    %v4331 = vpop.f32.mrb[0].mxu0
    %4332 = vmatprep.mubr.bf16.mxu0 0
    %4333 = vmatmul.mubr.bf16.gmra.mrb[0].mxu0 %v4269
    %v4334 = vpop.f32.mrb[0].mxu0
    %v4335 = vadd.f32 0.0, %v4334
    %v4336 = vpop.f32.mrb[0].mxu0
    %v4337 = vpop.f32.mrb[0].mxu0
    %v4338 = vadd.f32 0.0, %v4337
    %v4339 = vpop.f32.mrb[0].mxu0
    %4340 = vmatprep.mubr.bf16.mxu0 0
    %4341 = vmatmul.mubr.bf16.gmra.mrb[0].mxu0 %v4272
    %v4342 = vpop.f32.mrb[0].mxu0
    %v4343 = vadd.f32 0.0, %v4342
    %v4344 = vpop.f32.mrb[0].mxu0
    %v4345 = vpop.f32.mrb[0].mxu0
    %v4346 = vadd.f32 0.0, %v4345
    %v4347 = vpop.f32.mrb[0].mxu0
    %4348 = vmatprep.mubr.bf16.mxu0 0
    %4349 = vmatmul.mubr.bf16.gmra.mrb[0].mxu0 %v4275
    %v4350 = vpop.f32.mrb[0].mxu0
    %v4351 = vadd.f32 0.0, %v4350
    %v4352 = vpop.f32.mrb[0].mxu0
    %v4353 = vpop.f32.mrb[0].mxu0
    %v4354 = vadd.f32 0.0, %v4353
    %v4355 = vpop.f32.mrb[0].mxu0
    %4356 = vmatprep.mubr.bf16.mxu0 0
    %4357 = vmatmul.mubr.bf16.gmra.mrb[0].mxu0 %v4278
    %v4358 = vpop.f32.mrb[0].mxu0
    %v4359 = vadd.f32 0.0, %v4358
    %v4360 = vpop.f32.mrb[0].mxu0
    %v4361 = vpop.f32.mrb[0].mxu0
    %v4362 = vadd.f32 0.0, %v4361
    %v4363 = vpop.f32.mrb[0].mxu0
    %4364 = vmatprep.mubr.bf16.mxu0 0
    %4365 = vmatmul.mubr.bf16.gmra.mrb[0].mxu0 %v4281
    %v4366 = vpop.f32.mrb[0].mxu0
    %v4367 = vadd.f32 0.0, %v4366
    %v4368 = vpop.f32.mrb[0].mxu0
    %v4369 = vpop.f32.mrb[0].mxu0
    %v4370 = vadd.f32 0.0, %v4369
    %v4371 = vpop.f32.mrb[0].mxu0
    %4372 = vmatprep.mubr.bf16.mxu0 0
    %4373 = vmatmul.mubr.bf16.gmra.mrb[0].mxu0 %v4284
    %v4374 = vpop.f32.mrb[0].mxu0
    %v4375 = vadd.f32 0.0, %v4374
    %v4376 = vpop.f32.mrb[0].mxu0
    %v4377 = vpop.f32.mrb[0].mxu0
    %v4378 = vadd.f32 0.0, %v4377
    %v4379 = vpop.f32.mrb[0].mxu0
    %4380 = vmatprep.mubr.bf16.mxu0 0
    %4381 = vmatmul.mubr.bf16.gmra.mrb[0].mxu0 %v4287
    %v4382 = vpop.f32.mrb[0].mxu0
    %v4383 = vadd.f32 0.0, %v4382
    %v4384 = vpop.f32.mrb[0].mxu0
    %v4385 = vpop.f32.mrb[0].mxu0
    %v4386 = vadd.f32 0.0, %v4385
    %v4387 = vpop.f32.mrb[0].mxu0
    %4388 = vdwg.mxu0
    %v4389 = vadd.f32 %v4223, %v4327
    %v4390 = vadd.f32 %v4224, %v4330
    %v4391 = vadd.f32 %v4225, %v4335
    %v4392 = vadd.f32 %v4226, %v4338
    %v4393 = vadd.f32 %v4227, %v4343
    %v4394 = vadd.f32 %v4228, %v4346
    %v4395 = vadd.f32 %v4229, %v4351
    %v4396 = vadd.f32 %v4230, %v4354
    %v4397 = vadd.f32 %v4231, %v4359
    %v4398 = vadd.f32 %v4232, %v4362
    %v4399 = vadd.f32 %v4233, %v4367
    %v4400 = vadd.f32 %v4234, %v4370
    %v4401 = vadd.f32 %v4235, %v4375
    %v4402 = vadd.f32 %v4236, %v4378
    %v4403 = vadd.f32 %v4237, %v4383
    %v4404 = vadd.f32 %v4238, %v4386
    %v4405 = vld [vmem:[%s2379 + $0x2] sm:$0xff]
    %v4406 = vld [vmem:[%s2379 + $0x12] sm:$0xff]
    %v4407 = vld [vmem:[%s2379 + $0x22] sm:$0xff]
    %v4408 = vld [vmem:[%s2379 + $0x32] sm:$0xff]
    %v4409 = vld [vmem:[%s2379 + $0x42] sm:$0xff]
    %v4410 = vld [vmem:[%s2379 + $0x52] sm:$0xff]
    %v4411 = vld [vmem:[%s2379 + $0x62] sm:$0xff]
    %v4412 = vld [vmem:[%s2379 + $0x72] sm:$0xff]
    %v4413 = vld [vmem:[%s2379 + $0xc2] sm:$0xff]
    %v4414 = vld [vmem:[%s2379 + $0xd2] sm:$0xff]
    %v4415 = vld [vmem:[%s2379 + $0xe2] sm:$0xff]
    %v4416 = vld [vmem:[%s2379 + $0xf2] sm:$0xff]
    %v4417 = vld [vmem:[%s2379 + $0x102] sm:$0xff]
    %v4418 = vld [vmem:[%s2379 + $0x112] sm:$0xff]
    %v4419 = vld [vmem:[%s2379 + $0x122] sm:$0xff]
    %v4420 = vld [vmem:[%s2379 + $0x132] sm:$0xff]
    %v4421 = vpack.c.bf16 %v4406, %v4405
    %v4422 = vpack.c.bf16 %v4408, %v4407
    %v4423 = vpack.c.bf16 %v4410, %v4409
    %v4424 = vpack.c.bf16 %v4412, %v4411
    %v4425 = vpack.c.bf16 %v4414, %v4413
    %v4426 = vpack.c.bf16 %v4416, %v4415
    %v4427 = vpack.c.bf16 %v4418, %v4417
    %v4428 = vpack.c.bf16 %v4420, %v4419
    %s4429 = scalar_lea.vmem %s3, 48
    %v4430 = vld [vmem:[%s4429] sm:$0x7]
    %v4432 = vsel %vm2371, %v4421, 0
    %v4435 = vsel %vm2371, %v4422, 0
    %v4438 = vsel %vm2371, %v4423, 0
    %v4441 = vsel %vm2371, %v4424, 0
    %v4444 = vsel %vm2371, %v4425, 0
    %v4447 = vsel %vm2371, %v4426, 0
    %v4450 = vsel %vm2371, %v4427, 0
    %v4453 = vsel %vm2371, %v4428, 0
    %v4456 = vsel %vm2520, %v4430, 0
    %4458 = vmatprep.subr.bf16.mxu0 0
    %4459 = vmatpush1.bf16.msra.mxu0 %v4456
    %4460 = vmatprep.subr.bf16.mxu0 0
    %4461 = vmatpush1.bf16.msra.mxu0 0
    %4462 = vmatprep.subr.bf16.mxu0 0
    %4463 = vmatpush1.bf16.msra.mxu0 0
    %4464 = vmatprep.subr.bf16.mxu0 0
    %4465 = vmatpush1.bf16.msra.mxu0 0
    %4466 = vmatprep.subr.bf16.mxu0 0
    %4467 = vmatpush1.bf16.msra.mxu0 0
    %4468 = vmatprep.subr.bf16.mxu0 0
    %4469 = vmatpush1.bf16.msra.mxu0 0
    %4470 = vmatprep.subr.bf16.mxu0 0
    %4471 = vmatpush1.bf16.msra.mxu0 0
    %4472 = vmatprep.subr.bf16.mxu0 0
    %4473 = vmatpush1.bf16.msra.mxu0 0
    %4474 = vmatprep.subr.bf16.mxu0 0
    %4475 = vmatpush1.bf16.msra.mxu0 0
    %4476 = vmatprep.subr.bf16.mxu0 0
    %4477 = vmatpush1.bf16.msra.mxu0 0
    %4478 = vmatprep.subr.bf16.mxu0 0
    %4479 = vmatpush1.bf16.msra.mxu0 0
    %4480 = vmatprep.subr.bf16.mxu0 0
    %4481 = vmatpush1.bf16.msra.mxu0 0
    %4482 = vmatprep.subr.bf16.mxu0 0
    %4483 = vmatpush1.bf16.msra.mxu0 0
    %4484 = vmatprep.subr.bf16.mxu0 0
    %4485 = vmatpush1.bf16.msra.mxu0 0
    %4486 = vmatprep.subr.bf16.mxu0 0
    %4487 = vmatpush1.bf16.msra.mxu0 0
    %4488 = vmatprep.subr.bf16.mxu0 0
    %4489 = vmatpush1.bf16.msra.mxu0 0
    %4490 = vmatprep.mubr.bf16.mxu0 0
    %4491 = vmatmul.mubr.bf16.gmra.mrb[0].mxu0 %v4432
    %v4492 = vpop.f32.mrb[0].mxu0
    %v4493 = vadd.f32 0.0, %v4492
    %v4494 = vpop.f32.mrb[0].mxu0
    %v4495 = vpop.f32.mrb[0].mxu0
    %v4496 = vadd.f32 0.0, %v4495
    %v4497 = vpop.f32.mrb[0].mxu0
    %4498 = vmatprep.mubr.bf16.mxu0 0
    %4499 = vmatmul.mubr.bf16.gmra.mrb[0].mxu0 %v4435
    %v4500 = vpop.f32.mrb[0].mxu0
    %v4501 = vadd.f32 0.0, %v4500
    %v4502 = vpop.f32.mrb[0].mxu0
    %v4503 = vpop.f32.mrb[0].mxu0
    %v4504 = vadd.f32 0.0, %v4503
    %v4505 = vpop.f32.mrb[0].mxu0
    %4506 = vmatprep.mubr.bf16.mxu0 0
    %4507 = vmatmul.mubr.bf16.gmra.mrb[0].mxu0 %v4438
    %v4508 = vpop.f32.mrb[0].mxu0
    %v4509 = vadd.f32 0.0, %v4508
    %v4510 = vpop.f32.mrb[0].mxu0
    %v4511 = vpop.f32.mrb[0].mxu0
    %v4512 = vadd.f32 0.0, %v4511
    %v4513 = vpop.f32.mrb[0].mxu0
    %4514 = vmatprep.mubr.bf16.mxu0 0
    %4515 = vmatmul.mubr.bf16.gmra.mrb[0].mxu0 %v4441
    %v4516 = vpop.f32.mrb[0].mxu0
    %v4517 = vadd.f32 0.0, %v4516
    %v4518 = vpop.f32.mrb[0].mxu0
    %v4519 = vpop.f32.mrb[0].mxu0
    %v4520 = vadd.f32 0.0, %v4519
    %v4521 = vpop.f32.mrb[0].mxu0
    %4522 = vmatprep.mubr.bf16.mxu0 0
    %4523 = vmatmul.mubr.bf16.gmra.mrb[0].mxu0 %v4444
    %v4524 = vpop.f32.mrb[0].mxu0
    %v4525 = vadd.f32 0.0, %v4524
    %v4526 = vpop.f32.mrb[0].mxu0
    %v4527 = vpop.f32.mrb[0].mxu0
    %v4528 = vadd.f32 0.0, %v4527
    %v4529 = vpop.f32.mrb[0].mxu0
    %4530 = vmatprep.mubr.bf16.mxu0 0
    %4531 = vmatmul.mubr.bf16.gmra.mrb[0].mxu0 %v4447
    %v4532 = vpop.f32.mrb[0].mxu0
    %v4533 = vadd.f32 0.0, %v4532
    %v4534 = vpop.f32.mrb[0].mxu0
    %v4535 = vpop.f32.mrb[0].mxu0
    %v4536 = vadd.f32 0.0, %v4535
    %v4537 = vpop.f32.mrb[0].mxu0
    %4538 = vmatprep.mubr.bf16.mxu0 0
    %4539 = vmatmul.mubr.bf16.gmra.mrb[0].mxu0 %v4450
    %v4540 = vpop.f32.mrb[0].mxu0
    %v4541 = vadd.f32 0.0, %v4540
    %v4542 = vpop.f32.mrb[0].mxu0
    %v4543 = vpop.f32.mrb[0].mxu0
    %v4544 = vadd.f32 0.0, %v4543
    %v4545 = vpop.f32.mrb[0].mxu0
    %4546 = vmatprep.mubr.bf16.mxu0 0
    %4547 = vmatmul.mubr.bf16.gmra.mrb[0].mxu0 %v4453
    %v4548 = vpop.f32.mrb[0].mxu0
    %v4549 = vadd.f32 0.0, %v4548
    %v4550 = vpop.f32.mrb[0].mxu0
    %v4551 = vpop.f32.mrb[0].mxu0
    %v4552 = vadd.f32 0.0, %v4551
    %v4553 = vpop.f32.mrb[0].mxu0
    %4554 = vdwg.mxu0
    %v4555 = vadd.f32 %v4389, %v4493
    %v4556 = vadd.f32 %v4390, %v4496
    %v4557 = vadd.f32 %v4391, %v4501
    %v4558 = vadd.f32 %v4392, %v4504
    %v4559 = vadd.f32 %v4393, %v4509
    %v4560 = vadd.f32 %v4394, %v4512
    %v4561 = vadd.f32 %v4395, %v4517
    %v4562 = vadd.f32 %v4396, %v4520
    %v4563 = vadd.f32 %v4397, %v4525
    %v4564 = vadd.f32 %v4398, %v4528
    %v4565 = vadd.f32 %v4399, %v4533
    %v4566 = vadd.f32 %v4400, %v4536
    %v4567 = vadd.f32 %v4401, %v4541
    %v4568 = vadd.f32 %v4402, %v4544
    %v4569 = vadd.f32 %v4403, %v4549
    %v4570 = vadd.f32 %v4404, %v4552
    %v4571 = vld [vmem:[%s2379 + $0x3] sm:$0xff]
    %v4572 = vld [vmem:[%s2379 + $0x13] sm:$0xff]
    %v4573 = vld [vmem:[%s2379 + $0x23] sm:$0xff]
    %v4574 = vld [vmem:[%s2379 + $0x33] sm:$0xff]
    %v4575 = vld [vmem:[%s2379 + $0x43] sm:$0xff]
    %v4576 = vld [vmem:[%s2379 + $0x53] sm:$0xff]
    %v4577 = vld [vmem:[%s2379 + $0x63] sm:$0xff]
    %v4578 = vld [vmem:[%s2379 + $0x73] sm:$0xff]
    %v4579 = vld [vmem:[%s2379 + $0xc3] sm:$0xff]
    %v4580 = vld [vmem:[%s2379 + $0xd3] sm:$0xff]
    %v4581 = vld [vmem:[%s2379 + $0xe3] sm:$0xff]
    %v4582 = vld [vmem:[%s2379 + $0xf3] sm:$0xff]
    %v4583 = vld [vmem:[%s2379 + $0x103] sm:$0xff]
    %v4584 = vld [vmem:[%s2379 + $0x113] sm:$0xff]
    %v4585 = vld [vmem:[%s2379 + $0x123] sm:$0xff]
    %v4586 = vld [vmem:[%s2379 + $0x133] sm:$0xff]
    %v4587 = vpack.c.bf16 %v4572, %v4571
    %v4588 = vpack.c.bf16 %v4574, %v4573
    %v4589 = vpack.c.bf16 %v4576, %v4575
    %v4590 = vpack.c.bf16 %v4578, %v4577
    %v4591 = vpack.c.bf16 %v4580, %v4579
    %v4592 = vpack.c.bf16 %v4582, %v4581
    %v4593 = vpack.c.bf16 %v4584, %v4583
    %v4594 = vpack.c.bf16 %v4586, %v4585
    %s4595 = scalar_lea.vmem %s3, 52
    %v4596 = vld [vmem:[%s4595] sm:$0x7]
    %v4598 = vsel %vm2371, %v4587, 0
    %v4601 = vsel %vm2371, %v4588, 0
    %v4604 = vsel %vm2371, %v4589, 0
    %v4607 = vsel %vm2371, %v4590, 0
    %v4610 = vsel %vm2371, %v4591, 0
    %v4613 = vsel %vm2371, %v4592, 0
    %v4616 = vsel %vm2371, %v4593, 0
    %v4619 = vsel %vm2371, %v4594, 0
    %v4622 = vsel %vm2520, %v4596, 0
    %4624 = vmatprep.subr.bf16.mxu0 0
    %4625 = vmatpush1.bf16.msra.mxu0 %v4622
    %4626 = vmatprep.subr.bf16.mxu0 0
    %4627 = vmatpush1.bf16.msra.mxu0 0
    %4628 = vmatprep.subr.bf16.mxu0 0
    %4629 = vmatpush1.bf16.msra.mxu0 0
    %4630 = vmatprep.subr.bf16.mxu0 0
    %4631 = vmatpush1.bf16.msra.mxu0 0
    %4632 = vmatprep.subr.bf16.mxu0 0
    %4633 = vmatpush1.bf16.msra.mxu0 0
    %4634 = vmatprep.subr.bf16.mxu0 0
    %4635 = vmatpush1.bf16.msra.mxu0 0
    %4636 = vmatprep.subr.bf16.mxu0 0
    %4637 = vmatpush1.bf16.msra.mxu0 0
    %4638 = vmatprep.subr.bf16.mxu0 0
    %4639 = vmatpush1.bf16.msra.mxu0 0
    %4640 = vmatprep.subr.bf16.mxu0 0
    %4641 = vmatpush1.bf16.msra.mxu0 0
    %4642 = vmatprep.subr.bf16.mxu0 0
    %4643 = vmatpush1.bf16.msra.mxu0 0
    %4644 = vmatprep.subr.bf16.mxu0 0
    %4645 = vmatpush1.bf16.msra.mxu0 0
    %4646 = vmatprep.subr.bf16.mxu0 0
    %4647 = vmatpush1.bf16.msra.mxu0 0
    %4648 = vmatprep.subr.bf16.mxu0 0
    %4649 = vmatpush1.bf16.msra.mxu0 0
    %4650 = vmatprep.subr.bf16.mxu0 0
    %4651 = vmatpush1.bf16.msra.mxu0 0
    %4652 = vmatprep.subr.bf16.mxu0 0
    %4653 = vmatpush1.bf16.msra.mxu0 0
    %4654 = vmatprep.subr.bf16.mxu0 0
    %4655 = vmatpush1.bf16.msra.mxu0 0
    %4656 = vmatprep.mubr.bf16.mxu0 0
    %4657 = vmatmul.mubr.bf16.gmra.mrb[0].mxu0 %v4598
    %v4658 = vpop.f32.mrb[0].mxu0
    %v4659 = vadd.f32 0.0, %v4658
    %v4660 = vpop.f32.mrb[0].mxu0
    %v4661 = vpop.f32.mrb[0].mxu0
    %v4662 = vadd.f32 0.0, %v4661
    %v4663 = vpop.f32.mrb[0].mxu0
    %4664 = vmatprep.mubr.bf16.mxu0 0
    %4665 = vmatmul.mubr.bf16.gmra.mrb[0].mxu0 %v4601
    %v4666 = vpop.f32.mrb[0].mxu0
    %v4667 = vadd.f32 0.0, %v4666
    %v4668 = vpop.f32.mrb[0].mxu0
    %v4669 = vpop.f32.mrb[0].mxu0
    %v4670 = vadd.f32 0.0, %v4669
    %v4671 = vpop.f32.mrb[0].mxu0
    %4672 = vmatprep.mubr.bf16.mxu0 0
    %4673 = vmatmul.mubr.bf16.gmra.mrb[0].mxu0 %v4604
    %v4674 = vpop.f32.mrb[0].mxu0
    %v4675 = vadd.f32 0.0, %v4674
    %v4676 = vpop.f32.mrb[0].mxu0
    %v4677 = vpop.f32.mrb[0].mxu0
    %v4678 = vadd.f32 0.0, %v4677
    %v4679 = vpop.f32.mrb[0].mxu0
    %4680 = vmatprep.mubr.bf16.mxu0 0
    %4681 = vmatmul.mubr.bf16.gmra.mrb[0].mxu0 %v4607
    %v4682 = vpop.f32.mrb[0].mxu0
    %v4683 = vadd.f32 0.0, %v4682
    %v4684 = vpop.f32.mrb[0].mxu0
    %v4685 = vpop.f32.mrb[0].mxu0
    %v4686 = vadd.f32 0.0, %v4685
    %v4687 = vpop.f32.mrb[0].mxu0
    %4688 = vmatprep.mubr.bf16.mxu0 0
    %4689 = vmatmul.mubr.bf16.gmra.mrb[0].mxu0 %v4610
    %v4690 = vpop.f32.mrb[0].mxu0
    %v4691 = vadd.f32 0.0, %v4690
    %v4692 = vpop.f32.mrb[0].mxu0
    %v4693 = vpop.f32.mrb[0].mxu0
    %v4694 = vadd.f32 0.0, %v4693
    %v4695 = vpop.f32.mrb[0].mxu0
    %4696 = vmatprep.mubr.bf16.mxu0 0
    %4697 = vmatmul.mubr.bf16.gmra.mrb[0].mxu0 %v4613
    %v4698 = vpop.f32.mrb[0].mxu0
    %v4699 = vadd.f32 0.0, %v4698
    %v4700 = vpop.f32.mrb[0].mxu0
    %v4701 = vpop.f32.mrb[0].mxu0
    %v4702 = vadd.f32 0.0, %v4701
    %v4703 = vpop.f32.mrb[0].mxu0
    %4704 = vmatprep.mubr.bf16.mxu0 0
    %4705 = vmatmul.mubr.bf16.gmra.mrb[0].mxu0 %v4616
    %v4706 = vpop.f32.mrb[0].mxu0
    %v4707 = vadd.f32 0.0, %v4706
    %v4708 = vpop.f32.mrb[0].mxu0
    %v4709 = vpop.f32.mrb[0].mxu0
    %v4710 = vadd.f32 0.0, %v4709
    %v4711 = vpop.f32.mrb[0].mxu0
    %4712 = vmatprep.mubr.bf16.mxu0 0
    %4713 = vmatmul.mubr.bf16.gmra.mrb[0].mxu0 %v4619
    %v4714 = vpop.f32.mrb[0].mxu0
    %v4715 = vadd.f32 0.0, %v4714
    %v4716 = vpop.f32.mrb[0].mxu0
    %v4717 = vpop.f32.mrb[0].mxu0
    %v4718 = vadd.f32 0.0, %v4717
    %v4719 = vpop.f32.mrb[0].mxu0
    %4720 = vdwg.mxu0
    %v4721 = vadd.f32 %v4555, %v4659
    %v4722 = vadd.f32 %v4556, %v4662
    %v4723 = vadd.f32 %v4557, %v4667
    %v4724 = vadd.f32 %v4558, %v4670
    %v4725 = vadd.f32 %v4559, %v4675
    %v4726 = vadd.f32 %v4560, %v4678
    %v4727 = vadd.f32 %v4561, %v4683
    %v4728 = vadd.f32 %v4562, %v4686
    %v4729 = vadd.f32 %v4563, %v4691
    %v4730 = vadd.f32 %v4564, %v4694
    %v4731 = vadd.f32 %v4565, %v4699
    %v4732 = vadd.f32 %v4566, %v4702
    %v4733 = vadd.f32 %v4567, %v4707
    %v4734 = vadd.f32 %v4568, %v4710
    %v4735 = vadd.f32 %v4569, %v4715
    %v4736 = vadd.f32 %v4570, %v4718
    %v4737 = vld [vmem:[%s2379 + $0x4] sm:$0xff]
    %v4738 = vld [vmem:[%s2379 + $0x14] sm:$0xff]
    %v4739 = vld [vmem:[%s2379 + $0x24] sm:$0xff]
    %v4740 = vld [vmem:[%s2379 + $0x34] sm:$0xff]
    %v4741 = vld [vmem:[%s2379 + $0x44] sm:$0xff]
    %v4742 = vld [vmem:[%s2379 + $0x54] sm:$0xff]
    %v4743 = vld [vmem:[%s2379 + $0x64] sm:$0xff]
    %v4744 = vld [vmem:[%s2379 + $0x74] sm:$0xff]
    %v4745 = vld [vmem:[%s2379 + $0xc4] sm:$0xff]
    %v4746 = vld [vmem:[%s2379 + $0xd4] sm:$0xff]
    %v4747 = vld [vmem:[%s2379 + $0xe4] sm:$0xff]
    %v4748 = vld [vmem:[%s2379 + $0xf4] sm:$0xff]
    %v4749 = vld [vmem:[%s2379 + $0x104] sm:$0xff]
    %v4750 = vld [vmem:[%s2379 + $0x114] sm:$0xff]
    %v4751 = vld [vmem:[%s2379 + $0x124] sm:$0xff]
    %v4752 = vld [vmem:[%s2379 + $0x134] sm:$0xff]
    %v4753 = vpack.c.bf16 %v4738, %v4737
    %v4754 = vpack.c.bf16 %v4740, %v4739
    %v4755 = vpack.c.bf16 %v4742, %v4741
    %v4756 = vpack.c.bf16 %v4744, %v4743
    %v4757 = vpack.c.bf16 %v4746, %v4745
    %v4758 = vpack.c.bf16 %v4748, %v4747
    %v4759 = vpack.c.bf16 %v4750, %v4749
    %v4760 = vpack.c.bf16 %v4752, %v4751
    %s4761 = scalar_lea.vmem %s3, 56
    %v4762 = vld [vmem:[%s4761] sm:$0x7]
    %v4764 = vsel %vm2371, %v4753, 0
    %v4767 = vsel %vm2371, %v4754, 0
    %v4770 = vsel %vm2371, %v4755, 0
    %v4773 = vsel %vm2371, %v4756, 0
    %v4776 = vsel %vm2371, %v4757, 0
    %v4779 = vsel %vm2371, %v4758, 0
    %v4782 = vsel %vm2371, %v4759, 0
    %v4785 = vsel %vm2371, %v4760, 0
    %v4788 = vsel %vm2520, %v4762, 0
    %4790 = vmatprep.subr.bf16.mxu0 0
    %4791 = vmatpush1.bf16.msra.mxu0 %v4788
    %4792 = vmatprep.subr.bf16.mxu0 0
    %4793 = vmatpush1.bf16.msra.mxu0 0
    %4794 = vmatprep.subr.bf16.mxu0 0
    %4795 = vmatpush1.bf16.msra.mxu0 0
    %4796 = vmatprep.subr.bf16.mxu0 0
    %4797 = vmatpush1.bf16.msra.mxu0 0
    %4798 = vmatprep.subr.bf16.mxu0 0
    %4799 = vmatpush1.bf16.msra.mxu0 0
    %4800 = vmatprep.subr.bf16.mxu0 0
    %4801 = vmatpush1.bf16.msra.mxu0 0
    %4802 = vmatprep.subr.bf16.mxu0 0
    %4803 = vmatpush1.bf16.msra.mxu0 0
    %4804 = vmatprep.subr.bf16.mxu0 0
    %4805 = vmatpush1.bf16.msra.mxu0 0
    %4806 = vmatprep.subr.bf16.mxu0 0
    %4807 = vmatpush1.bf16.msra.mxu0 0
    %4808 = vmatprep.subr.bf16.mxu0 0
    %4809 = vmatpush1.bf16.msra.mxu0 0
    %4810 = vmatprep.subr.bf16.mxu0 0
    %4811 = vmatpush1.bf16.msra.mxu0 0
    %4812 = vmatprep.subr.bf16.mxu0 0
    %4813 = vmatpush1.bf16.msra.mxu0 0
    %4814 = vmatprep.subr.bf16.mxu0 0
    %4815 = vmatpush1.bf16.msra.mxu0 0
    %4816 = vmatprep.subr.bf16.mxu0 0
    %4817 = vmatpush1.bf16.msra.mxu0 0
    %4818 = vmatprep.subr.bf16.mxu0 0
    %4819 = vmatpush1.bf16.msra.mxu0 0
    %4820 = vmatprep.subr.bf16.mxu0 0
    %4821 = vmatpush1.bf16.msra.mxu0 0
    %4822 = vmatprep.mubr.bf16.mxu0 0
    %4823 = vmatmul.mubr.bf16.gmra.mrb[0].mxu0 %v4764
    %v4824 = vpop.f32.mrb[0].mxu0
    %v4825 = vadd.f32 0.0, %v4824
    %v4826 = vpop.f32.mrb[0].mxu0
    %v4827 = vpop.f32.mrb[0].mxu0
    %v4828 = vadd.f32 0.0, %v4827
    %v4829 = vpop.f32.mrb[0].mxu0
    %4830 = vmatprep.mubr.bf16.mxu0 0
    %4831 = vmatmul.mubr.bf16.gmra.mrb[0].mxu0 %v4767
    %v4832 = vpop.f32.mrb[0].mxu0
    %v4833 = vadd.f32 0.0, %v4832
    %v4834 = vpop.f32.mrb[0].mxu0
    %v4835 = vpop.f32.mrb[0].mxu0
    %v4836 = vadd.f32 0.0, %v4835
    %v4837 = vpop.f32.mrb[0].mxu0
    %4838 = vmatprep.mubr.bf16.mxu0 0
    %4839 = vmatmul.mubr.bf16.gmra.mrb[0].mxu0 %v4770
    %v4840 = vpop.f32.mrb[0].mxu0
    %v4841 = vadd.f32 0.0, %v4840
    %v4842 = vpop.f32.mrb[0].mxu0
    %v4843 = vpop.f32.mrb[0].mxu0
    %v4844 = vadd.f32 0.0, %v4843
    %v4845 = vpop.f32.mrb[0].mxu0
    %4846 = vmatprep.mubr.bf16.mxu0 0
    %4847 = vmatmul.mubr.bf16.gmra.mrb[0].mxu0 %v4773
    %v4848 = vpop.f32.mrb[0].mxu0
    %v4849 = vadd.f32 0.0, %v4848
    %v4850 = vpop.f32.mrb[0].mxu0
    %v4851 = vpop.f32.mrb[0].mxu0
    %v4852 = vadd.f32 0.0, %v4851
    %v4853 = vpop.f32.mrb[0].mxu0
    %4854 = vmatprep.mubr.bf16.mxu0 0
    %4855 = vmatmul.mubr.bf16.gmra.mrb[0].mxu0 %v4776
    %v4856 = vpop.f32.mrb[0].mxu0
    %v4857 = vadd.f32 0.0, %v4856
    %v4858 = vpop.f32.mrb[0].mxu0
    %v4859 = vpop.f32.mrb[0].mxu0
    %v4860 = vadd.f32 0.0, %v4859
    %v4861 = vpop.f32.mrb[0].mxu0
    %4862 = vmatprep.mubr.bf16.mxu0 0
    %4863 = vmatmul.mubr.bf16.gmra.mrb[0].mxu0 %v4779
    %v4864 = vpop.f32.mrb[0].mxu0
    %v4865 = vadd.f32 0.0, %v4864
    %v4866 = vpop.f32.mrb[0].mxu0
    %v4867 = vpop.f32.mrb[0].mxu0
    %v4868 = vadd.f32 0.0, %v4867
    %v4869 = vpop.f32.mrb[0].mxu0
    %4870 = vmatprep.mubr.bf16.mxu0 0
    %4871 = vmatmul.mubr.bf16.gmra.mrb[0].mxu0 %v4782
    %v4872 = vpop.f32.mrb[0].mxu0
    %v4873 = vadd.f32 0.0, %v4872
    %v4874 = vpop.f32.mrb[0].mxu0
    %v4875 = vpop.f32.mrb[0].mxu0
    %v4876 = vadd.f32 0.0, %v4875
    %v4877 = vpop.f32.mrb[0].mxu0
    %4878 = vmatprep.mubr.bf16.mxu0 0
    %4879 = vmatmul.mubr.bf16.gmra.mrb[0].mxu0 %v4785
    %v4880 = vpop.f32.mrb[0].mxu0
    %v4881 = vadd.f32 0.0, %v4880
    %v4882 = vpop.f32.mrb[0].mxu0
    %v4883 = vpop.f32.mrb[0].mxu0
    %v4884 = vadd.f32 0.0, %v4883
    %v4885 = vpop.f32.mrb[0].mxu0
    %4886 = vdwg.mxu0
    %v4887 = vadd.f32 %v4721, %v4825
    %v4888 = vadd.f32 %v4722, %v4828
    %v4889 = vadd.f32 %v4723, %v4833
    %v4890 = vadd.f32 %v4724, %v4836
    %v4891 = vadd.f32 %v4725, %v4841
    %v4892 = vadd.f32 %v4726, %v4844
    %v4893 = vadd.f32 %v4727, %v4849
    %v4894 = vadd.f32 %v4728, %v4852
    %v4895 = vadd.f32 %v4729, %v4857
    %v4896 = vadd.f32 %v4730, %v4860
    %v4897 = vadd.f32 %v4731, %v4865
    %v4898 = vadd.f32 %v4732, %v4868
    %v4899 = vadd.f32 %v4733, %v4873
    %v4900 = vadd.f32 %v4734, %v4876
    %v4901 = vadd.f32 %v4735, %v4881
    %v4902 = vadd.f32 %v4736, %v4884
    %v4903 = vld [vmem:[%s2382] sm:$0xff]
    %v4904 = vld [vmem:[%s2382 + $0x10] sm:$0xff]
    %v4905 = vld [vmem:[%s2382 + $0x20] sm:$0xff]
    %v4906 = vld [vmem:[%s2382 + $0x30] sm:$0xff]
    %v4907 = vld [vmem:[%s2382 + $0x40] sm:$0xff]
    %v4908 = vld [vmem:[%s2382 + $0x50] sm:$0xff]
    %v4909 = vld [vmem:[%s2382 + $0x60] sm:$0xff]
    %v4910 = vld [vmem:[%s2382 + $0x70] sm:$0xff]
    %v4911 = vld [vmem:[%s2382 + $0xc0] sm:$0xff]
    %v4912 = vld [vmem:[%s2382 + $0xd0] sm:$0xff]
    %v4913 = vld [vmem:[%s2382 + $0xe0] sm:$0xff]
    %v4914 = vld [vmem:[%s2382 + $0xf0] sm:$0xff]
    %v4915 = vld [vmem:[%s2382 + $0x100] sm:$0xff]
    %v4916 = vld [vmem:[%s2382 + $0x110] sm:$0xff]
    %v4917 = vld [vmem:[%s2382 + $0x120] sm:$0xff]
    %v4918 = vld [vmem:[%s2382 + $0x130] sm:$0xff]
    %v4919 = vpack.c.bf16 %v4904, %v4903
    %v4920 = vpack.c.bf16 %v4906, %v4905
    %v4921 = vpack.c.bf16 %v4908, %v4907
    %v4922 = vpack.c.bf16 %v4910, %v4909
    %v4923 = vpack.c.bf16 %v4912, %v4911
    %v4924 = vpack.c.bf16 %v4914, %v4913
    %v4925 = vpack.c.bf16 %v4916, %v4915
    %v4926 = vpack.c.bf16 %v4918, %v4917
    %s4927 = scalar_lea.vmem %s3, 60
    %v4928 = vld [vmem:[%s4927] sm:$0x7]
    %v4930 = vsel %vm2371, %v4919, 0
    %v4933 = vsel %vm2371, %v4920, 0
    %v4936 = vsel %vm2371, %v4921, 0
    %v4939 = vsel %vm2371, %v4922, 0
    %v4942 = vsel %vm2371, %v4923, 0
    %v4945 = vsel %vm2371, %v4924, 0
    %v4948 = vsel %vm2371, %v4925, 0
    %v4951 = vsel %vm2371, %v4926, 0
    %v4954 = vsel %vm2520, %v4928, 0
    %4956 = vmatprep.subr.bf16.mxu0 0
    %4957 = vmatpush1.bf16.msra.mxu0 %v4954
    %4958 = vmatprep.subr.bf16.mxu0 0
    %4959 = vmatpush1.bf16.msra.mxu0 0
    %4960 = vmatprep.subr.bf16.mxu0 0
    %4961 = vmatpush1.bf16.msra.mxu0 0
    %4962 = vmatprep.subr.bf16.mxu0 0
    %4963 = vmatpush1.bf16.msra.mxu0 0
    %4964 = vmatprep.subr.bf16.mxu0 0
    %4965 = vmatpush1.bf16.msra.mxu0 0
    %4966 = vmatprep.subr.bf16.mxu0 0
    %4967 = vmatpush1.bf16.msra.mxu0 0
    %4968 = vmatprep.subr.bf16.mxu0 0
    %4969 = vmatpush1.bf16.msra.mxu0 0
    %4970 = vmatprep.subr.bf16.mxu0 0
    %4971 = vmatpush1.bf16.msra.mxu0 0
    %4972 = vmatprep.subr.bf16.mxu0 0
    %4973 = vmatpush1.bf16.msra.mxu0 0
    %4974 = vmatprep.subr.bf16.mxu0 0
    %4975 = vmatpush1.bf16.msra.mxu0 0
    %4976 = vmatprep.subr.bf16.mxu0 0
    %4977 = vmatpush1.bf16.msra.mxu0 0
    %4978 = vmatprep.subr.bf16.mxu0 0
    %4979 = vmatpush1.bf16.msra.mxu0 0
    %4980 = vmatprep.subr.bf16.mxu0 0
    %4981 = vmatpush1.bf16.msra.mxu0 0
    %4982 = vmatprep.subr.bf16.mxu0 0
    %4983 = vmatpush1.bf16.msra.mxu0 0
    %4984 = vmatprep.subr.bf16.mxu0 0
    %4985 = vmatpush1.bf16.msra.mxu0 0
    %4986 = vmatprep.subr.bf16.mxu0 0
    %4987 = vmatpush1.bf16.msra.mxu0 0
    %4988 = vmatprep.mubr.bf16.mxu0 0
    %4989 = vmatmul.mubr.bf16.gmra.mrb[0].mxu0 %v4930
    %v4990 = vpop.f32.mrb[0].mxu0
    %v4991 = vadd.f32 0.0, %v4990
    %v4992 = vpop.f32.mrb[0].mxu0
    %v4993 = vpop.f32.mrb[0].mxu0
    %v4994 = vadd.f32 0.0, %v4993
    %v4995 = vpop.f32.mrb[0].mxu0
    %4996 = vmatprep.mubr.bf16.mxu0 0
    %4997 = vmatmul.mubr.bf16.gmra.mrb[0].mxu0 %v4933
    %v4998 = vpop.f32.mrb[0].mxu0
    %v4999 = vadd.f32 0.0, %v4998
    %v5000 = vpop.f32.mrb[0].mxu0
    %v5001 = vpop.f32.mrb[0].mxu0
    %v5002 = vadd.f32 0.0, %v5001
    %v5003 = vpop.f32.mrb[0].mxu0
    %5004 = vmatprep.mubr.bf16.mxu0 0
    %5005 = vmatmul.mubr.bf16.gmra.mrb[0].mxu0 %v4936
    %v5006 = vpop.f32.mrb[0].mxu0
    %v5007 = vadd.f32 0.0, %v5006
    %v5008 = vpop.f32.mrb[0].mxu0
    %v5009 = vpop.f32.mrb[0].mxu0
    %v5010 = vadd.f32 0.0, %v5009
    %v5011 = vpop.f32.mrb[0].mxu0
    %5012 = vmatprep.mubr.bf16.mxu0 0
    %5013 = vmatmul.mubr.bf16.gmra.mrb[0].mxu0 %v4939
    %v5014 = vpop.f32.mrb[0].mxu0
    %v5015 = vadd.f32 0.0, %v5014
    %v5016 = vpop.f32.mrb[0].mxu0
    %v5017 = vpop.f32.mrb[0].mxu0
    %v5018 = vadd.f32 0.0, %v5017
    %v5019 = vpop.f32.mrb[0].mxu0
    %5020 = vmatprep.mubr.bf16.mxu0 0
    %5021 = vmatmul.mubr.bf16.gmra.mrb[0].mxu0 %v4942
    %v5022 = vpop.f32.mrb[0].mxu0
    %v5023 = vadd.f32 0.0, %v5022
    %v5024 = vpop.f32.mrb[0].mxu0
    %v5025 = vpop.f32.mrb[0].mxu0
    %v5026 = vadd.f32 0.0, %v5025
    %v5027 = vpop.f32.mrb[0].mxu0
    %5028 = vmatprep.mubr.bf16.mxu0 0
    %5029 = vmatmul.mubr.bf16.gmra.mrb[0].mxu0 %v4945
    %v5030 = vpop.f32.mrb[0].mxu0
    %v5031 = vadd.f32 0.0, %v5030
    %v5032 = vpop.f32.mrb[0].mxu0
    %v5033 = vpop.f32.mrb[0].mxu0
    %v5034 = vadd.f32 0.0, %v5033
    %v5035 = vpop.f32.mrb[0].mxu0
    %5036 = vmatprep.mubr.bf16.mxu0 0
    %5037 = vmatmul.mubr.bf16.gmra.mrb[0].mxu0 %v4948
    %v5038 = vpop.f32.mrb[0].mxu0
    %v5039 = vadd.f32 0.0, %v5038
    %v5040 = vpop.f32.mrb[0].mxu0
    %v5041 = vpop.f32.mrb[0].mxu0
    %v5042 = vadd.f32 0.0, %v5041
    %v5043 = vpop.f32.mrb[0].mxu0
    %5044 = vmatprep.mubr.bf16.mxu0 0
    %5045 = vmatmul.mubr.bf16.gmra.mrb[0].mxu0 %v4951
    %v5046 = vpop.f32.mrb[0].mxu0
    %v5047 = vadd.f32 0.0, %v5046
    %v5048 = vpop.f32.mrb[0].mxu0
    %v5049 = vpop.f32.mrb[0].mxu0
    %v5050 = vadd.f32 0.0, %v5049
    %v5051 = vpop.f32.mrb[0].mxu0
    %5052 = vdwg.mxu0
    %v5053 = vadd.f32 %v4887, %v4991
    %v5054 = vadd.f32 %v4888, %v4994
    %v5055 = vadd.f32 %v4889, %v4999
    %v5056 = vadd.f32 %v4890, %v5002
    %v5057 = vadd.f32 %v4891, %v5007
    %v5058 = vadd.f32 %v4892, %v5010
    %v5059 = vadd.f32 %v4893, %v5015
    %v5060 = vadd.f32 %v4894, %v5018
    %v5061 = vadd.f32 %v4895, %v5023
    %v5062 = vadd.f32 %v4896, %v5026
    %v5063 = vadd.f32 %v4897, %v5031
    %v5064 = vadd.f32 %v4898, %v5034
    %v5065 = vadd.f32 %v4899, %v5039
    %v5066 = vadd.f32 %v4900, %v5042
    %v5067 = vadd.f32 %v4901, %v5047
    %v5068 = vadd.f32 %v4902, %v5050
    %v5069 = vld [vmem:[%s2382 + $0x1] sm:$0xff]
    %v5070 = vld [vmem:[%s2382 + $0x11] sm:$0xff]
    %v5071 = vld [vmem:[%s2382 + $0x21] sm:$0xff]
    %v5072 = vld [vmem:[%s2382 + $0x31] sm:$0xff]
    %v5073 = vld [vmem:[%s2382 + $0x41] sm:$0xff]
    %v5074 = vld [vmem:[%s2382 + $0x51] sm:$0xff]
    %v5075 = vld [vmem:[%s2382 + $0x61] sm:$0xff]
    %v5076 = vld [vmem:[%s2382 + $0x71] sm:$0xff]
    %v5077 = vld [vmem:[%s2382 + $0xc1] sm:$0xff]
    %v5078 = vld [vmem:[%s2382 + $0xd1] sm:$0xff]
    %v5079 = vld [vmem:[%s2382 + $0xe1] sm:$0xff]
    %v5080 = vld [vmem:[%s2382 + $0xf1] sm:$0xff]
    %v5081 = vld [vmem:[%s2382 + $0x101] sm:$0xff]
    %v5082 = vld [vmem:[%s2382 + $0x111] sm:$0xff]
    %v5083 = vld [vmem:[%s2382 + $0x121] sm:$0xff]
    %v5084 = vld [vmem:[%s2382 + $0x131] sm:$0xff]
    %v5085 = vpack.c.bf16 %v5070, %v5069
    %v5086 = vpack.c.bf16 %v5072, %v5071
    %v5087 = vpack.c.bf16 %v5074, %v5073
    %v5088 = vpack.c.bf16 %v5076, %v5075
    %v5089 = vpack.c.bf16 %v5078, %v5077
    %v5090 = vpack.c.bf16 %v5080, %v5079
    %v5091 = vpack.c.bf16 %v5082, %v5081
    %v5092 = vpack.c.bf16 %v5084, %v5083
    %s5093 = scalar_lea.vmem %s3, 64
    %v5094 = vld [vmem:[%s5093] sm:$0x7]
    %v5096 = vsel %vm2371, %v5085, 0
    %v5099 = vsel %vm2371, %v5086, 0
    %v5102 = vsel %vm2371, %v5087, 0
    %v5105 = vsel %vm2371, %v5088, 0
    %v5108 = vsel %vm2371, %v5089, 0
    %v5111 = vsel %vm2371, %v5090, 0
    %v5114 = vsel %vm2371, %v5091, 0
    %v5117 = vsel %vm2371, %v5092, 0
    %v5120 = vsel %vm2520, %v5094, 0
    %5122 = vmatprep.subr.bf16.mxu0 0
    %5123 = vmatpush1.bf16.msra.mxu0 %v5120
    %5124 = vmatprep.subr.bf16.mxu0 0
    %5125 = vmatpush1.bf16.msra.mxu0 0
    %5126 = vmatprep.subr.bf16.mxu0 0
    %5127 = vmatpush1.bf16.msra.mxu0 0
    %5128 = vmatprep.subr.bf16.mxu0 0
    %5129 = vmatpush1.bf16.msra.mxu0 0
    %5130 = vmatprep.subr.bf16.mxu0 0
    %5131 = vmatpush1.bf16.msra.mxu0 0
    %5132 = vmatprep.subr.bf16.mxu0 0
    %5133 = vmatpush1.bf16.msra.mxu0 0
    %5134 = vmatprep.subr.bf16.mxu0 0
    %5135 = vmatpush1.bf16.msra.mxu0 0
    %5136 = vmatprep.subr.bf16.mxu0 0
    %5137 = vmatpush1.bf16.msra.mxu0 0
    %5138 = vmatprep.subr.bf16.mxu0 0
    %5139 = vmatpush1.bf16.msra.mxu0 0
    %5140 = vmatprep.subr.bf16.mxu0 0
    %5141 = vmatpush1.bf16.msra.mxu0 0
    %5142 = vmatprep.subr.bf16.mxu0 0
    %5143 = vmatpush1.bf16.msra.mxu0 0
    %5144 = vmatprep.subr.bf16.mxu0 0
    %5145 = vmatpush1.bf16.msra.mxu0 0
    %5146 = vmatprep.subr.bf16.mxu0 0
    %5147 = vmatpush1.bf16.msra.mxu0 0
    %5148 = vmatprep.subr.bf16.mxu0 0
    %5149 = vmatpush1.bf16.msra.mxu0 0
    %5150 = vmatprep.subr.bf16.mxu0 0
    %5151 = vmatpush1.bf16.msra.mxu0 0
    %5152 = vmatprep.subr.bf16.mxu0 0
    %5153 = vmatpush1.bf16.msra.mxu0 0
    %5154 = vmatprep.mubr.bf16.mxu0 0
    %5155 = vmatmul.mubr.bf16.gmra.mrb[0].mxu0 %v5096
    %v5156 = vpop.f32.mrb[0].mxu0
    %v5157 = vadd.f32 0.0, %v5156
    %v5158 = vpop.f32.mrb[0].mxu0
    %v5159 = vpop.f32.mrb[0].mxu0
    %v5160 = vadd.f32 0.0, %v5159
    %v5161 = vpop.f32.mrb[0].mxu0
    %5162 = vmatprep.mubr.bf16.mxu0 0
    %5163 = vmatmul.mubr.bf16.gmra.mrb[0].mxu0 %v5099
    %v5164 = vpop.f32.mrb[0].mxu0
    %v5165 = vadd.f32 0.0, %v5164
    %v5166 = vpop.f32.mrb[0].mxu0
    %v5167 = vpop.f32.mrb[0].mxu0
    %v5168 = vadd.f32 0.0, %v5167
    %v5169 = vpop.f32.mrb[0].mxu0
    %5170 = vmatprep.mubr.bf16.mxu0 0
    %5171 = vmatmul.mubr.bf16.gmra.mrb[0].mxu0 %v5102
    %v5172 = vpop.f32.mrb[0].mxu0
    %v5173 = vadd.f32 0.0, %v5172
    %v5174 = vpop.f32.mrb[0].mxu0
    %v5175 = vpop.f32.mrb[0].mxu0
    %v5176 = vadd.f32 0.0, %v5175
    %v5177 = vpop.f32.mrb[0].mxu0
    %5178 = vmatprep.mubr.bf16.mxu0 0
    %5179 = vmatmul.mubr.bf16.gmra.mrb[0].mxu0 %v5105
    %v5180 = vpop.f32.mrb[0].mxu0
    %v5181 = vadd.f32 0.0, %v5180
    %v5182 = vpop.f32.mrb[0].mxu0
    %v5183 = vpop.f32.mrb[0].mxu0
    %v5184 = vadd.f32 0.0, %v5183
    %v5185 = vpop.f32.mrb[0].mxu0
    %5186 = vmatprep.mubr.bf16.mxu0 0
    %5187 = vmatmul.mubr.bf16.gmra.mrb[0].mxu0 %v5108
    %v5188 = vpop.f32.mrb[0].mxu0
    %v5189 = vadd.f32 0.0, %v5188
    %v5190 = vpop.f32.mrb[0].mxu0
    %v5191 = vpop.f32.mrb[0].mxu0
    %v5192 = vadd.f32 0.0, %v5191
    %v5193 = vpop.f32.mrb[0].mxu0
    %5194 = vmatprep.mubr.bf16.mxu0 0
    %5195 = vmatmul.mubr.bf16.gmra.mrb[0].mxu0 %v5111
    %v5196 = vpop.f32.mrb[0].mxu0
    %v5197 = vadd.f32 0.0, %v5196
    %v5198 = vpop.f32.mrb[0].mxu0
    %v5199 = vpop.f32.mrb[0].mxu0
    %v5200 = vadd.f32 0.0, %v5199
    %v5201 = vpop.f32.mrb[0].mxu0
    %5202 = vmatprep.mubr.bf16.mxu0 0
    %5203 = vmatmul.mubr.bf16.gmra.mrb[0].mxu0 %v5114
    %v5204 = vpop.f32.mrb[0].mxu0
    %v5205 = vadd.f32 0.0, %v5204
    %v5206 = vpop.f32.mrb[0].mxu0
    %v5207 = vpop.f32.mrb[0].mxu0
    %v5208 = vadd.f32 0.0, %v5207
    %v5209 = vpop.f32.mrb[0].mxu0
    %5210 = vmatprep.mubr.bf16.mxu0 0
    %5211 = vmatmul.mubr.bf16.gmra.mrb[0].mxu0 %v5117
    %v5212 = vpop.f32.mrb[0].mxu0
    %v5213 = vadd.f32 0.0, %v5212
    %v5214 = vpop.f32.mrb[0].mxu0
    %v5215 = vpop.f32.mrb[0].mxu0
    %v5216 = vadd.f32 0.0, %v5215
    %v5217 = vpop.f32.mrb[0].mxu0
    %5218 = vdwg.mxu0
    %v5219 = vadd.f32 %v5053, %v5157
    %v5220 = vadd.f32 %v5054, %v5160
    %v5221 = vadd.f32 %v5055, %v5165
    %v5222 = vadd.f32 %v5056, %v5168
    %v5223 = vadd.f32 %v5057, %v5173
    %v5224 = vadd.f32 %v5058, %v5176
    %v5225 = vadd.f32 %v5059, %v5181
    %v5226 = vadd.f32 %v5060, %v5184
    %v5227 = vadd.f32 %v5061, %v5189
    %v5228 = vadd.f32 %v5062, %v5192
    %v5229 = vadd.f32 %v5063, %v5197
    %v5230 = vadd.f32 %v5064, %v5200
    %v5231 = vadd.f32 %v5065, %v5205
    %v5232 = vadd.f32 %v5066, %v5208
    %v5233 = vadd.f32 %v5067, %v5213
    %v5234 = vadd.f32 %v5068, %v5216
    %v5235 = vld [vmem:[%s2382 + $0x2] sm:$0xff]
    %v5236 = vld [vmem:[%s2382 + $0x12] sm:$0xff]
    %v5237 = vld [vmem:[%s2382 + $0x22] sm:$0xff]
    %v5238 = vld [vmem:[%s2382 + $0x32] sm:$0xff]
    %v5239 = vld [vmem:[%s2382 + $0x42] sm:$0xff]
    %v5240 = vld [vmem:[%s2382 + $0x52] sm:$0xff]
    %v5241 = vld [vmem:[%s2382 + $0x62] sm:$0xff]
    %v5242 = vld [vmem:[%s2382 + $0x72] sm:$0xff]
    %v5243 = vld [vmem:[%s2382 + $0xc2] sm:$0xff]
    %v5244 = vld [vmem:[%s2382 + $0xd2] sm:$0xff]
    %v5245 = vld [vmem:[%s2382 + $0xe2] sm:$0xff]
    %v5246 = vld [vmem:[%s2382 + $0xf2] sm:$0xff]
    %v5247 = vld [vmem:[%s2382 + $0x102] sm:$0xff]
    %v5248 = vld [vmem:[%s2382 + $0x112] sm:$0xff]
    %v5249 = vld [vmem:[%s2382 + $0x122] sm:$0xff]
    %v5250 = vld [vmem:[%s2382 + $0x132] sm:$0xff]
    %v5251 = vpack.c.bf16 %v5236, %v5235
    %v5252 = vpack.c.bf16 %v5238, %v5237
    %v5253 = vpack.c.bf16 %v5240, %v5239
    %v5254 = vpack.c.bf16 %v5242, %v5241
    %v5255 = vpack.c.bf16 %v5244, %v5243
    %v5256 = vpack.c.bf16 %v5246, %v5245
    %v5257 = vpack.c.bf16 %v5248, %v5247
    %v5258 = vpack.c.bf16 %v5250, %v5249
    %s5259 = scalar_lea.vmem %s3, 68
    %v5260 = vld [vmem:[%s5259] sm:$0x7]
    %v5262 = vsel %vm2371, %v5251, 0
    %v5265 = vsel %vm2371, %v5252, 0
    %v5268 = vsel %vm2371, %v5253, 0
    %v5271 = vsel %vm2371, %v5254, 0
    %v5274 = vsel %vm2371, %v5255, 0
    %v5277 = vsel %vm2371, %v5256, 0
    %v5280 = vsel %vm2371, %v5257, 0
    %v5283 = vsel %vm2371, %v5258, 0
    %v5286 = vsel %vm2520, %v5260, 0
    %5288 = vmatprep.subr.bf16.mxu0 0
    %5289 = vmatpush1.bf16.msra.mxu0 %v5286
    %5290 = vmatprep.subr.bf16.mxu0 0
    %5291 = vmatpush1.bf16.msra.mxu0 0
    %5292 = vmatprep.subr.bf16.mxu0 0
    %5293 = vmatpush1.bf16.msra.mxu0 0
    %5294 = vmatprep.subr.bf16.mxu0 0
    %5295 = vmatpush1.bf16.msra.mxu0 0
    %5296 = vmatprep.subr.bf16.mxu0 0
    %5297 = vmatpush1.bf16.msra.mxu0 0
    %5298 = vmatprep.subr.bf16.mxu0 0
    %5299 = vmatpush1.bf16.msra.mxu0 0
    %5300 = vmatprep.subr.bf16.mxu0 0
    %5301 = vmatpush1.bf16.msra.mxu0 0
    %5302 = vmatprep.subr.bf16.mxu0 0
    %5303 = vmatpush1.bf16.msra.mxu0 0
    %5304 = vmatprep.subr.bf16.mxu0 0
    %5305 = vmatpush1.bf16.msra.mxu0 0
    %5306 = vmatprep.subr.bf16.mxu0 0
    %5307 = vmatpush1.bf16.msra.mxu0 0
    %5308 = vmatprep.subr.bf16.mxu0 0
    %5309 = vmatpush1.bf16.msra.mxu0 0
    %5310 = vmatprep.subr.bf16.mxu0 0
    %5311 = vmatpush1.bf16.msra.mxu0 0
    %5312 = vmatprep.subr.bf16.mxu0 0
    %5313 = vmatpush1.bf16.msra.mxu0 0
    %5314 = vmatprep.subr.bf16.mxu0 0
    %5315 = vmatpush1.bf16.msra.mxu0 0
    %5316 = vmatprep.subr.bf16.mxu0 0
    %5317 = vmatpush1.bf16.msra.mxu0 0
    %5318 = vmatprep.subr.bf16.mxu0 0
    %5319 = vmatpush1.bf16.msra.mxu0 0
    %5320 = vmatprep.mubr.bf16.mxu0 0
    %5321 = vmatmul.mubr.bf16.gmra.mrb[0].mxu0 %v5262
    %v5322 = vpop.f32.mrb[0].mxu0
    %v5323 = vadd.f32 0.0, %v5322
    %v5324 = vpop.f32.mrb[0].mxu0
    %v5325 = vpop.f32.mrb[0].mxu0
    %v5326 = vadd.f32 0.0, %v5325
    %v5327 = vpop.f32.mrb[0].mxu0
    %5328 = vmatprep.mubr.bf16.mxu0 0
    %5329 = vmatmul.mubr.bf16.gmra.mrb[0].mxu0 %v5265
    %v5330 = vpop.f32.mrb[0].mxu0
    %v5331 = vadd.f32 0.0, %v5330
    %v5332 = vpop.f32.mrb[0].mxu0
    %v5333 = vpop.f32.mrb[0].mxu0
    %v5334 = vadd.f32 0.0, %v5333
    %v5335 = vpop.f32.mrb[0].mxu0
    %5336 = vmatprep.mubr.bf16.mxu0 0
    %5337 = vmatmul.mubr.bf16.gmra.mrb[0].mxu0 %v5268
    %v5338 = vpop.f32.mrb[0].mxu0
    %v5339 = vadd.f32 0.0, %v5338
    %v5340 = vpop.f32.mrb[0].mxu0
    %v5341 = vpop.f32.mrb[0].mxu0
    %v5342 = vadd.f32 0.0, %v5341
    %v5343 = vpop.f32.mrb[0].mxu0
    %5344 = vmatprep.mubr.bf16.mxu0 0
    %5345 = vmatmul.mubr.bf16.gmra.mrb[0].mxu0 %v5271
    %v5346 = vpop.f32.mrb[0].mxu0
    %v5347 = vadd.f32 0.0, %v5346
    %v5348 = vpop.f32.mrb[0].mxu0
    %v5349 = vpop.f32.mrb[0].mxu0
    %v5350 = vadd.f32 0.0, %v5349
    %v5351 = vpop.f32.mrb[0].mxu0
    %5352 = vmatprep.mubr.bf16.mxu0 0
    %5353 = vmatmul.mubr.bf16.gmra.mrb[0].mxu0 %v5274
    %v5354 = vpop.f32.mrb[0].mxu0
    %v5355 = vadd.f32 0.0, %v5354
    %v5356 = vpop.f32.mrb[0].mxu0
    %v5357 = vpop.f32.mrb[0].mxu0
    %v5358 = vadd.f32 0.0, %v5357
    %v5359 = vpop.f32.mrb[0].mxu0
    %5360 = vmatprep.mubr.bf16.mxu0 0
    %5361 = vmatmul.mubr.bf16.gmra.mrb[0].mxu0 %v5277
    %v5362 = vpop.f32.mrb[0].mxu0
    %v5363 = vadd.f32 0.0, %v5362
    %v5364 = vpop.f32.mrb[0].mxu0
    %v5365 = vpop.f32.mrb[0].mxu0
    %v5366 = vadd.f32 0.0, %v5365
    %v5367 = vpop.f32.mrb[0].mxu0
    %5368 = vmatprep.mubr.bf16.mxu0 0
    %5369 = vmatmul.mubr.bf16.gmra.mrb[0].mxu0 %v5280
    %v5370 = vpop.f32.mrb[0].mxu0
    %v5371 = vadd.f32 0.0, %v5370
    %v5372 = vpop.f32.mrb[0].mxu0
    %v5373 = vpop.f32.mrb[0].mxu0
    %v5374 = vadd.f32 0.0, %v5373
    %v5375 = vpop.f32.mrb[0].mxu0
    %5376 = vmatprep.mubr.bf16.mxu0 0
    %5377 = vmatmul.mubr.bf16.gmra.mrb[0].mxu0 %v5283
    %v5378 = vpop.f32.mrb[0].mxu0
    %v5379 = vadd.f32 0.0, %v5378
    %v5380 = vpop.f32.mrb[0].mxu0
    %v5381 = vpop.f32.mrb[0].mxu0
    %v5382 = vadd.f32 0.0, %v5381
    %v5383 = vpop.f32.mrb[0].mxu0
    %5384 = vdwg.mxu0
    %v5385 = vadd.f32 %v5219, %v5323
    %v5386 = vadd.f32 %v5220, %v5326
    %v5387 = vadd.f32 %v5221, %v5331
    %v5388 = vadd.f32 %v5222, %v5334
    %v5389 = vadd.f32 %v5223, %v5339
    %v5390 = vadd.f32 %v5224, %v5342
    %v5391 = vadd.f32 %v5225, %v5347
    %v5392 = vadd.f32 %v5226, %v5350
    %v5393 = vadd.f32 %v5227, %v5355
    %v5394 = vadd.f32 %v5228, %v5358
    %v5395 = vadd.f32 %v5229, %v5363
    %v5396 = vadd.f32 %v5230, %v5366
    %v5397 = vadd.f32 %v5231, %v5371
    %v5398 = vadd.f32 %v5232, %v5374
    %v5399 = vadd.f32 %v5233, %v5379
    %v5400 = vadd.f32 %v5234, %v5382
    %v5401 = vld [vmem:[%s2382 + $0x3] sm:$0xff]
    %v5402 = vld [vmem:[%s2382 + $0x13] sm:$0xff]
    %v5403 = vld [vmem:[%s2382 + $0x23] sm:$0xff]
    %v5404 = vld [vmem:[%s2382 + $0x33] sm:$0xff]
    %v5405 = vld [vmem:[%s2382 + $0x43] sm:$0xff]
    %v5406 = vld [vmem:[%s2382 + $0x53] sm:$0xff]
    %v5407 = vld [vmem:[%s2382 + $0x63] sm:$0xff]
    %v5408 = vld [vmem:[%s2382 + $0x73] sm:$0xff]
    %v5409 = vld [vmem:[%s2382 + $0xc3] sm:$0xff]
    %v5410 = vld [vmem:[%s2382 + $0xd3] sm:$0xff]
    %v5411 = vld [vmem:[%s2382 + $0xe3] sm:$0xff]
    %v5412 = vld [vmem:[%s2382 + $0xf3] sm:$0xff]
    %v5413 = vld [vmem:[%s2382 + $0x103] sm:$0xff]
    %v5414 = vld [vmem:[%s2382 + $0x113] sm:$0xff]
    %v5415 = vld [vmem:[%s2382 + $0x123] sm:$0xff]
    %v5416 = vld [vmem:[%s2382 + $0x133] sm:$0xff]
    %v5417 = vpack.c.bf16 %v5402, %v5401
    %v5418 = vpack.c.bf16 %v5404, %v5403
    %v5419 = vpack.c.bf16 %v5406, %v5405
    %v5420 = vpack.c.bf16 %v5408, %v5407
    %v5421 = vpack.c.bf16 %v5410, %v5409
    %v5422 = vpack.c.bf16 %v5412, %v5411
    %v5423 = vpack.c.bf16 %v5414, %v5413
    %v5424 = vpack.c.bf16 %v5416, %v5415
    %s5425 = scalar_lea.vmem %s3, 72
    %v5426 = vld [vmem:[%s5425] sm:$0x7]
    %v5428 = vsel %vm2371, %v5417, 0
    %v5431 = vsel %vm2371, %v5418, 0
    %v5434 = vsel %vm2371, %v5419, 0
    %v5437 = vsel %vm2371, %v5420, 0
    %v5440 = vsel %vm2371, %v5421, 0
    %v5443 = vsel %vm2371, %v5422, 0
    %v5446 = vsel %vm2371, %v5423, 0
    %v5449 = vsel %vm2371, %v5424, 0
    %v5452 = vsel %vm2520, %v5426, 0
    %5454 = vmatprep.subr.bf16.mxu0 0
    %5455 = vmatpush1.bf16.msra.mxu0 %v5452
    %5456 = vmatprep.subr.bf16.mxu0 0
    %5457 = vmatpush1.bf16.msra.mxu0 0
    %5458 = vmatprep.subr.bf16.mxu0 0
    %5459 = vmatpush1.bf16.msra.mxu0 0
    %5460 = vmatprep.subr.bf16.mxu0 0
    %5461 = vmatpush1.bf16.msra.mxu0 0
    %5462 = vmatprep.subr.bf16.mxu0 0
    %5463 = vmatpush1.bf16.msra.mxu0 0
    %5464 = vmatprep.subr.bf16.mxu0 0
    %5465 = vmatpush1.bf16.msra.mxu0 0
    %5466 = vmatprep.subr.bf16.mxu0 0
    %5467 = vmatpush1.bf16.msra.mxu0 0
    %5468 = vmatprep.subr.bf16.mxu0 0
    %5469 = vmatpush1.bf16.msra.mxu0 0
    %5470 = vmatprep.subr.bf16.mxu0 0
    %5471 = vmatpush1.bf16.msra.mxu0 0
    %5472 = vmatprep.subr.bf16.mxu0 0
    %5473 = vmatpush1.bf16.msra.mxu0 0
    %5474 = vmatprep.subr.bf16.mxu0 0
    %5475 = vmatpush1.bf16.msra.mxu0 0
    %5476 = vmatprep.subr.bf16.mxu0 0
    %5477 = vmatpush1.bf16.msra.mxu0 0
    %5478 = vmatprep.subr.bf16.mxu0 0
    %5479 = vmatpush1.bf16.msra.mxu0 0
    %5480 = vmatprep.subr.bf16.mxu0 0
    %5481 = vmatpush1.bf16.msra.mxu0 0
    %5482 = vmatprep.subr.bf16.mxu0 0
    %5483 = vmatpush1.bf16.msra.mxu0 0
    %5484 = vmatprep.subr.bf16.mxu0 0
    %5485 = vmatpush1.bf16.msra.mxu0 0
    %5486 = vmatprep.mubr.bf16.mxu0 0
    %5487 = vmatmul.mubr.bf16.gmra.mrb[0].mxu0 %v5428
    %v5488 = vpop.f32.mrb[0].mxu0
    %v5489 = vadd.f32 0.0, %v5488
    %v5490 = vpop.f32.mrb[0].mxu0
    %v5491 = vpop.f32.mrb[0].mxu0
    %v5492 = vadd.f32 0.0, %v5491
    %v5493 = vpop.f32.mrb[0].mxu0
    %5494 = vmatprep.mubr.bf16.mxu0 0
    %5495 = vmatmul.mubr.bf16.gmra.mrb[0].mxu0 %v5431
    %v5496 = vpop.f32.mrb[0].mxu0
    %v5497 = vadd.f32 0.0, %v5496
    %v5498 = vpop.f32.mrb[0].mxu0
    %v5499 = vpop.f32.mrb[0].mxu0
    %v5500 = vadd.f32 0.0, %v5499
    %v5501 = vpop.f32.mrb[0].mxu0
    %5502 = vmatprep.mubr.bf16.mxu0 0
    %5503 = vmatmul.mubr.bf16.gmra.mrb[0].mxu0 %v5434
    %v5504 = vpop.f32.mrb[0].mxu0
    %v5505 = vadd.f32 0.0, %v5504
    %v5506 = vpop.f32.mrb[0].mxu0
    %v5507 = vpop.f32.mrb[0].mxu0
    %v5508 = vadd.f32 0.0, %v5507
    %v5509 = vpop.f32.mrb[0].mxu0
    %5510 = vmatprep.mubr.bf16.mxu0 0
    %5511 = vmatmul.mubr.bf16.gmra.mrb[0].mxu0 %v5437
    %v5512 = vpop.f32.mrb[0].mxu0
    %v5513 = vadd.f32 0.0, %v5512
    %v5514 = vpop.f32.mrb[0].mxu0
    %v5515 = vpop.f32.mrb[0].mxu0
    %v5516 = vadd.f32 0.0, %v5515
    %v5517 = vpop.f32.mrb[0].mxu0
    %5518 = vmatprep.mubr.bf16.mxu0 0
    %5519 = vmatmul.mubr.bf16.gmra.mrb[0].mxu0 %v5440
    %v5520 = vpop.f32.mrb[0].mxu0
    %v5521 = vadd.f32 0.0, %v5520
    %v5522 = vpop.f32.mrb[0].mxu0
    %v5523 = vpop.f32.mrb[0].mxu0
    %v5524 = vadd.f32 0.0, %v5523
    %v5525 = vpop.f32.mrb[0].mxu0
    %5526 = vmatprep.mubr.bf16.mxu0 0
    %5527 = vmatmul.mubr.bf16.gmra.mrb[0].mxu0 %v5443
    %v5528 = vpop.f32.mrb[0].mxu0
    %v5529 = vadd.f32 0.0, %v5528
    %v5530 = vpop.f32.mrb[0].mxu0
    %v5531 = vpop.f32.mrb[0].mxu0
    %v5532 = vadd.f32 0.0, %v5531
    %v5533 = vpop.f32.mrb[0].mxu0
    %5534 = vmatprep.mubr.bf16.mxu0 0
    %5535 = vmatmul.mubr.bf16.gmra.mrb[0].mxu0 %v5446
    %v5536 = vpop.f32.mrb[0].mxu0
    %v5537 = vadd.f32 0.0, %v5536
    %v5538 = vpop.f32.mrb[0].mxu0
    %v5539 = vpop.f32.mrb[0].mxu0
    %v5540 = vadd.f32 0.0, %v5539
    %v5541 = vpop.f32.mrb[0].mxu0
    %5542 = vmatprep.mubr.bf16.mxu0 0
    %5543 = vmatmul.mubr.bf16.gmra.mrb[0].mxu0 %v5449
    %v5544 = vpop.f32.mrb[0].mxu0
    %v5545 = vadd.f32 0.0, %v5544
    %v5546 = vpop.f32.mrb[0].mxu0
    %v5547 = vpop.f32.mrb[0].mxu0
    %v5548 = vadd.f32 0.0, %v5547
    %v5549 = vpop.f32.mrb[0].mxu0
    %5550 = vdwg.mxu0
    %v5551 = vadd.f32 %v5385, %v5489
    %v5552 = vadd.f32 %v5386, %v5492
    %v5553 = vadd.f32 %v5387, %v5497
    %v5554 = vadd.f32 %v5388, %v5500
    %v5555 = vadd.f32 %v5389, %v5505
    %v5556 = vadd.f32 %v5390, %v5508
    %v5557 = vadd.f32 %v5391, %v5513
    %v5558 = vadd.f32 %v5392, %v5516
    %v5559 = vadd.f32 %v5393, %v5521
    %v5560 = vadd.f32 %v5394, %v5524
    %v5561 = vadd.f32 %v5395, %v5529
    %v5562 = vadd.f32 %v5396, %v5532
    %v5563 = vadd.f32 %v5397, %v5537
    %v5564 = vadd.f32 %v5398, %v5540
    %v5565 = vadd.f32 %v5399, %v5545
    %v5566 = vadd.f32 %v5400, %v5548
    %v5567 = vld [vmem:[%s2382 + $0x4] sm:$0xff]
    %v5568 = vld [vmem:[%s2382 + $0x14] sm:$0xff]
    %v5569 = vld [vmem:[%s2382 + $0x24] sm:$0xff]
    %v5570 = vld [vmem:[%s2382 + $0x34] sm:$0xff]
    %v5571 = vld [vmem:[%s2382 + $0x44] sm:$0xff]
    %v5572 = vld [vmem:[%s2382 + $0x54] sm:$0xff]
    %v5573 = vld [vmem:[%s2382 + $0x64] sm:$0xff]
    %v5574 = vld [vmem:[%s2382 + $0x74] sm:$0xff]
    %v5575 = vld [vmem:[%s2382 + $0xc4] sm:$0xff]
    %v5576 = vld [vmem:[%s2382 + $0xd4] sm:$0xff]
    %v5577 = vld [vmem:[%s2382 + $0xe4] sm:$0xff]
    %v5578 = vld [vmem:[%s2382 + $0xf4] sm:$0xff]
    %v5579 = vld [vmem:[%s2382 + $0x104] sm:$0xff]
    %v5580 = vld [vmem:[%s2382 + $0x114] sm:$0xff]
    %v5581 = vld [vmem:[%s2382 + $0x124] sm:$0xff]
    %v5582 = vld [vmem:[%s2382 + $0x134] sm:$0xff]
    %v5583 = vpack.c.bf16 %v5568, %v5567
    %v5584 = vpack.c.bf16 %v5570, %v5569
    %v5585 = vpack.c.bf16 %v5572, %v5571
    %v5586 = vpack.c.bf16 %v5574, %v5573
    %v5587 = vpack.c.bf16 %v5576, %v5575
    %v5588 = vpack.c.bf16 %v5578, %v5577
    %v5589 = vpack.c.bf16 %v5580, %v5579
    %v5590 = vpack.c.bf16 %v5582, %v5581
    %s5591 = scalar_lea.vmem %s3, 76
    %v5592 = vld [vmem:[%s5591] sm:$0x7]
    %v5594 = vsel %vm2371, %v5583, 0
    %v5597 = vsel %vm2371, %v5584, 0
    %v5600 = vsel %vm2371, %v5585, 0
    %v5603 = vsel %vm2371, %v5586, 0
    %v5606 = vsel %vm2371, %v5587, 0
    %v5609 = vsel %vm2371, %v5588, 0
    %v5612 = vsel %vm2371, %v5589, 0
    %v5615 = vsel %vm2371, %v5590, 0
    %v5618 = vsel %vm2520, %v5592, 0
    %5620 = vmatprep.subr.bf16.mxu0 0
    %5621 = vmatpush1.bf16.msra.mxu0 %v5618
    %5622 = vmatprep.subr.bf16.mxu0 0
    %5623 = vmatpush1.bf16.msra.mxu0 0
    %5624 = vmatprep.subr.bf16.mxu0 0
    %5625 = vmatpush1.bf16.msra.mxu0 0
    %5626 = vmatprep.subr.bf16.mxu0 0
    %5627 = vmatpush1.bf16.msra.mxu0 0
    %5628 = vmatprep.subr.bf16.mxu0 0
    %5629 = vmatpush1.bf16.msra.mxu0 0
    %5630 = vmatprep.subr.bf16.mxu0 0
    %5631 = vmatpush1.bf16.msra.mxu0 0
    %5632 = vmatprep.subr.bf16.mxu0 0
    %5633 = vmatpush1.bf16.msra.mxu0 0
    %5634 = vmatprep.subr.bf16.mxu0 0
    %5635 = vmatpush1.bf16.msra.mxu0 0
    %5636 = vmatprep.subr.bf16.mxu0 0
    %5637 = vmatpush1.bf16.msra.mxu0 0
    %5638 = vmatprep.subr.bf16.mxu0 0
    %5639 = vmatpush1.bf16.msra.mxu0 0
    %5640 = vmatprep.subr.bf16.mxu0 0
    %5641 = vmatpush1.bf16.msra.mxu0 0
    %5642 = vmatprep.subr.bf16.mxu0 0
    %5643 = vmatpush1.bf16.msra.mxu0 0
    %5644 = vmatprep.subr.bf16.mxu0 0
    %5645 = vmatpush1.bf16.msra.mxu0 0
    %5646 = vmatprep.subr.bf16.mxu0 0
    %5647 = vmatpush1.bf16.msra.mxu0 0
    %5648 = vmatprep.subr.bf16.mxu0 0
    %5649 = vmatpush1.bf16.msra.mxu0 0
    %5650 = vmatprep.subr.bf16.mxu0 0
    %5651 = vmatpush1.bf16.msra.mxu0 0
    %5652 = vmatprep.mubr.bf16.mxu0 0
    %5653 = vmatmul.mubr.bf16.gmra.mrb[0].mxu0 %v5594
    %v5654 = vpop.f32.mrb[0].mxu0
    %v5655 = vadd.f32 0.0, %v5654
    %v5656 = vpop.f32.mrb[0].mxu0
    %v5657 = vpop.f32.mrb[0].mxu0
    %v5658 = vadd.f32 0.0, %v5657
    %v5659 = vpop.f32.mrb[0].mxu0
    %5660 = vmatprep.mubr.bf16.mxu0 0
    %5661 = vmatmul.mubr.bf16.gmra.mrb[0].mxu0 %v5597
    %v5662 = vpop.f32.mrb[0].mxu0
    %v5663 = vadd.f32 0.0, %v5662
    %v5664 = vpop.f32.mrb[0].mxu0
    %v5665 = vpop.f32.mrb[0].mxu0
    %v5666 = vadd.f32 0.0, %v5665
    %v5667 = vpop.f32.mrb[0].mxu0
    %5668 = vmatprep.mubr.bf16.mxu0 0
    %5669 = vmatmul.mubr.bf16.gmra.mrb[0].mxu0 %v5600
    %v5670 = vpop.f32.mrb[0].mxu0
    %v5671 = vadd.f32 0.0, %v5670
    %v5672 = vpop.f32.mrb[0].mxu0
    %v5673 = vpop.f32.mrb[0].mxu0
    %v5674 = vadd.f32 0.0, %v5673
    %v5675 = vpop.f32.mrb[0].mxu0
    %5676 = vmatprep.mubr.bf16.mxu0 0
    %5677 = vmatmul.mubr.bf16.gmra.mrb[0].mxu0 %v5603
    %v5678 = vpop.f32.mrb[0].mxu0
    %v5679 = vadd.f32 0.0, %v5678
    %v5680 = vpop.f32.mrb[0].mxu0
    %v5681 = vpop.f32.mrb[0].mxu0
    %v5682 = vadd.f32 0.0, %v5681
    %v5683 = vpop.f32.mrb[0].mxu0
    %5684 = vmatprep.mubr.bf16.mxu0 0
    %5685 = vmatmul.mubr.bf16.gmra.mrb[0].mxu0 %v5606
    %v5686 = vpop.f32.mrb[0].mxu0
    %v5687 = vadd.f32 0.0, %v5686
    %v5688 = vpop.f32.mrb[0].mxu0
    %v5689 = vpop.f32.mrb[0].mxu0
    %v5690 = vadd.f32 0.0, %v5689
    %v5691 = vpop.f32.mrb[0].mxu0
    %5692 = vmatprep.mubr.bf16.mxu0 0
    %5693 = vmatmul.mubr.bf16.gmra.mrb[0].mxu0 %v5609
    %v5694 = vpop.f32.mrb[0].mxu0
    %v5695 = vadd.f32 0.0, %v5694
    %v5696 = vpop.f32.mrb[0].mxu0
    %v5697 = vpop.f32.mrb[0].mxu0
    %v5698 = vadd.f32 0.0, %v5697
    %v5699 = vpop.f32.mrb[0].mxu0
    %5700 = vmatprep.mubr.bf16.mxu0 0
    %5701 = vmatmul.mubr.bf16.gmra.mrb[0].mxu0 %v5612
    %v5702 = vpop.f32.mrb[0].mxu0
    %v5703 = vadd.f32 0.0, %v5702
    %v5704 = vpop.f32.mrb[0].mxu0
    %v5705 = vpop.f32.mrb[0].mxu0
    %v5706 = vadd.f32 0.0, %v5705
    %v5707 = vpop.f32.mrb[0].mxu0
    %5708 = vmatprep.mubr.bf16.mxu0 0
    %5709 = vmatmul.mubr.bf16.gmra.mrb[0].mxu0 %v5615
    %v5710 = vpop.f32.mrb[0].mxu0
    %v5711 = vadd.f32 0.0, %v5710
    %v5712 = vpop.f32.mrb[0].mxu0
    %v5713 = vpop.f32.mrb[0].mxu0
    %v5714 = vadd.f32 0.0, %v5713
    %v5715 = vpop.f32.mrb[0].mxu0
    %5716 = vdwg.mxu0
    %v5717 = vadd.f32 %v5551, %v5655
    %v5718 = vadd.f32 %v5552, %v5658
    %v5719 = vadd.f32 %v5553, %v5663
    %v5720 = vadd.f32 %v5554, %v5666
    %v5721 = vadd.f32 %v5555, %v5671
    %v5722 = vadd.f32 %v5556, %v5674
    %v5723 = vadd.f32 %v5557, %v5679
    %v5724 = vadd.f32 %v5558, %v5682
    %v5725 = vadd.f32 %v5559, %v5687
    %v5726 = vadd.f32 %v5560, %v5690
    %v5727 = vadd.f32 %v5561, %v5695
    %v5728 = vadd.f32 %v5562, %v5698
    %v5729 = vadd.f32 %v5563, %v5703
    %v5730 = vadd.f32 %v5564, %v5706
    %v5731 = vadd.f32 %v5565, %v5711
    %v5732 = vadd.f32 %v5566, %v5714
    %v5733 = vld [vmem:[%s2385] sm:$0xff]
    %v5734 = vld [vmem:[%s2385 + $0x10] sm:$0xff]
    %v5735 = vld [vmem:[%s2385 + $0x20] sm:$0xff]
    %v5736 = vld [vmem:[%s2385 + $0x30] sm:$0xff]
    %v5737 = vld [vmem:[%s2385 + $0x40] sm:$0xff]
    %v5738 = vld [vmem:[%s2385 + $0x50] sm:$0xff]
    %v5739 = vld [vmem:[%s2385 + $0x60] sm:$0xff]
    %v5740 = vld [vmem:[%s2385 + $0x70] sm:$0xff]
    %v5741 = vld [vmem:[%s2385 + $0xc0] sm:$0xff]
    %v5742 = vld [vmem:[%s2385 + $0xd0] sm:$0xff]
    %v5743 = vld [vmem:[%s2385 + $0xe0] sm:$0xff]
    %v5744 = vld [vmem:[%s2385 + $0xf0] sm:$0xff]
    %v5745 = vld [vmem:[%s2385 + $0x100] sm:$0xff]
    %v5746 = vld [vmem:[%s2385 + $0x110] sm:$0xff]
    %v5747 = vld [vmem:[%s2385 + $0x120] sm:$0xff]
    %v5748 = vld [vmem:[%s2385 + $0x130] sm:$0xff]
    %v5749 = vpack.c.bf16 %v5734, %v5733
    %v5750 = vpack.c.bf16 %v5736, %v5735
    %v5751 = vpack.c.bf16 %v5738, %v5737
    %v5752 = vpack.c.bf16 %v5740, %v5739
    %v5753 = vpack.c.bf16 %v5742, %v5741
    %v5754 = vpack.c.bf16 %v5744, %v5743
    %v5755 = vpack.c.bf16 %v5746, %v5745
    %v5756 = vpack.c.bf16 %v5748, %v5747
    %s5757 = scalar_lea.vmem %s3, 80
    %v5758 = vld [vmem:[%s5757] sm:$0x7]
    %v5760 = vsel %vm2371, %v5749, 0
    %v5763 = vsel %vm2371, %v5750, 0
    %v5766 = vsel %vm2371, %v5751, 0
    %v5769 = vsel %vm2371, %v5752, 0
    %v5772 = vsel %vm2371, %v5753, 0
    %v5775 = vsel %vm2371, %v5754, 0
    %v5778 = vsel %vm2371, %v5755, 0
    %v5781 = vsel %vm2371, %v5756, 0
    %v5784 = vsel %vm2520, %v5758, 0
    %5786 = vmatprep.subr.bf16.mxu0 0
    %5787 = vmatpush1.bf16.msra.mxu0 %v5784
    %5788 = vmatprep.subr.bf16.mxu0 0
    %5789 = vmatpush1.bf16.msra.mxu0 0
    %5790 = vmatprep.subr.bf16.mxu0 0
    %5791 = vmatpush1.bf16.msra.mxu0 0
    %5792 = vmatprep.subr.bf16.mxu0 0
    %5793 = vmatpush1.bf16.msra.mxu0 0
    %5794 = vmatprep.subr.bf16.mxu0 0
    %5795 = vmatpush1.bf16.msra.mxu0 0
    %5796 = vmatprep.subr.bf16.mxu0 0
    %5797 = vmatpush1.bf16.msra.mxu0 0
    %5798 = vmatprep.subr.bf16.mxu0 0
    %5799 = vmatpush1.bf16.msra.mxu0 0
    %5800 = vmatprep.subr.bf16.mxu0 0
    %5801 = vmatpush1.bf16.msra.mxu0 0
    %5802 = vmatprep.subr.bf16.mxu0 0
    %5803 = vmatpush1.bf16.msra.mxu0 0
    %5804 = vmatprep.subr.bf16.mxu0 0
    %5805 = vmatpush1.bf16.msra.mxu0 0
    %5806 = vmatprep.subr.bf16.mxu0 0
    %5807 = vmatpush1.bf16.msra.mxu0 0
    %5808 = vmatprep.subr.bf16.mxu0 0
    %5809 = vmatpush1.bf16.msra.mxu0 0
    %5810 = vmatprep.subr.bf16.mxu0 0
    %5811 = vmatpush1.bf16.msra.mxu0 0
    %5812 = vmatprep.subr.bf16.mxu0 0
    %5813 = vmatpush1.bf16.msra.mxu0 0
    %5814 = vmatprep.subr.bf16.mxu0 0
    %5815 = vmatpush1.bf16.msra.mxu0 0
    %5816 = vmatprep.subr.bf16.mxu0 0
    %5817 = vmatpush1.bf16.msra.mxu0 0
    %5818 = vmatprep.mubr.bf16.mxu0 0
    %5819 = vmatmul.mubr.bf16.gmra.mrb[0].mxu0 %v5760
    %v5820 = vpop.f32.mrb[0].mxu0
    %v5821 = vadd.f32 0.0, %v5820
    %v5822 = vpop.f32.mrb[0].mxu0
    %v5823 = vpop.f32.mrb[0].mxu0
    %v5824 = vadd.f32 0.0, %v5823
    %v5825 = vpop.f32.mrb[0].mxu0
    %5826 = vmatprep.mubr.bf16.mxu0 0
    %5827 = vmatmul.mubr.bf16.gmra.mrb[0].mxu0 %v5763
    %v5828 = vpop.f32.mrb[0].mxu0
    %v5829 = vadd.f32 0.0, %v5828
    %v5830 = vpop.f32.mrb[0].mxu0
    %v5831 = vpop.f32.mrb[0].mxu0
    %v5832 = vadd.f32 0.0, %v5831
    %v5833 = vpop.f32.mrb[0].mxu0
    %5834 = vmatprep.mubr.bf16.mxu0 0
    %5835 = vmatmul.mubr.bf16.gmra.mrb[0].mxu0 %v5766
    %v5836 = vpop.f32.mrb[0].mxu0
    %v5837 = vadd.f32 0.0, %v5836
    %v5838 = vpop.f32.mrb[0].mxu0
    %v5839 = vpop.f32.mrb[0].mxu0
    %v5840 = vadd.f32 0.0, %v5839
    %v5841 = vpop.f32.mrb[0].mxu0
    %5842 = vmatprep.mubr.bf16.mxu0 0
    %5843 = vmatmul.mubr.bf16.gmra.mrb[0].mxu0 %v5769
    %v5844 = vpop.f32.mrb[0].mxu0
    %v5845 = vadd.f32 0.0, %v5844
    %v5846 = vpop.f32.mrb[0].mxu0
    %v5847 = vpop.f32.mrb[0].mxu0
    %v5848 = vadd.f32 0.0, %v5847
    %v5849 = vpop.f32.mrb[0].mxu0
    %5850 = vmatprep.mubr.bf16.mxu0 0
    %5851 = vmatmul.mubr.bf16.gmra.mrb[0].mxu0 %v5772
    %v5852 = vpop.f32.mrb[0].mxu0
    %v5853 = vadd.f32 0.0, %v5852
    %v5854 = vpop.f32.mrb[0].mxu0
    %v5855 = vpop.f32.mrb[0].mxu0
    %v5856 = vadd.f32 0.0, %v5855
    %v5857 = vpop.f32.mrb[0].mxu0
    %5858 = vmatprep.mubr.bf16.mxu0 0
    %5859 = vmatmul.mubr.bf16.gmra.mrb[0].mxu0 %v5775
    %v5860 = vpop.f32.mrb[0].mxu0
    %v5861 = vadd.f32 0.0, %v5860
    %v5862 = vpop.f32.mrb[0].mxu0
    %v5863 = vpop.f32.mrb[0].mxu0
    %v5864 = vadd.f32 0.0, %v5863
    %v5865 = vpop.f32.mrb[0].mxu0
    %5866 = vmatprep.mubr.bf16.mxu0 0
    %5867 = vmatmul.mubr.bf16.gmra.mrb[0].mxu0 %v5778
    %v5868 = vpop.f32.mrb[0].mxu0
    %v5869 = vadd.f32 0.0, %v5868
    %v5870 = vpop.f32.mrb[0].mxu0
    %v5871 = vpop.f32.mrb[0].mxu0
    %v5872 = vadd.f32 0.0, %v5871
    %v5873 = vpop.f32.mrb[0].mxu0
    %5874 = vmatprep.mubr.bf16.mxu0 0
    %5875 = vmatmul.mubr.bf16.gmra.mrb[0].mxu0 %v5781
    %v5876 = vpop.f32.mrb[0].mxu0
    %v5877 = vadd.f32 0.0, %v5876
    %v5878 = vpop.f32.mrb[0].mxu0
    %v5879 = vpop.f32.mrb[0].mxu0
    %v5880 = vadd.f32 0.0, %v5879
    %v5881 = vpop.f32.mrb[0].mxu0
    %5882 = vdwg.mxu0
    %v5883 = vadd.f32 %v5717, %v5821
    %v5884 = vadd.f32 %v5718, %v5824
    %v5885 = vadd.f32 %v5719, %v5829
    %v5886 = vadd.f32 %v5720, %v5832
    %v5887 = vadd.f32 %v5721, %v5837
    %v5888 = vadd.f32 %v5722, %v5840
    %v5889 = vadd.f32 %v5723, %v5845
    %v5890 = vadd.f32 %v5724, %v5848
    %v5891 = vadd.f32 %v5725, %v5853
    %v5892 = vadd.f32 %v5726, %v5856
    %v5893 = vadd.f32 %v5727, %v5861
    %v5894 = vadd.f32 %v5728, %v5864
    %v5895 = vadd.f32 %v5729, %v5869
    %v5896 = vadd.f32 %v5730, %v5872
    %v5897 = vadd.f32 %v5731, %v5877
    %v5898 = vadd.f32 %v5732, %v5880
    %v5899 = vld [vmem:[%s2385 + $0x1] sm:$0xff]
    %v5900 = vld [vmem:[%s2385 + $0x11] sm:$0xff]
    %v5901 = vld [vmem:[%s2385 + $0x21] sm:$0xff]
    %v5902 = vld [vmem:[%s2385 + $0x31] sm:$0xff]
    %v5903 = vld [vmem:[%s2385 + $0x41] sm:$0xff]
    %v5904 = vld [vmem:[%s2385 + $0x51] sm:$0xff]
    %v5905 = vld [vmem:[%s2385 + $0x61] sm:$0xff]
    %v5906 = vld [vmem:[%s2385 + $0x71] sm:$0xff]
    %v5907 = vld [vmem:[%s2385 + $0xc1] sm:$0xff]
    %v5908 = vld [vmem:[%s2385 + $0xd1] sm:$0xff]
    %v5909 = vld [vmem:[%s2385 + $0xe1] sm:$0xff]
    %v5910 = vld [vmem:[%s2385 + $0xf1] sm:$0xff]
    %v5911 = vld [vmem:[%s2385 + $0x101] sm:$0xff]
    %v5912 = vld [vmem:[%s2385 + $0x111] sm:$0xff]
    %v5913 = vld [vmem:[%s2385 + $0x121] sm:$0xff]
    %v5914 = vld [vmem:[%s2385 + $0x131] sm:$0xff]
    %v5915 = vpack.c.bf16 %v5900, %v5899
    %v5916 = vpack.c.bf16 %v5902, %v5901
    %v5917 = vpack.c.bf16 %v5904, %v5903
    %v5918 = vpack.c.bf16 %v5906, %v5905
    %v5919 = vpack.c.bf16 %v5908, %v5907
    %v5920 = vpack.c.bf16 %v5910, %v5909
    %v5921 = vpack.c.bf16 %v5912, %v5911
    %v5922 = vpack.c.bf16 %v5914, %v5913
    %s5923 = scalar_lea.vmem %s3, 84
    %v5924 = vld [vmem:[%s5923] sm:$0x7]
    %v5926 = vsel %vm2371, %v5915, 0
    %v5929 = vsel %vm2371, %v5916, 0
    %v5932 = vsel %vm2371, %v5917, 0
    %v5935 = vsel %vm2371, %v5918, 0
    %v5938 = vsel %vm2371, %v5919, 0
    %v5941 = vsel %vm2371, %v5920, 0
    %v5944 = vsel %vm2371, %v5921, 0
    %v5947 = vsel %vm2371, %v5922, 0
    %v5950 = vsel %vm2520, %v5924, 0
    %5952 = vmatprep.subr.bf16.mxu0 0
    %5953 = vmatpush1.bf16.msra.mxu0 %v5950
    %5954 = vmatprep.subr.bf16.mxu0 0
    %5955 = vmatpush1.bf16.msra.mxu0 0
    %5956 = vmatprep.subr.bf16.mxu0 0
    %5957 = vmatpush1.bf16.msra.mxu0 0
    %5958 = vmatprep.subr.bf16.mxu0 0
    %5959 = vmatpush1.bf16.msra.mxu0 0
    %5960 = vmatprep.subr.bf16.mxu0 0
    %5961 = vmatpush1.bf16.msra.mxu0 0
    %5962 = vmatprep.subr.bf16.mxu0 0
    %5963 = vmatpush1.bf16.msra.mxu0 0
    %5964 = vmatprep.subr.bf16.mxu0 0
    %5965 = vmatpush1.bf16.msra.mxu0 0
    %5966 = vmatprep.subr.bf16.mxu0 0
    %5967 = vmatpush1.bf16.msra.mxu0 0
    %5968 = vmatprep.subr.bf16.mxu0 0
    %5969 = vmatpush1.bf16.msra.mxu0 0
    %5970 = vmatprep.subr.bf16.mxu0 0
    %5971 = vmatpush1.bf16.msra.mxu0 0
    %5972 = vmatprep.subr.bf16.mxu0 0
    %5973 = vmatpush1.bf16.msra.mxu0 0
    %5974 = vmatprep.subr.bf16.mxu0 0
    %5975 = vmatpush1.bf16.msra.mxu0 0
    %5976 = vmatprep.subr.bf16.mxu0 0
    %5977 = vmatpush1.bf16.msra.mxu0 0
    %5978 = vmatprep.subr.bf16.mxu0 0
    %5979 = vmatpush1.bf16.msra.mxu0 0
    %5980 = vmatprep.subr.bf16.mxu0 0
    %5981 = vmatpush1.bf16.msra.mxu0 0
    %5982 = vmatprep.subr.bf16.mxu0 0
    %5983 = vmatpush1.bf16.msra.mxu0 0
    %5984 = vmatprep.mubr.bf16.mxu0 0
    %5985 = vmatmul.mubr.bf16.gmra.mrb[0].mxu0 %v5926
    %v5986 = vpop.f32.mrb[0].mxu0
    %v5987 = vadd.f32 0.0, %v5986
    %v5988 = vpop.f32.mrb[0].mxu0
    %v5989 = vpop.f32.mrb[0].mxu0
    %v5990 = vadd.f32 0.0, %v5989
    %v5991 = vpop.f32.mrb[0].mxu0
    %5992 = vmatprep.mubr.bf16.mxu0 0
    %5993 = vmatmul.mubr.bf16.gmra.mrb[0].mxu0 %v5929
    %v5994 = vpop.f32.mrb[0].mxu0
    %v5995 = vadd.f32 0.0, %v5994
    %v5996 = vpop.f32.mrb[0].mxu0
    %v5997 = vpop.f32.mrb[0].mxu0
    %v5998 = vadd.f32 0.0, %v5997
    %v5999 = vpop.f32.mrb[0].mxu0
    %6000 = vmatprep.mubr.bf16.mxu0 0
    %6001 = vmatmul.mubr.bf16.gmra.mrb[0].mxu0 %v5932
    %v6002 = vpop.f32.mrb[0].mxu0
    %v6003 = vadd.f32 0.0, %v6002
    %v6004 = vpop.f32.mrb[0].mxu0
    %v6005 = vpop.f32.mrb[0].mxu0
    %v6006 = vadd.f32 0.0, %v6005
    %v6007 = vpop.f32.mrb[0].mxu0
    %6008 = vmatprep.mubr.bf16.mxu0 0
    %6009 = vmatmul.mubr.bf16.gmra.mrb[0].mxu0 %v5935
    %v6010 = vpop.f32.mrb[0].mxu0
    %v6011 = vadd.f32 0.0, %v6010
    %v6012 = vpop.f32.mrb[0].mxu0
    %v6013 = vpop.f32.mrb[0].mxu0
    %v6014 = vadd.f32 0.0, %v6013
    %v6015 = vpop.f32.mrb[0].mxu0
    %6016 = vmatprep.mubr.bf16.mxu0 0
    %6017 = vmatmul.mubr.bf16.gmra.mrb[0].mxu0 %v5938
    %v6018 = vpop.f32.mrb[0].mxu0
    %v6019 = vadd.f32 0.0, %v6018
    %v6020 = vpop.f32.mrb[0].mxu0
    %v6021 = vpop.f32.mrb[0].mxu0
    %v6022 = vadd.f32 0.0, %v6021
    %v6023 = vpop.f32.mrb[0].mxu0
    %6024 = vmatprep.mubr.bf16.mxu0 0
    %6025 = vmatmul.mubr.bf16.gmra.mrb[0].mxu0 %v5941
    %v6026 = vpop.f32.mrb[0].mxu0
    %v6027 = vadd.f32 0.0, %v6026
    %v6028 = vpop.f32.mrb[0].mxu0
    %v6029 = vpop.f32.mrb[0].mxu0
    %v6030 = vadd.f32 0.0, %v6029
    %v6031 = vpop.f32.mrb[0].mxu0
    %6032 = vmatprep.mubr.bf16.mxu0 0
    %6033 = vmatmul.mubr.bf16.gmra.mrb[0].mxu0 %v5944
    %v6034 = vpop.f32.mrb[0].mxu0
    %v6035 = vadd.f32 0.0, %v6034
    %v6036 = vpop.f32.mrb[0].mxu0
    %v6037 = vpop.f32.mrb[0].mxu0
    %v6038 = vadd.f32 0.0, %v6037
    %v6039 = vpop.f32.mrb[0].mxu0
    %6040 = vmatprep.mubr.bf16.mxu0 0
    %6041 = vmatmul.mubr.bf16.gmra.mrb[0].mxu0 %v5947
    %v6042 = vpop.f32.mrb[0].mxu0
    %v6043 = vadd.f32 0.0, %v6042
    %v6044 = vpop.f32.mrb[0].mxu0
    %v6045 = vpop.f32.mrb[0].mxu0
    %v6046 = vadd.f32 0.0, %v6045
    %v6047 = vpop.f32.mrb[0].mxu0
    %6048 = vdwg.mxu0
    %v6049 = vadd.f32 %v5883, %v5987
    %v6050 = vadd.f32 %v5884, %v5990
    %v6051 = vadd.f32 %v5885, %v5995
    %v6052 = vadd.f32 %v5886, %v5998
    %v6053 = vadd.f32 %v5887, %v6003
    %v6054 = vadd.f32 %v5888, %v6006
    %v6055 = vadd.f32 %v5889, %v6011
    %v6056 = vadd.f32 %v5890, %v6014
    %v6057 = vadd.f32 %v5891, %v6019
    %v6058 = vadd.f32 %v5892, %v6022
    %v6059 = vadd.f32 %v5893, %v6027
    %v6060 = vadd.f32 %v5894, %v6030
    %v6061 = vadd.f32 %v5895, %v6035
    %v6062 = vadd.f32 %v5896, %v6038
    %v6063 = vadd.f32 %v5897, %v6043
    %v6064 = vadd.f32 %v5898, %v6046
    %v6065 = vld [vmem:[%s2385 + $0x2] sm:$0xff]
    %v6066 = vld [vmem:[%s2385 + $0x12] sm:$0xff]
    %v6067 = vld [vmem:[%s2385 + $0x22] sm:$0xff]
    %v6068 = vld [vmem:[%s2385 + $0x32] sm:$0xff]
    %v6069 = vld [vmem:[%s2385 + $0x42] sm:$0xff]
    %v6070 = vld [vmem:[%s2385 + $0x52] sm:$0xff]
    %v6071 = vld [vmem:[%s2385 + $0x62] sm:$0xff]
    %v6072 = vld [vmem:[%s2385 + $0x72] sm:$0xff]
    %v6073 = vld [vmem:[%s2385 + $0xc2] sm:$0xff]
    %v6074 = vld [vmem:[%s2385 + $0xd2] sm:$0xff]
    %v6075 = vld [vmem:[%s2385 + $0xe2] sm:$0xff]
    %v6076 = vld [vmem:[%s2385 + $0xf2] sm:$0xff]
    %v6077 = vld [vmem:[%s2385 + $0x102] sm:$0xff]
    %v6078 = vld [vmem:[%s2385 + $0x112] sm:$0xff]
    %v6079 = vld [vmem:[%s2385 + $0x122] sm:$0xff]
    %v6080 = vld [vmem:[%s2385 + $0x132] sm:$0xff]
    %v6081 = vpack.c.bf16 %v6066, %v6065
    %v6082 = vpack.c.bf16 %v6068, %v6067
    %v6083 = vpack.c.bf16 %v6070, %v6069
    %v6084 = vpack.c.bf16 %v6072, %v6071
    %v6085 = vpack.c.bf16 %v6074, %v6073
    %v6086 = vpack.c.bf16 %v6076, %v6075
    %v6087 = vpack.c.bf16 %v6078, %v6077
    %v6088 = vpack.c.bf16 %v6080, %v6079
    %s6089 = scalar_lea.vmem %s3, 88
    %v6090 = vld [vmem:[%s6089] sm:$0x7]
    %v6092 = vsel %vm2371, %v6081, 0
    %v6095 = vsel %vm2371, %v6082, 0
    %v6098 = vsel %vm2371, %v6083, 0
    %v6101 = vsel %vm2371, %v6084, 0
    %v6104 = vsel %vm2371, %v6085, 0
    %v6107 = vsel %vm2371, %v6086, 0
    %v6110 = vsel %vm2371, %v6087, 0
    %v6113 = vsel %vm2371, %v6088, 0
    %v6116 = vsel %vm2520, %v6090, 0
    %6118 = vmatprep.subr.bf16.mxu0 0
    %6119 = vmatpush1.bf16.msra.mxu0 %v6116
    %6120 = vmatprep.subr.bf16.mxu0 0
    %6121 = vmatpush1.bf16.msra.mxu0 0
    %6122 = vmatprep.subr.bf16.mxu0 0
    %6123 = vmatpush1.bf16.msra.mxu0 0
    %6124 = vmatprep.subr.bf16.mxu0 0
    %6125 = vmatpush1.bf16.msra.mxu0 0
    %6126 = vmatprep.subr.bf16.mxu0 0
    %6127 = vmatpush1.bf16.msra.mxu0 0
    %6128 = vmatprep.subr.bf16.mxu0 0
    %6129 = vmatpush1.bf16.msra.mxu0 0
    %6130 = vmatprep.subr.bf16.mxu0 0
    %6131 = vmatpush1.bf16.msra.mxu0 0
    %6132 = vmatprep.subr.bf16.mxu0 0
    %6133 = vmatpush1.bf16.msra.mxu0 0
    %6134 = vmatprep.subr.bf16.mxu0 0
    %6135 = vmatpush1.bf16.msra.mxu0 0
    %6136 = vmatprep.subr.bf16.mxu0 0
    %6137 = vmatpush1.bf16.msra.mxu0 0
    %6138 = vmatprep.subr.bf16.mxu0 0
    %6139 = vmatpush1.bf16.msra.mxu0 0
    %6140 = vmatprep.subr.bf16.mxu0 0
    %6141 = vmatpush1.bf16.msra.mxu0 0
    %6142 = vmatprep.subr.bf16.mxu0 0
    %6143 = vmatpush1.bf16.msra.mxu0 0
    %6144 = vmatprep.subr.bf16.mxu0 0
    %6145 = vmatpush1.bf16.msra.mxu0 0
    %6146 = vmatprep.subr.bf16.mxu0 0
    %6147 = vmatpush1.bf16.msra.mxu0 0
    %6148 = vmatprep.subr.bf16.mxu0 0
    %6149 = vmatpush1.bf16.msra.mxu0 0
    %6150 = vmatprep.mubr.bf16.mxu0 0
    %6151 = vmatmul.mubr.bf16.gmra.mrb[0].mxu0 %v6092
    %v6152 = vpop.f32.mrb[0].mxu0
    %v6153 = vadd.f32 0.0, %v6152
    %v6154 = vpop.f32.mrb[0].mxu0
    %v6155 = vpop.f32.mrb[0].mxu0
    %v6156 = vadd.f32 0.0, %v6155
    %v6157 = vpop.f32.mrb[0].mxu0
    %6158 = vmatprep.mubr.bf16.mxu0 0
    %6159 = vmatmul.mubr.bf16.gmra.mrb[0].mxu0 %v6095
    %v6160 = vpop.f32.mrb[0].mxu0
    %v6161 = vadd.f32 0.0, %v6160
    %v6162 = vpop.f32.mrb[0].mxu0
    %v6163 = vpop.f32.mrb[0].mxu0
    %v6164 = vadd.f32 0.0, %v6163
    %v6165 = vpop.f32.mrb[0].mxu0
    %6166 = vmatprep.mubr.bf16.mxu0 0
    %6167 = vmatmul.mubr.bf16.gmra.mrb[0].mxu0 %v6098
    %v6168 = vpop.f32.mrb[0].mxu0
    %v6169 = vadd.f32 0.0, %v6168
    %v6170 = vpop.f32.mrb[0].mxu0
    %v6171 = vpop.f32.mrb[0].mxu0
    %v6172 = vadd.f32 0.0, %v6171
    %v6173 = vpop.f32.mrb[0].mxu0
    %6174 = vmatprep.mubr.bf16.mxu0 0
    %6175 = vmatmul.mubr.bf16.gmra.mrb[0].mxu0 %v6101
    %v6176 = vpop.f32.mrb[0].mxu0
    %v6177 = vadd.f32 0.0, %v6176
    %v6178 = vpop.f32.mrb[0].mxu0
    %v6179 = vpop.f32.mrb[0].mxu0
    %v6180 = vadd.f32 0.0, %v6179
    %v6181 = vpop.f32.mrb[0].mxu0
    %6182 = vmatprep.mubr.bf16.mxu0 0
    %6183 = vmatmul.mubr.bf16.gmra.mrb[0].mxu0 %v6104
    %v6184 = vpop.f32.mrb[0].mxu0
    %v6185 = vadd.f32 0.0, %v6184
    %v6186 = vpop.f32.mrb[0].mxu0
    %v6187 = vpop.f32.mrb[0].mxu0
    %v6188 = vadd.f32 0.0, %v6187
    %v6189 = vpop.f32.mrb[0].mxu0
    %6190 = vmatprep.mubr.bf16.mxu0 0
    %6191 = vmatmul.mubr.bf16.gmra.mrb[0].mxu0 %v6107
    %v6192 = vpop.f32.mrb[0].mxu0
    %v6193 = vadd.f32 0.0, %v6192
    %v6194 = vpop.f32.mrb[0].mxu0
    %v6195 = vpop.f32.mrb[0].mxu0
    %v6196 = vadd.f32 0.0, %v6195
    %v6197 = vpop.f32.mrb[0].mxu0
    %6198 = vmatprep.mubr.bf16.mxu0 0
    %6199 = vmatmul.mubr.bf16.gmra.mrb[0].mxu0 %v6110
    %v6200 = vpop.f32.mrb[0].mxu0
    %v6201 = vadd.f32 0.0, %v6200
    %v6202 = vpop.f32.mrb[0].mxu0
    %v6203 = vpop.f32.mrb[0].mxu0
    %v6204 = vadd.f32 0.0, %v6203
    %v6205 = vpop.f32.mrb[0].mxu0
    %6206 = vmatprep.mubr.bf16.mxu0 0
    %6207 = vmatmul.mubr.bf16.gmra.mrb[0].mxu0 %v6113
    %v6208 = vpop.f32.mrb[0].mxu0
    %v6209 = vadd.f32 0.0, %v6208
    %v6210 = vpop.f32.mrb[0].mxu0
    %v6211 = vpop.f32.mrb[0].mxu0
    %v6212 = vadd.f32 0.0, %v6211
    %v6213 = vpop.f32.mrb[0].mxu0
    %6214 = vdwg.mxu0
    %v6215 = vadd.f32 %v6049, %v6153
    %v6216 = vadd.f32 %v6050, %v6156
    %v6217 = vadd.f32 %v6051, %v6161
    %v6218 = vadd.f32 %v6052, %v6164
    %v6219 = vadd.f32 %v6053, %v6169
    %v6220 = vadd.f32 %v6054, %v6172
    %v6221 = vadd.f32 %v6055, %v6177
    %v6222 = vadd.f32 %v6056, %v6180
    %v6223 = vadd.f32 %v6057, %v6185
    %v6224 = vadd.f32 %v6058, %v6188
    %v6225 = vadd.f32 %v6059, %v6193
    %v6226 = vadd.f32 %v6060, %v6196
    %v6227 = vadd.f32 %v6061, %v6201
    %v6228 = vadd.f32 %v6062, %v6204
    %v6229 = vadd.f32 %v6063, %v6209
    %v6230 = vadd.f32 %v6064, %v6212
    %v6231 = vld [vmem:[%s2385 + $0x3] sm:$0xff]
    %v6232 = vld [vmem:[%s2385 + $0x13] sm:$0xff]
    %v6233 = vld [vmem:[%s2385 + $0x23] sm:$0xff]
    %v6234 = vld [vmem:[%s2385 + $0x33] sm:$0xff]
    %v6235 = vld [vmem:[%s2385 + $0x43] sm:$0xff]
    %v6236 = vld [vmem:[%s2385 + $0x53] sm:$0xff]
    %v6237 = vld [vmem:[%s2385 + $0x63] sm:$0xff]
    %v6238 = vld [vmem:[%s2385 + $0x73] sm:$0xff]
    %v6239 = vld [vmem:[%s2385 + $0xc3] sm:$0xff]
    %v6240 = vld [vmem:[%s2385 + $0xd3] sm:$0xff]
    %v6241 = vld [vmem:[%s2385 + $0xe3] sm:$0xff]
    %v6242 = vld [vmem:[%s2385 + $0xf3] sm:$0xff]
    %v6243 = vld [vmem:[%s2385 + $0x103] sm:$0xff]
    %v6244 = vld [vmem:[%s2385 + $0x113] sm:$0xff]
    %v6245 = vld [vmem:[%s2385 + $0x123] sm:$0xff]
    %v6246 = vld [vmem:[%s2385 + $0x133] sm:$0xff]
    %v6247 = vpack.c.bf16 %v6232, %v6231
    %v6248 = vpack.c.bf16 %v6234, %v6233
    %v6249 = vpack.c.bf16 %v6236, %v6235
    %v6250 = vpack.c.bf16 %v6238, %v6237
    %v6251 = vpack.c.bf16 %v6240, %v6239
    %v6252 = vpack.c.bf16 %v6242, %v6241
    %v6253 = vpack.c.bf16 %v6244, %v6243
    %v6254 = vpack.c.bf16 %v6246, %v6245
    %s6255 = scalar_lea.vmem %s3, 92
    %v6256 = vld [vmem:[%s6255] sm:$0x7]
    %v6258 = vsel %vm2371, %v6247, 0
    %v6261 = vsel %vm2371, %v6248, 0
    %v6264 = vsel %vm2371, %v6249, 0
    %v6267 = vsel %vm2371, %v6250, 0
    %v6270 = vsel %vm2371, %v6251, 0
    %v6273 = vsel %vm2371, %v6252, 0
    %v6276 = vsel %vm2371, %v6253, 0
    %v6279 = vsel %vm2371, %v6254, 0
    %v6282 = vsel %vm2520, %v6256, 0
    %6284 = vmatprep.subr.bf16.mxu0 0
    %6285 = vmatpush1.bf16.msra.mxu0 %v6282
    %6286 = vmatprep.subr.bf16.mxu0 0
    %6287 = vmatpush1.bf16.msra.mxu0 0
    %6288 = vmatprep.subr.bf16.mxu0 0
    %6289 = vmatpush1.bf16.msra.mxu0 0
    %6290 = vmatprep.subr.bf16.mxu0 0
    %6291 = vmatpush1.bf16.msra.mxu0 0
    %6292 = vmatprep.subr.bf16.mxu0 0
    %6293 = vmatpush1.bf16.msra.mxu0 0
    %6294 = vmatprep.subr.bf16.mxu0 0
    %6295 = vmatpush1.bf16.msra.mxu0 0
    %6296 = vmatprep.subr.bf16.mxu0 0
    %6297 = vmatpush1.bf16.msra.mxu0 0
    %6298 = vmatprep.subr.bf16.mxu0 0
    %6299 = vmatpush1.bf16.msra.mxu0 0
    %6300 = vmatprep.subr.bf16.mxu0 0
    %6301 = vmatpush1.bf16.msra.mxu0 0
    %6302 = vmatprep.subr.bf16.mxu0 0
    %6303 = vmatpush1.bf16.msra.mxu0 0
    %6304 = vmatprep.subr.bf16.mxu0 0
    %6305 = vmatpush1.bf16.msra.mxu0 0
    %6306 = vmatprep.subr.bf16.mxu0 0
    %6307 = vmatpush1.bf16.msra.mxu0 0
    %6308 = vmatprep.subr.bf16.mxu0 0
    %6309 = vmatpush1.bf16.msra.mxu0 0
    %6310 = vmatprep.subr.bf16.mxu0 0
    %6311 = vmatpush1.bf16.msra.mxu0 0
    %6312 = vmatprep.subr.bf16.mxu0 0
    %6313 = vmatpush1.bf16.msra.mxu0 0
    %6314 = vmatprep.subr.bf16.mxu0 0
    %6315 = vmatpush1.bf16.msra.mxu0 0
    %6316 = vmatprep.mubr.bf16.mxu0 0
    %6317 = vmatmul.mubr.bf16.gmra.mrb[0].mxu0 %v6258
    %v6318 = vpop.f32.mrb[0].mxu0
    %v6319 = vadd.f32 0.0, %v6318
    %v6320 = vpop.f32.mrb[0].mxu0
    %v6321 = vpop.f32.mrb[0].mxu0
    %v6322 = vadd.f32 0.0, %v6321
    %v6323 = vpop.f32.mrb[0].mxu0
    %6324 = vmatprep.mubr.bf16.mxu0 0
    %6325 = vmatmul.mubr.bf16.gmra.mrb[0].mxu0 %v6261
    %v6326 = vpop.f32.mrb[0].mxu0
    %v6327 = vadd.f32 0.0, %v6326
    %v6328 = vpop.f32.mrb[0].mxu0
    %v6329 = vpop.f32.mrb[0].mxu0
    %v6330 = vadd.f32 0.0, %v6329
    %v6331 = vpop.f32.mrb[0].mxu0
    %6332 = vmatprep.mubr.bf16.mxu0 0
    %6333 = vmatmul.mubr.bf16.gmra.mrb[0].mxu0 %v6264
    %v6334 = vpop.f32.mrb[0].mxu0
    %v6335 = vadd.f32 0.0, %v6334
    %v6336 = vpop.f32.mrb[0].mxu0
    %v6337 = vpop.f32.mrb[0].mxu0
    %v6338 = vadd.f32 0.0, %v6337
    %v6339 = vpop.f32.mrb[0].mxu0
    %6340 = vmatprep.mubr.bf16.mxu0 0
    %6341 = vmatmul.mubr.bf16.gmra.mrb[0].mxu0 %v6267
    %v6342 = vpop.f32.mrb[0].mxu0
    %v6343 = vadd.f32 0.0, %v6342
    %v6344 = vpop.f32.mrb[0].mxu0
    %v6345 = vpop.f32.mrb[0].mxu0
    %v6346 = vadd.f32 0.0, %v6345
    %v6347 = vpop.f32.mrb[0].mxu0
    %6348 = vmatprep.mubr.bf16.mxu0 0
    %6349 = vmatmul.mubr.bf16.gmra.mrb[0].mxu0 %v6270
    %v6350 = vpop.f32.mrb[0].mxu0
    %v6351 = vadd.f32 0.0, %v6350
    %v6352 = vpop.f32.mrb[0].mxu0
    %v6353 = vpop.f32.mrb[0].mxu0
    %v6354 = vadd.f32 0.0, %v6353
    %v6355 = vpop.f32.mrb[0].mxu0
    %6356 = vmatprep.mubr.bf16.mxu0 0
    %6357 = vmatmul.mubr.bf16.gmra.mrb[0].mxu0 %v6273
    %v6358 = vpop.f32.mrb[0].mxu0
    %v6359 = vadd.f32 0.0, %v6358
    %v6360 = vpop.f32.mrb[0].mxu0
    %v6361 = vpop.f32.mrb[0].mxu0
    %v6362 = vadd.f32 0.0, %v6361
    %v6363 = vpop.f32.mrb[0].mxu0
    %6364 = vmatprep.mubr.bf16.mxu0 0
    %6365 = vmatmul.mubr.bf16.gmra.mrb[0].mxu0 %v6276
    %v6366 = vpop.f32.mrb[0].mxu0
    %v6367 = vadd.f32 0.0, %v6366
    %v6368 = vpop.f32.mrb[0].mxu0
    %v6369 = vpop.f32.mrb[0].mxu0
    %v6370 = vadd.f32 0.0, %v6369
    %v6371 = vpop.f32.mrb[0].mxu0
    %6372 = vmatprep.mubr.bf16.mxu0 0
    %6373 = vmatmul.mubr.bf16.gmra.mrb[0].mxu0 %v6279
    %v6374 = vpop.f32.mrb[0].mxu0
    %v6375 = vadd.f32 0.0, %v6374
    %v6376 = vpop.f32.mrb[0].mxu0
    %v6377 = vpop.f32.mrb[0].mxu0
    %v6378 = vadd.f32 0.0, %v6377
    %v6379 = vpop.f32.mrb[0].mxu0
    %6380 = vdwg.mxu0
    %v6381 = vadd.f32 %v6215, %v6319
    %v6382 = vadd.f32 %v6216, %v6322
    %v6383 = vadd.f32 %v6217, %v6327
    %v6384 = vadd.f32 %v6218, %v6330
    %v6385 = vadd.f32 %v6219, %v6335
    %v6386 = vadd.f32 %v6220, %v6338
    %v6387 = vadd.f32 %v6221, %v6343
    %v6388 = vadd.f32 %v6222, %v6346
    %v6389 = vadd.f32 %v6223, %v6351
    %v6390 = vadd.f32 %v6224, %v6354
    %v6391 = vadd.f32 %v6225, %v6359
    %v6392 = vadd.f32 %v6226, %v6362
    %v6393 = vadd.f32 %v6227, %v6367
    %v6394 = vadd.f32 %v6228, %v6370
    %v6395 = vadd.f32 %v6229, %v6375
    %v6396 = vadd.f32 %v6230, %v6378
    %v6397 = vld [vmem:[%s2385 + $0x4] sm:$0xff]
    %v6398 = vld [vmem:[%s2385 + $0x14] sm:$0xff]
    %v6399 = vld [vmem:[%s2385 + $0x24] sm:$0xff]
    %v6400 = vld [vmem:[%s2385 + $0x34] sm:$0xff]
    %v6401 = vld [vmem:[%s2385 + $0x44] sm:$0xff]
    %v6402 = vld [vmem:[%s2385 + $0x54] sm:$0xff]
    %v6403 = vld [vmem:[%s2385 + $0x64] sm:$0xff]
    %v6404 = vld [vmem:[%s2385 + $0x74] sm:$0xff]
    %v6405 = vld [vmem:[%s2385 + $0xc4] sm:$0xff]
    %v6406 = vld [vmem:[%s2385 + $0xd4] sm:$0xff]
    %v6407 = vld [vmem:[%s2385 + $0xe4] sm:$0xff]
    %v6408 = vld [vmem:[%s2385 + $0xf4] sm:$0xff]
    %v6409 = vld [vmem:[%s2385 + $0x104] sm:$0xff]
    %v6410 = vld [vmem:[%s2385 + $0x114] sm:$0xff]
    %v6411 = vld [vmem:[%s2385 + $0x124] sm:$0xff]
    %v6412 = vld [vmem:[%s2385 + $0x134] sm:$0xff]
    %v6413 = vpack.c.bf16 %v6398, %v6397
    %v6414 = vpack.c.bf16 %v6400, %v6399
    %v6415 = vpack.c.bf16 %v6402, %v6401
    %v6416 = vpack.c.bf16 %v6404, %v6403
    %v6417 = vpack.c.bf16 %v6406, %v6405
    %v6418 = vpack.c.bf16 %v6408, %v6407
    %v6419 = vpack.c.bf16 %v6410, %v6409
    %v6420 = vpack.c.bf16 %v6412, %v6411
    %s6421 = scalar_lea.vmem %s3, 96
    %v6422 = vld [vmem:[%s6421] sm:$0x7]
    %v6424 = vsel %vm2371, %v6413, 0
    %v6427 = vsel %vm2371, %v6414, 0
    %v6430 = vsel %vm2371, %v6415, 0
    %v6433 = vsel %vm2371, %v6416, 0
    %v6436 = vsel %vm2371, %v6417, 0
    %v6439 = vsel %vm2371, %v6418, 0
    %v6442 = vsel %vm2371, %v6419, 0
    %v6445 = vsel %vm2371, %v6420, 0
    %v6448 = vsel %vm2520, %v6422, 0
    %6450 = vmatprep.subr.bf16.mxu0 0
    %6451 = vmatpush1.bf16.msra.mxu0 %v6448
    %6452 = vmatprep.subr.bf16.mxu0 0
    %6453 = vmatpush1.bf16.msra.mxu0 0
    %6454 = vmatprep.subr.bf16.mxu0 0
    %6455 = vmatpush1.bf16.msra.mxu0 0
    %6456 = vmatprep.subr.bf16.mxu0 0
    %6457 = vmatpush1.bf16.msra.mxu0 0
    %6458 = vmatprep.subr.bf16.mxu0 0
    %6459 = vmatpush1.bf16.msra.mxu0 0
    %6460 = vmatprep.subr.bf16.mxu0 0
    %6461 = vmatpush1.bf16.msra.mxu0 0
    %6462 = vmatprep.subr.bf16.mxu0 0
    %6463 = vmatpush1.bf16.msra.mxu0 0
    %6464 = vmatprep.subr.bf16.mxu0 0
    %6465 = vmatpush1.bf16.msra.mxu0 0
    %6466 = vmatprep.subr.bf16.mxu0 0
    %6467 = vmatpush1.bf16.msra.mxu0 0
    %6468 = vmatprep.subr.bf16.mxu0 0
    %6469 = vmatpush1.bf16.msra.mxu0 0
    %6470 = vmatprep.subr.bf16.mxu0 0
    %6471 = vmatpush1.bf16.msra.mxu0 0
    %6472 = vmatprep.subr.bf16.mxu0 0
    %6473 = vmatpush1.bf16.msra.mxu0 0
    %6474 = vmatprep.subr.bf16.mxu0 0
    %6475 = vmatpush1.bf16.msra.mxu0 0
    %6476 = vmatprep.subr.bf16.mxu0 0
    %6477 = vmatpush1.bf16.msra.mxu0 0
    %6478 = vmatprep.subr.bf16.mxu0 0
    %6479 = vmatpush1.bf16.msra.mxu0 0
    %6480 = vmatprep.subr.bf16.mxu0 0
    %6481 = vmatpush1.bf16.msra.mxu0 0
    %6482 = vmatprep.mubr.bf16.mxu0 0
    %6483 = vmatmul.mubr.bf16.gmra.mrb[0].mxu0 %v6424
    %v6484 = vpop.f32.mrb[0].mxu0
    %v6485 = vadd.f32 0.0, %v6484
    %v6486 = vpop.f32.mrb[0].mxu0
    %v6487 = vpop.f32.mrb[0].mxu0
    %v6488 = vadd.f32 0.0, %v6487
    %v6489 = vpop.f32.mrb[0].mxu0
    %6490 = vmatprep.mubr.bf16.mxu0 0
    %6491 = vmatmul.mubr.bf16.gmra.mrb[0].mxu0 %v6427
    %v6492 = vpop.f32.mrb[0].mxu0
    %v6493 = vadd.f32 0.0, %v6492
    %v6494 = vpop.f32.mrb[0].mxu0
    %v6495 = vpop.f32.mrb[0].mxu0
    %v6496 = vadd.f32 0.0, %v6495
    %v6497 = vpop.f32.mrb[0].mxu0
    %6498 = vmatprep.mubr.bf16.mxu0 0
    %6499 = vmatmul.mubr.bf16.gmra.mrb[0].mxu0 %v6430
    %v6500 = vpop.f32.mrb[0].mxu0
    %v6501 = vadd.f32 0.0, %v6500
    %v6502 = vpop.f32.mrb[0].mxu0
    %v6503 = vpop.f32.mrb[0].mxu0
    %v6504 = vadd.f32 0.0, %v6503
    %v6505 = vpop.f32.mrb[0].mxu0
    %6506 = vmatprep.mubr.bf16.mxu0 0
    %6507 = vmatmul.mubr.bf16.gmra.mrb[0].mxu0 %v6433
    %v6508 = vpop.f32.mrb[0].mxu0
    %v6509 = vadd.f32 0.0, %v6508
    %v6510 = vpop.f32.mrb[0].mxu0
    %v6511 = vpop.f32.mrb[0].mxu0
    %v6512 = vadd.f32 0.0, %v6511
    %v6513 = vpop.f32.mrb[0].mxu0
    %6514 = vmatprep.mubr.bf16.mxu0 0
    %6515 = vmatmul.mubr.bf16.gmra.mrb[0].mxu0 %v6436
    %v6516 = vpop.f32.mrb[0].mxu0
    %v6517 = vadd.f32 0.0, %v6516
    %v6518 = vpop.f32.mrb[0].mxu0
    %v6519 = vpop.f32.mrb[0].mxu0
    %v6520 = vadd.f32 0.0, %v6519
    %v6521 = vpop.f32.mrb[0].mxu0
    %6522 = vmatprep.mubr.bf16.mxu0 0
    %6523 = vmatmul.mubr.bf16.gmra.mrb[0].mxu0 %v6439
    %v6524 = vpop.f32.mrb[0].mxu0
    %v6525 = vadd.f32 0.0, %v6524
    %v6526 = vpop.f32.mrb[0].mxu0
    %v6527 = vpop.f32.mrb[0].mxu0
    %v6528 = vadd.f32 0.0, %v6527
    %v6529 = vpop.f32.mrb[0].mxu0
    %6530 = vmatprep.mubr.bf16.mxu0 0
    %6531 = vmatmul.mubr.bf16.gmra.mrb[0].mxu0 %v6442
    %v6532 = vpop.f32.mrb[0].mxu0
    %v6533 = vadd.f32 0.0, %v6532
    %v6534 = vpop.f32.mrb[0].mxu0
    %v6535 = vpop.f32.mrb[0].mxu0
    %v6536 = vadd.f32 0.0, %v6535
    %v6537 = vpop.f32.mrb[0].mxu0
    %6538 = vmatprep.mubr.bf16.mxu0 0
    %6539 = vmatmul.mubr.bf16.gmra.mrb[0].mxu0 %v6445
    %v6540 = vpop.f32.mrb[0].mxu0
    %v6541 = vadd.f32 0.0, %v6540
    %v6542 = vpop.f32.mrb[0].mxu0
    %v6543 = vpop.f32.mrb[0].mxu0
    %v6544 = vadd.f32 0.0, %v6543
    %v6545 = vpop.f32.mrb[0].mxu0
    %6546 = vdwg.mxu0
    %v6547 = vadd.f32 %v6381, %v6485
    %v6548 = vadd.f32 %v6382, %v6488
    %v6549 = vadd.f32 %v6383, %v6493
    %v6550 = vadd.f32 %v6384, %v6496
    %v6551 = vadd.f32 %v6385, %v6501
    %v6552 = vadd.f32 %v6386, %v6504
    %v6553 = vadd.f32 %v6387, %v6509
    %v6554 = vadd.f32 %v6388, %v6512
    %v6555 = vadd.f32 %v6389, %v6517
    %v6556 = vadd.f32 %v6390, %v6520
    %v6557 = vadd.f32 %v6391, %v6525
    %v6558 = vadd.f32 %v6392, %v6528
    %v6559 = vadd.f32 %v6393, %v6533
    %v6560 = vadd.f32 %v6394, %v6536
    %v6561 = vadd.f32 %v6395, %v6541
    %v6562 = vadd.f32 %v6396, %v6544
    %v6563 = vld [vmem:[%s4] sm:$0x1]
    %v6565 = vlaneseq
    %v6566 = vshrl.u32 %v6565, 7
    %v6567 = vsub.s32 0, %v6566
    %v6568 = vrot.slane %v6563, %v6567
    %v6570 = vadd.f32 %v6547, %v6568
    %v6571 = vadd.f32 %v6548, %v6568
    %v6572 = vadd.f32 %v6549, %v6568
    %v6573 = vadd.f32 %v6550, %v6568
    %v6574 = vadd.f32 %v6551, %v6568
    %v6575 = vadd.f32 %v6552, %v6568
    %v6576 = vadd.f32 %v6553, %v6568
    %v6577 = vadd.f32 %v6554, %v6568
    %v6578 = vadd.f32 %v6555, %v6568
    %v6579 = vadd.f32 %v6556, %v6568
    %v6580 = vadd.f32 %v6557, %v6568
    %v6581 = vadd.f32 %v6558, %v6568
    %v6582 = vadd.f32 %v6559, %v6568
    %v6583 = vadd.f32 %v6560, %v6568
    %v6584 = vadd.f32 %v6561, %v6568
    %v6585 = vadd.f32 %v6562, %v6568
    %v6586 = vxor.u32 %v6570, 2147483648
    %v6587 = vxor.u32 %v6571, 2147483648
    %v6588 = vxor.u32 %v6572, 2147483648
    %v6589 = vxor.u32 %v6573, 2147483648
    %v6590 = vxor.u32 %v6574, 2147483648
    %v6591 = vxor.u32 %v6575, 2147483648
    %v6592 = vxor.u32 %v6576, 2147483648
    %v6593 = vxor.u32 %v6577, 2147483648
    %v6594 = vxor.u32 %v6578, 2147483648
    %v6595 = vxor.u32 %v6579, 2147483648
    %v6596 = vxor.u32 %v6580, 2147483648
    %v6597 = vxor.u32 %v6581, 2147483648
    %v6598 = vxor.u32 %v6582, 2147483648
    %v6599 = vxor.u32 %v6583, 2147483648
    %v6600 = vxor.u32 %v6584, 2147483648
    %v6601 = vxor.u32 %v6585, 2147483648
    %v6602 = vmul.f32 %v6586, 1.442695
    %v6603 = vpow.pop %v6602
    %v6604 = vmul.f32 %v6587, 1.442695
    %v6605 = vpow.pop %v6604
    %v6606 = vmul.f32 %v6588, 1.442695
    %v6607 = vpow.pop %v6606
    %v6608 = vmul.f32 %v6589, 1.442695
    %v6609 = vpow.pop %v6608
    %v6610 = vmul.f32 %v6590, 1.442695
    %v6611 = vpow.pop %v6610
    %v6612 = vmul.f32 %v6591, 1.442695
    %v6613 = vpow.pop %v6612
    %v6614 = vmul.f32 %v6592, 1.442695
    %v6615 = vpow.pop %v6614
    %v6616 = vmul.f32 %v6593, 1.442695
    %v6617 = vpow.pop %v6616
    %v6618 = vmul.f32 %v6594, 1.442695
    %v6619 = vpow.pop %v6618
    %v6620 = vmul.f32 %v6595, 1.442695
    %v6621 = vpow.pop %v6620
    %v6622 = vmul.f32 %v6596, 1.442695
    %v6623 = vpow.pop %v6622
    %v6624 = vmul.f32 %v6597, 1.442695
    %v6625 = vpow.pop %v6624
    %v6626 = vmul.f32 %v6598, 1.442695
    %v6627 = vpow.pop %v6626
    %v6628 = vmul.f32 %v6599, 1.442695
    %v6629 = vpow.pop %v6628
    %v6630 = vmul.f32 %v6600, 1.442695
    %v6631 = vpow.pop %v6630
    %v6632 = vmul.f32 %v6601, 1.442695
    %v6633 = vpow.pop %v6632
    %v6634 = vadd.f32 %v6603, 1.0
    %v6635 = vadd.f32 %v6605, 1.0
    %v6636 = vadd.f32 %v6607, 1.0
    %v6637 = vadd.f32 %v6609, 1.0
    %v6638 = vadd.f32 %v6611, 1.0
    %v6639 = vadd.f32 %v6613, 1.0
    %v6640 = vadd.f32 %v6615, 1.0
    %v6641 = vadd.f32 %v6617, 1.0
    %v6642 = vadd.f32 %v6619, 1.0
    %v6643 = vadd.f32 %v6621, 1.0
    %v6644 = vadd.f32 %v6623, 1.0
    %v6645 = vadd.f32 %v6625, 1.0
    %v6646 = vadd.f32 %v6627, 1.0
    %v6647 = vadd.f32 %v6629, 1.0
    %v6648 = vadd.f32 %v6631, 1.0
    %v6649 = vadd.f32 %v6633, 1.0
    %v6650 = vrcp.pop %v6634
    %v6651 = vmul.f32 1.0, %v6650
    %v6652 = vrcp.pop %v6635
    %v6653 = vmul.f32 1.0, %v6652
    %v6654 = vrcp.pop %v6636
    %v6655 = vmul.f32 1.0, %v6654
    %v6656 = vrcp.pop %v6637
    %v6657 = vmul.f32 1.0, %v6656
    %v6658 = vrcp.pop %v6638
    %v6659 = vmul.f32 1.0, %v6658
    %v6660 = vrcp.pop %v6639
    %v6661 = vmul.f32 1.0, %v6660
    %v6662 = vrcp.pop %v6640
    %v6663 = vmul.f32 1.0, %v6662
    %v6664 = vrcp.pop %v6641
    %v6665 = vmul.f32 1.0, %v6664
    %v6666 = vrcp.pop %v6642
    %v6667 = vmul.f32 1.0, %v6666
    %v6668 = vrcp.pop %v6643
    %v6669 = vmul.f32 1.0, %v6668
    %v6670 = vrcp.pop %v6644
    %v6671 = vmul.f32 1.0, %v6670
    %v6672 = vrcp.pop %v6645
    %v6673 = vmul.f32 1.0, %v6672
    %v6674 = vrcp.pop %v6646
    %v6675 = vmul.f32 1.0, %v6674
    %v6676 = vrcp.pop %v6647
    %v6677 = vmul.f32 1.0, %v6676
    %v6678 = vrcp.pop %v6648
    %v6679 = vmul.f32 1.0, %v6678
    %v6680 = vrcp.pop %v6649
    %v6681 = vmul.f32 1.0, %v6680
    %v6684 = vrot.slane %v6651, 1
    %v6685 = vrot.slane %v6667, 1
    %v6688 = vmax.f32 %v6651, %v6684
    %v6689 = vmax.f32 %v6667, %v6685
    %v6692 = vrot.slane %v6653, 1
    %v6693 = vrot.slane %v6669, 1
    %v6696 = vmax.f32 %v6653, %v6692
    %v6697 = vmax.f32 %v6669, %v6693
    %v6698 = vmax.f32 %v6688, %v6696
    %v6699 = vmax.f32 %v6689, %v6697
    %v6700 = vpack.c.bf16 %v6698, %v6698
    %v6701 = vpack.c.bf16 %v6699, %v6699
    %v6702 = vld [vmem:[%s5] sm:$0xf]
    %v6703 = vld [vmem:[%s5 + $0x4] sm:$0xf]
    %s6704 = scalar_lea.vmem %s5, 8
    %v6705 = vld [vmem:[%s6704] sm:$0xf]
    %v6706 = vld [vmem:[%s6704 + $0x4] sm:$0xf]
    %v6709 = vunpack.c.l.b16 %v6700
    %v6710 = vunpack.c.l.b16 %v6701
    %v6711 = vrot.slane %v6709, 2
    %v6712 = vrot.slane %v6710, 1
    %vm6713 = vcmask 1041409
    %v6714 = vsel %vm6713, %v6712, %v6711
    %v6715 = vpack.c.b16 %v6714, %v6714
    %v6718 = vunpack.c.l.b16 %v6705
    %v6719 = vunpack.c.l.b16 %v6706
    %v6720 = vpack.c.b16 %v6719, %v6718
    %vm6722 = vcmask 130048
    %v6724 = vsel %vm6722, %v6715, 0
    %6726 = vmatprep.subr.bf16.mxu0 0
    %6727 = vmatpush1.bf16.msra.mxu0 %v6720
    %6728 = vmatprep.subr.bf16.mxu0 0
    %6729 = vmatpush1.bf16.msra.mxu0 0
    %6730 = vmatprep.subr.bf16.mxu0 0
    %6731 = vmatpush1.bf16.msra.mxu0 0
    %6732 = vmatprep.subr.bf16.mxu0 0
    %6733 = vmatpush1.bf16.msra.mxu0 0
    %6734 = vmatprep.subr.bf16.mxu0 0
    %6735 = vmatpush1.bf16.msra.mxu0 0
    %6736 = vmatprep.subr.bf16.mxu0 0
    %6737 = vmatpush1.bf16.msra.mxu0 0
    %6738 = vmatprep.subr.bf16.mxu0 0
    %6739 = vmatpush1.bf16.msra.mxu0 0
    %6740 = vmatprep.subr.bf16.mxu0 0
    %6741 = vmatpush1.bf16.msra.mxu0 0
    %6742 = vmatprep.subr.bf16.mxu0 0
    %6743 = vmatpush1.bf16.msra.mxu0 0
    %6744 = vmatprep.subr.bf16.mxu0 0
    %6745 = vmatpush1.bf16.msra.mxu0 0
    %6746 = vmatprep.subr.bf16.mxu0 0
    %6747 = vmatpush1.bf16.msra.mxu0 0
    %6748 = vmatprep.subr.bf16.mxu0 0
    %6749 = vmatpush1.bf16.msra.mxu0 0
    %6750 = vmatprep.subr.bf16.mxu0 0
    %6751 = vmatpush1.bf16.msra.mxu0 0
    %6752 = vmatprep.subr.bf16.mxu0 0
    %6753 = vmatpush1.bf16.msra.mxu0 0
    %6754 = vmatprep.subr.bf16.mxu0 0
    %6755 = vmatpush1.bf16.msra.mxu0 0
    %6756 = vmatprep.subr.bf16.mxu0 0
    %6757 = vmatpush1.bf16.msra.mxu0 0
    %6758 = vmatprep.mubr.bf16.mxu0 0
    %6759 = vmatmul.mubr.bf16.gmra.mrb[0].mxu0 %v6724
    %v6760 = vpop.f32.mrb[0].mxu0
    %v6761 = vadd.f32 0.0, %v6760
    %v6762 = vpop.f32.mrb[0].mxu0
    %v6763 = vpop.f32.mrb[0].mxu0
    %v6764 = vpop.f32.mrb[0].mxu0
    %6765 = vdwg.mxu0
    %v6766 = vrot.slane %v6710, 7
    %v6767 = vsel %vm6713, %v6766, %v6709
    %v6768 = vpack.c.b16 %v6767, %v6767
    %v6771 = vunpack.c.l.b16 %v6702
    %v6772 = vunpack.c.l.b16 %v6703
    %v6773 = vpack.c.b16 %v6772, %v6771
    %v6776 = vsel %vm6722, %v6768, 0
    %6778 = vmatprep.subr.bf16.mxu0 0
    %6779 = vmatpush1.bf16.msra.mxu0 %v6773
    %6780 = vmatprep.subr.bf16.mxu0 0
    %6781 = vmatpush1.bf16.msra.mxu0 0
    %6782 = vmatprep.subr.bf16.mxu0 0
    %6783 = vmatpush1.bf16.msra.mxu0 0
    %6784 = vmatprep.subr.bf16.mxu0 0
    %6785 = vmatpush1.bf16.msra.mxu0 0
    %6786 = vmatprep.subr.bf16.mxu0 0
    %6787 = vmatpush1.bf16.msra.mxu0 0
    %6788 = vmatprep.subr.bf16.mxu0 0
    %6789 = vmatpush1.bf16.msra.mxu0 0
    %6790 = vmatprep.subr.bf16.mxu0 0
    %6791 = vmatpush1.bf16.msra.mxu0 0
    %6792 = vmatprep.subr.bf16.mxu0 0
    %6793 = vmatpush1.bf16.msra.mxu0 0
    %6794 = vmatprep.subr.bf16.mxu0 0
    %6795 = vmatpush1.bf16.msra.mxu0 0
    %6796 = vmatprep.subr.bf16.mxu0 0
    %6797 = vmatpush1.bf16.msra.mxu0 0
    %6798 = vmatprep.subr.bf16.mxu0 0
    %6799 = vmatpush1.bf16.msra.mxu0 0
    %6800 = vmatprep.subr.bf16.mxu0 0
    %6801 = vmatpush1.bf16.msra.mxu0 0
    %6802 = vmatprep.subr.bf16.mxu0 0
    %6803 = vmatpush1.bf16.msra.mxu0 0
    %6804 = vmatprep.subr.bf16.mxu0 0
    %6805 = vmatpush1.bf16.msra.mxu0 0
    %6806 = vmatprep.subr.bf16.mxu0 0
    %6807 = vmatpush1.bf16.msra.mxu0 0
    %6808 = vmatprep.subr.bf16.mxu0 0
    %6809 = vmatpush1.bf16.msra.mxu0 0
    %6810 = vmatprep.mubr.bf16.mxu0 0
    %6811 = vmatmul.mubr.bf16.gmra.mrb[0].mxu0 %v6776
    %v6812 = vpop.f32.mrb[0].mxu0
    %v6813 = vadd.f32 %v6761, %v6812
    %v6814 = vpop.f32.mrb[0].mxu0
    %v6815 = vpop.f32.mrb[0].mxu0
    %v6816 = vpop.f32.mrb[0].mxu0
    %6817 = vdwg.mxu0
    %s6818 = scalar_lea.vmem %s5, 16
    %v6819 = vld [vmem:[%s6818] sm:$0xf]
    %v6820 = vld [vmem:[%s6818 + $0x4] sm:$0xf]
    %v6821 = vrot.slane %v6709, 4
    %v6822 = vrot.slane %v6710, 3
    %v6823 = vsel %vm6713, %v6822, %v6821
    %v6824 = vpack.c.b16 %v6823, %v6823
    %v6827 = vunpack.c.l.b16 %v6819
    %v6828 = vunpack.c.l.b16 %v6820
    %v6829 = vpack.c.b16 %v6828, %v6827
    %v6832 = vsel %vm6722, %v6824, 0
    %6834 = vmatprep.subr.bf16.mxu0 0
    %6835 = vmatpush1.bf16.msra.mxu0 %v6829
    %6836 = vmatprep.subr.bf16.mxu0 0
    %6837 = vmatpush1.bf16.msra.mxu0 0
    %6838 = vmatprep.subr.bf16.mxu0 0
    %6839 = vmatpush1.bf16.msra.mxu0 0
    %6840 = vmatprep.subr.bf16.mxu0 0
    %6841 = vmatpush1.bf16.msra.mxu0 0
    %6842 = vmatprep.subr.bf16.mxu0 0
    %6843 = vmatpush1.bf16.msra.mxu0 0
    %6844 = vmatprep.subr.bf16.mxu0 0
    %6845 = vmatpush1.bf16.msra.mxu0 0
    %6846 = vmatprep.subr.bf16.mxu0 0
    %6847 = vmatpush1.bf16.msra.mxu0 0
    %6848 = vmatprep.subr.bf16.mxu0 0
    %6849 = vmatpush1.bf16.msra.mxu0 0
    %6850 = vmatprep.subr.bf16.mxu0 0
    %6851 = vmatpush1.bf16.msra.mxu0 0
    %6852 = vmatprep.subr.bf16.mxu0 0
    %6853 = vmatpush1.bf16.msra.mxu0 0
    %6854 = vmatprep.subr.bf16.mxu0 0
    %6855 = vmatpush1.bf16.msra.mxu0 0
    %6856 = vmatprep.subr.bf16.mxu0 0
    %6857 = vmatpush1.bf16.msra.mxu0 0
    %6858 = vmatprep.subr.bf16.mxu0 0
    %6859 = vmatpush1.bf16.msra.mxu0 0
    %6860 = vmatprep.subr.bf16.mxu0 0
    %6861 = vmatpush1.bf16.msra.mxu0 0
    %6862 = vmatprep.subr.bf16.mxu0 0
    %6863 = vmatpush1.bf16.msra.mxu0 0
    %6864 = vmatprep.subr.bf16.mxu0 0
    %6865 = vmatpush1.bf16.msra.mxu0 0
    %6866 = vmatprep.mubr.bf16.mxu0 0
    %6867 = vmatmul.mubr.bf16.gmra.mrb[0].mxu0 %v6832
    %v6868 = vpop.f32.mrb[0].mxu0
    %v6869 = vadd.f32 0.0, %v6868
    %v6870 = vpop.f32.mrb[0].mxu0
    %v6871 = vpop.f32.mrb[0].mxu0
    %v6872 = vpop.f32.mrb[0].mxu0
    %6873 = vdwg.mxu0
    %v6874 = vadd.f32 %v6813, %v6869
    %s6875 = scalar_lea.vmem %s5, 24
    %v6876 = vld [vmem:[%s6875] sm:$0xf]
    %v6877 = vld [vmem:[%s6875 + $0x4] sm:$0xf]
    %v6878 = vrot.slane %v6709, 6
    %v6879 = vrot.slane %v6710, 5
    %v6880 = vsel %vm6713, %v6879, %v6878
    %v6881 = vpack.c.b16 %v6880, %v6880
    %v6884 = vunpack.c.l.b16 %v6876
    %v6885 = vunpack.c.l.b16 %v6877
    %v6886 = vpack.c.b16 %v6885, %v6884
    %v6889 = vsel %vm6722, %v6881, 0
    %6891 = vmatprep.subr.bf16.mxu0 0
    %6892 = vmatpush1.bf16.msra.mxu0 %v6886
    %6893 = vmatprep.subr.bf16.mxu0 0
    %6894 = vmatpush1.bf16.msra.mxu0 0
    %6895 = vmatprep.subr.bf16.mxu0 0
    %6896 = vmatpush1.bf16.msra.mxu0 0
    %6897 = vmatprep.subr.bf16.mxu0 0
    %6898 = vmatpush1.bf16.msra.mxu0 0
    %6899 = vmatprep.subr.bf16.mxu0 0
    %6900 = vmatpush1.bf16.msra.mxu0 0
    %6901 = vmatprep.subr.bf16.mxu0 0
    %6902 = vmatpush1.bf16.msra.mxu0 0
    %6903 = vmatprep.subr.bf16.mxu0 0
    %6904 = vmatpush1.bf16.msra.mxu0 0
    %6905 = vmatprep.subr.bf16.mxu0 0
    %6906 = vmatpush1.bf16.msra.mxu0 0
    %6907 = vmatprep.subr.bf16.mxu0 0
    %6908 = vmatpush1.bf16.msra.mxu0 0
    %6909 = vmatprep.subr.bf16.mxu0 0
    %6910 = vmatpush1.bf16.msra.mxu0 0
    %6911 = vmatprep.subr.bf16.mxu0 0
    %6912 = vmatpush1.bf16.msra.mxu0 0
    %6913 = vmatprep.subr.bf16.mxu0 0
    %6914 = vmatpush1.bf16.msra.mxu0 0
    %6915 = vmatprep.subr.bf16.mxu0 0
    %6916 = vmatpush1.bf16.msra.mxu0 0
    %6917 = vmatprep.subr.bf16.mxu0 0
    %6918 = vmatpush1.bf16.msra.mxu0 0
    %6919 = vmatprep.subr.bf16.mxu0 0
    %6920 = vmatpush1.bf16.msra.mxu0 0
    %6921 = vmatprep.subr.bf16.mxu0 0
    %6922 = vmatpush1.bf16.msra.mxu0 0
    %6923 = vmatprep.mubr.bf16.mxu0 0
    %6924 = vmatmul.mubr.bf16.gmra.mrb[0].mxu0 %v6889
    %v6925 = vpop.f32.mrb[0].mxu0
    %v6926 = vadd.f32 0.0, %v6925
    %v6927 = vpop.f32.mrb[0].mxu0
    %v6928 = vpop.f32.mrb[0].mxu0
    %v6929 = vpop.f32.mrb[0].mxu0
    %6930 = vdwg.mxu0
    %v6931 = vadd.f32 %v6874, %v6926
    %v6934 = vrot.slane %v6655, 1
    %v6935 = vrot.slane %v6671, 1
    %v6938 = vmax.f32 %v6655, %v6934
    %v6939 = vmax.f32 %v6671, %v6935
    %v6942 = vrot.slane %v6657, 1
    %v6943 = vrot.slane %v6673, 1
    %v6946 = vmax.f32 %v6657, %v6942
    %v6947 = vmax.f32 %v6673, %v6943
    %v6948 = vmax.f32 %v6938, %v6946
    %v6949 = vmax.f32 %v6939, %v6947
    %v6950 = vpack.c.bf16 %v6948, %v6948
    %v6951 = vpack.c.bf16 %v6949, %v6949
    %s6952 = scalar_lea.vmem %s5, 32
    %v6953 = vld [vmem:[%s6952] sm:$0xf]
    %v6954 = vld [vmem:[%s6952 + $0x4] sm:$0xf]
    %v6957 = vunpack.c.l.b16 %v6950
    %v6958 = vunpack.c.l.b16 %v6951
    %v6959 = vrot.slane %v6958, 7
    %v6960 = vsel %vm6713, %v6959, %v6957
    %v6961 = vpack.c.b16 %v6960, %v6960
    %v6964 = vunpack.c.l.b16 %v6953
    %v6965 = vunpack.c.l.b16 %v6954
    %v6966 = vpack.c.b16 %v6965, %v6964
    %v6969 = vsel %vm6722, %v6961, 0
    %6971 = vmatprep.subr.bf16.mxu0 0
    %6972 = vmatpush1.bf16.msra.mxu0 %v6966
    %6973 = vmatprep.subr.bf16.mxu0 0
    %6974 = vmatpush1.bf16.msra.mxu0 0
    %6975 = vmatprep.subr.bf16.mxu0 0
    %6976 = vmatpush1.bf16.msra.mxu0 0
    %6977 = vmatprep.subr.bf16.mxu0 0
    %6978 = vmatpush1.bf16.msra.mxu0 0
    %6979 = vmatprep.subr.bf16.mxu0 0
    %6980 = vmatpush1.bf16.msra.mxu0 0
    %6981 = vmatprep.subr.bf16.mxu0 0
    %6982 = vmatpush1.bf16.msra.mxu0 0
    %6983 = vmatprep.subr.bf16.mxu0 0
    %6984 = vmatpush1.bf16.msra.mxu0 0
    %6985 = vmatprep.subr.bf16.mxu0 0
    %6986 = vmatpush1.bf16.msra.mxu0 0
    %6987 = vmatprep.subr.bf16.mxu0 0
    %6988 = vmatpush1.bf16.msra.mxu0 0
    %6989 = vmatprep.subr.bf16.mxu0 0
    %6990 = vmatpush1.bf16.msra.mxu0 0
    %6991 = vmatprep.subr.bf16.mxu0 0
    %6992 = vmatpush1.bf16.msra.mxu0 0
    %6993 = vmatprep.subr.bf16.mxu0 0
    %6994 = vmatpush1.bf16.msra.mxu0 0
    %6995 = vmatprep.subr.bf16.mxu0 0
    %6996 = vmatpush1.bf16.msra.mxu0 0
    %6997 = vmatprep.subr.bf16.mxu0 0
    %6998 = vmatpush1.bf16.msra.mxu0 0
    %6999 = vmatprep.subr.bf16.mxu0 0
    %7000 = vmatpush1.bf16.msra.mxu0 0
    %7001 = vmatprep.subr.bf16.mxu0 0
    %7002 = vmatpush1.bf16.msra.mxu0 0
    %7003 = vmatprep.mubr.bf16.mxu0 0
    %7004 = vmatmul.mubr.bf16.gmra.mrb[0].mxu0 %v6969
    %v7005 = vpop.f32.mrb[0].mxu0
    %v7006 = vadd.f32 0.0, %v7005
    %v7007 = vpop.f32.mrb[0].mxu0
    %v7008 = vpop.f32.mrb[0].mxu0
    %v7009 = vpop.f32.mrb[0].mxu0
    %7010 = vdwg.mxu0
    %v7011 = vadd.f32 %v6931, %v7006
    %s7012 = scalar_lea.vmem %s5, 40
    %v7013 = vld [vmem:[%s7012] sm:$0xf]
    %v7014 = vld [vmem:[%s7012 + $0x4] sm:$0xf]
    %v7015 = vrot.slane %v6957, 2
    %v7016 = vrot.slane %v6958, 1
    %v7017 = vsel %vm6713, %v7016, %v7015
    %v7018 = vpack.c.b16 %v7017, %v7017
    %v7021 = vunpack.c.l.b16 %v7013
    %v7022 = vunpack.c.l.b16 %v7014
    %v7023 = vpack.c.b16 %v7022, %v7021
    %v7026 = vsel %vm6722, %v7018, 0
    %7028 = vmatprep.subr.bf16.mxu0 0
    %7029 = vmatpush1.bf16.msra.mxu0 %v7023
    %7030 = vmatprep.subr.bf16.mxu0 0
    %7031 = vmatpush1.bf16.msra.mxu0 0
    %7032 = vmatprep.subr.bf16.mxu0 0
    %7033 = vmatpush1.bf16.msra.mxu0 0
    %7034 = vmatprep.subr.bf16.mxu0 0
    %7035 = vmatpush1.bf16.msra.mxu0 0
    %7036 = vmatprep.subr.bf16.mxu0 0
    %7037 = vmatpush1.bf16.msra.mxu0 0
    %7038 = vmatprep.subr.bf16.mxu0 0
    %7039 = vmatpush1.bf16.msra.mxu0 0
    %7040 = vmatprep.subr.bf16.mxu0 0
    %7041 = vmatpush1.bf16.msra.mxu0 0
    %7042 = vmatprep.subr.bf16.mxu0 0
    %7043 = vmatpush1.bf16.msra.mxu0 0
    %7044 = vmatprep.subr.bf16.mxu0 0
    %7045 = vmatpush1.bf16.msra.mxu0 0
    %7046 = vmatprep.subr.bf16.mxu0 0
    %7047 = vmatpush1.bf16.msra.mxu0 0
    %7048 = vmatprep.subr.bf16.mxu0 0
    %7049 = vmatpush1.bf16.msra.mxu0 0
    %7050 = vmatprep.subr.bf16.mxu0 0
    %7051 = vmatpush1.bf16.msra.mxu0 0
    %7052 = vmatprep.subr.bf16.mxu0 0
    %7053 = vmatpush1.bf16.msra.mxu0 0
    %7054 = vmatprep.subr.bf16.mxu0 0
    %7055 = vmatpush1.bf16.msra.mxu0 0
    %7056 = vmatprep.subr.bf16.mxu0 0
    %7057 = vmatpush1.bf16.msra.mxu0 0
    %7058 = vmatprep.subr.bf16.mxu0 0
    %7059 = vmatpush1.bf16.msra.mxu0 0
    %7060 = vmatprep.mubr.bf16.mxu0 0
    %7061 = vmatmul.mubr.bf16.gmra.mrb[0].mxu0 %v7026
    %v7062 = vpop.f32.mrb[0].mxu0
    %v7063 = vadd.f32 0.0, %v7062
    %v7064 = vpop.f32.mrb[0].mxu0
    %v7065 = vpop.f32.mrb[0].mxu0
    %v7066 = vpop.f32.mrb[0].mxu0
    %7067 = vdwg.mxu0
    %v7068 = vadd.f32 %v7011, %v7063
    %s7069 = scalar_lea.vmem %s5, 48
    %v7070 = vld [vmem:[%s7069] sm:$0xf]
    %v7071 = vld [vmem:[%s7069 + $0x4] sm:$0xf]
    %v7072 = vrot.slane %v6957, 4
    %v7073 = vrot.slane %v6958, 3
    %v7074 = vsel %vm6713, %v7073, %v7072
    %v7075 = vpack.c.b16 %v7074, %v7074
    %v7078 = vunpack.c.l.b16 %v7070
    %v7079 = vunpack.c.l.b16 %v7071
    %v7080 = vpack.c.b16 %v7079, %v7078
    %v7083 = vsel %vm6722, %v7075, 0
    %7085 = vmatprep.subr.bf16.mxu0 0
    %7086 = vmatpush1.bf16.msra.mxu0 %v7080
    %7087 = vmatprep.subr.bf16.mxu0 0
    %7088 = vmatpush1.bf16.msra.mxu0 0
    %7089 = vmatprep.subr.bf16.mxu0 0
    %7090 = vmatpush1.bf16.msra.mxu0 0
    %7091 = vmatprep.subr.bf16.mxu0 0
    %7092 = vmatpush1.bf16.msra.mxu0 0
    %7093 = vmatprep.subr.bf16.mxu0 0
    %7094 = vmatpush1.bf16.msra.mxu0 0
    %7095 = vmatprep.subr.bf16.mxu0 0
    %7096 = vmatpush1.bf16.msra.mxu0 0
    %7097 = vmatprep.subr.bf16.mxu0 0
    %7098 = vmatpush1.bf16.msra.mxu0 0
    %7099 = vmatprep.subr.bf16.mxu0 0
    %7100 = vmatpush1.bf16.msra.mxu0 0
    %7101 = vmatprep.subr.bf16.mxu0 0
    %7102 = vmatpush1.bf16.msra.mxu0 0
    %7103 = vmatprep.subr.bf16.mxu0 0
    %7104 = vmatpush1.bf16.msra.mxu0 0
    %7105 = vmatprep.subr.bf16.mxu0 0
    %7106 = vmatpush1.bf16.msra.mxu0 0
    %7107 = vmatprep.subr.bf16.mxu0 0
    %7108 = vmatpush1.bf16.msra.mxu0 0
    %7109 = vmatprep.subr.bf16.mxu0 0
    %7110 = vmatpush1.bf16.msra.mxu0 0
    %7111 = vmatprep.subr.bf16.mxu0 0
    %7112 = vmatpush1.bf16.msra.mxu0 0
    %7113 = vmatprep.subr.bf16.mxu0 0
    %7114 = vmatpush1.bf16.msra.mxu0 0
    %7115 = vmatprep.subr.bf16.mxu0 0
    %7116 = vmatpush1.bf16.msra.mxu0 0
    %7117 = vmatprep.mubr.bf16.mxu0 0
    %7118 = vmatmul.mubr.bf16.gmra.mrb[0].mxu0 %v7083
    %v7119 = vpop.f32.mrb[0].mxu0
    %v7120 = vadd.f32 0.0, %v7119
    %v7121 = vpop.f32.mrb[0].mxu0
    %v7122 = vpop.f32.mrb[0].mxu0
    %v7123 = vpop.f32.mrb[0].mxu0
    %7124 = vdwg.mxu0
    %v7125 = vadd.f32 %v7068, %v7120
    %s7126 = scalar_lea.vmem %s5, 56
    %v7127 = vld [vmem:[%s7126] sm:$0xf]
    %v7128 = vld [vmem:[%s7126 + $0x4] sm:$0xf]
    %v7129 = vrot.slane %v6957, 6
    %v7130 = vrot.slane %v6958, 5
    %v7131 = vsel %vm6713, %v7130, %v7129
    %v7132 = vpack.c.b16 %v7131, %v7131
    %v7135 = vunpack.c.l.b16 %v7127
    %v7136 = vunpack.c.l.b16 %v7128
    %v7137 = vpack.c.b16 %v7136, %v7135
    %v7140 = vsel %vm6722, %v7132, 0
    %7142 = vmatprep.subr.bf16.mxu0 0
    %7143 = vmatpush1.bf16.msra.mxu0 %v7137
    %7144 = vmatprep.subr.bf16.mxu0 0
    %7145 = vmatpush1.bf16.msra.mxu0 0
    %7146 = vmatprep.subr.bf16.mxu0 0
    %7147 = vmatpush1.bf16.msra.mxu0 0
    %7148 = vmatprep.subr.bf16.mxu0 0
    %7149 = vmatpush1.bf16.msra.mxu0 0
    %7150 = vmatprep.subr.bf16.mxu0 0
    %7151 = vmatpush1.bf16.msra.mxu0 0
    %7152 = vmatprep.subr.bf16.mxu0 0
    %7153 = vmatpush1.bf16.msra.mxu0 0
    %7154 = vmatprep.subr.bf16.mxu0 0
    %7155 = vmatpush1.bf16.msra.mxu0 0
    %7156 = vmatprep.subr.bf16.mxu0 0
    %7157 = vmatpush1.bf16.msra.mxu0 0
    %7158 = vmatprep.subr.bf16.mxu0 0
    %7159 = vmatpush1.bf16.msra.mxu0 0
    %7160 = vmatprep.subr.bf16.mxu0 0
    %7161 = vmatpush1.bf16.msra.mxu0 0
    %7162 = vmatprep.subr.bf16.mxu0 0
    %7163 = vmatpush1.bf16.msra.mxu0 0
    %7164 = vmatprep.subr.bf16.mxu0 0
    %7165 = vmatpush1.bf16.msra.mxu0 0
    %7166 = vmatprep.subr.bf16.mxu0 0
    %7167 = vmatpush1.bf16.msra.mxu0 0
    %7168 = vmatprep.subr.bf16.mxu0 0
    %7169 = vmatpush1.bf16.msra.mxu0 0
    %7170 = vmatprep.subr.bf16.mxu0 0
    %7171 = vmatpush1.bf16.msra.mxu0 0
    %7172 = vmatprep.subr.bf16.mxu0 0
    %7173 = vmatpush1.bf16.msra.mxu0 0
    %7174 = vmatprep.mubr.bf16.mxu0 0
    %7175 = vmatmul.mubr.bf16.gmra.mrb[0].mxu0 %v7140
    %v7176 = vpop.f32.mrb[0].mxu0
    %v7177 = vadd.f32 0.0, %v7176
    %v7178 = vpop.f32.mrb[0].mxu0
    %v7179 = vpop.f32.mrb[0].mxu0
    %v7180 = vpop.f32.mrb[0].mxu0
    %7181 = vdwg.mxu0
    %v7182 = vadd.f32 %v7125, %v7177
    %v7185 = vrot.slane %v6659, 1
    %v7186 = vrot.slane %v6675, 1
    %v7189 = vmax.f32 %v6659, %v7185
    %v7190 = vmax.f32 %v6675, %v7186
    %v7193 = vrot.slane %v6661, 1
    %v7194 = vrot.slane %v6677, 1
    %v7197 = vmax.f32 %v6661, %v7193
    %v7198 = vmax.f32 %v6677, %v7194
    %v7199 = vmax.f32 %v7189, %v7197
    %v7200 = vmax.f32 %v7190, %v7198
    %v7201 = vpack.c.bf16 %v7199, %v7199
    %v7202 = vpack.c.bf16 %v7200, %v7200
    %s7203 = scalar_lea.vmem %s5, 64
    %v7204 = vld [vmem:[%s7203] sm:$0xf]
    %v7205 = vld [vmem:[%s7203 + $0x4] sm:$0xf]
    %v7208 = vunpack.c.l.b16 %v7201
    %v7209 = vunpack.c.l.b16 %v7202
    %v7210 = vrot.slane %v7209, 7
    %v7211 = vsel %vm6713, %v7210, %v7208
    %v7212 = vpack.c.b16 %v7211, %v7211
    %v7215 = vunpack.c.l.b16 %v7204
    %v7216 = vunpack.c.l.b16 %v7205
    %v7217 = vpack.c.b16 %v7216, %v7215
    %v7220 = vsel %vm6722, %v7212, 0
    %7222 = vmatprep.subr.bf16.mxu0 0
    %7223 = vmatpush1.bf16.msra.mxu0 %v7217
    %7224 = vmatprep.subr.bf16.mxu0 0
    %7225 = vmatpush1.bf16.msra.mxu0 0
    %7226 = vmatprep.subr.bf16.mxu0 0
    %7227 = vmatpush1.bf16.msra.mxu0 0
    %7228 = vmatprep.subr.bf16.mxu0 0
    %7229 = vmatpush1.bf16.msra.mxu0 0
    %7230 = vmatprep.subr.bf16.mxu0 0
    %7231 = vmatpush1.bf16.msra.mxu0 0
    %7232 = vmatprep.subr.bf16.mxu0 0
    %7233 = vmatpush1.bf16.msra.mxu0 0
    %7234 = vmatprep.subr.bf16.mxu0 0
    %7235 = vmatpush1.bf16.msra.mxu0 0
    %7236 = vmatprep.subr.bf16.mxu0 0
    %7237 = vmatpush1.bf16.msra.mxu0 0
    %7238 = vmatprep.subr.bf16.mxu0 0
    %7239 = vmatpush1.bf16.msra.mxu0 0
    %7240 = vmatprep.subr.bf16.mxu0 0
    %7241 = vmatpush1.bf16.msra.mxu0 0
    %7242 = vmatprep.subr.bf16.mxu0 0
    %7243 = vmatpush1.bf16.msra.mxu0 0
    %7244 = vmatprep.subr.bf16.mxu0 0
    %7245 = vmatpush1.bf16.msra.mxu0 0
    %7246 = vmatprep.subr.bf16.mxu0 0
    %7247 = vmatpush1.bf16.msra.mxu0 0
    %7248 = vmatprep.subr.bf16.mxu0 0
    %7249 = vmatpush1.bf16.msra.mxu0 0
    %7250 = vmatprep.subr.bf16.mxu0 0
    %7251 = vmatpush1.bf16.msra.mxu0 0
    %7252 = vmatprep.subr.bf16.mxu0 0
    %7253 = vmatpush1.bf16.msra.mxu0 0
    %7254 = vmatprep.mubr.bf16.mxu0 0
    %7255 = vmatmul.mubr.bf16.gmra.mrb[0].mxu0 %v7220
    %v7256 = vpop.f32.mrb[0].mxu0
    %v7257 = vadd.f32 0.0, %v7256
    %v7258 = vpop.f32.mrb[0].mxu0
    %v7259 = vpop.f32.mrb[0].mxu0
    %v7260 = vpop.f32.mrb[0].mxu0
    %7261 = vdwg.mxu0
    %v7262 = vadd.f32 %v7182, %v7257
    %s7263 = scalar_lea.vmem %s5, 72
    %v7264 = vld [vmem:[%s7263] sm:$0xf]
    %v7265 = vld [vmem:[%s7263 + $0x4] sm:$0xf]
    %v7266 = vrot.slane %v7208, 2
    %v7267 = vrot.slane %v7209, 1
    %v7268 = vsel %vm6713, %v7267, %v7266
    %v7269 = vpack.c.b16 %v7268, %v7268
    %v7272 = vunpack.c.l.b16 %v7264
    %v7273 = vunpack.c.l.b16 %v7265
    %v7274 = vpack.c.b16 %v7273, %v7272
    %v7277 = vsel %vm6722, %v7269, 0
    %7279 = vmatprep.subr.bf16.mxu0 0
    %7280 = vmatpush1.bf16.msra.mxu0 %v7274
    %7281 = vmatprep.subr.bf16.mxu0 0
    %7282 = vmatpush1.bf16.msra.mxu0 0
    %7283 = vmatprep.subr.bf16.mxu0 0
    %7284 = vmatpush1.bf16.msra.mxu0 0
    %7285 = vmatprep.subr.bf16.mxu0 0
    %7286 = vmatpush1.bf16.msra.mxu0 0
    %7287 = vmatprep.subr.bf16.mxu0 0
    %7288 = vmatpush1.bf16.msra.mxu0 0
    %7289 = vmatprep.subr.bf16.mxu0 0
    %7290 = vmatpush1.bf16.msra.mxu0 0
    %7291 = vmatprep.subr.bf16.mxu0 0
    %7292 = vmatpush1.bf16.msra.mxu0 0
    %7293 = vmatprep.subr.bf16.mxu0 0
    %7294 = vmatpush1.bf16.msra.mxu0 0
    %7295 = vmatprep.subr.bf16.mxu0 0
    %7296 = vmatpush1.bf16.msra.mxu0 0
    %7297 = vmatprep.subr.bf16.mxu0 0
    %7298 = vmatpush1.bf16.msra.mxu0 0
    %7299 = vmatprep.subr.bf16.mxu0 0
    %7300 = vmatpush1.bf16.msra.mxu0 0
    %7301 = vmatprep.subr.bf16.mxu0 0
    %7302 = vmatpush1.bf16.msra.mxu0 0
    %7303 = vmatprep.subr.bf16.mxu0 0
    %7304 = vmatpush1.bf16.msra.mxu0 0
    %7305 = vmatprep.subr.bf16.mxu0 0
    %7306 = vmatpush1.bf16.msra.mxu0 0
    %7307 = vmatprep.subr.bf16.mxu0 0
    %7308 = vmatpush1.bf16.msra.mxu0 0
    %7309 = vmatprep.subr.bf16.mxu0 0
    %7310 = vmatpush1.bf16.msra.mxu0 0
    %7311 = vmatprep.mubr.bf16.mxu0 0
    %7312 = vmatmul.mubr.bf16.gmra.mrb[0].mxu0 %v7277
    %v7313 = vpop.f32.mrb[0].mxu0
    %v7314 = vadd.f32 0.0, %v7313
    %v7315 = vpop.f32.mrb[0].mxu0
    %v7316 = vpop.f32.mrb[0].mxu0
    %v7317 = vpop.f32.mrb[0].mxu0
    %7318 = vdwg.mxu0
    %v7319 = vadd.f32 %v7262, %v7314
    %s7320 = scalar_lea.vmem %s5, 80
    %v7321 = vld [vmem:[%s7320] sm:$0xf]
    %v7322 = vld [vmem:[%s7320 + $0x4] sm:$0xf]
    %v7323 = vrot.slane %v7208, 4
    %v7324 = vrot.slane %v7209, 3
    %v7325 = vsel %vm6713, %v7324, %v7323
    %v7326 = vpack.c.b16 %v7325, %v7325
    %v7329 = vunpack.c.l.b16 %v7321
    %v7330 = vunpack.c.l.b16 %v7322
    %v7331 = vpack.c.b16 %v7330, %v7329
    %v7334 = vsel %vm6722, %v7326, 0
    %7336 = vmatprep.subr.bf16.mxu0 0
    %7337 = vmatpush1.bf16.msra.mxu0 %v7331
    %7338 = vmatprep.subr.bf16.mxu0 0
    %7339 = vmatpush1.bf16.msra.mxu0 0
    %7340 = vmatprep.subr.bf16.mxu0 0
    %7341 = vmatpush1.bf16.msra.mxu0 0
    %7342 = vmatprep.subr.bf16.mxu0 0
    %7343 = vmatpush1.bf16.msra.mxu0 0
    %7344 = vmatprep.subr.bf16.mxu0 0
    %7345 = vmatpush1.bf16.msra.mxu0 0
    %7346 = vmatprep.subr.bf16.mxu0 0
    %7347 = vmatpush1.bf16.msra.mxu0 0
    %7348 = vmatprep.subr.bf16.mxu0 0
    %7349 = vmatpush1.bf16.msra.mxu0 0
    %7350 = vmatprep.subr.bf16.mxu0 0
    %7351 = vmatpush1.bf16.msra.mxu0 0
    %7352 = vmatprep.subr.bf16.mxu0 0
    %7353 = vmatpush1.bf16.msra.mxu0 0
    %7354 = vmatprep.subr.bf16.mxu0 0
    %7355 = vmatpush1.bf16.msra.mxu0 0
    %7356 = vmatprep.subr.bf16.mxu0 0
    %7357 = vmatpush1.bf16.msra.mxu0 0
    %7358 = vmatprep.subr.bf16.mxu0 0
    %7359 = vmatpush1.bf16.msra.mxu0 0
    %7360 = vmatprep.subr.bf16.mxu0 0
    %7361 = vmatpush1.bf16.msra.mxu0 0
    %7362 = vmatprep.subr.bf16.mxu0 0
    %7363 = vmatpush1.bf16.msra.mxu0 0
    %7364 = vmatprep.subr.bf16.mxu0 0
    %7365 = vmatpush1.bf16.msra.mxu0 0
    %7366 = vmatprep.subr.bf16.mxu0 0
    %7367 = vmatpush1.bf16.msra.mxu0 0
    %7368 = vmatprep.mubr.bf16.mxu0 0
    %7369 = vmatmul.mubr.bf16.gmra.mrb[0].mxu0 %v7334
    %v7370 = vpop.f32.mrb[0].mxu0
    %v7371 = vadd.f32 0.0, %v7370
    %v7372 = vpop.f32.mrb[0].mxu0
    %v7373 = vpop.f32.mrb[0].mxu0
    %v7374 = vpop.f32.mrb[0].mxu0
    %7375 = vdwg.mxu0
    %v7376 = vadd.f32 %v7319, %v7371
    %s7377 = scalar_lea.vmem %s5, 88
    %v7378 = vld [vmem:[%s7377] sm:$0xf]
    %v7379 = vld [vmem:[%s7377 + $0x4] sm:$0xf]
    %v7380 = vrot.slane %v7208, 6
    %v7381 = vrot.slane %v7209, 5
    %v7382 = vsel %vm6713, %v7381, %v7380
    %v7383 = vpack.c.b16 %v7382, %v7382
    %v7386 = vunpack.c.l.b16 %v7378
    %v7387 = vunpack.c.l.b16 %v7379
    %v7388 = vpack.c.b16 %v7387, %v7386
    %v7391 = vsel %vm6722, %v7383, 0
    %7393 = vmatprep.subr.bf16.mxu0 0
    %7394 = vmatpush1.bf16.msra.mxu0 %v7388
    %7395 = vmatprep.subr.bf16.mxu0 0
    %7396 = vmatpush1.bf16.msra.mxu0 0
    %7397 = vmatprep.subr.bf16.mxu0 0
    %7398 = vmatpush1.bf16.msra.mxu0 0
    %7399 = vmatprep.subr.bf16.mxu0 0
    %7400 = vmatpush1.bf16.msra.mxu0 0
    %7401 = vmatprep.subr.bf16.mxu0 0
    %7402 = vmatpush1.bf16.msra.mxu0 0
    %7403 = vmatprep.subr.bf16.mxu0 0
    %7404 = vmatpush1.bf16.msra.mxu0 0
    %7405 = vmatprep.subr.bf16.mxu0 0
    %7406 = vmatpush1.bf16.msra.mxu0 0
    %7407 = vmatprep.subr.bf16.mxu0 0
    %7408 = vmatpush1.bf16.msra.mxu0 0
    %7409 = vmatprep.subr.bf16.mxu0 0
    %7410 = vmatpush1.bf16.msra.mxu0 0
    %7411 = vmatprep.subr.bf16.mxu0 0
    %7412 = vmatpush1.bf16.msra.mxu0 0
    %7413 = vmatprep.subr.bf16.mxu0 0
    %7414 = vmatpush1.bf16.msra.mxu0 0
    %7415 = vmatprep.subr.bf16.mxu0 0
    %7416 = vmatpush1.bf16.msra.mxu0 0
    %7417 = vmatprep.subr.bf16.mxu0 0
    %7418 = vmatpush1.bf16.msra.mxu0 0
    %7419 = vmatprep.subr.bf16.mxu0 0
    %7420 = vmatpush1.bf16.msra.mxu0 0
    %7421 = vmatprep.subr.bf16.mxu0 0
    %7422 = vmatpush1.bf16.msra.mxu0 0
    %7423 = vmatprep.subr.bf16.mxu0 0
    %7424 = vmatpush1.bf16.msra.mxu0 0
    %7425 = vmatprep.mubr.bf16.mxu0 0
    %7426 = vmatmul.mubr.bf16.gmra.mrb[0].mxu0 %v7391
    %v7427 = vpop.f32.mrb[0].mxu0
    %v7428 = vadd.f32 0.0, %v7427
    %v7429 = vpop.f32.mrb[0].mxu0
    %v7430 = vpop.f32.mrb[0].mxu0
    %v7431 = vpop.f32.mrb[0].mxu0
    %7432 = vdwg.mxu0
    %v7433 = vadd.f32 %v7376, %v7428
    %v7436 = vrot.slane %v6663, 1
    %v7437 = vrot.slane %v6679, 1
    %v7440 = vmax.f32 %v6663, %v7436
    %v7441 = vmax.f32 %v6679, %v7437
    %v7444 = vrot.slane %v6665, 1
    %v7445 = vrot.slane %v6681, 1
    %v7448 = vmax.f32 %v6665, %v7444
    %v7449 = vmax.f32 %v6681, %v7445
    %v7450 = vmax.f32 %v7440, %v7448
    %v7451 = vmax.f32 %v7441, %v7449
    %v7452 = vpack.c.bf16 %v7450, %v7450
    %v7453 = vpack.c.bf16 %v7451, %v7451
    %s7454 = scalar_lea.vmem %s5, 96
    %v7455 = vld [vmem:[%s7454] sm:$0xf]
    %v7456 = vld [vmem:[%s7454 + $0x4] sm:$0xf]
    %v7459 = vunpack.c.l.b16 %v7452
    %v7460 = vunpack.c.l.b16 %v7453
    %v7461 = vrot.slane %v7460, 7
    %v7462 = vsel %vm6713, %v7461, %v7459
    %v7463 = vpack.c.b16 %v7462, %v7462
    %v7466 = vunpack.c.l.b16 %v7455
    %v7467 = vunpack.c.l.b16 %v7456
    %v7468 = vpack.c.b16 %v7467, %v7466
    %v7471 = vsel %vm6722, %v7463, 0
    %7473 = vmatprep.subr.bf16.mxu0 0
    %7474 = vmatpush1.bf16.msra.mxu0 %v7468
    %7475 = vmatprep.subr.bf16.mxu0 0
    %7476 = vmatpush1.bf16.msra.mxu0 0
    %7477 = vmatprep.subr.bf16.mxu0 0
    %7478 = vmatpush1.bf16.msra.mxu0 0
    %7479 = vmatprep.subr.bf16.mxu0 0
    %7480 = vmatpush1.bf16.msra.mxu0 0
    %7481 = vmatprep.subr.bf16.mxu0 0
    %7482 = vmatpush1.bf16.msra.mxu0 0
    %7483 = vmatprep.subr.bf16.mxu0 0
    %7484 = vmatpush1.bf16.msra.mxu0 0
    %7485 = vmatprep.subr.bf16.mxu0 0
    %7486 = vmatpush1.bf16.msra.mxu0 0
    %7487 = vmatprep.subr.bf16.mxu0 0
    %7488 = vmatpush1.bf16.msra.mxu0 0
    %7489 = vmatprep.subr.bf16.mxu0 0
    %7490 = vmatpush1.bf16.msra.mxu0 0
    %7491 = vmatprep.subr.bf16.mxu0 0
    %7492 = vmatpush1.bf16.msra.mxu0 0
    %7493 = vmatprep.subr.bf16.mxu0 0
    %7494 = vmatpush1.bf16.msra.mxu0 0
    %7495 = vmatprep.subr.bf16.mxu0 0
    %7496 = vmatpush1.bf16.msra.mxu0 0
    %7497 = vmatprep.subr.bf16.mxu0 0
    %7498 = vmatpush1.bf16.msra.mxu0 0
    %7499 = vmatprep.subr.bf16.mxu0 0
    %7500 = vmatpush1.bf16.msra.mxu0 0
    %7501 = vmatprep.subr.bf16.mxu0 0
    %7502 = vmatpush1.bf16.msra.mxu0 0
    %7503 = vmatprep.subr.bf16.mxu0 0
    %7504 = vmatpush1.bf16.msra.mxu0 0
    %7505 = vmatprep.mubr.bf16.mxu0 0
    %7506 = vmatmul.mubr.bf16.gmra.mrb[0].mxu0 %v7471
    %v7507 = vpop.f32.mrb[0].mxu0
    %v7508 = vadd.f32 0.0, %v7507
    %v7509 = vpop.f32.mrb[0].mxu0
    %v7510 = vpop.f32.mrb[0].mxu0
    %v7511 = vpop.f32.mrb[0].mxu0
    %7512 = vdwg.mxu0
    %v7513 = vadd.f32 %v7433, %v7508
    %s7514 = scalar_lea.vmem %s5, 104
    %v7515 = vld [vmem:[%s7514] sm:$0xf]
    %v7516 = vld [vmem:[%s7514 + $0x4] sm:$0xf]
    %v7517 = vrot.slane %v7459, 2
    %v7518 = vrot.slane %v7460, 1
    %v7519 = vsel %vm6713, %v7518, %v7517
    %v7520 = vpack.c.b16 %v7519, %v7519
    %v7523 = vunpack.c.l.b16 %v7515
    %v7524 = vunpack.c.l.b16 %v7516
    %v7525 = vpack.c.b16 %v7524, %v7523
    %v7528 = vsel %vm6722, %v7520, 0
    %7530 = vmatprep.subr.bf16.mxu0 0
    %7531 = vmatpush1.bf16.msra.mxu0 %v7525
    %7532 = vmatprep.subr.bf16.mxu0 0
    %7533 = vmatpush1.bf16.msra.mxu0 0
    %7534 = vmatprep.subr.bf16.mxu0 0
    %7535 = vmatpush1.bf16.msra.mxu0 0
    %7536 = vmatprep.subr.bf16.mxu0 0
    %7537 = vmatpush1.bf16.msra.mxu0 0
    %7538 = vmatprep.subr.bf16.mxu0 0
    %7539 = vmatpush1.bf16.msra.mxu0 0
    %7540 = vmatprep.subr.bf16.mxu0 0
    %7541 = vmatpush1.bf16.msra.mxu0 0
    %7542 = vmatprep.subr.bf16.mxu0 0
    %7543 = vmatpush1.bf16.msra.mxu0 0
    %7544 = vmatprep.subr.bf16.mxu0 0
    %7545 = vmatpush1.bf16.msra.mxu0 0
    %7546 = vmatprep.subr.bf16.mxu0 0
    %7547 = vmatpush1.bf16.msra.mxu0 0
    %7548 = vmatprep.subr.bf16.mxu0 0
    %7549 = vmatpush1.bf16.msra.mxu0 0
    %7550 = vmatprep.subr.bf16.mxu0 0
    %7551 = vmatpush1.bf16.msra.mxu0 0
    %7552 = vmatprep.subr.bf16.mxu0 0
    %7553 = vmatpush1.bf16.msra.mxu0 0
    %7554 = vmatprep.subr.bf16.mxu0 0
    %7555 = vmatpush1.bf16.msra.mxu0 0
    %7556 = vmatprep.subr.bf16.mxu0 0
    %7557 = vmatpush1.bf16.msra.mxu0 0
    %7558 = vmatprep.subr.bf16.mxu0 0
    %7559 = vmatpush1.bf16.msra.mxu0 0
    %7560 = vmatprep.subr.bf16.mxu0 0
    %7561 = vmatpush1.bf16.msra.mxu0 0
    %7562 = vmatprep.mubr.bf16.mxu0 0
    %7563 = vmatmul.mubr.bf16.gmra.mrb[0].mxu0 %v7528
    %v7564 = vpop.f32.mrb[0].mxu0
    %v7565 = vadd.f32 0.0, %v7564
    %v7566 = vpop.f32.mrb[0].mxu0
    %v7567 = vpop.f32.mrb[0].mxu0
    %v7568 = vpop.f32.mrb[0].mxu0
    %7569 = vdwg.mxu0
    %v7570 = vadd.f32 %v7513, %v7565
    %s7571 = scalar_lea.vmem %s5, 112
    %v7572 = vld [vmem:[%s7571] sm:$0xf]
    %v7573 = vld [vmem:[%s7571 + $0x4] sm:$0xf]
    %v7574 = vrot.slane %v7459, 4
    %v7575 = vrot.slane %v7460, 3
    %v7576 = vsel %vm6713, %v7575, %v7574
    %v7577 = vpack.c.b16 %v7576, %v7576
    %v7580 = vunpack.c.l.b16 %v7572
    %v7581 = vunpack.c.l.b16 %v7573
    %v7582 = vpack.c.b16 %v7581, %v7580
    %v7585 = vsel %vm6722, %v7577, 0
    %7587 = vmatprep.subr.bf16.mxu0 0
    %7588 = vmatpush1.bf16.msra.mxu0 %v7582
    %7589 = vmatprep.subr.bf16.mxu0 0
    %7590 = vmatpush1.bf16.msra.mxu0 0
    %7591 = vmatprep.subr.bf16.mxu0 0
    %7592 = vmatpush1.bf16.msra.mxu0 0
    %7593 = vmatprep.subr.bf16.mxu0 0
    %7594 = vmatpush1.bf16.msra.mxu0 0
    %7595 = vmatprep.subr.bf16.mxu0 0
    %7596 = vmatpush1.bf16.msra.mxu0 0
    %7597 = vmatprep.subr.bf16.mxu0 0
    %7598 = vmatpush1.bf16.msra.mxu0 0
    %7599 = vmatprep.subr.bf16.mxu0 0
    %7600 = vmatpush1.bf16.msra.mxu0 0
    %7601 = vmatprep.subr.bf16.mxu0 0
    %7602 = vmatpush1.bf16.msra.mxu0 0
    %7603 = vmatprep.subr.bf16.mxu0 0
    %7604 = vmatpush1.bf16.msra.mxu0 0
    %7605 = vmatprep.subr.bf16.mxu0 0
    %7606 = vmatpush1.bf16.msra.mxu0 0
    %7607 = vmatprep.subr.bf16.mxu0 0
    %7608 = vmatpush1.bf16.msra.mxu0 0
    %7609 = vmatprep.subr.bf16.mxu0 0
    %7610 = vmatpush1.bf16.msra.mxu0 0
    %7611 = vmatprep.subr.bf16.mxu0 0
    %7612 = vmatpush1.bf16.msra.mxu0 0
    %7613 = vmatprep.subr.bf16.mxu0 0
    %7614 = vmatpush1.bf16.msra.mxu0 0
    %7615 = vmatprep.subr.bf16.mxu0 0
    %7616 = vmatpush1.bf16.msra.mxu0 0
    %7617 = vmatprep.subr.bf16.mxu0 0
    %7618 = vmatpush1.bf16.msra.mxu0 0
    %7619 = vmatprep.mubr.bf16.mxu0 0
    %7620 = vmatmul.mubr.bf16.gmra.mrb[0].mxu0 %v7585
    %v7621 = vpop.f32.mrb[0].mxu0
    %v7622 = vadd.f32 0.0, %v7621
    %v7623 = vpop.f32.mrb[0].mxu0
    %v7624 = vpop.f32.mrb[0].mxu0
    %v7625 = vpop.f32.mrb[0].mxu0
    %7626 = vdwg.mxu0
    %v7627 = vadd.f32 %v7570, %v7622
    %s7628 = scalar_lea.vmem %s5, 120
    %v7629 = vld [vmem:[%s7628] sm:$0xf]
    %v7630 = vld [vmem:[%s7628 + $0x4] sm:$0xf]
    %v7631 = vrot.slane %v7459, 6
    %v7632 = vrot.slane %v7460, 5
    %v7633 = vsel %vm6713, %v7632, %v7631
    %v7634 = vpack.c.b16 %v7633, %v7633
    %v7637 = vunpack.c.l.b16 %v7629
    %v7638 = vunpack.c.l.b16 %v7630
    %v7639 = vpack.c.b16 %v7638, %v7637
    %v7642 = vsel %vm6722, %v7634, 0
    %7644 = vmatprep.subr.bf16.mxu0 0
    %7645 = vmatpush1.bf16.msra.mxu0 %v7639
    %7646 = vmatprep.subr.bf16.mxu0 0
    %7647 = vmatpush1.bf16.msra.mxu0 0
    %7648 = vmatprep.subr.bf16.mxu0 0
    %7649 = vmatpush1.bf16.msra.mxu0 0
    %7650 = vmatprep.subr.bf16.mxu0 0
    %7651 = vmatpush1.bf16.msra.mxu0 0
    %7652 = vmatprep.subr.bf16.mxu0 0
    %7653 = vmatpush1.bf16.msra.mxu0 0
    %7654 = vmatprep.subr.bf16.mxu0 0
    %7655 = vmatpush1.bf16.msra.mxu0 0
    %7656 = vmatprep.subr.bf16.mxu0 0
    %7657 = vmatpush1.bf16.msra.mxu0 0
    %7658 = vmatprep.subr.bf16.mxu0 0
    %7659 = vmatpush1.bf16.msra.mxu0 0
    %7660 = vmatprep.subr.bf16.mxu0 0
    %7661 = vmatpush1.bf16.msra.mxu0 0
    %7662 = vmatprep.subr.bf16.mxu0 0
    %7663 = vmatpush1.bf16.msra.mxu0 0
    %7664 = vmatprep.subr.bf16.mxu0 0
    %7665 = vmatpush1.bf16.msra.mxu0 0
    %7666 = vmatprep.subr.bf16.mxu0 0
    %7667 = vmatpush1.bf16.msra.mxu0 0
    %7668 = vmatprep.subr.bf16.mxu0 0
    %7669 = vmatpush1.bf16.msra.mxu0 0
    %7670 = vmatprep.subr.bf16.mxu0 0
    %7671 = vmatpush1.bf16.msra.mxu0 0
    %7672 = vmatprep.subr.bf16.mxu0 0
    %7673 = vmatpush1.bf16.msra.mxu0 0
    %7674 = vmatprep.subr.bf16.mxu0 0
    %7675 = vmatpush1.bf16.msra.mxu0 0
    %7676 = vmatprep.mubr.bf16.mxu0 0
    %7677 = vmatmul.mubr.bf16.gmra.mrb[0].mxu0 %v7642
    %v7678 = vpop.f32.mrb[0].mxu0
    %v7679 = vadd.f32 0.0, %v7678
    %v7680 = vpop.f32.mrb[0].mxu0
    %v7681 = vpop.f32.mrb[0].mxu0
    %v7682 = vpop.f32.mrb[0].mxu0
    %7683 = vdwg.mxu0
    %v7684 = vadd.f32 %v7627, %v7679
    %v7685 = vld [vmem:[%s6] sm:$0x1]
    %v7687 = vlaneseq
    %v7688 = vshrl.u32 %v7687, 7
    %v7689 = vsub.s32 0, %v7688
    %v7690 = vrot.slane %v7685, %v7689
    %v7692 = vadd.f32 %v7684, %v7690
    %v7693 = vxor.u32 %v7692, 2147483648
    %v7694 = vmul.f32 %v7693, 1.442695
    %v7695 = vpow.pop %v7694
    %v7696 = vadd.f32 %v7695, 1.0
    %v7697 = vrcp.pop %v7696
    %v7698 = vmul.f32 1.0, %v7697
    %v7699 = vpack.c.bf16 %v7698, %v7698
    %v7700 = vld [vmem:[%s7] sm:$0xf]
    %v7701 = vld [vmem:[%s7 + $0x4] sm:$0xf]
    %v7702 = vld [vmem:[%s7 + $0x8] sm:$0xf]
    %v7703 = vld [vmem:[%s7 + $0xc] sm:$0xf]
    %v7704 = vld [vmem:[%s7 + $0x10] sm:$0xf]
    %v7705 = vld [vmem:[%s7 + $0x14] sm:$0xf]
    %v7706 = vld [vmem:[%s7 + $0x18] sm:$0xf]
    %v7707 = vld [vmem:[%s7 + $0x1c] sm:$0xf]
    %v7708 = vld [vmem:[%s7 + $0x20] sm:$0xf]
    %v7709 = vld [vmem:[%s7 + $0x24] sm:$0xf]
    %v7710 = vld [vmem:[%s7 + $0x28] sm:$0xf]
    %v7711 = vld [vmem:[%s7 + $0x2c] sm:$0xf]
    %v7712 = vld [vmem:[%s7 + $0x30] sm:$0xf]
    %v7713 = vld [vmem:[%s7 + $0x34] sm:$0xf]
    %v7714 = vld [vmem:[%s7 + $0x38] sm:$0xf]
    %v7715 = vld [vmem:[%s8] sm:$0x1]
    %v7717 = vlaneseq
    %v7718 = vshrl.u32 %v7717, 7
    %v7719 = vsub.s32 0, %v7718
    %v7720 = vrot.slane %v7715, %v7719
    %v7737 = vunpack.c.l.b16 %v7700
    %v7738 = vunpack.c.l.b16 %v7701
    %v7739 = vunpack.c.l.b16 %v7702
    %v7740 = vunpack.c.l.b16 %v7703
    %v7741 = vunpack.c.l.b16 %v7704
    %v7742 = vunpack.c.l.b16 %v7705
    %v7743 = vunpack.c.l.b16 %v7706
    %v7744 = vunpack.c.l.b16 %v7707
    %v7745 = vunpack.c.l.b16 %v7708
    %v7746 = vunpack.c.l.b16 %v7709
    %v7747 = vunpack.c.l.b16 %v7710
    %v7748 = vunpack.c.l.b16 %v7711
    %v7749 = vunpack.c.l.b16 %v7712
    %v7750 = vunpack.c.l.b16 %v7713
    %v7751 = vunpack.c.l.b16 %v7714
    %v7752 = vpack.c.b16 %v7738, %v7737
    %v7753 = vpack.c.b16 %v7740, %v7739
    %v7754 = vpack.c.b16 %v7742, %v7741
    %v7755 = vpack.c.b16 %v7744, %v7743
    %v7756 = vpack.c.b16 %v7746, %v7745
    %v7757 = vpack.c.b16 %v7748, %v7747
    %v7758 = vpack.c.b16 %v7750, %v7749
    %v7759 = vpack.c.b16 %v7751, %v7751
    %vm7767 = vcmask 982016
    %v7769 = vsel %vm7767, %v7699, 0
    %v7772 = vsel %vm783, %v7759, 0
    %7774 = vmatprep.subr.bf16.mxu0 0
    %7775 = vmatpush1.bf16.msra.mxu0 %v7752
    %7776 = vmatprep.subr.bf16.mxu0 0
    %7777 = vmatpush1.bf16.msra.mxu0 %v7753
    %7778 = vmatprep.subr.bf16.mxu0 0
    %7779 = vmatpush1.bf16.msra.mxu0 %v7754
    %7780 = vmatprep.subr.bf16.mxu0 0
    %7781 = vmatpush1.bf16.msra.mxu0 %v7755
    %7782 = vmatprep.subr.bf16.mxu0 0
    %7783 = vmatpush1.bf16.msra.mxu0 %v7756
    %7784 = vmatprep.subr.bf16.mxu0 0
    %7785 = vmatpush1.bf16.msra.mxu0 %v7757
    %7786 = vmatprep.subr.bf16.mxu0 0
    %7787 = vmatpush1.bf16.msra.mxu0 %v7758
    %7788 = vmatprep.subr.bf16.mxu0 0
    %7789 = vmatpush1.bf16.msra.mxu0 %v7772
    %7790 = vmatprep.subr.bf16.mxu0 0
    %7791 = vmatpush1.bf16.msra.mxu0 0
    %7792 = vmatprep.subr.bf16.mxu0 0
    %7793 = vmatpush1.bf16.msra.mxu0 0
    %7794 = vmatprep.subr.bf16.mxu0 0
    %7795 = vmatpush1.bf16.msra.mxu0 0
    %7796 = vmatprep.subr.bf16.mxu0 0
    %7797 = vmatpush1.bf16.msra.mxu0 0
    %7798 = vmatprep.subr.bf16.mxu0 0
    %7799 = vmatpush1.bf16.msra.mxu0 0
    %7800 = vmatprep.subr.bf16.mxu0 0
    %7801 = vmatpush1.bf16.msra.mxu0 0
    %7802 = vmatprep.subr.bf16.mxu0 0
    %7803 = vmatpush1.bf16.msra.mxu0 0
    %7804 = vmatprep.subr.bf16.mxu0 0
    %7805 = vmatpush1.bf16.msra.mxu0 0
    %7806 = vmatprep.mubr.bf16.mxu0 0
    %7807 = vmatmul.mubr.bf16.gmra.mrb[0].mxu0 %v7769
    %v7808 = vpop.f32.mrb[0].mxu0
    %v7809 = vadd.f32 %v7720, %v7808
    %v7810 = vpop.f32.mrb[0].mxu0
    %v7811 = vpop.f32.mrb[0].mxu0
    %v7812 = vpop.f32.mrb[0].mxu0
    %7813 = vdwg.mxu0
    %v7814 = vxor.u32 %v7809, 2147483648
    %v7815 = vmul.f32 %v7814, 1.442695
    %v7816 = vpow.pop %v7815
    %v7817 = vadd.f32 %v7816, 1.0
    %v7818 = vrcp.pop %v7817
    %v7819 = vmul.f32 1.0, %v7818
    %v7820 = vpack.c.bf16 %v7819, %v7819
    %v7821 = vld [vmem:[%s9] sm:$0xf]
    %v7822 = vld [vmem:[%s9 + $0x4] sm:$0xf]
    %v7823 = vld [vmem:[%s9 + $0x8] sm:$0xf]
    %v7824 = vld [vmem:[%s9 + $0xc] sm:$0xf]
    %v7825 = vld [vmem:[%s9 + $0x10] sm:$0xf]
    %v7826 = vld [vmem:[%s9 + $0x14] sm:$0xf]
    %v7827 = vld [vmem:[%s9 + $0x18] sm:$0xf]
    %v7828 = vld [vmem:[%s9 + $0x1c] sm:$0xf]
    %v7829 = vld [vmem:[%s9 + $0x20] sm:$0xf]
    %v7830 = vld [vmem:[%s9 + $0x24] sm:$0xf]
    %v7831 = vld [vmem:[%s9 + $0x28] sm:$0x3]
    %v7832 = vld [vmem:[%s10] sm:$0x1]
    %v7834 = vlaneseq
    %v7835 = vshrl.u32 %v7834, 7
    %v7836 = vsub.s32 0, %v7835
    %v7837 = vrot.slane %v7832, %v7836
    %v7850 = vunpack.c.l.b16 %v7821
    %v7851 = vunpack.c.l.b16 %v7822
    %v7852 = vunpack.c.l.b16 %v7823
    %v7853 = vunpack.c.l.b16 %v7824
    %v7854 = vunpack.c.l.b16 %v7825
    %v7855 = vunpack.c.l.b16 %v7826
    %v7856 = vunpack.c.l.b16 %v7827
    %v7857 = vunpack.c.l.b16 %v7828
    %v7858 = vunpack.c.l.b16 %v7829
    %v7859 = vunpack.c.l.b16 %v7830
    %v7860 = vunpack.c.l.b16 %v7831
    %v7861 = vpack.c.b16 %v7851, %v7850
    %v7862 = vpack.c.b16 %v7853, %v7852
    %v7863 = vpack.c.b16 %v7855, %v7854
    %v7864 = vpack.c.b16 %v7857, %v7856
    %v7865 = vpack.c.b16 %v7859, %v7858
    %v7866 = vpack.c.b16 %v7860, %v7860
    %vm7872 = vcmask 687104
    %v7874 = vsel %vm7872, %v7820, 0
    %vm7876 = vcmask 1041408
    %v7878 = vsel %vm7876, %v7866, 0
    %7880 = vmatprep.subr.bf16.mxu0 0
    %7881 = vmatpush1.bf16.msra.mxu0 %v7861
    %7882 = vmatprep.subr.bf16.mxu0 0
    %7883 = vmatpush1.bf16.msra.mxu0 %v7862
    %7884 = vmatprep.subr.bf16.mxu0 0
    %7885 = vmatpush1.bf16.msra.mxu0 %v7863
    %7886 = vmatprep.subr.bf16.mxu0 0
    %7887 = vmatpush1.bf16.msra.mxu0 %v7864
    %7888 = vmatprep.subr.bf16.mxu0 0
    %7889 = vmatpush1.bf16.msra.mxu0 %v7865
    %7890 = vmatprep.subr.bf16.mxu0 0
    %7891 = vmatpush1.bf16.msra.mxu0 %v7878
    %7892 = vmatprep.subr.bf16.mxu0 0
    %7893 = vmatpush1.bf16.msra.mxu0 0
    %7894 = vmatprep.subr.bf16.mxu0 0
    %7895 = vmatpush1.bf16.msra.mxu0 0
    %7896 = vmatprep.subr.bf16.mxu0 0
    %7897 = vmatpush1.bf16.msra.mxu0 0
    %7898 = vmatprep.subr.bf16.mxu0 0
    %7899 = vmatpush1.bf16.msra.mxu0 0
    %7900 = vmatprep.subr.bf16.mxu0 0
    %7901 = vmatpush1.bf16.msra.mxu0 0
    %7902 = vmatprep.subr.bf16.mxu0 0
    %7903 = vmatpush1.bf16.msra.mxu0 0
    %7904 = vmatprep.subr.bf16.mxu0 0
    %7905 = vmatpush1.bf16.msra.mxu0 0
    %7906 = vmatprep.subr.bf16.mxu0 0
    %7907 = vmatpush1.bf16.msra.mxu0 0
    %7908 = vmatprep.subr.bf16.mxu0 0
    %7909 = vmatpush1.bf16.msra.mxu0 0
    %7910 = vmatprep.subr.bf16.mxu0 0
    %7911 = vmatpush1.bf16.msra.mxu0 0
    %7912 = vmatprep.mubr.bf16.mxu0 0
    %7913 = vmatmul.mubr.bf16.gmra.mrb[0].mxu0 %v7874
    %v7914 = vpop.f32.mrb[0].mxu0
    %v7915 = vadd.f32 %v7837, %v7914
    %v7916 = vpop.f32.mrb[0].mxu0
    %v7917 = vpop.f32.mrb[0].mxu0
    %v7918 = vpop.f32.mrb[0].mxu0
    %7919 = vdwg.mxu0
    %vm7920 = vcmask 74752
    %7921 = vst.msk [vmem:[#allocation3] sm:$0x3] %vm7920, %v7915
    // Predicated region
    $region46: #{lenet_forward.1} parent=1 // pred_check
      _
    $region47: #{lenet_forward.1} parent=1 // pred_check_branch
      %7923 = sbr.rel (0) target = $region49
    $region48: #{lenet_forward.1} parent=1 // pred_region
      %s7925 = ssub.s32 32, 32
      %7926 = vsyncadd [#allocation4], %s7925
      %s7928 = sshll.u32 [#allocation3], 4
      %s7929 = int_to_ptr.vmem [resolvable:$true] %s7928
      %7931 = dma.vmem_to_hbm [thread:$0]  %s7929, 32, %s11, [#allocation4]
    $region49: #{lenet_forward.1} parent=1 // pred_fallthru
      _
    // Predicated region
    $region50: #{lenet_forward.1} parent=1 // pred_check
      _
    $region51: #{lenet_forward.1} parent=1 // pred_check_branch
      %7933 = sbr.rel (0) target = $region53
    $region52: #{lenet_forward.1} parent=1 // pred_region
      %7934 = dma.done [#allocation4], 32
    $region53: #{lenet_forward.1} parent=1 // pred_fallthru
      _
    %7935 = vsyncpa [#allocation4], 1

</llo_original>
